<compile_context>
chip_gen: v6e
topology: v6e:2x2x1
jax: 0.10.0
libtpu: 0.0.40
codegen_flags: <defaults>
</compile_context>

<pallas_src>
import math

import jax
import jax.numpy as jnp
from jax.experimental import pallas as pl
from jax.experimental.pallas import tpu as pltpu

# ----- model config (args) ---------------------------------------------------
D_MODEL = 32        # args.d_model
NHEAD = 4           # args.nhead
DIM_FF = 64         # args.dim_feedforward
NUM_LAYERS = 2      # args.num_en_layers
HEAD_DIM = D_MODEL // NHEAD
LN_EPS = 1e-5
NEG_INF = -1e9

# ----- packed-slab row offsets ------------------------------------------------
# attention slab block (per layer, per {self, cross}): [80, 3*D]
#   self : rows 0:32 -> w_qkv [D,3D] (wq pre-scaled); row 32 -> b_qkv;
#          rows 40:72 -> w_o (lanes 0:D); row 72 -> b_o (lanes 0:D)
#   cross: rows 0:32 / row 32 hold only wq/bq in lanes 0:D (K/V are hoisted)
_ATTN_ROWS = 80
_WO_ROW = 40
_BO_ROW = 72
# FFN slab block (per layer): [112, DIM_FF]
_FFN_ROWS = 112
_W2_ROW = 40
_B2_ROW = 40 + DIM_FF
# hoisted cross-attention K/V slab: [40, 2*L*D]  (rows 0:32 weights, row 32 bias)
_CKV_ROWS = 40
# vector slab: per layer 6 LayerNorm rows, then final-LN gamma/beta, prefix+pe0
_FLN_G_ROW = 6 * NUM_LAYERS
_FLN_B_ROW = 6 * NUM_LAYERS + 1
_PREFIX_ROW = 6 * NUM_LAYERS + 2
_VEC_ROWS = 6 * NUM_LAYERS + 4


# =============================================================================
# Pallas kernel
# =============================================================================
def _make_kernel(nb, lc, lm):
    """Kernel closure for NB sequences per grid step (lc text chunks, lm frames)."""
    t_rows = nb * lc          # text-token rows per block
    m_t = t_rows + nb         # target rows: text tokens + one prefix/CLS row per seq
    m_m = nb * lm             # memory (visual) rows per block
    D = D_MODEL

    def _ln(z, g, b):
        # fused stats: two independent XLU reductions instead of mean-then-var
        m1 = jnp.mean(z, axis=-1, keepdims=True)
        m2 = jnp.mean(z * z, axis=-1, keepdims=True)
        var = m2 - m1 * m1
        return (z - m1) * jax.lax.rsqrt(var + LN_EPS) * g + b

    def _mha_core(q, k, v, mask_add, wo, bo):
        """Multi-head attention core over flattened rows.

        Sequences stay independent via the additive block-diagonal mask, so each
        head is one wide 2-D MXU matmul.  Head outputs are accumulated through
        wo row-slices (no lane-domain concatenate).
        """
        out = bo                                     # [1, D]; broadcasts on first add
        for h in range(NHEAD):                       # static unroll
            lo, hi = h * HEAD_DIM, (h + 1) * HEAD_DIM
            logits = jax.lax.dot_general(
                q[:, lo:hi], k[:, lo:hi], (((1,), (1,)), ((), ())),
                preferred_element_type=jnp.float32) + mask_add    # [Mq, Mk]
            logits = logits - jnp.max(logits, axis=-1, keepdims=True)
            p = jnp.exp(logits)
            p = p * pl.reciprocal(jnp.sum(p, axis=-1, keepdims=True), approx=True)
            ctx_h = jnp.dot(p, v[:, lo:hi], preferred_element_type=jnp.float32)
            out = out + jnp.dot(ctx_h, wo[lo:hi, :],
                                preferred_element_type=jnp.float32)
        return out

    def _self_attn(q_in, kv_in, mask_add, blk, fused):
        wqkv = blk[0:D, :]                            # [D, 3D]
        bqkv = blk[D:D + 1, :]                        # [1, 3D]
        if fused:                                     # q_in is kv_in: one fused matmul
            qkv = jnp.dot(q_in, wqkv, preferred_element_type=jnp.float32) + bqkv
            q, k, v = qkv[:, 0:D], qkv[:, D:2 * D], qkv[:, 2 * D:3 * D]
        else:                                         # CLS-restricted query stream
            q = (jnp.dot(q_in, wqkv[:, 0:D],
                         preferred_element_type=jnp.float32) + bqkv[:, 0:D])
            kv = (jnp.dot(kv_in, wqkv[:, D:3 * D],
                          preferred_element_type=jnp.float32) + bqkv[:, D:3 * D])
            k, v = kv[:, 0:D], kv[:, D:2 * D]
        wo = blk[_WO_ROW:_WO_ROW + D, 0:D]
        bo = blk[_BO_ROW:_BO_ROW + 1, 0:D]
        return _mha_core(q, k, v, mask_add, wo, bo)

    def _cross_attn(q_in, k, v, mask_add, blk):
        # K/V come pre-projected (hoisted out of the layer loop); only Q here.
        wq = blk[0:D, 0:D]
        bq = blk[D:D + 1, 0:D]
        q = jnp.dot(q_in, wq, preferred_element_type=jnp.float32) + bq
        wo = blk[_WO_ROW:_WO_ROW + D, 0:D]
        bo = blk[_BO_ROW:_BO_ROW + 1, 0:D]
        return _mha_core(q, k, v, mask_add, wo, bo)

    def _ffn(z, blk):
        w1 = blk[0:D, :]
        b1 = blk[D:D + 1, :]
        w2 = blk[_W2_ROW:_W2_ROW + DIM_FF, 0:D]
        b2 = blk[_B2_ROW:_B2_ROW + 1, 0:D]
        h = jnp.maximum(jnp.dot(z, w1, preferred_element_type=jnp.float32) + b1, 0.0)
        return jnp.dot(h, w2, preferred_element_type=jnp.float32) + b2

    def kernel(text_ref, mem_ref, pet_ref, pem_ref,
               stc_ref, str_ref, smr_ref,
               attn_ref, ckv_ref, ffn_ref, vec_ref, out_ref):
        vec = vec_ref[...]                                           # [V, D]

        # Build target rows: nb*lc text rows (+PE) followed by nb prefix rows
        # (prefix row already carries pe[0]).  Attention is bidirectional so
        # token order inside a sequence is irrelevant; placing the prefix rows
        # last keeps the CLS slice contiguous.
        x_text = text_ref[...] + pet_ref[...]                        # [t_rows, D]
        x_pref = jnp.broadcast_to(vec[_PREFIX_ROW:_PREFIX_ROW + 1, :], (nb, D))
        x = jnp.concatenate([x_text, x_pref], axis=0)                # [m_t, D]
        mem = mem_ref[...] + pem_ref[...]                            # [m_m, D]

        # Additive block-diagonal masks built in-kernel from tiny 1-D
        # sequence-id vectors (no O(NB^2) HBM traffic / VMEM input).
        tgt_c = stc_ref[...]                                         # [m_t, 1] int32
        tgt_r = str_ref[...]                                         # [1, m_t] int32
        mem_r = smr_ref[...]                                         # [1, m_m] int32
        m_self = jnp.where(tgt_c == tgt_r, 0.0, NEG_INF).astype(jnp.float32)
        m_cross = jnp.where(tgt_c == mem_r, 0.0, NEG_INF).astype(jnp.float32)

        # Hoisted cross-attention K/V: mem never changes across layers, so one
        # matmul produces every layer's cross K and V.
        ckv_w = ckv_ref[0:D, :]                                      # [D, 2LD]
        ckv_b = ckv_ref[D:D + 1, :]                                  # [1, 2LD]
        kv_all = jnp.dot(mem, ckv_w, preferred_element_type=jnp.float32) + ckv_b

        for l in range(NUM_LAYERS):
            blk_sa = attn_ref[2 * l]                                 # [80, 3D]
            blk_ca = attn_ref[2 * l + 1]
            ffn_blk = ffn_ref[l]                                     # [112, F]
            g1, b1 = vec[6 * l + 0:6 * l + 1, :], vec[6 * l + 1:6 * l + 2, :]
            g2, b2 = vec[6 * l + 2:6 * l + 3, :], vec[6 * l + 3:6 * l + 4, :]
            g3, b3 = vec[6 * l + 4:6 * l + 5, :], vec[6 * l + 5:6 * l + 6, :]
            off = 2 * l * D
            k_ca = kv_all[:, off:off + D]
            v_ca = kv_all[:, off + D:off + 2 * D]

            if l < NUM_LAYERS - 1:
                sa = _self_attn(x, x, m_self, blk_sa, fused=True)
                x = _ln(x + sa, g1, b1)
                ca = _cross_attn(x, k_ca, v_ca, m_cross, blk_ca)
                x = _ln(x + ca, g2, b2)
                x = _ln(x + _ffn(x, ffn_blk), g3, b3)
            else:
                # Only the prefix/CLS rows feed the output: restrict the query
                # stream of the final layer to those rows (k/v still full).
                cls_c = jax.lax.broadcasted_iota(jnp.int32, (nb, 1), 0)
                m_self_cls = jnp.where(cls_c == tgt_r, 0.0, NEG_INF
                                       ).astype(jnp.float32)
                m_cross_cls = jnp.where(cls_c == mem_r, 0.0, NEG_INF
                                        ).astype(jnp.float32)
                x_cls = x[t_rows:m_t, :]                             # [nb, D]
                sa = _self_attn(x_cls, x, m_self_cls, blk_sa, fused=False)
                x_cls = _ln(x_cls + sa, g1, b1)
                ca = _cross_attn(x_cls, k_ca, v_ca, m_cross_cls, blk_ca)
                x_cls = _ln(x_cls + ca, g2, b2)
                x_cls = _ln(x_cls + _ffn(x_cls, ffn_blk), g3, b3)
                out_ref[...] = _ln(x_cls,
                                   vec[_FLN_G_ROW:_FLN_G_ROW + 1, :],
                                   vec[_FLN_B_ROW:_FLN_B_ROW + 1, :])

    return kernel


# =============================================================================
# wrapper: packing, sequence ids, block policy, pallas_call
# =============================================================================
def _pack_params(params):
    """Pack the 28 weights/biases into 4 VMEM-resident slabs."""
    scale = 1.0 / math.sqrt(HEAD_DIM)
    D = D_MODEL

    def self_block(wq, bq, wk, bk, wv, bv, wo, bo):
        wqkv = jnp.concatenate([wq * scale, wk, wv], axis=1)         # [D, 3D]
        bqkv = jnp.concatenate([bq * scale, bk, bv], axis=1)         # [1, 3D]
        blk = jnp.zeros((_ATTN_ROWS, 3 * D), jnp.float32)
        blk = blk.at[0:D, :].set(wqkv)
        blk = blk.at[D:D + 1, :].set(bqkv)
        blk = blk.at[_WO_ROW:_WO_ROW + D, 0:D].set(wo)
        blk = blk.at[_BO_ROW:_BO_ROW + 1, 0:D].set(bo)
        return blk

    def cross_block(wq, bq, wo, bo):                                  # K/V hoisted
        blk = jnp.zeros((_ATTN_ROWS, 3 * D), jnp.float32)
        blk = blk.at[0:D, 0:D].set(wq * scale)
        blk = blk.at[D:D + 1, 0:D].set(bq * scale)
        blk = blk.at[_WO_ROW:_WO_ROW + D, 0:D].set(wo)
        blk = blk.at[_BO_ROW:_BO_ROW + 1, 0:D].set(bo)
        return blk

    def ffn_block(w1, b1, w2, b2):
        blk = jnp.zeros((_FFN_ROWS, DIM_FF), jnp.float32)
        blk = blk.at[0:D, :].set(w1)
        blk = blk.at[D:D + 1, :].set(b1)
        blk = blk.at[_W2_ROW:_W2_ROW + DIM_FF, 0:D].set(w2)
        blk = blk.at[_B2_ROW:_B2_ROW + 1, 0:D].set(b2)
        return blk

    attn_blocks, ffn_blocks, vec_rows = [], [], []
    ckv = jnp.zeros((_CKV_ROWS, 2 * NUM_LAYERS * D), jnp.float32)
    for l in range(NUM_LAYERS):
        attn_blocks.append(self_block(
            params["sa_wq"][l], params["sa_bq"][l], params["sa_wk"][l],
            params["sa_bk"][l], params["sa_wv"][l], params["sa_bv"][l],
            params["sa_wo"][l], params["sa_bo"][l]))
        attn_blocks.append(cross_block(
            params["ca_wq"][l], params["ca_bq"][l],
            params["ca_wo"][l], params["ca_bo"][l]))
        off = 2 * l * D
        ckv = ckv.at[0:D, off:off + D].set(params["ca_wk"][l])
        ckv = ckv.at[0:D, off + D:off + 2 * D].set(params["ca_wv"][l])
        ckv = ckv.at[D:D + 1, off:off + D].set(params["ca_bk"][l])
        ckv = ckv.at[D:D + 1, off + D:off + 2 * D].set(params["ca_bv"][l])
        ffn_blocks.append(ffn_block(params["l1_w"][l], params["l1_b"][l],
                                    params["l2_w"][l], params["l2_b"][l]))
        for nm in ("ln1_g", "ln1_b", "ln2_g", "ln2_b", "ln3_g", "ln3_b"):
            vec_rows.append(params[nm][l, 0])
    vec_rows.append(params["fln_g"][0])
    vec_rows.append(params["fln_b"][0])
    vec_rows.append(params["prefix"] + params["pe"][0])   # prefix token carries pe[0]
    vec_rows.append(jnp.zeros((D_MODEL,), jnp.float32))
    return (jnp.stack(attn_blocks).astype(jnp.float32),   # [2L, 80, 3D]
            ckv.astype(jnp.float32),                      # [40, 2LD]
            jnp.stack(ffn_blocks).astype(jnp.float32),    # [L, 112, F]
            jnp.stack(vec_rows).astype(jnp.float32))      # [6L+4, D]


def _build_seq_ids(nb, lc, lm):
    """Tiny O(NB*L) sequence-id vectors; the O(NB^2) masks are built in-kernel."""
    seq_text = jnp.repeat(jnp.arange(nb, dtype=jnp.int32), lc)
    seq_tgt = jnp.concatenate([seq_text, jnp.arange(nb, dtype=jnp.int32)])
    seq_mem = jnp.repeat(jnp.arange(nb, dtype=jnp.int32), lm)
    return (seq_tgt.reshape(-1, 1),       # [m_t, 1] column
            seq_tgt.reshape(1, -1),       # [1, m_t] row
            seq_mem.reshape(1, -1))       # [1, m_m] row


def _num_tensorcores():
    """2 TensorCores only on v7x; v5e/v6e have one (grid is a serial loop there)."""
    try:
        kind = jax.devices()[0].device_kind.lower()
    except Exception:
        return 1
    return 2 if ("v7" in kind or "7x" in kind) else 1


def _pick_block(n, block_n, num_tc):
    """NB policy: largest block on single-TC chips; >=2 even steps on v7x."""
    n8 = max(8, pl.cdiv(n, 8) * 8)                # NB multiple of 8 (sublane tiling)
    if num_tc >= 2 and n8 >= 16:
        half = max(8, (n8 // 2) // 8 * 8)
        return min(block_n, half)
    return min(block_n, n8)


def _vmem_cap_bytes():
    try:
        return int(pltpu.get_tpu_info().vmem_capacity_bytes)
    except Exception:
        return 64 * 1024 * 1024                   # conservative (v7x per-TC physical)


def _vmem_limit_bytes(nb, lc, lm):
    """Raise the scoped VMEM limit only when the block actually needs it."""
    m_t = nb * (lc + 1)
    m_m = nb * lm
    f32 = 4
    act = 2 * 2 * (nb * lc + m_m) * D_MODEL * f32              # double-buffered text/mem
    consts = 2 * f32 * ((nb * lc + m_m) * D_MODEL              # pe tables
                        + 2 * NUM_LAYERS * _ATTN_ROWS * 3 * D_MODEL
                        + _CKV_ROWS * 2 * NUM_LAYERS * D_MODEL
                        + NUM_LAYERS * _FFN_ROWS * DIM_FF
                        + _VEC_ROWS * D_MODEL
                        + 2 * m_t + m_m)
    masks = (m_t * m_t + m_t * m_m + nb * m_t + nb * m_m) * f32
    temps = 4 * m_t * max(m_t, m_m) * f32                      # logits/exp/qkv temps
    est = act + consts + masks + temps + (1 << 20)
    if est <= 12 * (1 << 20):
        return None                                # fits under every scoped default
    return int(min(2 * est, 0.8 * _vmem_cap_bytes()))


def mm_video_encoder(text_feats, visual_feats, params, block_n=64):
    B, num_videos, num_chunks, tdim = text_feats.shape
    _, _, num_frames, vdim = visual_feats.shape
    assert tdim == D_MODEL and vdim == D_MODEL
    pe = params["pe"]
    assert num_chunks + 1 <= pe.shape[0] and num_frames <= pe.shape[0], \
        "positional-encoding table too short for this sequence length"

    n = B * num_videos
    lc, lm = num_chunks, num_frames
    nb = _pick_block(n, block_n, _num_tensorcores())
    n_pad = pl.cdiv(n, nb) * nb
    grid = n_pad // nb
    t_rows = nb * lc
    m_m = nb * lm

    text = text_feats.reshape(n, lc, D_MODEL).astype(jnp.float32)
    mem = visual_feats.reshape(n, lm, D_MODEL).astype(jnp.float32)
    if n_pad != n:
        # padded sequences attend only within their own (zero) block, then are
        # dropped by the out[:n] slice — no NaN risk (every row sees itself).
        text = jnp.pad(text, ((0, n_pad - n), (0, 0), (0, 0)))
        mem = jnp.pad(mem, ((0, n_pad - n), (0, 0), (0, 0)))
    # pure view reshapes (no prefix concat, no extra HBM round-trip)
    text_flat = text.reshape(n_pad * lc, D_MODEL)
    mem_flat = mem.reshape(n_pad * lm, D_MODEL)

    pe_text = jnp.tile(pe[1:lc + 1], (nb, 1))     # token j of every seq gets pe[j+1]
    pe_mem = jnp.tile(pe[:lm], (nb, 1))           # frame j gets pe[j]

    attn_slab, ckv_slab, ffn_slab, vec_slab = _pack_params(params)
    seq_tgt_col, seq_tgt_row, seq_mem_row = _build_seq_ids(nb, lc, lm)

    kernel = _make_kernel(nb, lc, lm)

    def _full(arr):
        r = arr.ndim
        return pl.BlockSpec(arr.shape, lambda i, r=r: (0,) * r)

    in_specs = [
        pl.BlockSpec((t_rows, D_MODEL), lambda i: (i, 0)),
        pl.BlockSpec((m_m, D_MODEL), lambda i: (i, 0)),
        _full(pe_text), _full(pe_mem),
        _full(seq_tgt_col), _full(seq_tgt_row), _full(seq_mem_row),
        _full(attn_slab), _full(ckv_slab), _full(ffn_slab), _full(vec_slab),
    ]

    out = pl.pallas_call(
        kernel,
        out_shape=jax.ShapeDtypeStruct((n_pad, D_MODEL), jnp.float32),
        grid_spec=pltpu.PrefetchScalarGridSpec(
            num_scalar_prefetch=0,
            grid=(grid,),
            in_specs=in_specs,
            out_specs=pl.BlockSpec((nb, D_MODEL), lambda i: (i, 0)),
        ),
        compiler_params=pltpu.CompilerParams(
            dimension_semantics=("parallel",),
            vmem_limit_bytes=_vmem_limit_bytes(nb, lc, lm)),
    )(text_flat, mem_flat, pe_text, pe_mem,
      seq_tgt_col, seq_tgt_row, seq_mem_row,
      attn_slab, ckv_slab, ffn_slab, vec_slab)

    return out[:n].reshape(B, num_videos, D_MODEL)


# =============================================================================
# pure-JAX reference (unpacked weights, standard token order) — independent check
# =============================================================================
def _ref_layer_norm(x, g, b):
    mu = jnp.mean(x, axis=-1, keepdims=True)
    var = jnp.mean(jnp.square(x - mu), axis=-1, keepdims=True)
    return (x - mu) * jax.lax.rsqrt(var + LN_EPS) * g + b


def _ref_mha(q_in, kv_in, wq, bq, wk, bk, wv, bv, wo, bo):
    q = jnp.dot(q_in, wq) + bq
    k = jnp.dot(kv_in, wk) + bk
    v = jnp.dot(kv_in, wv) + bv
    scale = 1.0 / math.sqrt(HEAD_DIM)
    head_outs = []
    for h in range(NHEAD):
        lo, hi = h * HEAD_DIM, (h + 1) * HEAD_DIM
        logits = jnp.dot(q[:, lo:hi] * scale, k[:, lo:hi].T)
        logits = logits - jnp.max(logits, axis=-1, keepdims=True)
        p = jnp.exp(logits)
        p = p / jnp.sum(p, axis=-1, keepdims=True)
        head_outs.append(jnp.dot(p, v[:, lo:hi]))
    o = jnp.concatenate(head_outs, axis=-1)
    return jnp.dot(o, wo) + bo


def _ref_decoder_stack(x, mem, w):
    for l in range(NUM_LAYERS):
        sa = _ref_mha(x, x,
                      w["sa_wq"][l], w["sa_bq"][l], w["sa_wk"][l], w["sa_bk"][l],
                      w["sa_wv"][l], w["sa_bv"][l], w["sa_wo"][l], w["sa_bo"][l])
        x = _ref_layer_norm(x + sa, w["ln1_g"][l], w["ln1_b"][l])
        ca = _ref_mha(x, mem,
                      w["ca_wq"][l], w["ca_bq"][l], w["ca_wk"][l], w["ca_bk"][l],
                      w["ca_wv"][l], w["ca_bv"][l], w["ca_wo"][l], w["ca_bo"][l])
        x = _ref_layer_norm(x + ca, w["ln2_g"][l], w["ln2_b"][l])
        h = jnp.maximum(jnp.dot(x, w["l1_w"][l]) + w["l1_b"][l], 0.0)
        ff = jnp.dot(h, w["l2_w"][l]) + w["l2_b"][l]
        x = _ref_layer_norm(x + ff, w["ln3_g"][l], w["ln3_b"][l])
    return x


def reference_forward(text_feats, visual_feats, params):
    B, num_videos, num_chunks, _ = text_feats.shape
    _, _, num_frames, _ = visual_feats.shape
    N = B * num_videos
    Lt = num_chunks + 1
    Lm = num_frames
    text = text_feats.reshape(N, num_chunks, D_MODEL)
    prefix = jnp.broadcast_to(params["prefix"].reshape(1, 1, D_MODEL),
                              (N, 1, D_MODEL))
    text = jnp.concatenate([prefix, text], axis=1)
    mem = visual_feats.reshape(N, Lm, D_MODEL)
    pe_t = params["pe"][:Lt]
    pe_m = params["pe"][:Lm]

    outs = []
    for i in range(N):
        x = _ref_decoder_stack(text[i] + pe_t, mem[i] + pe_m, params)
        outs.append(_ref_layer_norm(x[0:1, :], params["fln_g"], params["fln_b"]))
    return jnp.concatenate(outs, axis=0).reshape(B, num_videos, D_MODEL)


# =============================================================================
# deterministic parameter init
# =============================================================================
def make_positional_encoding(d_model, max_len=128):
    position = jnp.arange(max_len, dtype=jnp.float32)[:, None]
    div_term = jnp.exp(jnp.arange(0, d_model, 2, dtype=jnp.float32)
                       * (-math.log(10000.0) / d_model))
    pe = jnp.zeros((max_len, d_model), jnp.float32)
    pe = pe.at[:, 0::2].set(jnp.sin(position * div_term))
    pe = pe.at[:, 1::2].set(jnp.cos(position * div_term))
    return pe


def init_params(key):
    keys = list(jax.random.split(key, 40))
    it = iter(keys)

    def w(shape, scale=0.05):
        return (scale * jax.random.normal(next(it), shape)).astype(jnp.float32)

    L, D, F = NUM_LAYERS, D_MODEL, DIM_FF
    params = {
        "prefix": w((D,), 1.0),
        "pe": make_positional_encoding(D),
        # self-attention (weights stored as [in, out] == torch W.T)
        "sa_wq": w((L, D, D)), "sa_bq": w((L, 1, D)),
        "sa_wk": w((L, D, D)), "sa_bk": w((L, 1, D)),
        "sa_wv": w((L, D, D)), "sa_bv": w((L, 1, D)),
        "sa_wo": w((L, D, D)), "sa_bo": w((L, 1, D)),
        # cross-attention
        "ca_wq": w((L, D, D)), "ca_bq": w((L, 1, D)),
        "ca_wk": w((L, D, D)), "ca_bk": w((L, 1, D)),
        "ca_wv": w((L, D, D)), "ca_bv": w((L, 1, D)),
        "ca_wo": w((L, D, D)), "ca_bo": w((L, 1, D)),
        # feed-forward
        "l1_w": w((L, D, F)), "l1_b": w((L, 1, F)),
        "l2_w": w((L, F, D)), "l2_b": w((L, 1, D)),
        # per-layer norms
        "ln1_g": 1.0 + w((L, 1, D)), "ln1_b": w((L, 1, D)),
        "ln2_g": 1.0 + w((L, 1, D)), "ln2_b": w((L, 1, D)),
        "ln3_g": 1.0 + w((L, 1, D)), "ln3_b": w((L, 1, D)),
        # final LayerNorm
        "fln_g": 1.0 + w((1, D)), "fln_b": w((1, D)),
    }
    return params


if __name__ == "__main__":
    key = jax.random.PRNGKey(0)
    kp, kt, kv = jax.random.split(key, 3)
    params = init_params(kp)

    B, num_videos, num_chunks, num_frames = 2, 2, 6, 8
    text_feats = jax.random.normal(
        kt, (B, num_videos, num_chunks, D_MODEL), jnp.float32)
    visual_feats = jax.random.normal(
        kv, (B, num_videos, num_frames, D_MODEL), jnp.float32)

    out = mm_video_encoder(text_feats, visual_feats, params)
    out = jax.block_until_ready(out)

    ref = reference_forward(text_feats, visual_feats, params)
    assert out.shape == (B, num_videos, D_MODEL)
    assert bool(jnp.all(jnp.isfinite(out)))
    assert bool(jnp.allclose(out, ref, atol=1e-2, rtol=1e-2))
    print("KERNEL_OK")
</pallas_src>

<mosaic_0001>
module attributes {stable_mosaic.version = 11 : i64} {
  func.func @kernel(%arg0: i32, %arg1: memref<48x32xf32, #tpu.memory_space<vmem>>, %arg2: memref<64x32xf32, #tpu.memory_space<vmem>>, %arg3: memref<48x32xf32, #tpu.memory_space<vmem>>, %arg4: memref<64x32xf32, #tpu.memory_space<vmem>>, %arg5: memref<56x1xi32, #tpu.memory_space<vmem>>, %arg6: memref<1x56xi32, #tpu.memory_space<vmem>>, %arg7: memref<1x64xi32, #tpu.memory_space<vmem>>, %arg8: memref<4x80x96xf32, #tpu.memory_space<vmem>>, %arg9: memref<40x128xf32, #tpu.memory_space<vmem>>, %arg10: memref<2x112x64xf32, #tpu.memory_space<vmem>>, %arg11: memref<16x32xf32, #tpu.memory_space<vmem>>, %arg12: memref<8x32xf32, #tpu.memory_space<vmem>>) attributes {dimension_semantics = [#tpu.dimension_semantics<parallel>], iteration_bounds = array<i64: 1>, scalar_prefetch = 0 : i64, scratch_operands = 0 : i64, tpu.core_type = #tpu.core_type<tc>, window_params = [{transform_indices = @transform_0, window_bounds = array<i64: 48, 32>}, {transform_indices = @transform_1, window_bounds = array<i64: 64, 32>}, {pipeline_mode = #tpu.pipeline_mode<synchronous>, transform_indices = @transform_2, window_bounds = array<i64: 48, 32>}, {pipeline_mode = #tpu.pipeline_mode<synchronous>, transform_indices = @transform_3, window_bounds = array<i64: 64, 32>}, {pipeline_mode = #tpu.pipeline_mode<synchronous>, transform_indices = @transform_4, window_bounds = array<i64: 56, 1>}, {pipeline_mode = #tpu.pipeline_mode<synchronous>, transform_indices = @transform_5, window_bounds = array<i64: 1, 56>}, {pipeline_mode = #tpu.pipeline_mode<synchronous>, transform_indices = @transform_6, window_bounds = array<i64: 1, 64>}, {pipeline_mode = #tpu.pipeline_mode<synchronous>, transform_indices = @transform_7, window_bounds = array<i64: 4, 80, 96>}, {pipeline_mode = #tpu.pipeline_mode<synchronous>, transform_indices = @transform_8, window_bounds = array<i64: 40, 128>}, {pipeline_mode = #tpu.pipeline_mode<synchronous>, transform_indices = @transform_9, window_bounds = array<i64: 2, 112, 64>}, {pipeline_mode = #tpu.pipeline_mode<synchronous>, transform_indices = @transform_10, window_bounds = array<i64: 16, 32>}, {transform_indices = @transform_11, window_bounds = array<i64: 8, 32>}]} {
    %c0 = arith.constant 0 : index
    %c0_0 = arith.constant 0 : index
    %0 = vector.load %arg11[%c0, %c0_0] : memref<16x32xf32, #tpu.memory_space<vmem>>, vector<16x32xf32>
    %c0_1 = arith.constant 0 : index
    %c0_2 = arith.constant 0 : index
    %1 = vector.load %arg1[%c0_1, %c0_2] : memref<48x32xf32, #tpu.memory_space<vmem>>, vector<48x32xf32>
    %c0_3 = arith.constant 0 : index
    %c0_4 = arith.constant 0 : index
    %2 = vector.load %arg3[%c0_3, %c0_4] : memref<48x32xf32, #tpu.memory_space<vmem>>, vector<48x32xf32>
    %3 = arith.addf %1, %2 : vector<48x32xf32>
    %4 = vector.extract_strided_slice %0 {offsets = [14, 0], sizes = [1, 32], strides = [1, 1]} : vector<16x32xf32> to vector<1x32xf32>
    %5 = vector.shape_cast %4 : vector<1x32xf32> to vector<1x32xf32>
    %6 = vector.broadcast %5 : vector<1x32xf32> to vector<8x32xf32>
    %7 = tpu.concatenate %3, %6 in 0 : vector<48x32xf32>, vector<8x32xf32> -> vector<56x32xf32>
    %c0_5 = arith.constant 0 : index
    %c0_6 = arith.constant 0 : index
    %8 = vector.load %arg2[%c0_5, %c0_6] : memref<64x32xf32, #tpu.memory_space<vmem>>, vector<64x32xf32>
    %c0_7 = arith.constant 0 : index
    %c0_8 = arith.constant 0 : index
    %9 = vector.load %arg4[%c0_7, %c0_8] : memref<64x32xf32, #tpu.memory_space<vmem>>, vector<64x32xf32>
    %10 = arith.addf %8, %9 : vector<64x32xf32>
    %c0_9 = arith.constant 0 : index
    %c0_10 = arith.constant 0 : index
    %11 = vector.load %arg5[%c0_9, %c0_10] : memref<56x1xi32, #tpu.memory_space<vmem>>, vector<56x1xi32>
    %c0_11 = arith.constant 0 : index
    %c0_12 = arith.constant 0 : index
    %12 = vector.load %arg6[%c0_11, %c0_12] : memref<1x56xi32, #tpu.memory_space<vmem>>, vector<1x56xi32>
    %c0_13 = arith.constant 0 : index
    %c0_14 = arith.constant 0 : index
    %13 = vector.load %arg7[%c0_13, %c0_14] : memref<1x64xi32, #tpu.memory_space<vmem>>, vector<1x64xi32>
    %14 = vector.broadcast %11 : vector<56x1xi32> to vector<56x56xi32>
    %15 = vector.broadcast %12 : vector<1x56xi32> to vector<56x56xi32>
    %16 = arith.cmpi eq, %14, %15 : vector<56x56xi32>
    %cst = arith.constant 0.000000e+00 : f32
    %cst_15 = arith.constant -1.000000e+09 : f32
    %17 = vector.broadcast %cst : f32 to vector<56x56xf32>
    %18 = vector.broadcast %cst_15 : f32 to vector<56x56xf32>
    %19 = arith.select %16, %17, %18 : vector<56x56xi1>, vector<56x56xf32>
    %20 = vector.broadcast %11 : vector<56x1xi32> to vector<56x64xi32>
    %21 = vector.broadcast %13 : vector<1x64xi32> to vector<56x64xi32>
    %22 = arith.cmpi eq, %20, %21 : vector<56x64xi32>
    %cst_16 = arith.constant 0.000000e+00 : f32
    %cst_17 = arith.constant -1.000000e+09 : f32
    %23 = vector.broadcast %cst_16 : f32 to vector<56x64xf32>
    %24 = vector.broadcast %cst_17 : f32 to vector<56x64xf32>
    %25 = arith.select %22, %23, %24 : vector<56x64xi1>, vector<56x64xf32>
    %c0_18 = arith.constant 0 : index
    %c0_19 = arith.constant 0 : index
    %26 = vector.load %arg9[%c0_18, %c0_19] : memref<40x128xf32, #tpu.memory_space<vmem>>, vector<32x128xf32>
    %c32 = arith.constant 32 : index
    %c0_20 = arith.constant 0 : index
    %27 = vector.load %arg9[%c32, %c0_20] : memref<40x128xf32, #tpu.memory_space<vmem>>, vector<1x128xf32>
    %cst_21 = arith.constant dense<0.000000e+00> : vector<64x128xf32>
    %28 = tpu.matmul %10, %26, %cst_21 {dimension_numbers = #tpu.dot_dimension_numbers<[1], [0], [0], [1], [0, 0, 1, 1], [], []>} : vector<64x32xf32>, vector<32x128xf32>, vector<64x128xf32> -> vector<64x128xf32>
    %29 = vector.broadcast %27 : vector<1x128xf32> to vector<64x128xf32>
    %30 = arith.addf %28, %29 : vector<64x128xf32>
    %c0_22 = arith.constant 0 : index
    %c0_23 = arith.constant 0 : index
    %c0_24 = arith.constant 0 : index
    %31 = vector.load %arg8[%c0_22, %c0_23, %c0_24] : memref<4x80x96xf32, #tpu.memory_space<vmem>>, vector<1x80x96xf32>
    %32 = vector.shape_cast %31 : vector<1x80x96xf32> to vector<80x96xf32>
    %c1 = arith.constant 1 : index
    %c0_25 = arith.constant 0 : index
    %c0_26 = arith.constant 0 : index
    %33 = vector.load %arg8[%c1, %c0_25, %c0_26] : memref<4x80x96xf32, #tpu.memory_space<vmem>>, vector<1x80x96xf32>
    %34 = vector.shape_cast %33 : vector<1x80x96xf32> to vector<80x96xf32>
    %c0_27 = arith.constant 0 : index
    %c0_28 = arith.constant 0 : index
    %c0_29 = arith.constant 0 : index
    %35 = vector.load %arg10[%c0_27, %c0_28, %c0_29] : memref<2x112x64xf32, #tpu.memory_space<vmem>>, vector<1x112x64xf32>
    %36 = vector.shape_cast %35 : vector<1x112x64xf32> to vector<112x64xf32>
    %37 = vector.extract_strided_slice %0 {offsets = [0, 0], sizes = [1, 32], strides = [1, 1]} : vector<16x32xf32> to vector<1x32xf32>
    %38 = vector.extract_strided_slice %0 {offsets = [1, 0], sizes = [1, 32], strides = [1, 1]} : vector<16x32xf32> to vector<1x32xf32>
    %39 = vector.extract_strided_slice %0 {offsets = [2, 0], sizes = [1, 32], strides = [1, 1]} : vector<16x32xf32> to vector<1x32xf32>
    %40 = vector.extract_strided_slice %0 {offsets = [3, 0], sizes = [1, 32], strides = [1, 1]} : vector<16x32xf32> to vector<1x32xf32>
    %41 = vector.extract_strided_slice %0 {offsets = [4, 0], sizes = [1, 32], strides = [1, 1]} : vector<16x32xf32> to vector<1x32xf32>
    %42 = vector.extract_strided_slice %0 {offsets = [5, 0], sizes = [1, 32], strides = [1, 1]} : vector<16x32xf32> to vector<1x32xf32>
    %43 = vector.extract_strided_slice %30 {offsets = [0, 0], sizes = [64, 32], strides = [1, 1]} : vector<64x128xf32> to vector<64x32xf32>
    %44 = vector.extract_strided_slice %30 {offsets = [0, 32], sizes = [64, 32], strides = [1, 1]} : vector<64x128xf32> to vector<64x32xf32>
    %45 = vector.extract_strided_slice %32 {offsets = [0, 0], sizes = [32, 96], strides = [1, 1]} : vector<80x96xf32> to vector<32x96xf32>
    %46 = vector.extract_strided_slice %32 {offsets = [32, 0], sizes = [1, 96], strides = [1, 1]} : vector<80x96xf32> to vector<1x96xf32>
    %cst_30 = arith.constant dense<0.000000e+00> : vector<56x96xf32>
    %47 = tpu.matmul %7, %45, %cst_30 {dimension_numbers = #tpu.dot_dimension_numbers<[1], [0], [0], [1], [0, 0, 1, 1], [], []>} : vector<56x32xf32>, vector<32x96xf32>, vector<56x96xf32> -> vector<56x96xf32>
    %48 = vector.broadcast %46 : vector<1x96xf32> to vector<56x96xf32>
    %49 = arith.addf %47, %48 : vector<56x96xf32>
    %50 = vector.extract_strided_slice %49 {offsets = [0, 0], sizes = [56, 32], strides = [1, 1]} : vector<56x96xf32> to vector<56x32xf32>
    %51 = vector.extract_strided_slice %49 {offsets = [0, 32], sizes = [56, 32], strides = [1, 1]} : vector<56x96xf32> to vector<56x32xf32>
    %52 = vector.extract_strided_slice %49 {offsets = [0, 64], sizes = [56, 32], strides = [1, 1]} : vector<56x96xf32> to vector<56x32xf32>
    %53 = vector.extract_strided_slice %32 {offsets = [40, 0], sizes = [32, 32], strides = [1, 1]} : vector<80x96xf32> to vector<32x32xf32>
    %54 = vector.extract_strided_slice %32 {offsets = [72, 0], sizes = [1, 32], strides = [1, 1]} : vector<80x96xf32> to vector<1x32xf32>
    %55 = vector.extract_strided_slice %50 {offsets = [0, 0], sizes = [56, 8], strides = [1, 1]} : vector<56x32xf32> to vector<56x8xf32>
    %56 = vector.extract_strided_slice %51 {offsets = [0, 0], sizes = [56, 8], strides = [1, 1]} : vector<56x32xf32> to vector<56x8xf32>
    %cst_31 = arith.constant dense<0.000000e+00> : vector<56x56xf32>
    %57 = tpu.matmul %55, %56, %cst_31 {dimension_numbers = #tpu.dot_dimension_numbers<[1], [1], [0], [0], [0, 0, 1, 0], [], []>} : vector<56x8xf32>, vector<56x8xf32>, vector<56x56xf32> -> vector<56x56xf32>
    %58 = arith.addf %57, %19 : vector<56x56xf32>
    %cst_32 = arith.constant dense<0xFF800000> : vector<56xf32>
    %59 = vector.multi_reduction <maximumf>, %58, %cst_32 [1] : vector<56x56xf32> to vector<56xf32>
    %60 = vector.shape_cast %59 : vector<56xf32> to vector<56x1xf32>
    %61 = vector.broadcast %60 : vector<56x1xf32> to vector<56x56xf32>
    %62 = arith.subf %58, %61 : vector<56x56xf32>
    %63 = math.exp %62 : vector<56x56xf32>
    %cst_33 = arith.constant dense<0.000000e+00> : vector<56xf32>
    %64 = vector.multi_reduction <add>, %63, %cst_33 [1] : vector<56x56xf32> to vector<56xf32>
    %65 = vector.shape_cast %64 : vector<56xf32> to vector<56x1xf32>
    %66 = tpu.reciprocal %65 {approx = true} : vector<56x1xf32> -> vector<56x1xf32>
    %67 = vector.broadcast %66 : vector<56x1xf32> to vector<56x56xf32>
    %68 = arith.mulf %63, %67 : vector<56x56xf32>
    %69 = vector.extract_strided_slice %52 {offsets = [0, 0], sizes = [56, 8], strides = [1, 1]} : vector<56x32xf32> to vector<56x8xf32>
    %cst_34 = arith.constant dense<0.000000e+00> : vector<56x8xf32>
    %70 = tpu.matmul %68, %69, %cst_34 {dimension_numbers = #tpu.dot_dimension_numbers<[1], [0], [0], [1], [0, 0, 1, 1], [], []>} : vector<56x56xf32>, vector<56x8xf32>, vector<56x8xf32> -> vector<56x8xf32>
    %71 = vector.extract_strided_slice %53 {offsets = [0, 0], sizes = [8, 32], strides = [1, 1]} : vector<32x32xf32> to vector<8x32xf32>
    %cst_35 = arith.constant dense<0.000000e+00> : vector<56x32xf32>
    %72 = tpu.matmul %70, %71, %cst_35 {dimension_numbers = #tpu.dot_dimension_numbers<[1], [0], [0], [1], [0, 0, 1, 1], [], []>} : vector<56x8xf32>, vector<8x32xf32>, vector<56x32xf32> -> vector<56x32xf32>
    %73 = vector.broadcast %54 : vector<1x32xf32> to vector<56x32xf32>
    %74 = arith.addf %73, %72 : vector<56x32xf32>
    %75 = vector.extract_strided_slice %50 {offsets = [0, 8], sizes = [56, 8], strides = [1, 1]} : vector<56x32xf32> to vector<56x8xf32>
    %76 = vector.extract_strided_slice %51 {offsets = [0, 8], sizes = [56, 8], strides = [1, 1]} : vector<56x32xf32> to vector<56x8xf32>
    %cst_36 = arith.constant dense<0.000000e+00> : vector<56x56xf32>
    %77 = tpu.matmul %75, %76, %cst_36 {dimension_numbers = #tpu.dot_dimension_numbers<[1], [1], [0], [0], [0, 0, 1, 0], [], []>} : vector<56x8xf32>, vector<56x8xf32>, vector<56x56xf32> -> vector<56x56xf32>
    %78 = arith.addf %77, %19 : vector<56x56xf32>
    %cst_37 = arith.constant dense<0xFF800000> : vector<56xf32>
    %79 = vector.multi_reduction <maximumf>, %78, %cst_37 [1] : vector<56x56xf32> to vector<56xf32>
    %80 = vector.shape_cast %79 : vector<56xf32> to vector<56x1xf32>
    %81 = vector.broadcast %80 : vector<56x1xf32> to vector<56x56xf32>
    %82 = arith.subf %78, %81 : vector<56x56xf32>
    %83 = math.exp %82 : vector<56x56xf32>
    %cst_38 = arith.constant dense<0.000000e+00> : vector<56xf32>
    %84 = vector.multi_reduction <add>, %83, %cst_38 [1] : vector<56x56xf32> to vector<56xf32>
    %85 = vector.shape_cast %84 : vector<56xf32> to vector<56x1xf32>
    %86 = tpu.reciprocal %85 {approx = true} : vector<56x1xf32> -> vector<56x1xf32>
    %87 = vector.broadcast %86 : vector<56x1xf32> to vector<56x56xf32>
    %88 = arith.mulf %83, %87 : vector<56x56xf32>
    %89 = vector.extract_strided_slice %52 {offsets = [0, 8], sizes = [56, 8], strides = [1, 1]} : vector<56x32xf32> to vector<56x8xf32>
    %cst_39 = arith.constant dense<0.000000e+00> : vector<56x8xf32>
    %90 = tpu.matmul %88, %89, %cst_39 {dimension_numbers = #tpu.dot_dimension_numbers<[1], [0], [0], [1], [0, 0, 1, 1], [], []>} : vector<56x56xf32>, vector<56x8xf32>, vector<56x8xf32> -> vector<56x8xf32>
    %91 = vector.extract_strided_slice %53 {offsets = [8, 0], sizes = [8, 32], strides = [1, 1]} : vector<32x32xf32> to vector<8x32xf32>
    %cst_40 = arith.constant dense<0.000000e+00> : vector<56x32xf32>
    %92 = tpu.matmul %90, %91, %cst_40 {dimension_numbers = #tpu.dot_dimension_numbers<[1], [0], [0], [1], [0, 0, 1, 1], [], []>} : vector<56x8xf32>, vector<8x32xf32>, vector<56x32xf32> -> vector<56x32xf32>
    %93 = arith.addf %74, %92 : vector<56x32xf32>
    %94 = vector.extract_strided_slice %50 {offsets = [0, 16], sizes = [56, 8], strides = [1, 1]} : vector<56x32xf32> to vector<56x8xf32>
    %95 = vector.extract_strided_slice %51 {offsets = [0, 16], sizes = [56, 8], strides = [1, 1]} : vector<56x32xf32> to vector<56x8xf32>
    %cst_41 = arith.constant dense<0.000000e+00> : vector<56x56xf32>
    %96 = tpu.matmul %94, %95, %cst_41 {dimension_numbers = #tpu.dot_dimension_numbers<[1], [1], [0], [0], [0, 0, 1, 0], [], []>} : vector<56x8xf32>, vector<56x8xf32>, vector<56x56xf32> -> vector<56x56xf32>
    %97 = arith.addf %96, %19 : vector<56x56xf32>
    %cst_42 = arith.constant dense<0xFF800000> : vector<56xf32>
    %98 = vector.multi_reduction <maximumf>, %97, %cst_42 [1] : vector<56x56xf32> to vector<56xf32>
    %99 = vector.shape_cast %98 : vector<56xf32> to vector<56x1xf32>
    %100 = vector.broadcast %99 : vector<56x1xf32> to vector<56x56xf32>
    %101 = arith.subf %97, %100 : vector<56x56xf32>
    %102 = math.exp %101 : vector<56x56xf32>
    %cst_43 = arith.constant dense<0.000000e+00> : vector<56xf32>
    %103 = vector.multi_reduction <add>, %102, %cst_43 [1] : vector<56x56xf32> to vector<56xf32>
    %104 = vector.shape_cast %103 : vector<56xf32> to vector<56x1xf32>
    %105 = tpu.reciprocal %104 {approx = true} : vector<56x1xf32> -> vector<56x1xf32>
    %106 = vector.broadcast %105 : vector<56x1xf32> to vector<56x56xf32>
    %107 = arith.mulf %102, %106 : vector<56x56xf32>
    %108 = vector.extract_strided_slice %52 {offsets = [0, 16], sizes = [56, 8], strides = [1, 1]} : vector<56x32xf32> to vector<56x8xf32>
    %cst_44 = arith.constant dense<0.000000e+00> : vector<56x8xf32>
    %109 = tpu.matmul %107, %108, %cst_44 {dimension_numbers = #tpu.dot_dimension_numbers<[1], [0], [0], [1], [0, 0, 1, 1], [], []>} : vector<56x56xf32>, vector<56x8xf32>, vector<56x8xf32> -> vector<56x8xf32>
    %110 = vector.extract_strided_slice %53 {offsets = [16, 0], sizes = [8, 32], strides = [1, 1]} : vector<32x32xf32> to vector<8x32xf32>
    %cst_45 = arith.constant dense<0.000000e+00> : vector<56x32xf32>
    %111 = tpu.matmul %109, %110, %cst_45 {dimension_numbers = #tpu.dot_dimension_numbers<[1], [0], [0], [1], [0, 0, 1, 1], [], []>} : vector<56x8xf32>, vector<8x32xf32>, vector<56x32xf32> -> vector<56x32xf32>
    %112 = arith.addf %93, %111 : vector<56x32xf32>
    %113 = vector.extract_strided_slice %50 {offsets = [0, 24], sizes = [56, 8], strides = [1, 1]} : vector<56x32xf32> to vector<56x8xf32>
    %114 = vector.extract_strided_slice %51 {offsets = [0, 24], sizes = [56, 8], strides = [1, 1]} : vector<56x32xf32> to vector<56x8xf32>
    %cst_46 = arith.constant dense<0.000000e+00> : vector<56x56xf32>
    %115 = tpu.matmul %113, %114, %cst_46 {dimension_numbers = #tpu.dot_dimension_numbers<[1], [1], [0], [0], [0, 0, 1, 0], [], []>} : vector<56x8xf32>, vector<56x8xf32>, vector<56x56xf32> -> vector<56x56xf32>
    %116 = arith.addf %115, %19 : vector<56x56xf32>
    %cst_47 = arith.constant dense<0xFF800000> : vector<56xf32>
    %117 = vector.multi_reduction <maximumf>, %116, %cst_47 [1] : vector<56x56xf32> to vector<56xf32>
    %118 = vector.shape_cast %117 : vector<56xf32> to vector<56x1xf32>
    %119 = vector.broadcast %118 : vector<56x1xf32> to vector<56x56xf32>
    %120 = arith.subf %116, %119 : vector<56x56xf32>
    %121 = math.exp %120 : vector<56x56xf32>
    %cst_48 = arith.constant dense<0.000000e+00> : vector<56xf32>
    %122 = vector.multi_reduction <add>, %121, %cst_48 [1] : vector<56x56xf32> to vector<56xf32>
    %123 = vector.shape_cast %122 : vector<56xf32> to vector<56x1xf32>
    %124 = tpu.reciprocal %123 {approx = true} : vector<56x1xf32> -> vector<56x1xf32>
    %125 = vector.broadcast %124 : vector<56x1xf32> to vector<56x56xf32>
    %126 = arith.mulf %121, %125 : vector<56x56xf32>
    %127 = vector.extract_strided_slice %52 {offsets = [0, 24], sizes = [56, 8], strides = [1, 1]} : vector<56x32xf32> to vector<56x8xf32>
    %cst_49 = arith.constant dense<0.000000e+00> : vector<56x8xf32>
    %128 = tpu.matmul %126, %127, %cst_49 {dimension_numbers = #tpu.dot_dimension_numbers<[1], [0], [0], [1], [0, 0, 1, 1], [], []>} : vector<56x56xf32>, vector<56x8xf32>, vector<56x8xf32> -> vector<56x8xf32>
    %129 = vector.extract_strided_slice %53 {offsets = [24, 0], sizes = [8, 32], strides = [1, 1]} : vector<32x32xf32> to vector<8x32xf32>
    %cst_50 = arith.constant dense<0.000000e+00> : vector<56x32xf32>
    %130 = tpu.matmul %128, %129, %cst_50 {dimension_numbers = #tpu.dot_dimension_numbers<[1], [0], [0], [1], [0, 0, 1, 1], [], []>} : vector<56x8xf32>, vector<8x32xf32>, vector<56x32xf32> -> vector<56x32xf32>
    %131 = arith.addf %112, %130 : vector<56x32xf32>
    %132 = arith.addf %7, %131 : vector<56x32xf32>
    %cst_51 = arith.constant dense<0.000000e+00> : vector<56xf32>
    %133 = vector.multi_reduction <add>, %132, %cst_51 [1] : vector<56x32xf32> to vector<56xf32>
    %134 = vector.shape_cast %133 : vector<56xf32> to vector<56x1xf32>
    %cst_52 = arith.constant 3.200000e+01 : f32
    %135 = vector.broadcast %cst_52 : f32 to vector<56x1xf32>
    %136 = arith.divf %134, %135 : vector<56x1xf32>
    %137 = arith.mulf %132, %132 : vector<56x32xf32>
    %cst_53 = arith.constant dense<0.000000e+00> : vector<56xf32>
    %138 = vector.multi_reduction <add>, %137, %cst_53 [1] : vector<56x32xf32> to vector<56xf32>
    %139 = vector.shape_cast %138 : vector<56xf32> to vector<56x1xf32>
    %cst_54 = arith.constant 3.200000e+01 : f32
    %140 = vector.broadcast %cst_54 : f32 to vector<56x1xf32>
    %141 = arith.divf %139, %140 : vector<56x1xf32>
    %142 = arith.mulf %136, %136 : vector<56x1xf32>
    %143 = arith.subf %141, %142 : vector<56x1xf32>
    %144 = vector.broadcast %136 : vector<56x1xf32> to vector<56x32xf32>
    %145 = arith.subf %132, %144 : vector<56x32xf32>
    %cst_55 = arith.constant 9.99999974E-6 : f32
    %146 = vector.broadcast %cst_55 : f32 to vector<56x1xf32>
    %147 = arith.addf %143, %146 : vector<56x1xf32>
    %148 = math.rsqrt %147 : vector<56x1xf32>
    %149 = vector.broadcast %148 : vector<56x1xf32> to vector<56x32xf32>
    %150 = arith.mulf %145, %149 : vector<56x32xf32>
    %151 = vector.broadcast %37 : vector<1x32xf32> to vector<56x32xf32>
    %152 = arith.mulf %150, %151 : vector<56x32xf32>
    %153 = vector.broadcast %38 : vector<1x32xf32> to vector<56x32xf32>
    %154 = arith.addf %152, %153 : vector<56x32xf32>
    %155 = vector.extract_strided_slice %34 {offsets = [0, 0], sizes = [32, 32], strides = [1, 1]} : vector<80x96xf32> to vector<32x32xf32>
    %156 = vector.extract_strided_slice %34 {offsets = [32, 0], sizes = [1, 32], strides = [1, 1]} : vector<80x96xf32> to vector<1x32xf32>
    %cst_56 = arith.constant dense<0.000000e+00> : vector<56x32xf32>
    %157 = tpu.matmul %154, %155, %cst_56 {dimension_numbers = #tpu.dot_dimension_numbers<[1], [0], [0], [1], [0, 0, 1, 1], [], []>} : vector<56x32xf32>, vector<32x32xf32>, vector<56x32xf32> -> vector<56x32xf32>
    %158 = vector.broadcast %156 : vector<1x32xf32> to vector<56x32xf32>
    %159 = arith.addf %157, %158 : vector<56x32xf32>
    %160 = vector.extract_strided_slice %34 {offsets = [40, 0], sizes = [32, 32], strides = [1, 1]} : vector<80x96xf32> to vector<32x32xf32>
    %161 = vector.extract_strided_slice %34 {offsets = [72, 0], sizes = [1, 32], strides = [1, 1]} : vector<80x96xf32> to vector<1x32xf32>
    %162 = vector.extract_strided_slice %159 {offsets = [0, 0], sizes = [56, 8], strides = [1, 1]} : vector<56x32xf32> to vector<56x8xf32>
    %163 = vector.extract_strided_slice %43 {offsets = [0, 0], sizes = [64, 8], strides = [1, 1]} : vector<64x32xf32> to vector<64x8xf32>
    %cst_57 = arith.constant dense<0.000000e+00> : vector<56x64xf32>
    %164 = tpu.matmul %162, %163, %cst_57 {dimension_numbers = #tpu.dot_dimension_numbers<[1], [1], [0], [0], [0, 0, 1, 0], [], []>} : vector<56x8xf32>, vector<64x8xf32>, vector<56x64xf32> -> vector<56x64xf32>
    %165 = arith.addf %164, %25 : vector<56x64xf32>
    %cst_58 = arith.constant dense<0xFF800000> : vector<56xf32>
    %166 = vector.multi_reduction <maximumf>, %165, %cst_58 [1] : vector<56x64xf32> to vector<56xf32>
    %167 = vector.shape_cast %166 : vector<56xf32> to vector<56x1xf32>
    %168 = vector.broadcast %167 : vector<56x1xf32> to vector<56x64xf32>
    %169 = arith.subf %165, %168 : vector<56x64xf32>
    %170 = math.exp %169 : vector<56x64xf32>
    %cst_59 = arith.constant dense<0.000000e+00> : vector<56xf32>
    %171 = vector.multi_reduction <add>, %170, %cst_59 [1] : vector<56x64xf32> to vector<56xf32>
    %172 = vector.shape_cast %171 : vector<56xf32> to vector<56x1xf32>
    %173 = tpu.reciprocal %172 {approx = true} : vector<56x1xf32> -> vector<56x1xf32>
    %174 = vector.broadcast %173 : vector<56x1xf32> to vector<56x64xf32>
    %175 = arith.mulf %170, %174 : vector<56x64xf32>
    %176 = vector.extract_strided_slice %44 {offsets = [0, 0], sizes = [64, 8], strides = [1, 1]} : vector<64x32xf32> to vector<64x8xf32>
    %cst_60 = arith.constant dense<0.000000e+00> : vector<56x8xf32>
    %177 = tpu.matmul %175, %176, %cst_60 {dimension_numbers = #tpu.dot_dimension_numbers<[1], [0], [0], [1], [0, 0, 1, 1], [], []>} : vector<56x64xf32>, vector<64x8xf32>, vector<56x8xf32> -> vector<56x8xf32>
    %178 = vector.extract_strided_slice %160 {offsets = [0, 0], sizes = [8, 32], strides = [1, 1]} : vector<32x32xf32> to vector<8x32xf32>
    %cst_61 = arith.constant dense<0.000000e+00> : vector<56x32xf32>
    %179 = tpu.matmul %177, %178, %cst_61 {dimension_numbers = #tpu.dot_dimension_numbers<[1], [0], [0], [1], [0, 0, 1, 1], [], []>} : vector<56x8xf32>, vector<8x32xf32>, vector<56x32xf32> -> vector<56x32xf32>
    %180 = vector.broadcast %161 : vector<1x32xf32> to vector<56x32xf32>
    %181 = arith.addf %180, %179 : vector<56x32xf32>
    %182 = vector.extract_strided_slice %159 {offsets = [0, 8], sizes = [56, 8], strides = [1, 1]} : vector<56x32xf32> to vector<56x8xf32>
    %183 = vector.extract_strided_slice %43 {offsets = [0, 8], sizes = [64, 8], strides = [1, 1]} : vector<64x32xf32> to vector<64x8xf32>
    %cst_62 = arith.constant dense<0.000000e+00> : vector<56x64xf32>
    %184 = tpu.matmul %182, %183, %cst_62 {dimension_numbers = #tpu.dot_dimension_numbers<[1], [1], [0], [0], [0, 0, 1, 0], [], []>} : vector<56x8xf32>, vector<64x8xf32>, vector<56x64xf32> -> vector<56x64xf32>
    %185 = arith.addf %184, %25 : vector<56x64xf32>
    %cst_63 = arith.constant dense<0xFF800000> : vector<56xf32>
    %186 = vector.multi_reduction <maximumf>, %185, %cst_63 [1] : vector<56x64xf32> to vector<56xf32>
    %187 = vector.shape_cast %186 : vector<56xf32> to vector<56x1xf32>
    %188 = vector.broadcast %187 : vector<56x1xf32> to vector<56x64xf32>
    %189 = arith.subf %185, %188 : vector<56x64xf32>
    %190 = math.exp %189 : vector<56x64xf32>
    %cst_64 = arith.constant dense<0.000000e+00> : vector<56xf32>
    %191 = vector.multi_reduction <add>, %190, %cst_64 [1] : vector<56x64xf32> to vector<56xf32>
    %192 = vector.shape_cast %191 : vector<56xf32> to vector<56x1xf32>
    %193 = tpu.reciprocal %192 {approx = true} : vector<56x1xf32> -> vector<56x1xf32>
    %194 = vector.broadcast %193 : vector<56x1xf32> to vector<56x64xf32>
    %195 = arith.mulf %190, %194 : vector<56x64xf32>
    %196 = vector.extract_strided_slice %44 {offsets = [0, 8], sizes = [64, 8], strides = [1, 1]} : vector<64x32xf32> to vector<64x8xf32>
    %cst_65 = arith.constant dense<0.000000e+00> : vector<56x8xf32>
    %197 = tpu.matmul %195, %196, %cst_65 {dimension_numbers = #tpu.dot_dimension_numbers<[1], [0], [0], [1], [0, 0, 1, 1], [], []>} : vector<56x64xf32>, vector<64x8xf32>, vector<56x8xf32> -> vector<56x8xf32>
    %198 = vector.extract_strided_slice %160 {offsets = [8, 0], sizes = [8, 32], strides = [1, 1]} : vector<32x32xf32> to vector<8x32xf32>
    %cst_66 = arith.constant dense<0.000000e+00> : vector<56x32xf32>
    %199 = tpu.matmul %197, %198, %cst_66 {dimension_numbers = #tpu.dot_dimension_numbers<[1], [0], [0], [1], [0, 0, 1, 1], [], []>} : vector<56x8xf32>, vector<8x32xf32>, vector<56x32xf32> -> vector<56x32xf32>
    %200 = arith.addf %181, %199 : vector<56x32xf32>
    %201 = vector.extract_strided_slice %159 {offsets = [0, 16], sizes = [56, 8], strides = [1, 1]} : vector<56x32xf32> to vector<56x8xf32>
    %202 = vector.extract_strided_slice %43 {offsets = [0, 16], sizes = [64, 8], strides = [1, 1]} : vector<64x32xf32> to vector<64x8xf32>
    %cst_67 = arith.constant dense<0.000000e+00> : vector<56x64xf32>
    %203 = tpu.matmul %201, %202, %cst_67 {dimension_numbers = #tpu.dot_dimension_numbers<[1], [1], [0], [0], [0, 0, 1, 0], [], []>} : vector<56x8xf32>, vector<64x8xf32>, vector<56x64xf32> -> vector<56x64xf32>
    %204 = arith.addf %203, %25 : vector<56x64xf32>
    %cst_68 = arith.constant dense<0xFF800000> : vector<56xf32>
    %205 = vector.multi_reduction <maximumf>, %204, %cst_68 [1] : vector<56x64xf32> to vector<56xf32>
    %206 = vector.shape_cast %205 : vector<56xf32> to vector<56x1xf32>
    %207 = vector.broadcast %206 : vector<56x1xf32> to vector<56x64xf32>
    %208 = arith.subf %204, %207 : vector<56x64xf32>
    %209 = math.exp %208 : vector<56x64xf32>
    %cst_69 = arith.constant dense<0.000000e+00> : vector<56xf32>
    %210 = vector.multi_reduction <add>, %209, %cst_69 [1] : vector<56x64xf32> to vector<56xf32>
    %211 = vector.shape_cast %210 : vector<56xf32> to vector<56x1xf32>
    %212 = tpu.reciprocal %211 {approx = true} : vector<56x1xf32> -> vector<56x1xf32>
    %213 = vector.broadcast %212 : vector<56x1xf32> to vector<56x64xf32>
    %214 = arith.mulf %209, %213 : vector<56x64xf32>
    %215 = vector.extract_strided_slice %44 {offsets = [0, 16], sizes = [64, 8], strides = [1, 1]} : vector<64x32xf32> to vector<64x8xf32>
    %cst_70 = arith.constant dense<0.000000e+00> : vector<56x8xf32>
    %216 = tpu.matmul %214, %215, %cst_70 {dimension_numbers = #tpu.dot_dimension_numbers<[1], [0], [0], [1], [0, 0, 1, 1], [], []>} : vector<56x64xf32>, vector<64x8xf32>, vector<56x8xf32> -> vector<56x8xf32>
    %217 = vector.extract_strided_slice %160 {offsets = [16, 0], sizes = [8, 32], strides = [1, 1]} : vector<32x32xf32> to vector<8x32xf32>
    %cst_71 = arith.constant dense<0.000000e+00> : vector<56x32xf32>
    %218 = tpu.matmul %216, %217, %cst_71 {dimension_numbers = #tpu.dot_dimension_numbers<[1], [0], [0], [1], [0, 0, 1, 1], [], []>} : vector<56x8xf32>, vector<8x32xf32>, vector<56x32xf32> -> vector<56x32xf32>
    %219 = arith.addf %200, %218 : vector<56x32xf32>
    %220 = vector.extract_strided_slice %159 {offsets = [0, 24], sizes = [56, 8], strides = [1, 1]} : vector<56x32xf32> to vector<56x8xf32>
    %221 = vector.extract_strided_slice %43 {offsets = [0, 24], sizes = [64, 8], strides = [1, 1]} : vector<64x32xf32> to vector<64x8xf32>
    %cst_72 = arith.constant dense<0.000000e+00> : vector<56x64xf32>
    %222 = tpu.matmul %220, %221, %cst_72 {dimension_numbers = #tpu.dot_dimension_numbers<[1], [1], [0], [0], [0, 0, 1, 0], [], []>} : vector<56x8xf32>, vector<64x8xf32>, vector<56x64xf32> -> vector<56x64xf32>
    %223 = arith.addf %222, %25 : vector<56x64xf32>
    %cst_73 = arith.constant dense<0xFF800000> : vector<56xf32>
    %224 = vector.multi_reduction <maximumf>, %223, %cst_73 [1] : vector<56x64xf32> to vector<56xf32>
    %225 = vector.shape_cast %224 : vector<56xf32> to vector<56x1xf32>
    %226 = vector.broadcast %225 : vector<56x1xf32> to vector<56x64xf32>
    %227 = arith.subf %223, %226 : vector<56x64xf32>
    %228 = math.exp %227 : vector<56x64xf32>
    %cst_74 = arith.constant dense<0.000000e+00> : vector<56xf32>
    %229 = vector.multi_reduction <add>, %228, %cst_74 [1] : vector<56x64xf32> to vector<56xf32>
    %230 = vector.shape_cast %229 : vector<56xf32> to vector<56x1xf32>
    %231 = tpu.reciprocal %230 {approx = true} : vector<56x1xf32> -> vector<56x1xf32>
    %232 = vector.broadcast %231 : vector<56x1xf32> to vector<56x64xf32>
    %233 = arith.mulf %228, %232 : vector<56x64xf32>
    %234 = vector.extract_strided_slice %44 {offsets = [0, 24], sizes = [64, 8], strides = [1, 1]} : vector<64x32xf32> to vector<64x8xf32>
    %cst_75 = arith.constant dense<0.000000e+00> : vector<56x8xf32>
    %235 = tpu.matmul %233, %234, %cst_75 {dimension_numbers = #tpu.dot_dimension_numbers<[1], [0], [0], [1], [0, 0, 1, 1], [], []>} : vector<56x64xf32>, vector<64x8xf32>, vector<56x8xf32> -> vector<56x8xf32>
    %236 = vector.extract_strided_slice %160 {offsets = [24, 0], sizes = [8, 32], strides = [1, 1]} : vector<32x32xf32> to vector<8x32xf32>
    %cst_76 = arith.constant dense<0.000000e+00> : vector<56x32xf32>
    %237 = tpu.matmul %235, %236, %cst_76 {dimension_numbers = #tpu.dot_dimension_numbers<[1], [0], [0], [1], [0, 0, 1, 1], [], []>} : vector<56x8xf32>, vector<8x32xf32>, vector<56x32xf32> -> vector<56x32xf32>
    %238 = arith.addf %219, %237 : vector<56x32xf32>
    %239 = arith.addf %154, %238 : vector<56x32xf32>
    %cst_77 = arith.constant dense<0.000000e+00> : vector<56xf32>
    %240 = vector.multi_reduction <add>, %239, %cst_77 [1] : vector<56x32xf32> to vector<56xf32>
    %241 = vector.shape_cast %240 : vector<56xf32> to vector<56x1xf32>
    %cst_78 = arith.constant 3.200000e+01 : f32
    %242 = vector.broadcast %cst_78 : f32 to vector<56x1xf32>
    %243 = arith.divf %241, %242 : vector<56x1xf32>
    %244 = arith.mulf %239, %239 : vector<56x32xf32>
    %cst_79 = arith.constant dense<0.000000e+00> : vector<56xf32>
    %245 = vector.multi_reduction <add>, %244, %cst_79 [1] : vector<56x32xf32> to vector<56xf32>
    %246 = vector.shape_cast %245 : vector<56xf32> to vector<56x1xf32>
    %cst_80 = arith.constant 3.200000e+01 : f32
    %247 = vector.broadcast %cst_80 : f32 to vector<56x1xf32>
    %248 = arith.divf %246, %247 : vector<56x1xf32>
    %249 = arith.mulf %243, %243 : vector<56x1xf32>
    %250 = arith.subf %248, %249 : vector<56x1xf32>
    %251 = vector.broadcast %243 : vector<56x1xf32> to vector<56x32xf32>
    %252 = arith.subf %239, %251 : vector<56x32xf32>
    %cst_81 = arith.constant 9.99999974E-6 : f32
    %253 = vector.broadcast %cst_81 : f32 to vector<56x1xf32>
    %254 = arith.addf %250, %253 : vector<56x1xf32>
    %255 = math.rsqrt %254 : vector<56x1xf32>
    %256 = vector.broadcast %255 : vector<56x1xf32> to vector<56x32xf32>
    %257 = arith.mulf %252, %256 : vector<56x32xf32>
    %258 = vector.broadcast %39 : vector<1x32xf32> to vector<56x32xf32>
    %259 = arith.mulf %257, %258 : vector<56x32xf32>
    %260 = vector.broadcast %40 : vector<1x32xf32> to vector<56x32xf32>
    %261 = arith.addf %259, %260 : vector<56x32xf32>
    %262 = vector.extract_strided_slice %36 {offsets = [0, 0], sizes = [32, 64], strides = [1, 1]} : vector<112x64xf32> to vector<32x64xf32>
    %263 = vector.extract_strided_slice %36 {offsets = [32, 0], sizes = [1, 64], strides = [1, 1]} : vector<112x64xf32> to vector<1x64xf32>
    %264 = vector.extract_strided_slice %36 {offsets = [40, 0], sizes = [64, 32], strides = [1, 1]} : vector<112x64xf32> to vector<64x32xf32>
    %265 = vector.extract_strided_slice %36 {offsets = [104, 0], sizes = [1, 32], strides = [1, 1]} : vector<112x64xf32> to vector<1x32xf32>
    %cst_82 = arith.constant dense<0.000000e+00> : vector<56x64xf32>
    %266 = tpu.matmul %261, %262, %cst_82 {dimension_numbers = #tpu.dot_dimension_numbers<[1], [0], [0], [1], [0, 0, 1, 1], [], []>} : vector<56x32xf32>, vector<32x64xf32>, vector<56x64xf32> -> vector<56x64xf32>
    %267 = vector.broadcast %263 : vector<1x64xf32> to vector<56x64xf32>
    %268 = arith.addf %266, %267 : vector<56x64xf32>
    %cst_83 = arith.constant 0.000000e+00 : f32
    %269 = vector.broadcast %cst_83 : f32 to vector<56x64xf32>
    %270 = arith.maximumf %268, %269 : vector<56x64xf32>
    %cst_84 = arith.constant dense<0.000000e+00> : vector<56x32xf32>
    %271 = tpu.matmul %270, %264, %cst_84 {dimension_numbers = #tpu.dot_dimension_numbers<[1], [0], [0], [1], [0, 0, 1, 1], [], []>} : vector<56x64xf32>, vector<64x32xf32>, vector<56x32xf32> -> vector<56x32xf32>
    %272 = vector.broadcast %265 : vector<1x32xf32> to vector<56x32xf32>
    %273 = arith.addf %271, %272 : vector<56x32xf32>
    %274 = arith.addf %261, %273 : vector<56x32xf32>
    %cst_85 = arith.constant dense<0.000000e+00> : vector<56xf32>
    %275 = vector.multi_reduction <add>, %274, %cst_85 [1] : vector<56x32xf32> to vector<56xf32>
    %276 = vector.shape_cast %275 : vector<56xf32> to vector<56x1xf32>
    %cst_86 = arith.constant 3.200000e+01 : f32
    %277 = vector.broadcast %cst_86 : f32 to vector<56x1xf32>
    %278 = arith.divf %276, %277 : vector<56x1xf32>
    %279 = arith.mulf %274, %274 : vector<56x32xf32>
    %cst_87 = arith.constant dense<0.000000e+00> : vector<56xf32>
    %280 = vector.multi_reduction <add>, %279, %cst_87 [1] : vector<56x32xf32> to vector<56xf32>
    %281 = vector.shape_cast %280 : vector<56xf32> to vector<56x1xf32>
    %cst_88 = arith.constant 3.200000e+01 : f32
    %282 = vector.broadcast %cst_88 : f32 to vector<56x1xf32>
    %283 = arith.divf %281, %282 : vector<56x1xf32>
    %284 = arith.mulf %278, %278 : vector<56x1xf32>
    %285 = arith.subf %283, %284 : vector<56x1xf32>
    %286 = vector.broadcast %278 : vector<56x1xf32> to vector<56x32xf32>
    %287 = arith.subf %274, %286 : vector<56x32xf32>
    %cst_89 = arith.constant 9.99999974E-6 : f32
    %288 = vector.broadcast %cst_89 : f32 to vector<56x1xf32>
    %289 = arith.addf %285, %288 : vector<56x1xf32>
    %290 = math.rsqrt %289 : vector<56x1xf32>
    %291 = vector.broadcast %290 : vector<56x1xf32> to vector<56x32xf32>
    %292 = arith.mulf %287, %291 : vector<56x32xf32>
    %293 = vector.broadcast %41 : vector<1x32xf32> to vector<56x32xf32>
    %294 = arith.mulf %292, %293 : vector<56x32xf32>
    %295 = vector.broadcast %42 : vector<1x32xf32> to vector<56x32xf32>
    %296 = arith.addf %294, %295 : vector<56x32xf32>
    %c2 = arith.constant 2 : index
    %c0_90 = arith.constant 0 : index
    %c0_91 = arith.constant 0 : index
    %297 = vector.load %arg8[%c2, %c0_90, %c0_91] : memref<4x80x96xf32, #tpu.memory_space<vmem>>, vector<1x80x96xf32>
    %298 = vector.shape_cast %297 : vector<1x80x96xf32> to vector<80x96xf32>
    %c3 = arith.constant 3 : index
    %c0_92 = arith.constant 0 : index
    %c0_93 = arith.constant 0 : index
    %299 = vector.load %arg8[%c3, %c0_92, %c0_93] : memref<4x80x96xf32, #tpu.memory_space<vmem>>, vector<1x80x96xf32>
    %300 = vector.shape_cast %299 : vector<1x80x96xf32> to vector<80x96xf32>
    %c1_94 = arith.constant 1 : index
    %c0_95 = arith.constant 0 : index
    %c0_96 = arith.constant 0 : index
    %301 = vector.load %arg10[%c1_94, %c0_95, %c0_96] : memref<2x112x64xf32, #tpu.memory_space<vmem>>, vector<1x112x64xf32>
    %302 = vector.shape_cast %301 : vector<1x112x64xf32> to vector<112x64xf32>
    %303 = vector.extract_strided_slice %0 {offsets = [6, 0], sizes = [1, 32], strides = [1, 1]} : vector<16x32xf32> to vector<1x32xf32>
    %304 = vector.extract_strided_slice %0 {offsets = [7, 0], sizes = [1, 32], strides = [1, 1]} : vector<16x32xf32> to vector<1x32xf32>
    %305 = vector.extract_strided_slice %0 {offsets = [8, 0], sizes = [1, 32], strides = [1, 1]} : vector<16x32xf32> to vector<1x32xf32>
    %306 = vector.extract_strided_slice %0 {offsets = [9, 0], sizes = [1, 32], strides = [1, 1]} : vector<16x32xf32> to vector<1x32xf32>
    %307 = vector.extract_strided_slice %0 {offsets = [10, 0], sizes = [1, 32], strides = [1, 1]} : vector<16x32xf32> to vector<1x32xf32>
    %308 = vector.extract_strided_slice %0 {offsets = [11, 0], sizes = [1, 32], strides = [1, 1]} : vector<16x32xf32> to vector<1x32xf32>
    %309 = vector.extract_strided_slice %30 {offsets = [0, 64], sizes = [64, 32], strides = [1, 1]} : vector<64x128xf32> to vector<64x32xf32>
    %310 = vector.extract_strided_slice %30 {offsets = [0, 96], sizes = [64, 32], strides = [1, 1]} : vector<64x128xf32> to vector<64x32xf32>
    %311 = tpu.iota {dimensions = array<i32: 0>} : vector<8x1xi32>
    %312 = vector.broadcast %311 : vector<8x1xi32> to vector<8x56xi32>
    %313 = vector.broadcast %12 : vector<1x56xi32> to vector<8x56xi32>
    %314 = arith.cmpi eq, %312, %313 : vector<8x56xi32>
    %cst_97 = arith.constant 0.000000e+00 : f32
    %cst_98 = arith.constant -1.000000e+09 : f32
    %315 = vector.broadcast %cst_97 : f32 to vector<8x56xf32>
    %316 = vector.broadcast %cst_98 : f32 to vector<8x56xf32>
    %317 = arith.select %314, %315, %316 : vector<8x56xi1>, vector<8x56xf32>
    %318 = vector.broadcast %311 : vector<8x1xi32> to vector<8x64xi32>
    %319 = vector.broadcast %13 : vector<1x64xi32> to vector<8x64xi32>
    %320 = arith.cmpi eq, %318, %319 : vector<8x64xi32>
    %cst_99 = arith.constant 0.000000e+00 : f32
    %cst_100 = arith.constant -1.000000e+09 : f32
    %321 = vector.broadcast %cst_99 : f32 to vector<8x64xf32>
    %322 = vector.broadcast %cst_100 : f32 to vector<8x64xf32>
    %323 = arith.select %320, %321, %322 : vector<8x64xi1>, vector<8x64xf32>
    %324 = vector.extract_strided_slice %296 {offsets = [48, 0], sizes = [8, 32], strides = [1, 1]} : vector<56x32xf32> to vector<8x32xf32>
    %325 = vector.extract_strided_slice %298 {offsets = [0, 0], sizes = [32, 96], strides = [1, 1]} : vector<80x96xf32> to vector<32x96xf32>
    %326 = vector.extract_strided_slice %298 {offsets = [32, 0], sizes = [1, 96], strides = [1, 1]} : vector<80x96xf32> to vector<1x96xf32>
    %327 = vector.extract_strided_slice %325 {offsets = [0, 0], sizes = [32, 32], strides = [1, 1]} : vector<32x96xf32> to vector<32x32xf32>
    %cst_101 = arith.constant dense<0.000000e+00> : vector<8x32xf32>
    %328 = tpu.matmul %324, %327, %cst_101 {dimension_numbers = #tpu.dot_dimension_numbers<[1], [0], [0], [1], [0, 0, 1, 1], [], []>} : vector<8x32xf32>, vector<32x32xf32>, vector<8x32xf32> -> vector<8x32xf32>
    %329 = vector.extract_strided_slice %326 {offsets = [0, 0], sizes = [1, 32], strides = [1, 1]} : vector<1x96xf32> to vector<1x32xf32>
    %330 = vector.broadcast %329 : vector<1x32xf32> to vector<8x32xf32>
    %331 = arith.addf %328, %330 : vector<8x32xf32>
    %332 = vector.extract_strided_slice %325 {offsets = [0, 32], sizes = [32, 64], strides = [1, 1]} : vector<32x96xf32> to vector<32x64xf32>
    %cst_102 = arith.constant dense<0.000000e+00> : vector<56x64xf32>
    %333 = tpu.matmul %296, %332, %cst_102 {dimension_numbers = #tpu.dot_dimension_numbers<[1], [0], [0], [1], [0, 0, 1, 1], [], []>} : vector<56x32xf32>, vector<32x64xf32>, vector<56x64xf32> -> vector<56x64xf32>
    %334 = vector.extract_strided_slice %326 {offsets = [0, 32], sizes = [1, 64], strides = [1, 1]} : vector<1x96xf32> to vector<1x64xf32>
    %335 = vector.broadcast %334 : vector<1x64xf32> to vector<56x64xf32>
    %336 = arith.addf %333, %335 : vector<56x64xf32>
    %337 = vector.extract_strided_slice %336 {offsets = [0, 0], sizes = [56, 32], strides = [1, 1]} : vector<56x64xf32> to vector<56x32xf32>
    %338 = vector.extract_strided_slice %336 {offsets = [0, 32], sizes = [56, 32], strides = [1, 1]} : vector<56x64xf32> to vector<56x32xf32>
    %339 = vector.extract_strided_slice %298 {offsets = [40, 0], sizes = [32, 32], strides = [1, 1]} : vector<80x96xf32> to vector<32x32xf32>
    %340 = vector.extract_strided_slice %298 {offsets = [72, 0], sizes = [1, 32], strides = [1, 1]} : vector<80x96xf32> to vector<1x32xf32>
    %341 = vector.extract_strided_slice %331 {offsets = [0, 0], sizes = [8, 8], strides = [1, 1]} : vector<8x32xf32> to vector<8x8xf32>
    %342 = vector.extract_strided_slice %337 {offsets = [0, 0], sizes = [56, 8], strides = [1, 1]} : vector<56x32xf32> to vector<56x8xf32>
    %cst_103 = arith.constant dense<0.000000e+00> : vector<8x56xf32>
    %343 = tpu.matmul %341, %342, %cst_103 {dimension_numbers = #tpu.dot_dimension_numbers<[1], [1], [0], [0], [0, 0, 1, 0], [], []>} : vector<8x8xf32>, vector<56x8xf32>, vector<8x56xf32> -> vector<8x56xf32>
    %344 = arith.addf %343, %317 : vector<8x56xf32>
    %cst_104 = arith.constant dense<0xFF800000> : vector<8xf32>
    %345 = vector.multi_reduction <maximumf>, %344, %cst_104 [1] : vector<8x56xf32> to vector<8xf32>
    %346 = vector.shape_cast %345 : vector<8xf32> to vector<8x1xf32>
    %347 = vector.broadcast %346 : vector<8x1xf32> to vector<8x56xf32>
    %348 = arith.subf %344, %347 : vector<8x56xf32>
    %349 = math.exp %348 : vector<8x56xf32>
    %cst_105 = arith.constant dense<0.000000e+00> : vector<8xf32>
    %350 = vector.multi_reduction <add>, %349, %cst_105 [1] : vector<8x56xf32> to vector<8xf32>
    %351 = vector.shape_cast %350 : vector<8xf32> to vector<8x1xf32>
    %352 = tpu.reciprocal %351 {approx = true} : vector<8x1xf32> -> vector<8x1xf32>
    %353 = vector.broadcast %352 : vector<8x1xf32> to vector<8x56xf32>
    %354 = arith.mulf %349, %353 : vector<8x56xf32>
    %355 = vector.extract_strided_slice %338 {offsets = [0, 0], sizes = [56, 8], strides = [1, 1]} : vector<56x32xf32> to vector<56x8xf32>
    %cst_106 = arith.constant dense<0.000000e+00> : vector<8x8xf32>
    %356 = tpu.matmul %354, %355, %cst_106 {dimension_numbers = #tpu.dot_dimension_numbers<[1], [0], [0], [1], [0, 0, 1, 1], [], []>} : vector<8x56xf32>, vector<56x8xf32>, vector<8x8xf32> -> vector<8x8xf32>
    %357 = vector.extract_strided_slice %339 {offsets = [0, 0], sizes = [8, 32], strides = [1, 1]} : vector<32x32xf32> to vector<8x32xf32>
    %cst_107 = arith.constant dense<0.000000e+00> : vector<8x32xf32>
    %358 = tpu.matmul %356, %357, %cst_107 {dimension_numbers = #tpu.dot_dimension_numbers<[1], [0], [0], [1], [0, 0, 1, 1], [], []>} : vector<8x8xf32>, vector<8x32xf32>, vector<8x32xf32> -> vector<8x32xf32>
    %359 = vector.broadcast %340 : vector<1x32xf32> to vector<8x32xf32>
    %360 = arith.addf %359, %358 : vector<8x32xf32>
    %361 = vector.extract_strided_slice %331 {offsets = [0, 8], sizes = [8, 8], strides = [1, 1]} : vector<8x32xf32> to vector<8x8xf32>
    %362 = vector.extract_strided_slice %337 {offsets = [0, 8], sizes = [56, 8], strides = [1, 1]} : vector<56x32xf32> to vector<56x8xf32>
    %cst_108 = arith.constant dense<0.000000e+00> : vector<8x56xf32>
    %363 = tpu.matmul %361, %362, %cst_108 {dimension_numbers = #tpu.dot_dimension_numbers<[1], [1], [0], [0], [0, 0, 1, 0], [], []>} : vector<8x8xf32>, vector<56x8xf32>, vector<8x56xf32> -> vector<8x56xf32>
    %364 = arith.addf %363, %317 : vector<8x56xf32>
    %cst_109 = arith.constant dense<0xFF800000> : vector<8xf32>
    %365 = vector.multi_reduction <maximumf>, %364, %cst_109 [1] : vector<8x56xf32> to vector<8xf32>
    %366 = vector.shape_cast %365 : vector<8xf32> to vector<8x1xf32>
    %367 = vector.broadcast %366 : vector<8x1xf32> to vector<8x56xf32>
    %368 = arith.subf %364, %367 : vector<8x56xf32>
    %369 = math.exp %368 : vector<8x56xf32>
    %cst_110 = arith.constant dense<0.000000e+00> : vector<8xf32>
    %370 = vector.multi_reduction <add>, %369, %cst_110 [1] : vector<8x56xf32> to vector<8xf32>
    %371 = vector.shape_cast %370 : vector<8xf32> to vector<8x1xf32>
    %372 = tpu.reciprocal %371 {approx = true} : vector<8x1xf32> -> vector<8x1xf32>
    %373 = vector.broadcast %372 : vector<8x1xf32> to vector<8x56xf32>
    %374 = arith.mulf %369, %373 : vector<8x56xf32>
    %375 = vector.extract_strided_slice %338 {offsets = [0, 8], sizes = [56, 8], strides = [1, 1]} : vector<56x32xf32> to vector<56x8xf32>
    %cst_111 = arith.constant dense<0.000000e+00> : vector<8x8xf32>
    %376 = tpu.matmul %374, %375, %cst_111 {dimension_numbers = #tpu.dot_dimension_numbers<[1], [0], [0], [1], [0, 0, 1, 1], [], []>} : vector<8x56xf32>, vector<56x8xf32>, vector<8x8xf32> -> vector<8x8xf32>
    %377 = vector.extract_strided_slice %339 {offsets = [8, 0], sizes = [8, 32], strides = [1, 1]} : vector<32x32xf32> to vector<8x32xf32>
    %cst_112 = arith.constant dense<0.000000e+00> : vector<8x32xf32>
    %378 = tpu.matmul %376, %377, %cst_112 {dimension_numbers = #tpu.dot_dimension_numbers<[1], [0], [0], [1], [0, 0, 1, 1], [], []>} : vector<8x8xf32>, vector<8x32xf32>, vector<8x32xf32> -> vector<8x32xf32>
    %379 = arith.addf %360, %378 : vector<8x32xf32>
    %380 = vector.extract_strided_slice %331 {offsets = [0, 16], sizes = [8, 8], strides = [1, 1]} : vector<8x32xf32> to vector<8x8xf32>
    %381 = vector.extract_strided_slice %337 {offsets = [0, 16], sizes = [56, 8], strides = [1, 1]} : vector<56x32xf32> to vector<56x8xf32>
    %cst_113 = arith.constant dense<0.000000e+00> : vector<8x56xf32>
    %382 = tpu.matmul %380, %381, %cst_113 {dimension_numbers = #tpu.dot_dimension_numbers<[1], [1], [0], [0], [0, 0, 1, 0], [], []>} : vector<8x8xf32>, vector<56x8xf32>, vector<8x56xf32> -> vector<8x56xf32>
    %383 = arith.addf %382, %317 : vector<8x56xf32>
    %cst_114 = arith.constant dense<0xFF800000> : vector<8xf32>
    %384 = vector.multi_reduction <maximumf>, %383, %cst_114 [1] : vector<8x56xf32> to vector<8xf32>
    %385 = vector.shape_cast %384 : vector<8xf32> to vector<8x1xf32>
    %386 = vector.broadcast %385 : vector<8x1xf32> to vector<8x56xf32>
    %387 = arith.subf %383, %386 : vector<8x56xf32>
    %388 = math.exp %387 : vector<8x56xf32>
    %cst_115 = arith.constant dense<0.000000e+00> : vector<8xf32>
    %389 = vector.multi_reduction <add>, %388, %cst_115 [1] : vector<8x56xf32> to vector<8xf32>
    %390 = vector.shape_cast %389 : vector<8xf32> to vector<8x1xf32>
    %391 = tpu.reciprocal %390 {approx = true} : vector<8x1xf32> -> vector<8x1xf32>
    %392 = vector.broadcast %391 : vector<8x1xf32> to vector<8x56xf32>
    %393 = arith.mulf %388, %392 : vector<8x56xf32>
    %394 = vector.extract_strided_slice %338 {offsets = [0, 16], sizes = [56, 8], strides = [1, 1]} : vector<56x32xf32> to vector<56x8xf32>
    %cst_116 = arith.constant dense<0.000000e+00> : vector<8x8xf32>
    %395 = tpu.matmul %393, %394, %cst_116 {dimension_numbers = #tpu.dot_dimension_numbers<[1], [0], [0], [1], [0, 0, 1, 1], [], []>} : vector<8x56xf32>, vector<56x8xf32>, vector<8x8xf32> -> vector<8x8xf32>
    %396 = vector.extract_strided_slice %339 {offsets = [16, 0], sizes = [8, 32], strides = [1, 1]} : vector<32x32xf32> to vector<8x32xf32>
    %cst_117 = arith.constant dense<0.000000e+00> : vector<8x32xf32>
    %397 = tpu.matmul %395, %396, %cst_117 {dimension_numbers = #tpu.dot_dimension_numbers<[1], [0], [0], [1], [0, 0, 1, 1], [], []>} : vector<8x8xf32>, vector<8x32xf32>, vector<8x32xf32> -> vector<8x32xf32>
    %398 = arith.addf %379, %397 : vector<8x32xf32>
    %399 = vector.extract_strided_slice %331 {offsets = [0, 24], sizes = [8, 8], strides = [1, 1]} : vector<8x32xf32> to vector<8x8xf32>
    %400 = vector.extract_strided_slice %337 {offsets = [0, 24], sizes = [56, 8], strides = [1, 1]} : vector<56x32xf32> to vector<56x8xf32>
    %cst_118 = arith.constant dense<0.000000e+00> : vector<8x56xf32>
    %401 = tpu.matmul %399, %400, %cst_118 {dimension_numbers = #tpu.dot_dimension_numbers<[1], [1], [0], [0], [0, 0, 1, 0], [], []>} : vector<8x8xf32>, vector<56x8xf32>, vector<8x56xf32> -> vector<8x56xf32>
    %402 = arith.addf %401, %317 : vector<8x56xf32>
    %cst_119 = arith.constant dense<0xFF800000> : vector<8xf32>
    %403 = vector.multi_reduction <maximumf>, %402, %cst_119 [1] : vector<8x56xf32> to vector<8xf32>
    %404 = vector.shape_cast %403 : vector<8xf32> to vector<8x1xf32>
    %405 = vector.broadcast %404 : vector<8x1xf32> to vector<8x56xf32>
    %406 = arith.subf %402, %405 : vector<8x56xf32>
    %407 = math.exp %406 : vector<8x56xf32>
    %cst_120 = arith.constant dense<0.000000e+00> : vector<8xf32>
    %408 = vector.multi_reduction <add>, %407, %cst_120 [1] : vector<8x56xf32> to vector<8xf32>
    %409 = vector.shape_cast %408 : vector<8xf32> to vector<8x1xf32>
    %410 = tpu.reciprocal %409 {approx = true} : vector<8x1xf32> -> vector<8x1xf32>
    %411 = vector.broadcast %410 : vector<8x1xf32> to vector<8x56xf32>
    %412 = arith.mulf %407, %411 : vector<8x56xf32>
    %413 = vector.extract_strided_slice %338 {offsets = [0, 24], sizes = [56, 8], strides = [1, 1]} : vector<56x32xf32> to vector<56x8xf32>
    %cst_121 = arith.constant dense<0.000000e+00> : vector<8x8xf32>
    %414 = tpu.matmul %412, %413, %cst_121 {dimension_numbers = #tpu.dot_dimension_numbers<[1], [0], [0], [1], [0, 0, 1, 1], [], []>} : vector<8x56xf32>, vector<56x8xf32>, vector<8x8xf32> -> vector<8x8xf32>
    %415 = vector.extract_strided_slice %339 {offsets = [24, 0], sizes = [8, 32], strides = [1, 1]} : vector<32x32xf32> to vector<8x32xf32>
    %cst_122 = arith.constant dense<0.000000e+00> : vector<8x32xf32>
    %416 = tpu.matmul %414, %415, %cst_122 {dimension_numbers = #tpu.dot_dimension_numbers<[1], [0], [0], [1], [0, 0, 1, 1], [], []>} : vector<8x8xf32>, vector<8x32xf32>, vector<8x32xf32> -> vector<8x32xf32>
    %417 = arith.addf %398, %416 : vector<8x32xf32>
    %418 = arith.addf %324, %417 : vector<8x32xf32>
    %cst_123 = arith.constant dense<0.000000e+00> : vector<8xf32>
    %419 = vector.multi_reduction <add>, %418, %cst_123 [1] : vector<8x32xf32> to vector<8xf32>
    %420 = vector.shape_cast %419 : vector<8xf32> to vector<8x1xf32>
    %cst_124 = arith.constant 3.200000e+01 : f32
    %421 = vector.broadcast %cst_124 : f32 to vector<8x1xf32>
    %422 = arith.divf %420, %421 : vector<8x1xf32>
    %423 = arith.mulf %418, %418 : vector<8x32xf32>
    %cst_125 = arith.constant dense<0.000000e+00> : vector<8xf32>
    %424 = vector.multi_reduction <add>, %423, %cst_125 [1] : vector<8x32xf32> to vector<8xf32>
    %425 = vector.shape_cast %424 : vector<8xf32> to vector<8x1xf32>
    %cst_126 = arith.constant 3.200000e+01 : f32
    %426 = vector.broadcast %cst_126 : f32 to vector<8x1xf32>
    %427 = arith.divf %425, %426 : vector<8x1xf32>
    %428 = arith.mulf %422, %422 : vector<8x1xf32>
    %429 = arith.subf %427, %428 : vector<8x1xf32>
    %430 = vector.broadcast %422 : vector<8x1xf32> to vector<8x32xf32>
    %431 = arith.subf %418, %430 : vector<8x32xf32>
    %cst_127 = arith.constant 9.99999974E-6 : f32
    %432 = vector.broadcast %cst_127 : f32 to vector<8x1xf32>
    %433 = arith.addf %429, %432 : vector<8x1xf32>
    %434 = math.rsqrt %433 : vector<8x1xf32>
    %435 = vector.broadcast %434 : vector<8x1xf32> to vector<8x32xf32>
    %436 = arith.mulf %431, %435 : vector<8x32xf32>
    %437 = vector.broadcast %303 : vector<1x32xf32> to vector<8x32xf32>
    %438 = arith.mulf %436, %437 : vector<8x32xf32>
    %439 = vector.broadcast %304 : vector<1x32xf32> to vector<8x32xf32>
    %440 = arith.addf %438, %439 : vector<8x32xf32>
    %441 = vector.extract_strided_slice %300 {offsets = [0, 0], sizes = [32, 32], strides = [1, 1]} : vector<80x96xf32> to vector<32x32xf32>
    %442 = vector.extract_strided_slice %300 {offsets = [32, 0], sizes = [1, 32], strides = [1, 1]} : vector<80x96xf32> to vector<1x32xf32>
    %cst_128 = arith.constant dense<0.000000e+00> : vector<8x32xf32>
    %443 = tpu.matmul %440, %441, %cst_128 {dimension_numbers = #tpu.dot_dimension_numbers<[1], [0], [0], [1], [0, 0, 1, 1], [], []>} : vector<8x32xf32>, vector<32x32xf32>, vector<8x32xf32> -> vector<8x32xf32>
    %444 = vector.broadcast %442 : vector<1x32xf32> to vector<8x32xf32>
    %445 = arith.addf %443, %444 : vector<8x32xf32>
    %446 = vector.extract_strided_slice %300 {offsets = [40, 0], sizes = [32, 32], strides = [1, 1]} : vector<80x96xf32> to vector<32x32xf32>
    %447 = vector.extract_strided_slice %300 {offsets = [72, 0], sizes = [1, 32], strides = [1, 1]} : vector<80x96xf32> to vector<1x32xf32>
    %448 = vector.extract_strided_slice %445 {offsets = [0, 0], sizes = [8, 8], strides = [1, 1]} : vector<8x32xf32> to vector<8x8xf32>
    %449 = vector.extract_strided_slice %309 {offsets = [0, 0], sizes = [64, 8], strides = [1, 1]} : vector<64x32xf32> to vector<64x8xf32>
    %cst_129 = arith.constant dense<0.000000e+00> : vector<8x64xf32>
    %450 = tpu.matmul %448, %449, %cst_129 {dimension_numbers = #tpu.dot_dimension_numbers<[1], [1], [0], [0], [0, 0, 1, 0], [], []>} : vector<8x8xf32>, vector<64x8xf32>, vector<8x64xf32> -> vector<8x64xf32>
    %451 = arith.addf %450, %323 : vector<8x64xf32>
    %cst_130 = arith.constant dense<0xFF800000> : vector<8xf32>
    %452 = vector.multi_reduction <maximumf>, %451, %cst_130 [1] : vector<8x64xf32> to vector<8xf32>
    %453 = vector.shape_cast %452 : vector<8xf32> to vector<8x1xf32>
    %454 = vector.broadcast %453 : vector<8x1xf32> to vector<8x64xf32>
    %455 = arith.subf %451, %454 : vector<8x64xf32>
    %456 = math.exp %455 : vector<8x64xf32>
    %cst_131 = arith.constant dense<0.000000e+00> : vector<8xf32>
    %457 = vector.multi_reduction <add>, %456, %cst_131 [1] : vector<8x64xf32> to vector<8xf32>
    %458 = vector.shape_cast %457 : vector<8xf32> to vector<8x1xf32>
    %459 = tpu.reciprocal %458 {approx = true} : vector<8x1xf32> -> vector<8x1xf32>
    %460 = vector.broadcast %459 : vector<8x1xf32> to vector<8x64xf32>
    %461 = arith.mulf %456, %460 : vector<8x64xf32>
    %462 = vector.extract_strided_slice %310 {offsets = [0, 0], sizes = [64, 8], strides = [1, 1]} : vector<64x32xf32> to vector<64x8xf32>
    %cst_132 = arith.constant dense<0.000000e+00> : vector<8x8xf32>
    %463 = tpu.matmul %461, %462, %cst_132 {dimension_numbers = #tpu.dot_dimension_numbers<[1], [0], [0], [1], [0, 0, 1, 1], [], []>} : vector<8x64xf32>, vector<64x8xf32>, vector<8x8xf32> -> vector<8x8xf32>
    %464 = vector.extract_strided_slice %446 {offsets = [0, 0], sizes = [8, 32], strides = [1, 1]} : vector<32x32xf32> to vector<8x32xf32>
    %cst_133 = arith.constant dense<0.000000e+00> : vector<8x32xf32>
    %465 = tpu.matmul %463, %464, %cst_133 {dimension_numbers = #tpu.dot_dimension_numbers<[1], [0], [0], [1], [0, 0, 1, 1], [], []>} : vector<8x8xf32>, vector<8x32xf32>, vector<8x32xf32> -> vector<8x32xf32>
    %466 = vector.broadcast %447 : vector<1x32xf32> to vector<8x32xf32>
    %467 = arith.addf %466, %465 : vector<8x32xf32>
    %468 = vector.extract_strided_slice %445 {offsets = [0, 8], sizes = [8, 8], strides = [1, 1]} : vector<8x32xf32> to vector<8x8xf32>
    %469 = vector.extract_strided_slice %309 {offsets = [0, 8], sizes = [64, 8], strides = [1, 1]} : vector<64x32xf32> to vector<64x8xf32>
    %cst_134 = arith.constant dense<0.000000e+00> : vector<8x64xf32>
    %470 = tpu.matmul %468, %469, %cst_134 {dimension_numbers = #tpu.dot_dimension_numbers<[1], [1], [0], [0], [0, 0, 1, 0], [], []>} : vector<8x8xf32>, vector<64x8xf32>, vector<8x64xf32> -> vector<8x64xf32>
    %471 = arith.addf %470, %323 : vector<8x64xf32>
    %cst_135 = arith.constant dense<0xFF800000> : vector<8xf32>
    %472 = vector.multi_reduction <maximumf>, %471, %cst_135 [1] : vector<8x64xf32> to vector<8xf32>
    %473 = vector.shape_cast %472 : vector<8xf32> to vector<8x1xf32>
    %474 = vector.broadcast %473 : vector<8x1xf32> to vector<8x64xf32>
    %475 = arith.subf %471, %474 : vector<8x64xf32>
    %476 = math.exp %475 : vector<8x64xf32>
    %cst_136 = arith.constant dense<0.000000e+00> : vector<8xf32>
    %477 = vector.multi_reduction <add>, %476, %cst_136 [1] : vector<8x64xf32> to vector<8xf32>
    %478 = vector.shape_cast %477 : vector<8xf32> to vector<8x1xf32>
    %479 = tpu.reciprocal %478 {approx = true} : vector<8x1xf32> -> vector<8x1xf32>
    %480 = vector.broadcast %479 : vector<8x1xf32> to vector<8x64xf32>
    %481 = arith.mulf %476, %480 : vector<8x64xf32>
    %482 = vector.extract_strided_slice %310 {offsets = [0, 8], sizes = [64, 8], strides = [1, 1]} : vector<64x32xf32> to vector<64x8xf32>
    %cst_137 = arith.constant dense<0.000000e+00> : vector<8x8xf32>
    %483 = tpu.matmul %481, %482, %cst_137 {dimension_numbers = #tpu.dot_dimension_numbers<[1], [0], [0], [1], [0, 0, 1, 1], [], []>} : vector<8x64xf32>, vector<64x8xf32>, vector<8x8xf32> -> vector<8x8xf32>
    %484 = vector.extract_strided_slice %446 {offsets = [8, 0], sizes = [8, 32], strides = [1, 1]} : vector<32x32xf32> to vector<8x32xf32>
    %cst_138 = arith.constant dense<0.000000e+00> : vector<8x32xf32>
    %485 = tpu.matmul %483, %484, %cst_138 {dimension_numbers = #tpu.dot_dimension_numbers<[1], [0], [0], [1], [0, 0, 1, 1], [], []>} : vector<8x8xf32>, vector<8x32xf32>, vector<8x32xf32> -> vector<8x32xf32>
    %486 = arith.addf %467, %485 : vector<8x32xf32>
    %487 = vector.extract_strided_slice %445 {offsets = [0, 16], sizes = [8, 8], strides = [1, 1]} : vector<8x32xf32> to vector<8x8xf32>
    %488 = vector.extract_strided_slice %309 {offsets = [0, 16], sizes = [64, 8], strides = [1, 1]} : vector<64x32xf32> to vector<64x8xf32>
    %cst_139 = arith.constant dense<0.000000e+00> : vector<8x64xf32>
    %489 = tpu.matmul %487, %488, %cst_139 {dimension_numbers = #tpu.dot_dimension_numbers<[1], [1], [0], [0], [0, 0, 1, 0], [], []>} : vector<8x8xf32>, vector<64x8xf32>, vector<8x64xf32> -> vector<8x64xf32>
    %490 = arith.addf %489, %323 : vector<8x64xf32>
    %cst_140 = arith.constant dense<0xFF800000> : vector<8xf32>
    %491 = vector.multi_reduction <maximumf>, %490, %cst_140 [1] : vector<8x64xf32> to vector<8xf32>
    %492 = vector.shape_cast %491 : vector<8xf32> to vector<8x1xf32>
    %493 = vector.broadcast %492 : vector<8x1xf32> to vector<8x64xf32>
    %494 = arith.subf %490, %493 : vector<8x64xf32>
    %495 = math.exp %494 : vector<8x64xf32>
    %cst_141 = arith.constant dense<0.000000e+00> : vector<8xf32>
    %496 = vector.multi_reduction <add>, %495, %cst_141 [1] : vector<8x64xf32> to vector<8xf32>
    %497 = vector.shape_cast %496 : vector<8xf32> to vector<8x1xf32>
    %498 = tpu.reciprocal %497 {approx = true} : vector<8x1xf32> -> vector<8x1xf32>
    %499 = vector.broadcast %498 : vector<8x1xf32> to vector<8x64xf32>
    %500 = arith.mulf %495, %499 : vector<8x64xf32>
    %501 = vector.extract_strided_slice %310 {offsets = [0, 16], sizes = [64, 8], strides = [1, 1]} : vector<64x32xf32> to vector<64x8xf32>
    %cst_142 = arith.constant dense<0.000000e+00> : vector<8x8xf32>
    %502 = tpu.matmul %500, %501, %cst_142 {dimension_numbers = #tpu.dot_dimension_numbers<[1], [0], [0], [1], [0, 0, 1, 1], [], []>} : vector<8x64xf32>, vector<64x8xf32>, vector<8x8xf32> -> vector<8x8xf32>
    %503 = vector.extract_strided_slice %446 {offsets = [16, 0], sizes = [8, 32], strides = [1, 1]} : vector<32x32xf32> to vector<8x32xf32>
    %cst_143 = arith.constant dense<0.000000e+00> : vector<8x32xf32>
    %504 = tpu.matmul %502, %503, %cst_143 {dimension_numbers = #tpu.dot_dimension_numbers<[1], [0], [0], [1], [0, 0, 1, 1], [], []>} : vector<8x8xf32>, vector<8x32xf32>, vector<8x32xf32> -> vector<8x32xf32>
    %505 = arith.addf %486, %504 : vector<8x32xf32>
    %506 = vector.extract_strided_slice %445 {offsets = [0, 24], sizes = [8, 8], strides = [1, 1]} : vector<8x32xf32> to vector<8x8xf32>
    %507 = vector.extract_strided_slice %309 {offsets = [0, 24], sizes = [64, 8], strides = [1, 1]} : vector<64x32xf32> to vector<64x8xf32>
    %cst_144 = arith.constant dense<0.000000e+00> : vector<8x64xf32>
    %508 = tpu.matmul %506, %507, %cst_144 {dimension_numbers = #tpu.dot_dimension_numbers<[1], [1], [0], [0], [0, 0, 1, 0], [], []>} : vector<8x8xf32>, vector<64x8xf32>, vector<8x64xf32> -> vector<8x64xf32>
    %509 = arith.addf %508, %323 : vector<8x64xf32>
    %cst_145 = arith.constant dense<0xFF800000> : vector<8xf32>
    %510 = vector.multi_reduction <maximumf>, %509, %cst_145 [1] : vector<8x64xf32> to vector<8xf32>
    %511 = vector.shape_cast %510 : vector<8xf32> to vector<8x1xf32>
    %512 = vector.broadcast %511 : vector<8x1xf32> to vector<8x64xf32>
    %513 = arith.subf %509, %512 : vector<8x64xf32>
    %514 = math.exp %513 : vector<8x64xf32>
    %cst_146 = arith.constant dense<0.000000e+00> : vector<8xf32>
    %515 = vector.multi_reduction <add>, %514, %cst_146 [1] : vector<8x64xf32> to vector<8xf32>
    %516 = vector.shape_cast %515 : vector<8xf32> to vector<8x1xf32>
    %517 = tpu.reciprocal %516 {approx = true} : vector<8x1xf32> -> vector<8x1xf32>
    %518 = vector.broadcast %517 : vector<8x1xf32> to vector<8x64xf32>
    %519 = arith.mulf %514, %518 : vector<8x64xf32>
    %520 = vector.extract_strided_slice %310 {offsets = [0, 24], sizes = [64, 8], strides = [1, 1]} : vector<64x32xf32> to vector<64x8xf32>
    %cst_147 = arith.constant dense<0.000000e+00> : vector<8x8xf32>
    %521 = tpu.matmul %519, %520, %cst_147 {dimension_numbers = #tpu.dot_dimension_numbers<[1], [0], [0], [1], [0, 0, 1, 1], [], []>} : vector<8x64xf32>, vector<64x8xf32>, vector<8x8xf32> -> vector<8x8xf32>
    %522 = vector.extract_strided_slice %446 {offsets = [24, 0], sizes = [8, 32], strides = [1, 1]} : vector<32x32xf32> to vector<8x32xf32>
    %cst_148 = arith.constant dense<0.000000e+00> : vector<8x32xf32>
    %523 = tpu.matmul %521, %522, %cst_148 {dimension_numbers = #tpu.dot_dimension_numbers<[1], [0], [0], [1], [0, 0, 1, 1], [], []>} : vector<8x8xf32>, vector<8x32xf32>, vector<8x32xf32> -> vector<8x32xf32>
    %524 = arith.addf %505, %523 : vector<8x32xf32>
    %525 = arith.addf %440, %524 : vector<8x32xf32>
    %cst_149 = arith.constant dense<0.000000e+00> : vector<8xf32>
    %526 = vector.multi_reduction <add>, %525, %cst_149 [1] : vector<8x32xf32> to vector<8xf32>
    %527 = vector.shape_cast %526 : vector<8xf32> to vector<8x1xf32>
    %cst_150 = arith.constant 3.200000e+01 : f32
    %528 = vector.broadcast %cst_150 : f32 to vector<8x1xf32>
    %529 = arith.divf %527, %528 : vector<8x1xf32>
    %530 = arith.mulf %525, %525 : vector<8x32xf32>
    %cst_151 = arith.constant dense<0.000000e+00> : vector<8xf32>
    %531 = vector.multi_reduction <add>, %530, %cst_151 [1] : vector<8x32xf32> to vector<8xf32>
    %532 = vector.shape_cast %531 : vector<8xf32> to vector<8x1xf32>
    %cst_152 = arith.constant 3.200000e+01 : f32
    %533 = vector.broadcast %cst_152 : f32 to vector<8x1xf32>
    %534 = arith.divf %532, %533 : vector<8x1xf32>
    %535 = arith.mulf %529, %529 : vector<8x1xf32>
    %536 = arith.subf %534, %535 : vector<8x1xf32>
    %537 = vector.broadcast %529 : vector<8x1xf32> to vector<8x32xf32>
    %538 = arith.subf %525, %537 : vector<8x32xf32>
    %cst_153 = arith.constant 9.99999974E-6 : f32
    %539 = vector.broadcast %cst_153 : f32 to vector<8x1xf32>
    %540 = arith.addf %536, %539 : vector<8x1xf32>
    %541 = math.rsqrt %540 : vector<8x1xf32>
    %542 = vector.broadcast %541 : vector<8x1xf32> to vector<8x32xf32>
    %543 = arith.mulf %538, %542 : vector<8x32xf32>
    %544 = vector.broadcast %305 : vector<1x32xf32> to vector<8x32xf32>
    %545 = arith.mulf %543, %544 : vector<8x32xf32>
    %546 = vector.broadcast %306 : vector<1x32xf32> to vector<8x32xf32>
    %547 = arith.addf %545, %546 : vector<8x32xf32>
    %548 = vector.extract_strided_slice %302 {offsets = [0, 0], sizes = [32, 64], strides = [1, 1]} : vector<112x64xf32> to vector<32x64xf32>
    %549 = vector.extract_strided_slice %302 {offsets = [32, 0], sizes = [1, 64], strides = [1, 1]} : vector<112x64xf32> to vector<1x64xf32>
    %550 = vector.extract_strided_slice %302 {offsets = [40, 0], sizes = [64, 32], strides = [1, 1]} : vector<112x64xf32> to vector<64x32xf32>
    %551 = vector.extract_strided_slice %302 {offsets = [104, 0], sizes = [1, 32], strides = [1, 1]} : vector<112x64xf32> to vector<1x32xf32>
    %cst_154 = arith.constant dense<0.000000e+00> : vector<8x64xf32>
    %552 = tpu.matmul %547, %548, %cst_154 {dimension_numbers = #tpu.dot_dimension_numbers<[1], [0], [0], [1], [0, 0, 1, 1], [], []>} : vector<8x32xf32>, vector<32x64xf32>, vector<8x64xf32> -> vector<8x64xf32>
    %553 = vector.broadcast %549 : vector<1x64xf32> to vector<8x64xf32>
    %554 = arith.addf %552, %553 : vector<8x64xf32>
    %cst_155 = arith.constant 0.000000e+00 : f32
    %555 = vector.broadcast %cst_155 : f32 to vector<8x64xf32>
    %556 = arith.maximumf %554, %555 : vector<8x64xf32>
    %cst_156 = arith.constant dense<0.000000e+00> : vector<8x32xf32>
    %557 = tpu.matmul %556, %550, %cst_156 {dimension_numbers = #tpu.dot_dimension_numbers<[1], [0], [0], [1], [0, 0, 1, 1], [], []>} : vector<8x64xf32>, vector<64x32xf32>, vector<8x32xf32> -> vector<8x32xf32>
    %558 = vector.broadcast %551 : vector<1x32xf32> to vector<8x32xf32>
    %559 = arith.addf %557, %558 : vector<8x32xf32>
    %560 = arith.addf %547, %559 : vector<8x32xf32>
    %cst_157 = arith.constant dense<0.000000e+00> : vector<8xf32>
    %561 = vector.multi_reduction <add>, %560, %cst_157 [1] : vector<8x32xf32> to vector<8xf32>
    %562 = vector.shape_cast %561 : vector<8xf32> to vector<8x1xf32>
    %cst_158 = arith.constant 3.200000e+01 : f32
    %563 = vector.broadcast %cst_158 : f32 to vector<8x1xf32>
    %564 = arith.divf %562, %563 : vector<8x1xf32>
    %565 = arith.mulf %560, %560 : vector<8x32xf32>
    %cst_159 = arith.constant dense<0.000000e+00> : vector<8xf32>
    %566 = vector.multi_reduction <add>, %565, %cst_159 [1] : vector<8x32xf32> to vector<8xf32>
    %567 = vector.shape_cast %566 : vector<8xf32> to vector<8x1xf32>
    %cst_160 = arith.constant 3.200000e+01 : f32
    %568 = vector.broadcast %cst_160 : f32 to vector<8x1xf32>
    %569 = arith.divf %567, %568 : vector<8x1xf32>
    %570 = arith.mulf %564, %564 : vector<8x1xf32>
    %571 = arith.subf %569, %570 : vector<8x1xf32>
    %572 = vector.broadcast %564 : vector<8x1xf32> to vector<8x32xf32>
    %573 = arith.subf %560, %572 : vector<8x32xf32>
    %cst_161 = arith.constant 9.99999974E-6 : f32
    %574 = vector.broadcast %cst_161 : f32 to vector<8x1xf32>
    %575 = arith.addf %571, %574 : vector<8x1xf32>
    %576 = math.rsqrt %575 : vector<8x1xf32>
    %577 = vector.broadcast %576 : vector<8x1xf32> to vector<8x32xf32>
    %578 = arith.mulf %573, %577 : vector<8x32xf32>
    %579 = vector.broadcast %307 : vector<1x32xf32> to vector<8x32xf32>
    %580 = arith.mulf %578, %579 : vector<8x32xf32>
    %581 = vector.broadcast %308 : vector<1x32xf32> to vector<8x32xf32>
    %582 = arith.addf %580, %581 : vector<8x32xf32>
    %583 = vector.extract_strided_slice %0 {offsets = [12, 0], sizes = [1, 32], strides = [1, 1]} : vector<16x32xf32> to vector<1x32xf32>
    %584 = vector.extract_strided_slice %0 {offsets = [13, 0], sizes = [1, 32], strides = [1, 1]} : vector<16x32xf32> to vector<1x32xf32>
    %cst_162 = arith.constant dense<0.000000e+00> : vector<8xf32>
    %585 = vector.multi_reduction <add>, %582, %cst_162 [1] : vector<8x32xf32> to vector<8xf32>
    %586 = vector.shape_cast %585 : vector<8xf32> to vector<8x1xf32>
    %cst_163 = arith.constant 3.200000e+01 : f32
    %587 = vector.broadcast %cst_163 : f32 to vector<8x1xf32>
    %588 = arith.divf %586, %587 : vector<8x1xf32>
    %589 = arith.mulf %582, %582 : vector<8x32xf32>
    %cst_164 = arith.constant dense<0.000000e+00> : vector<8xf32>
    %590 = vector.multi_reduction <add>, %589, %cst_164 [1] : vector<8x32xf32> to vector<8xf32>
    %591 = vector.shape_cast %590 : vector<8xf32> to vector<8x1xf32>
    %cst_165 = arith.constant 3.200000e+01 : f32
    %592 = vector.broadcast %cst_165 : f32 to vector<8x1xf32>
    %593 = arith.divf %591, %592 : vector<8x1xf32>
    %594 = arith.mulf %588, %588 : vector<8x1xf32>
    %595 = arith.subf %593, %594 : vector<8x1xf32>
    %596 = vector.broadcast %588 : vector<8x1xf32> to vector<8x32xf32>
    %597 = arith.subf %582, %596 : vector<8x32xf32>
    %cst_166 = arith.constant 9.99999974E-6 : f32
    %598 = vector.broadcast %cst_166 : f32 to vector<8x1xf32>
    %599 = arith.addf %595, %598 : vector<8x1xf32>
    %600 = math.rsqrt %599 : vector<8x1xf32>
    %601 = vector.broadcast %600 : vector<8x1xf32> to vector<8x32xf32>
    %602 = arith.mulf %597, %601 : vector<8x32xf32>
    %603 = vector.broadcast %583 : vector<1x32xf32> to vector<8x32xf32>
    %604 = arith.mulf %602, %603 : vector<8x32xf32>
    %605 = vector.broadcast %584 : vector<1x32xf32> to vector<8x32xf32>
    %606 = arith.addf %604, %605 : vector<8x32xf32>
    %c0_167 = arith.constant 0 : index
    %c0_168 = arith.constant 0 : index
    %607 = vector.load %arg12[%c0_167, %c0_168] : memref<8x32xf32, #tpu.memory_space<vmem>>, vector<8x32xf32>
    tpu.vector_store %arg12[%c0_167, %c0_168], %606 {strides = array<i32>} : memref<8x32xf32, #tpu.memory_space<vmem>>, vector<8x32xf32>,
    return
  }
  func.func @transform_0(%arg0: i32) -> (i32, i32) {
    %c0_i32 = arith.constant 0 : i32
    %c0_i32_0 = arith.constant 0 : i32
    return %arg0, %c0_i32 : i32, i32
  }
  func.func @transform_1(%arg0: i32) -> (i32, i32) {
    %c0_i32 = arith.constant 0 : i32
    %c0_i32_0 = arith.constant 0 : i32
    return %arg0, %c0_i32 : i32, i32
  }
  func.func @transform_2(%arg0: i32) -> (i32, i32) {
    %c0_i32 = arith.constant 0 : i32
    %c0_i32_0 = arith.constant 0 : i32
    %c0_i32_1 = arith.constant 0 : i32
    return %c0_i32, %c0_i32_0 : i32, i32
  }
  func.func @transform_3(%arg0: i32) -> (i32, i32) {
    %c0_i32 = arith.constant 0 : i32
    %c0_i32_0 = arith.constant 0 : i32
    %c0_i32_1 = arith.constant 0 : i32
    return %c0_i32, %c0_i32_0 : i32, i32
  }
  func.func @transform_4(%arg0: i32) -> (i32, i32) {
    %c0_i32 = arith.constant 0 : i32
    %c0_i32_0 = arith.constant 0 : i32
    %c0_i32_1 = arith.constant 0 : i32
    return %c0_i32, %c0_i32_0 : i32, i32
  }
  func.func @transform_5(%arg0: i32) -> (i32, i32) {
    %c0_i32 = arith.constant 0 : i32
    %c0_i32_0 = arith.constant 0 : i32
    %c0_i32_1 = arith.constant 0 : i32
    return %c0_i32, %c0_i32_0 : i32, i32
  }
  func.func @transform_6(%arg0: i32) -> (i32, i32) {
    %c0_i32 = arith.constant 0 : i32
    %c0_i32_0 = arith.constant 0 : i32
    %c0_i32_1 = arith.constant 0 : i32
    return %c0_i32, %c0_i32_0 : i32, i32
  }
  func.func @transform_7(%arg0: i32) -> (i32, i32, i32) {
    %c0_i32 = arith.constant 0 : i32
    %c0_i32_0 = arith.constant 0 : i32
    %c0_i32_1 = arith.constant 0 : i32
    %c0_i32_2 = arith.constant 0 : i32
    return %c0_i32, %c0_i32_0, %c0_i32_1 : i32, i32, i32
  }
  func.func @transform_8(%arg0: i32) -> (i32, i32) {
    %c0_i32 = arith.constant 0 : i32
    %c0_i32_0 = arith.constant 0 : i32
    %c0_i32_1 = arith.constant 0 : i32
    return %c0_i32, %c0_i32_0 : i32, i32
  }
  func.func @transform_9(%arg0: i32) -> (i32, i32, i32) {
    %c0_i32 = arith.constant 0 : i32
    %c0_i32_0 = arith.constant 0 : i32
    %c0_i32_1 = arith.constant 0 : i32
    %c0_i32_2 = arith.constant 0 : i32
    return %c0_i32, %c0_i32_0, %c0_i32_1 : i32, i32, i32
  }
  func.func @transform_10(%arg0: i32) -> (i32, i32) {
    %c0_i32 = arith.constant 0 : i32
    %c0_i32_0 = arith.constant 0 : i32
    %c0_i32_1 = arith.constant 0 : i32
    return %c0_i32, %c0_i32_0 : i32, i32
  }
  func.func @transform_11(%arg0: i32) -> (i32, i32) {
    %c0_i32 = arith.constant 0 : i32
    %c0_i32_0 = arith.constant 0 : i32
    return %arg0, %c0_i32 : i32, i32
  }
}

</mosaic_0001>

<llo_original>
// kernel: tpu_custom_call.1
$region0: #{tpu_custom_call.1}
  #allocation0 [shape = 'u32[]', space=smem, size = 0x4, offset = 0x4, fixed_abs, tag = 'smem constant byte address 0x4 - core index']
  #allocation1 [shape = 'u32[144,128]{1,0:T(1,128)}', space=vmem, size = 0x12000, scoped, tag = 'internal scratch']
  %s0 = inlined_call_operand.vmem [shape: f32[48,32], index: 0, kind: input, shape index: {}]
  %s1 = inlined_call_operand.vmem [shape: f32[64,32], index: 1, kind: input, shape index: {}]
  %s2 = inlined_call_operand.vmem [shape: f32[48,32], index: 2, kind: input, shape index: {}]
  %s3 = inlined_call_operand.vmem [shape: f32[64,32], index: 3, kind: input, shape index: {}]
  %s4 = inlined_call_operand.vmem [shape: s32[56,1], index: 4, kind: input, shape index: {}]
  %s5 = inlined_call_operand.vmem [shape: s32[1,56], index: 5, kind: input, shape index: {}]
  %s6 = inlined_call_operand.vmem [shape: s32[1,64], index: 6, kind: input, shape index: {}]
  %s7 = inlined_call_operand.vmem [shape: f32[4,80,96], index: 7, kind: input, shape index: {}]
  %s8 = inlined_call_operand.vmem [shape: f32[40,128], index: 8, kind: input, shape index: {}]
  %s9 = inlined_call_operand.vmem [shape: f32[2,112,64], index: 9, kind: input, shape index: {}]
  %s10 = inlined_call_operand.vmem [shape: f32[16,32], index: 10, kind: input, shape index: {}]
  %s11 = inlined_call_operand.hbm [shape: f32[8,32], index: 11, kind: output, shape index: {}]
  %s12 = sld [smem:[#allocation0]]
  $region54: #{tpu_custom_call.1} parent=0
    _
  %s14 = ssub.s32 1, %s12
  %s15 = scalar_select 0, %s14, %s12
  $region1: #{tpu_custom_call.1} parent=0
    #allocation2 [shape = 'u8[4096]{0}', space=vmem, size = 0x1000, scoped, tag = 'output window, operand 0, single buffered']
    #allocation3 [shape = 's32[1]{0}', space=sflag, size = 0x4, scoped, tag = 'scoped memory for tpu_custom_call.1']
    %16 = vsyncpa [#allocation3], 0
    // Predicated region
    $region2: #{tpu_custom_call.1} parent=1 // pred_check
      _
    $region3: #{tpu_custom_call.1} parent=1 // pred_check_branch
      %18 = sbr.rel (0) target = $region5
    $region4: #{tpu_custom_call.1} parent=1 // pred_region
      _
    $region5: #{tpu_custom_call.1} parent=1 // pred_fallthru
      _
    // Predicated region
    $region6: #{tpu_custom_call.1} parent=1 // pred_check
      _
    $region7: #{tpu_custom_call.1} parent=1 // pred_check_branch
      %20 = sbr.rel (0) target = $region9
    $region8: #{tpu_custom_call.1} parent=1 // pred_region
      _
    $region9: #{tpu_custom_call.1} parent=1 // pred_fallthru
      _
    // Predicated region
    $region10: #{tpu_custom_call.1} parent=1 // pred_check
      _
    $region11: #{tpu_custom_call.1} parent=1 // pred_check_branch
      %22 = sbr.rel (0) target = $region13
    $region12: #{tpu_custom_call.1} parent=1 // pred_region
      _
    $region13: #{tpu_custom_call.1} parent=1 // pred_fallthru
      _
    // Predicated region
    $region14: #{tpu_custom_call.1} parent=1 // pred_check
      _
    $region15: #{tpu_custom_call.1} parent=1 // pred_check_branch
      %24 = sbr.rel (0) target = $region17
    $region16: #{tpu_custom_call.1} parent=1 // pred_region
      _
    $region17: #{tpu_custom_call.1} parent=1 // pred_fallthru
      _
    // Predicated region
    $region18: #{tpu_custom_call.1} parent=1 // pred_check
      _
    $region19: #{tpu_custom_call.1} parent=1 // pred_check_branch
      %26 = sbr.rel (0) target = $region21
    $region20: #{tpu_custom_call.1} parent=1 // pred_region
      _
    $region21: #{tpu_custom_call.1} parent=1 // pred_fallthru
      _
    // Predicated region
    $region22: #{tpu_custom_call.1} parent=1 // pred_check
      _
    $region23: #{tpu_custom_call.1} parent=1 // pred_check_branch
      %28 = sbr.rel (0) target = $region25
    $region24: #{tpu_custom_call.1} parent=1 // pred_region
      _
    $region25: #{tpu_custom_call.1} parent=1 // pred_fallthru
      _
    // Predicated region
    $region26: #{tpu_custom_call.1} parent=1 // pred_check
      _
    $region27: #{tpu_custom_call.1} parent=1 // pred_check_branch
      %30 = sbr.rel (0) target = $region29
    $region28: #{tpu_custom_call.1} parent=1 // pred_region
      _
    $region29: #{tpu_custom_call.1} parent=1 // pred_fallthru
      _
    // Predicated region
    $region30: #{tpu_custom_call.1} parent=1 // pred_check
      _
    $region31: #{tpu_custom_call.1} parent=1 // pred_check_branch
      %32 = sbr.rel (0) target = $region33
    $region32: #{tpu_custom_call.1} parent=1 // pred_region
      _
    $region33: #{tpu_custom_call.1} parent=1 // pred_fallthru
      _
    // Predicated region
    $region34: #{tpu_custom_call.1} parent=1 // pred_check
      _
    $region35: #{tpu_custom_call.1} parent=1 // pred_check_branch
      %34 = sbr.rel (0) target = $region37
    $region36: #{tpu_custom_call.1} parent=1 // pred_region
      _
    $region37: #{tpu_custom_call.1} parent=1 // pred_fallthru
      _
    // Predicated region
    $region38: #{tpu_custom_call.1} parent=1 // pred_check
      _
    $region39: #{tpu_custom_call.1} parent=1 // pred_check_branch
      %36 = sbr.rel (0) target = $region41
    $region40: #{tpu_custom_call.1} parent=1 // pred_region
      _
    $region41: #{tpu_custom_call.1} parent=1 // pred_fallthru
      _
    // Predicated region
    $region42: #{tpu_custom_call.1} parent=1 // pred_check
      _
    $region43: #{tpu_custom_call.1} parent=1 // pred_check_branch
      %38 = sbr.rel (0) target = $region45
    $region44: #{tpu_custom_call.1} parent=1 // pred_region
      _
    $region45: #{tpu_custom_call.1} parent=1 // pred_fallthru
      _
    %v39 = vld [vmem:[%s10] sm:$0xff]
    %v40 = vld [vmem:[%s10 + $0x8] sm:$0xff]
    %v41 = vld [vmem:[%s0] sm:$0xff]
    %v42 = vld [vmem:[%s0 + $0x8] sm:$0xff]
    %v43 = vld [vmem:[%s0 + $0x10] sm:$0xff]
    %v44 = vld [vmem:[%s0 + $0x18] sm:$0xff]
    %v45 = vld [vmem:[%s0 + $0x20] sm:$0xff]
    %v46 = vld [vmem:[%s0 + $0x28] sm:$0xff]
    %v47 = vld [vmem:[%s2] sm:$0xff]
    %v48 = vld [vmem:[%s2 + $0x8] sm:$0xff]
    %v49 = vld [vmem:[%s2 + $0x10] sm:$0xff]
    %v50 = vld [vmem:[%s2 + $0x18] sm:$0xff]
    %v51 = vld [vmem:[%s2 + $0x20] sm:$0xff]
    %v52 = vld [vmem:[%s2 + $0x28] sm:$0xff]
    %v53 = vadd.f32 %v41, %v47
    %v54 = vadd.f32 %v42, %v48
    %v55 = vadd.f32 %v43, %v49
    %v56 = vadd.f32 %v44, %v50
    %v57 = vadd.f32 %v45, %v51
    %v58 = vadd.f32 %v46, %v52
    %v59 = vlaneseq
    %v60 = vshrl.u32 %v59, 7
    %v61 = vsub.s32 6, %v60
    %v62 = vrot.slane %v40, %v61
    %v63 = vld [vmem:[%s1] sm:$0xff]
    %v64 = vld [vmem:[%s1 + $0x8] sm:$0xff]
    %v65 = vld [vmem:[%s1 + $0x10] sm:$0xff]
    %v66 = vld [vmem:[%s1 + $0x18] sm:$0xff]
    %v67 = vld [vmem:[%s1 + $0x20] sm:$0xff]
    %v68 = vld [vmem:[%s1 + $0x28] sm:$0xff]
    %v69 = vld [vmem:[%s1 + $0x30] sm:$0xff]
    %v70 = vld [vmem:[%s1 + $0x38] sm:$0xff]
    %v71 = vld [vmem:[%s3] sm:$0xff]
    %v72 = vld [vmem:[%s3 + $0x8] sm:$0xff]
    %v73 = vld [vmem:[%s3 + $0x10] sm:$0xff]
    %v74 = vld [vmem:[%s3 + $0x18] sm:$0xff]
    %v75 = vld [vmem:[%s3 + $0x20] sm:$0xff]
    %v76 = vld [vmem:[%s3 + $0x28] sm:$0xff]
    %v77 = vld [vmem:[%s3 + $0x30] sm:$0xff]
    %v78 = vld [vmem:[%s3 + $0x38] sm:$0xff]
    %v79 = vadd.f32 %v63, %v71
    %v80 = vadd.f32 %v64, %v72
    %v81 = vadd.f32 %v65, %v73
    %v82 = vadd.f32 %v66, %v74
    %v83 = vadd.f32 %v67, %v75
    %v84 = vadd.f32 %v68, %v76
    %v85 = vadd.f32 %v69, %v77
    %v86 = vadd.f32 %v70, %v78
    %v87 = vld [vmem:[%s4] sm:$0xff]
    %v88 = vld [vmem:[%s4 + $0x8] sm:$0xff]
    %v89 = vld [vmem:[%s4 + $0x10] sm:$0xff]
    %v90 = vld [vmem:[%s4 + $0x18] sm:$0xff]
    %v91 = vld [vmem:[%s4 + $0x20] sm:$0xff]
    %v92 = vld [vmem:[%s4 + $0x28] sm:$0xff]
    %v93 = vld [vmem:[%s4 + $0x30] sm:$0xff]
    %v94 = vld [vmem:[%s5] sm:$0x1]
    %v95 = vld [vmem:[%s6] sm:$0x1]
    %96 = vset.pattern.permute.xlu0 0
    %97 = vperm.xlu0 %96, %v87
    %v98 = vpop.permute.xlu0 %97
    %99 = vset.pattern.permute.xlu0 0
    %100 = vperm.xlu0 %99, %v88
    %v101 = vpop.permute.xlu0 %100
    %102 = vset.pattern.permute.xlu0 0
    %103 = vperm.xlu0 %102, %v89
    %v104 = vpop.permute.xlu0 %103
    %105 = vset.pattern.permute.xlu0 0
    %106 = vperm.xlu0 %105, %v90
    %v107 = vpop.permute.xlu0 %106
    %108 = vset.pattern.permute.xlu0 0
    %109 = vperm.xlu0 %108, %v91
    %v110 = vpop.permute.xlu0 %109
    %111 = vset.pattern.permute.xlu0 0
    %112 = vperm.xlu0 %111, %v92
    %v113 = vpop.permute.xlu0 %112
    %114 = vset.pattern.permute.xlu0 0
    %115 = vperm.xlu0 %114, %v93
    %v116 = vpop.permute.xlu0 %115
    %v117 = vlaneseq
    %v118 = vshrl.u32 %v117, 7
    %v119 = vsub.s32 0, %v118
    %v120 = vrot.slane %v94, %v119
    %vm121 = vcmp.eq.s32.totalorder %v98, %v120
    %vm122 = vcmp.eq.s32.totalorder %v101, %v120
    %vm123 = vcmp.eq.s32.totalorder %v104, %v120
    %vm124 = vcmp.eq.s32.totalorder %v107, %v120
    %vm125 = vcmp.eq.s32.totalorder %v110, %v120
    %vm126 = vcmp.eq.s32.totalorder %v113, %v120
    %vm127 = vcmp.eq.s32.totalorder %v116, %v120
    %v128 = vsel %vm121, 0.0, -1e+09
    %v129 = vsel %vm122, 0.0, -1e+09
    %v130 = vsel %vm123, 0.0, -1e+09
    %v131 = vsel %vm124, 0.0, -1e+09
    %v132 = vsel %vm125, 0.0, -1e+09
    %v133 = vsel %vm126, 0.0, -1e+09
    %v134 = vsel %vm127, 0.0, -1e+09
    %v135 = vlaneseq
    %v136 = vshrl.u32 %v135, 7
    %v137 = vsub.s32 0, %v136
    %v138 = vrot.slane %v95, %v137
    %vm139 = vcmp.eq.s32.totalorder %v98, %v138
    %vm140 = vcmp.eq.s32.totalorder %v101, %v138
    %vm141 = vcmp.eq.s32.totalorder %v104, %v138
    %vm142 = vcmp.eq.s32.totalorder %v107, %v138
    %vm143 = vcmp.eq.s32.totalorder %v110, %v138
    %vm144 = vcmp.eq.s32.totalorder %v113, %v138
    %vm145 = vcmp.eq.s32.totalorder %v116, %v138
    %v146 = vsel %vm139, 0.0, -1e+09
    %v147 = vsel %vm140, 0.0, -1e+09
    %v148 = vsel %vm141, 0.0, -1e+09
    %v149 = vsel %vm142, 0.0, -1e+09
    %v150 = vsel %vm143, 0.0, -1e+09
    %v151 = vsel %vm144, 0.0, -1e+09
    %v152 = vsel %vm145, 0.0, -1e+09
    %v153 = vld [vmem:[%s8] sm:$0xff]
    %v154 = vld [vmem:[%s8 + $0x8] sm:$0xff]
    %v155 = vld [vmem:[%s8 + $0x10] sm:$0xff]
    %v156 = vld [vmem:[%s8 + $0x18] sm:$0xff]
    %v157 = vld [vmem:[%s8 + $0x20] sm:$0x1]
    %v158 = vlaneseq
    %v159 = vshrl.u32 %v158, 7
    %v160 = vsub.s32 0, %v159
    %v161 = vrot.slane %v157, %v160
    %vm162 = vcmask 261120
    %v164 = vsel %vm162, %v79, 0
    %v167 = vsel %vm162, %v80, 0
    %v170 = vsel %vm162, %v81, 0
    %v173 = vsel %vm162, %v82, 0
    %v176 = vsel %vm162, %v83, 0
    %v179 = vsel %vm162, %v84, 0
    %v182 = vsel %vm162, %v85, 0
    %v185 = vsel %vm162, %v86, 0
    %187 = vmatprep.subr.mxu0 0.0
    %188 = vmatpush1.msra.mxu0 0.0
    %189 = vmatprep.subr.mxu0 0.0
    %190 = vmatpush1.msra.mxu0 0.0
    %191 = vmatprep.subr.mxu0 0.0
    %192 = vmatpush1.msra.mxu0 0.0
    %193 = vmatprep.subr.mxu0 0.0
    %194 = vmatpush1.msra.mxu0 0.0
    %195 = vmatprep.subr.mxu0 0.0
    %196 = vmatpush1.msra.mxu0 0.0
    %197 = vmatprep.subr.mxu0 0.0
    %198 = vmatpush1.msra.mxu0 0.0
    %199 = vmatprep.subr.mxu0 0.0
    %200 = vmatpush1.msra.mxu0 0.0
    %201 = vmatprep.subr.mxu0 0.0
    %202 = vmatpush1.msra.mxu0 0.0
    %203 = vmatprep.subr.mxu0 0.0
    %204 = vmatpush1.msra.mxu0 0.0
    %205 = vmatprep.subr.mxu0 0.0
    %206 = vmatpush1.msra.mxu0 0.0
    %207 = vmatprep.subr.mxu0 0.0
    %208 = vmatpush1.msra.mxu0 0.0
    %209 = vmatprep.subr.mxu0 0.0
    %210 = vmatpush1.msra.mxu0 0.0
    %211 = vmatprep.subr.mxu0 0.0
    %212 = vmatpush1.msra.mxu0 %v156
    %213 = vmatprep.subr.mxu0 0.0
    %214 = vmatpush1.msra.mxu0 %v155
    %215 = vmatprep.subr.mxu0 0.0
    %216 = vmatpush1.msra.mxu0 %v154
    %217 = vmatprep.subr.mxu0 0.0
    %218 = vmatpush1.msra.mxu0 %v153
    %219 = vmatprep.subr.mxu0 0.0
    %220 = vmatpush2.msra.mxu0 0.0
    %221 = vmatprep.subr.mxu0 0.0
    %222 = vmatpush2.msra.mxu0 0.0
    %223 = vmatprep.subr.mxu0 0.0
    %224 = vmatpush2.msra.mxu0 0.0
    %225 = vmatprep.subr.mxu0 0.0
    %226 = vmatpush2.msra.mxu0 0.0
    %227 = vmatprep.subr.mxu0 0.0
    %228 = vmatpush2.msra.mxu0 0.0
    %229 = vmatprep.subr.mxu0 0.0
    %230 = vmatpush2.msra.mxu0 0.0
    %231 = vmatprep.subr.mxu0 0.0
    %232 = vmatpush2.msra.mxu0 0.0
    %233 = vmatprep.subr.mxu0 0.0
    %234 = vmatpush2.msra.mxu0 0.0
    %235 = vmatprep.subr.mxu0 0.0
    %236 = vmatpush2.msra.mxu0 0.0
    %237 = vmatprep.subr.mxu0 0.0
    %238 = vmatpush2.msra.mxu0 0.0
    %239 = vmatprep.subr.mxu0 0.0
    %240 = vmatpush2.msra.mxu0 0.0
    %241 = vmatprep.subr.mxu0 0.0
    %242 = vmatpush2.msra.mxu0 0.0
    %243 = vmatprep.subr.mxu0 0.0
    %244 = vmatpush2.msra.mxu0 0.0
    %245 = vmatprep.subr.mxu0 0.0
    %246 = vmatpush2.msra.mxu0 0.0
    %247 = vmatprep.subr.mxu0 0.0
    %248 = vmatpush2.msra.mxu0 0.0
    %249 = vmatprep.subr.mxu0 0.0
    %250 = vmatpush2.msra.mxu0 0.0
    %251 = vmatprep.mubr.f32.mxu0 0.0
    %252 = vmatmul.mubr.f32.gmra.mxu0 %v164
    %v253 = vpop.f32.mrf.mxu0
    %v254 = vadd.f32 %v161, %v253
    %v255 = vpop.f32.mrf.mxu0
    %256 = vmatprep.mubr.f32.mxu0 0.0
    %257 = vmatmul.mubr.f32.gmra.mxu0 %v167
    %v258 = vpop.f32.mrf.mxu0
    %v259 = vadd.f32 %v161, %v258
    %v260 = vpop.f32.mrf.mxu0
    %261 = vmatprep.mubr.f32.mxu0 0.0
    %262 = vmatmul.mubr.f32.gmra.mxu0 %v170
    %v263 = vpop.f32.mrf.mxu0
    %v264 = vadd.f32 %v161, %v263
    %v265 = vpop.f32.mrf.mxu0
    %266 = vmatprep.mubr.f32.mxu0 0.0
    %267 = vmatmul.mubr.f32.gmra.mxu0 %v173
    %v268 = vpop.f32.mrf.mxu0
    %v269 = vadd.f32 %v161, %v268
    %v270 = vpop.f32.mrf.mxu0
    %271 = vmatprep.mubr.f32.mxu0 0.0
    %272 = vmatmul.mubr.f32.gmra.mxu0 %v176
    %v273 = vpop.f32.mrf.mxu0
    %v274 = vadd.f32 %v161, %v273
    %v275 = vpop.f32.mrf.mxu0
    %276 = vmatprep.mubr.f32.mxu0 0.0
    %277 = vmatmul.mubr.f32.gmra.mxu0 %v179
    %v278 = vpop.f32.mrf.mxu0
    %v279 = vadd.f32 %v161, %v278
    %v280 = vpop.f32.mrf.mxu0
    %281 = vmatprep.mubr.f32.mxu0 0.0
    %282 = vmatmul.mubr.f32.gmra.mxu0 %v182
    %v283 = vpop.f32.mrf.mxu0
    %v284 = vadd.f32 %v161, %v283
    %v285 = vpop.f32.mrf.mxu0
    %286 = vmatprep.mubr.f32.mxu0 0.0
    %287 = vmatmul.mubr.f32.gmra.mxu0 %v185
    %v288 = vpop.f32.mrf.mxu0
    %v289 = vadd.f32 %v161, %v288
    %v290 = vpop.f32.mrf.mxu0
    %291 = vdwg.mxu0
    %v292 = vld [vmem:[%s7] sm:$0xff]
    %v293 = vld [vmem:[%s7 + $0x8] sm:$0xff]
    %v294 = vld [vmem:[%s7 + $0x10] sm:$0xff]
    %v295 = vld [vmem:[%s7 + $0x18] sm:$0xff]
    %v296 = vld [vmem:[%s7 + $0x20] sm:$0xff]
    %v297 = vld [vmem:[%s7 + $0x28] sm:$0xff]
    %v298 = vld [vmem:[%s7 + $0x30] sm:$0xff]
    %v299 = vld [vmem:[%s7 + $0x38] sm:$0xff]
    %v300 = vld [vmem:[%s7 + $0x40] sm:$0xff]
    %v301 = vld [vmem:[%s7 + $0x48] sm:$0xff]
    %s302 = scalar_lea.vmem %s7, 80
    %v303 = vld [vmem:[%s302] sm:$0xff]
    %v304 = vld [vmem:[%s302 + $0x8] sm:$0xff]
    %v305 = vld [vmem:[%s302 + $0x10] sm:$0xff]
    %v306 = vld [vmem:[%s302 + $0x18] sm:$0xff]
    %v307 = vld [vmem:[%s302 + $0x20] sm:$0xff]
    %v308 = vld [vmem:[%s302 + $0x28] sm:$0xff]
    %v309 = vld [vmem:[%s302 + $0x30] sm:$0xff]
    %v310 = vld [vmem:[%s302 + $0x38] sm:$0xff]
    %v311 = vld [vmem:[%s302 + $0x40] sm:$0xff]
    %v312 = vld [vmem:[%s302 + $0x48] sm:$0xff]
    %v313 = vld [vmem:[%s9] sm:$0xff]
    %v314 = vld [vmem:[%s9 + $0x8] sm:$0xff]
    %v315 = vld [vmem:[%s9 + $0x10] sm:$0xff]
    %v316 = vld [vmem:[%s9 + $0x18] sm:$0xff]
    %v317 = vld [vmem:[%s9 + $0x20] sm:$0xff]
    %v318 = vld [vmem:[%s9 + $0x28] sm:$0xff]
    %v319 = vld [vmem:[%s9 + $0x30] sm:$0xff]
    %v320 = vld [vmem:[%s9 + $0x38] sm:$0xff]
    %v321 = vld [vmem:[%s9 + $0x40] sm:$0xff]
    %v322 = vld [vmem:[%s9 + $0x48] sm:$0xff]
    %v323 = vld [vmem:[%s9 + $0x50] sm:$0xff]
    %v324 = vld [vmem:[%s9 + $0x58] sm:$0xff]
    %v325 = vld [vmem:[%s9 + $0x60] sm:$0xff]
    %v326 = vld [vmem:[%s9 + $0x68] sm:$0xff]
    %v327 = vlaneseq
    %v328 = vshrl.u32 %v327, 7
    %v329 = vsub.s32 0, %v328
    %v330 = vrot.slane %v296, %v329
    %v332 = vsel %vm162, %v53, 0
    %v335 = vsel %vm162, %v54, 0
    %v338 = vsel %vm162, %v55, 0
    %v341 = vsel %vm162, %v56, 0
    %v344 = vsel %vm162, %v57, 0
    %v347 = vsel %vm162, %v58, 0
    %v350 = vsel %vm162, %v62, 0
    %352 = vmatprep.subr.mxu0 0.0
    %353 = vmatpush1.msra.mxu0 0.0
    %354 = vmatprep.subr.mxu0 0.0
    %355 = vmatpush1.msra.mxu0 0.0
    %356 = vmatprep.subr.mxu0 0.0
    %357 = vmatpush1.msra.mxu0 0.0
    %358 = vmatprep.subr.mxu0 0.0
    %359 = vmatpush1.msra.mxu0 0.0
    %360 = vmatprep.subr.mxu0 0.0
    %361 = vmatpush1.msra.mxu0 0.0
    %362 = vmatprep.subr.mxu0 0.0
    %363 = vmatpush1.msra.mxu0 0.0
    %364 = vmatprep.subr.mxu0 0.0
    %365 = vmatpush1.msra.mxu0 0.0
    %366 = vmatprep.subr.mxu0 0.0
    %367 = vmatpush1.msra.mxu0 0.0
    %368 = vmatprep.subr.mxu0 0.0
    %369 = vmatpush1.msra.mxu0 0.0
    %370 = vmatprep.subr.mxu0 0.0
    %371 = vmatpush1.msra.mxu0 0.0
    %372 = vmatprep.subr.mxu0 0.0
    %373 = vmatpush1.msra.mxu0 0.0
    %374 = vmatprep.subr.mxu0 0.0
    %375 = vmatpush1.msra.mxu0 0.0
    %376 = vmatprep.subr.mxu0 0.0
    %377 = vmatpush1.msra.mxu0 %v295
    %378 = vmatprep.subr.mxu0 0.0
    %379 = vmatpush1.msra.mxu0 %v294
    %380 = vmatprep.subr.mxu0 0.0
    %381 = vmatpush1.msra.mxu0 %v293
    %382 = vmatprep.subr.mxu0 0.0
    %383 = vmatpush1.msra.mxu0 %v292
    %384 = vmatprep.subr.mxu0 0.0
    %385 = vmatpush2.msra.mxu0 0.0
    %386 = vmatprep.subr.mxu0 0.0
    %387 = vmatpush2.msra.mxu0 0.0
    %388 = vmatprep.subr.mxu0 0.0
    %389 = vmatpush2.msra.mxu0 0.0
    %390 = vmatprep.subr.mxu0 0.0
    %391 = vmatpush2.msra.mxu0 0.0
    %392 = vmatprep.subr.mxu0 0.0
    %393 = vmatpush2.msra.mxu0 0.0
    %394 = vmatprep.subr.mxu0 0.0
    %395 = vmatpush2.msra.mxu0 0.0
    %396 = vmatprep.subr.mxu0 0.0
    %397 = vmatpush2.msra.mxu0 0.0
    %398 = vmatprep.subr.mxu0 0.0
    %399 = vmatpush2.msra.mxu0 0.0
    %400 = vmatprep.subr.mxu0 0.0
    %401 = vmatpush2.msra.mxu0 0.0
    %402 = vmatprep.subr.mxu0 0.0
    %403 = vmatpush2.msra.mxu0 0.0
    %404 = vmatprep.subr.mxu0 0.0
    %405 = vmatpush2.msra.mxu0 0.0
    %406 = vmatprep.subr.mxu0 0.0
    %407 = vmatpush2.msra.mxu0 0.0
    %408 = vmatprep.subr.mxu0 0.0
    %409 = vmatpush2.msra.mxu0 0.0
    %410 = vmatprep.subr.mxu0 0.0
    %411 = vmatpush2.msra.mxu0 0.0
    %412 = vmatprep.subr.mxu0 0.0
    %413 = vmatpush2.msra.mxu0 0.0
    %414 = vmatprep.subr.mxu0 0.0
    %415 = vmatpush2.msra.mxu0 0.0
    %416 = vmatprep.mubr.f32.mxu0 0.0
    %417 = vmatmul.mubr.f32.gmra.mxu0 %v332
    %v418 = vpop.f32.mrf.mxu0
    %v419 = vadd.f32 %v330, %v418
    %v420 = vpop.f32.mrf.mxu0
    %421 = vmatprep.mubr.f32.mxu0 0.0
    %422 = vmatmul.mubr.f32.gmra.mxu0 %v335
    %v423 = vpop.f32.mrf.mxu0
    %v424 = vadd.f32 %v330, %v423
    %v425 = vpop.f32.mrf.mxu0
    %426 = vmatprep.mubr.f32.mxu0 0.0
    %427 = vmatmul.mubr.f32.gmra.mxu0 %v338
    %v428 = vpop.f32.mrf.mxu0
    %v429 = vadd.f32 %v330, %v428
    %v430 = vpop.f32.mrf.mxu0
    %431 = vmatprep.mubr.f32.mxu0 0.0
    %432 = vmatmul.mubr.f32.gmra.mxu0 %v341
    %v433 = vpop.f32.mrf.mxu0
    %v434 = vadd.f32 %v330, %v433
    %v435 = vpop.f32.mrf.mxu0
    %436 = vmatprep.mubr.f32.mxu0 0.0
    %437 = vmatmul.mubr.f32.gmra.mxu0 %v344
    %v438 = vpop.f32.mrf.mxu0
    %v439 = vadd.f32 %v330, %v438
    %v440 = vpop.f32.mrf.mxu0
    %441 = vmatprep.mubr.f32.mxu0 0.0
    %442 = vmatmul.mubr.f32.gmra.mxu0 %v347
    %v443 = vpop.f32.mrf.mxu0
    %v444 = vadd.f32 %v330, %v443
    %v445 = vpop.f32.mrf.mxu0
    %446 = vmatprep.mubr.f32.mxu0 0.0
    %447 = vmatmul.mubr.f32.gmra.mxu0 %v350
    %v448 = vpop.f32.mrf.mxu0
    %v449 = vadd.f32 %v330, %v448
    %v450 = vpop.f32.mrf.mxu0
    %451 = vdwg.mxu0
    %459 = vrot.lane.b32.xlu0 %v419, 96
    %v460 = vpop.permute.xlu0 %459
    %461 = vrot.lane.b32.xlu0 %v424, 96
    %v462 = vpop.permute.xlu0 %461
    %463 = vrot.lane.b32.xlu0 %v429, 96
    %v464 = vpop.permute.xlu0 %463
    %465 = vrot.lane.b32.xlu0 %v434, 96
    %v466 = vpop.permute.xlu0 %465
    %467 = vrot.lane.b32.xlu0 %v439, 96
    %v468 = vpop.permute.xlu0 %467
    %469 = vrot.lane.b32.xlu0 %v444, 96
    %v470 = vpop.permute.xlu0 %469
    %471 = vrot.lane.b32.xlu0 %v449, 96
    %v472 = vpop.permute.xlu0 %471
    %vm473 = vcmask 64512
    %v474 = vsel %vm473, %v419, 0
    %v476 = vsel %vm473, %v424, 0
    %v478 = vsel %vm473, %v429, 0
    %v480 = vsel %vm473, %v434, 0
    %v482 = vsel %vm473, %v439, 0
    %v484 = vsel %vm473, %v444, 0
    %v486 = vsel %vm473, %v449, 0
    %v488 = vsel %vm473, %v460, 0
    %v490 = vsel %vm473, %v462, 0
    %v492 = vsel %vm473, %v464, 0
    %v494 = vsel %vm473, %v466, 0
    %v496 = vsel %vm473, %v468, 0
    %v498 = vsel %vm473, %v470, 0
    %v500 = vsel %vm473, %v472, 0
    %502 = vmatprep.subr.mxu0 0.0
    %503 = vmatpush1.xpose.msra.mxu0 0.0
    %504 = vmatprep.subr.mxu0 0.0
    %505 = vmatpush1.xpose.msra.mxu0 0.0
    %506 = vmatprep.subr.mxu0 0.0
    %507 = vmatpush1.xpose.msra.mxu0 0.0
    %508 = vmatprep.subr.mxu0 0.0
    %509 = vmatpush1.xpose.msra.mxu0 0.0
    %510 = vmatprep.subr.mxu0 0.0
    %511 = vmatpush1.xpose.msra.mxu0 0.0
    %512 = vmatprep.subr.mxu0 0.0
    %513 = vmatpush1.xpose.msra.mxu0 0.0
    %514 = vmatprep.subr.mxu0 0.0
    %515 = vmatpush1.xpose.msra.mxu0 0.0
    %516 = vmatprep.subr.mxu0 0.0
    %517 = vmatpush1.xpose.msra.mxu0 0.0
    %518 = vmatprep.subr.mxu0 0.0
    %519 = vmatpush1.xpose.msra.mxu0 0.0
    %520 = vmatprep.subr.mxu0 0.0
    %521 = vmatpush1.xpose.msra.mxu0 %v500
    %522 = vmatprep.subr.mxu0 0.0
    %523 = vmatpush1.xpose.msra.mxu0 %v498
    %524 = vmatprep.subr.mxu0 0.0
    %525 = vmatpush1.xpose.msra.mxu0 %v496
    %526 = vmatprep.subr.mxu0 0.0
    %527 = vmatpush1.xpose.msra.mxu0 %v494
    %528 = vmatprep.subr.mxu0 0.0
    %529 = vmatpush1.xpose.msra.mxu0 %v492
    %530 = vmatprep.subr.mxu0 0.0
    %531 = vmatpush1.xpose.msra.mxu0 %v490
    %532 = vmatprep.subr.mxu0 0.0
    %533 = vmatpush1.xpose.msra.mxu0 %v488
    %534 = vmatprep.subr.mxu0 0.0
    %535 = vmatpush2.xpose.msra.mxu0 0.0
    %536 = vmatprep.subr.mxu0 0.0
    %537 = vmatpush2.xpose.msra.mxu0 0.0
    %538 = vmatprep.subr.mxu0 0.0
    %539 = vmatpush2.xpose.msra.mxu0 0.0
    %540 = vmatprep.subr.mxu0 0.0
    %541 = vmatpush2.xpose.msra.mxu0 0.0
    %542 = vmatprep.subr.mxu0 0.0
    %543 = vmatpush2.xpose.msra.mxu0 0.0
    %544 = vmatprep.subr.mxu0 0.0
    %545 = vmatpush2.xpose.msra.mxu0 0.0
    %546 = vmatprep.subr.mxu0 0.0
    %547 = vmatpush2.xpose.msra.mxu0 0.0
    %548 = vmatprep.subr.mxu0 0.0
    %549 = vmatpush2.xpose.msra.mxu0 0.0
    %550 = vmatprep.subr.mxu0 0.0
    %551 = vmatpush2.xpose.msra.mxu0 0.0
    %552 = vmatprep.subr.mxu0 0.0
    %553 = vmatpush2.xpose.msra.mxu0 0.0
    %554 = vmatprep.subr.mxu0 0.0
    %555 = vmatpush2.xpose.msra.mxu0 0.0
    %556 = vmatprep.subr.mxu0 0.0
    %557 = vmatpush2.xpose.msra.mxu0 0.0
    %558 = vmatprep.subr.mxu0 0.0
    %559 = vmatpush2.xpose.msra.mxu0 0.0
    %560 = vmatprep.subr.mxu0 0.0
    %561 = vmatpush2.xpose.msra.mxu0 0.0
    %562 = vmatprep.subr.mxu0 0.0
    %563 = vmatpush2.xpose.msra.mxu0 0.0
    %564 = vmatprep.subr.mxu0 0.0
    %565 = vmatpush2.xpose.msra.mxu0 0.0
    %566 = vmatprep.mubr.f32.mxu0 0.0
    %567 = vmatmul.mubr.f32.gmra.mxu0 %v474
    %v568 = vpop.f32.mrf.mxu0
    %v569 = vadd.f32 %v128, %v568
    %v570 = vpop.f32.mrf.mxu0
    %571 = vmatprep.mubr.f32.mxu0 0.0
    %572 = vmatmul.mubr.f32.gmra.mxu0 %v476
    %v573 = vpop.f32.mrf.mxu0
    %v574 = vadd.f32 %v129, %v573
    %v575 = vpop.f32.mrf.mxu0
    %576 = vmatprep.mubr.f32.mxu0 0.0
    %577 = vmatmul.mubr.f32.gmra.mxu0 %v478
    %v578 = vpop.f32.mrf.mxu0
    %v579 = vadd.f32 %v130, %v578
    %v580 = vpop.f32.mrf.mxu0
    %581 = vmatprep.mubr.f32.mxu0 0.0
    %582 = vmatmul.mubr.f32.gmra.mxu0 %v480
    %v583 = vpop.f32.mrf.mxu0
    %v584 = vadd.f32 %v131, %v583
    %v585 = vpop.f32.mrf.mxu0
    %586 = vmatprep.mubr.f32.mxu0 0.0
    %587 = vmatmul.mubr.f32.gmra.mxu0 %v482
    %v588 = vpop.f32.mrf.mxu0
    %v589 = vadd.f32 %v132, %v588
    %v590 = vpop.f32.mrf.mxu0
    %591 = vmatprep.mubr.f32.mxu0 0.0
    %592 = vmatmul.mubr.f32.gmra.mxu0 %v484
    %v593 = vpop.f32.mrf.mxu0
    %v594 = vadd.f32 %v133, %v593
    %v595 = vpop.f32.mrf.mxu0
    %596 = vmatprep.mubr.f32.mxu0 0.0
    %597 = vmatmul.mubr.f32.gmra.mxu0 %v486
    %v598 = vpop.f32.mrf.mxu0
    %v599 = vadd.f32 %v134, %v598
    %v600 = vpop.f32.mrf.mxu0
    %601 = vdwg.mxu0
    %vm602 = vcmask 457728
    %v603 = vsel %vm602, %v569, -inf
    %604 = vmax.xlane.f32.xlu0 %v603
    %v605 = vpop.xlane.xlu0 %604
    %v606 = vsel %vm602, %v574, -inf
    %607 = vmax.xlane.f32.xlu0 %v606
    %v608 = vpop.xlane.xlu0 %607
    %v609 = vsel %vm602, %v579, -inf
    %610 = vmax.xlane.f32.xlu0 %v609
    %v611 = vpop.xlane.xlu0 %610
    %v612 = vsel %vm602, %v584, -inf
    %613 = vmax.xlane.f32.xlu0 %v612
    %v614 = vpop.xlane.xlu0 %613
    %v615 = vsel %vm602, %v589, -inf
    %616 = vmax.xlane.f32.xlu0 %v615
    %v617 = vpop.xlane.xlu0 %616
    %v618 = vsel %vm602, %v594, -inf
    %619 = vmax.xlane.f32.xlu0 %v618
    %v620 = vpop.xlane.xlu0 %619
    %v621 = vsel %vm602, %v599, -inf
    %622 = vmax.xlane.f32.xlu0 %v621
    %v623 = vpop.xlane.xlu0 %622
    %v624 = vsub.f32 %v569, %v605
    %v625 = vsub.f32 %v574, %v608
    %v626 = vsub.f32 %v579, %v611
    %v627 = vsub.f32 %v584, %v614
    %v628 = vsub.f32 %v589, %v617
    %v629 = vsub.f32 %v594, %v620
    %v630 = vsub.f32 %v599, %v623
    %v631 = vmul.f32 %v624, 1.442695
    %v632 = vpow.pop %v631
    %v633 = vmul.f32 %v625, 1.442695
    %v634 = vpow.pop %v633
    %v635 = vmul.f32 %v626, 1.442695
    %v636 = vpow.pop %v635
    %v637 = vmul.f32 %v627, 1.442695
    %v638 = vpow.pop %v637
    %v639 = vmul.f32 %v628, 1.442695
    %v640 = vpow.pop %v639
    %v641 = vmul.f32 %v629, 1.442695
    %v642 = vpow.pop %v641
    %v643 = vmul.f32 %v630, 1.442695
    %v644 = vpow.pop %v643
    %v645 = vsel %vm602, %v632, 0.0
    %646 = vadd.xlane.f32.xlu0 %v645
    %v647 = vpop.xlane.xlu0 %646
    %v648 = vsel %vm602, %v634, 0.0
    %649 = vadd.xlane.f32.xlu0 %v648
    %v650 = vpop.xlane.xlu0 %649
    %v651 = vsel %vm602, %v636, 0.0
    %652 = vadd.xlane.f32.xlu0 %v651
    %v653 = vpop.xlane.xlu0 %652
    %v654 = vsel %vm602, %v638, 0.0
    %655 = vadd.xlane.f32.xlu0 %v654
    %v656 = vpop.xlane.xlu0 %655
    %v657 = vsel %vm602, %v640, 0.0
    %658 = vadd.xlane.f32.xlu0 %v657
    %v659 = vpop.xlane.xlu0 %658
    %v660 = vsel %vm602, %v642, 0.0
    %661 = vadd.xlane.f32.xlu0 %v660
    %v662 = vpop.xlane.xlu0 %661
    %v663 = vsel %vm602, %v644, 0.0
    %664 = vadd.xlane.f32.xlu0 %v663
    %v665 = vpop.xlane.xlu0 %664
    %v666 = vrcp.pop %v647
    %v667 = vrcp.pop %v650
    %v668 = vrcp.pop %v653
    %v669 = vrcp.pop %v656
    %v670 = vrcp.pop %v659
    %v671 = vrcp.pop %v662
    %v672 = vrcp.pop %v665
    %v673 = vmul.f32 %v632, %v666
    %v674 = vmul.f32 %v634, %v667
    %v675 = vmul.f32 %v636, %v668
    %v676 = vmul.f32 %v638, %v669
    %v677 = vmul.f32 %v640, %v670
    %v678 = vmul.f32 %v642, %v671
    %v679 = vmul.f32 %v644, %v672
    %680 = vrot.lane.b32.xlu0 %v419, 64
    %v681 = vpop.permute.xlu0 %680
    %682 = vrot.lane.b32.xlu0 %v424, 64
    %v683 = vpop.permute.xlu0 %682
    %684 = vrot.lane.b32.xlu0 %v429, 64
    %v685 = vpop.permute.xlu0 %684
    %686 = vrot.lane.b32.xlu0 %v434, 64
    %v687 = vpop.permute.xlu0 %686
    %688 = vrot.lane.b32.xlu0 %v439, 64
    %v689 = vpop.permute.xlu0 %688
    %690 = vrot.lane.b32.xlu0 %v444, 64
    %v691 = vpop.permute.xlu0 %690
    %692 = vrot.lane.b32.xlu0 %v449, 64
    %v693 = vpop.permute.xlu0 %692
    %v702 = vsel %vm602, %v673, 0
    %v705 = vsel %vm602, %v674, 0
    %v708 = vsel %vm602, %v675, 0
    %v711 = vsel %vm602, %v676, 0
    %v714 = vsel %vm602, %v677, 0
    %v717 = vsel %vm602, %v678, 0
    %v720 = vsel %vm602, %v679, 0
    %722 = vmatprep.subr.mxu0 0.0
    %723 = vmatpush1.msra.mxu0 0.0
    %724 = vmatprep.subr.mxu0 0.0
    %725 = vmatpush1.msra.mxu0 0.0
    %726 = vmatprep.subr.mxu0 0.0
    %727 = vmatpush1.msra.mxu0 0.0
    %728 = vmatprep.subr.mxu0 0.0
    %729 = vmatpush1.msra.mxu0 0.0
    %730 = vmatprep.subr.mxu0 0.0
    %731 = vmatpush1.msra.mxu0 0.0
    %732 = vmatprep.subr.mxu0 0.0
    %733 = vmatpush1.msra.mxu0 0.0
    %734 = vmatprep.subr.mxu0 0.0
    %735 = vmatpush1.msra.mxu0 0.0
    %736 = vmatprep.subr.mxu0 0.0
    %737 = vmatpush1.msra.mxu0 0.0
    %738 = vmatprep.subr.mxu0 0.0
    %739 = vmatpush1.msra.mxu0 0.0
    %740 = vmatprep.subr.mxu0 0.0
    %741 = vmatpush1.msra.mxu0 %v693
    %742 = vmatprep.subr.mxu0 0.0
    %743 = vmatpush1.msra.mxu0 %v691
    %744 = vmatprep.subr.mxu0 0.0
    %745 = vmatpush1.msra.mxu0 %v689
    %746 = vmatprep.subr.mxu0 0.0
    %747 = vmatpush1.msra.mxu0 %v687
    %748 = vmatprep.subr.mxu0 0.0
    %749 = vmatpush1.msra.mxu0 %v685
    %750 = vmatprep.subr.mxu0 0.0
    %751 = vmatpush1.msra.mxu0 %v683
    %752 = vmatprep.subr.mxu0 0.0
    %753 = vmatpush1.msra.mxu0 %v681
    %754 = vmatprep.subr.mxu0 0.0
    %755 = vmatpush2.msra.mxu0 0.0
    %756 = vmatprep.subr.mxu0 0.0
    %757 = vmatpush2.msra.mxu0 0.0
    %758 = vmatprep.subr.mxu0 0.0
    %759 = vmatpush2.msra.mxu0 0.0
    %760 = vmatprep.subr.mxu0 0.0
    %761 = vmatpush2.msra.mxu0 0.0
    %762 = vmatprep.subr.mxu0 0.0
    %763 = vmatpush2.msra.mxu0 0.0
    %764 = vmatprep.subr.mxu0 0.0
    %765 = vmatpush2.msra.mxu0 0.0
    %766 = vmatprep.subr.mxu0 0.0
    %767 = vmatpush2.msra.mxu0 0.0
    %768 = vmatprep.subr.mxu0 0.0
    %769 = vmatpush2.msra.mxu0 0.0
    %770 = vmatprep.subr.mxu0 0.0
    %771 = vmatpush2.msra.mxu0 0.0
    %772 = vmatprep.subr.mxu0 0.0
    %773 = vmatpush2.msra.mxu0 0.0
    %774 = vmatprep.subr.mxu0 0.0
    %775 = vmatpush2.msra.mxu0 0.0
    %776 = vmatprep.subr.mxu0 0.0
    %777 = vmatpush2.msra.mxu0 0.0
    %778 = vmatprep.subr.mxu0 0.0
    %779 = vmatpush2.msra.mxu0 0.0
    %780 = vmatprep.subr.mxu0 0.0
    %781 = vmatpush2.msra.mxu0 0.0
    %782 = vmatprep.subr.mxu0 0.0
    %783 = vmatpush2.msra.mxu0 0.0
    %784 = vmatprep.subr.mxu0 0.0
    %785 = vmatpush2.msra.mxu0 0.0
    %786 = vmatprep.mubr.f32.mxu0 0.0
    %787 = vmatmul.mubr.f32.gmra.mxu0 %v702
    %v788 = vpop.f32.mrf.mxu0
    %v789 = vadd.f32 0.0, %v788
    %v790 = vpop.f32.mrf.mxu0
    %791 = vmatprep.mubr.f32.mxu0 0.0
    %792 = vmatmul.mubr.f32.gmra.mxu0 %v705
    %v793 = vpop.f32.mrf.mxu0
    %v794 = vadd.f32 0.0, %v793
    %v795 = vpop.f32.mrf.mxu0
    %796 = vmatprep.mubr.f32.mxu0 0.0
    %797 = vmatmul.mubr.f32.gmra.mxu0 %v708
    %v798 = vpop.f32.mrf.mxu0
    %v799 = vadd.f32 0.0, %v798
    %v800 = vpop.f32.mrf.mxu0
    %801 = vmatprep.mubr.f32.mxu0 0.0
    %802 = vmatmul.mubr.f32.gmra.mxu0 %v711
    %v803 = vpop.f32.mrf.mxu0
    %v804 = vadd.f32 0.0, %v803
    %v805 = vpop.f32.mrf.mxu0
    %806 = vmatprep.mubr.f32.mxu0 0.0
    %807 = vmatmul.mubr.f32.gmra.mxu0 %v714
    %v808 = vpop.f32.mrf.mxu0
    %v809 = vadd.f32 0.0, %v808
    %v810 = vpop.f32.mrf.mxu0
    %811 = vmatprep.mubr.f32.mxu0 0.0
    %812 = vmatmul.mubr.f32.gmra.mxu0 %v717
    %v813 = vpop.f32.mrf.mxu0
    %v814 = vadd.f32 0.0, %v813
    %v815 = vpop.f32.mrf.mxu0
    %816 = vmatprep.mubr.f32.mxu0 0.0
    %817 = vmatmul.mubr.f32.gmra.mxu0 %v720
    %v818 = vpop.f32.mrf.mxu0
    %v819 = vadd.f32 0.0, %v818
    %v820 = vpop.f32.mrf.mxu0
    %821 = vdwg.mxu0
    %v823 = vsel %vm473, %v789, 0
    %v826 = vsel %vm473, %v794, 0
    %v829 = vsel %vm473, %v799, 0
    %v832 = vsel %vm473, %v804, 0
    %v835 = vsel %vm473, %v809, 0
    %v838 = vsel %vm473, %v814, 0
    %v841 = vsel %vm473, %v819, 0
    %843 = vmatprep.subr.mxu0 0.0
    %844 = vmatpush1.msra.mxu0 0.0
    %845 = vmatprep.subr.mxu0 0.0
    %846 = vmatpush1.msra.mxu0 0.0
    %847 = vmatprep.subr.mxu0 0.0
    %848 = vmatpush1.msra.mxu0 0.0
    %849 = vmatprep.subr.mxu0 0.0
    %850 = vmatpush1.msra.mxu0 0.0
    %851 = vmatprep.subr.mxu0 0.0
    %852 = vmatpush1.msra.mxu0 0.0
    %853 = vmatprep.subr.mxu0 0.0
    %854 = vmatpush1.msra.mxu0 0.0
    %855 = vmatprep.subr.mxu0 0.0
    %856 = vmatpush1.msra.mxu0 0.0
    %857 = vmatprep.subr.mxu0 0.0
    %858 = vmatpush1.msra.mxu0 0.0
    %859 = vmatprep.subr.mxu0 0.0
    %860 = vmatpush1.msra.mxu0 0.0
    %861 = vmatprep.subr.mxu0 0.0
    %862 = vmatpush1.msra.mxu0 0.0
    %863 = vmatprep.subr.mxu0 0.0
    %864 = vmatpush1.msra.mxu0 0.0
    %865 = vmatprep.subr.mxu0 0.0
    %866 = vmatpush1.msra.mxu0 0.0
    %867 = vmatprep.subr.mxu0 0.0
    %868 = vmatpush1.msra.mxu0 0.0
    %869 = vmatprep.subr.mxu0 0.0
    %870 = vmatpush1.msra.mxu0 0.0
    %871 = vmatprep.subr.mxu0 0.0
    %872 = vmatpush1.msra.mxu0 0.0
    %873 = vmatprep.subr.mxu0 0.0
    %874 = vmatpush1.msra.mxu0 %v297
    %875 = vmatprep.subr.mxu0 0.0
    %876 = vmatpush2.msra.mxu0 0.0
    %877 = vmatprep.subr.mxu0 0.0
    %878 = vmatpush2.msra.mxu0 0.0
    %879 = vmatprep.subr.mxu0 0.0
    %880 = vmatpush2.msra.mxu0 0.0
    %881 = vmatprep.subr.mxu0 0.0
    %882 = vmatpush2.msra.mxu0 0.0
    %883 = vmatprep.subr.mxu0 0.0
    %884 = vmatpush2.msra.mxu0 0.0
    %885 = vmatprep.subr.mxu0 0.0
    %886 = vmatpush2.msra.mxu0 0.0
    %887 = vmatprep.subr.mxu0 0.0
    %888 = vmatpush2.msra.mxu0 0.0
    %889 = vmatprep.subr.mxu0 0.0
    %890 = vmatpush2.msra.mxu0 0.0
    %891 = vmatprep.subr.mxu0 0.0
    %892 = vmatpush2.msra.mxu0 0.0
    %893 = vmatprep.subr.mxu0 0.0
    %894 = vmatpush2.msra.mxu0 0.0
    %895 = vmatprep.subr.mxu0 0.0
    %896 = vmatpush2.msra.mxu0 0.0
    %897 = vmatprep.subr.mxu0 0.0
    %898 = vmatpush2.msra.mxu0 0.0
    %899 = vmatprep.subr.mxu0 0.0
    %900 = vmatpush2.msra.mxu0 0.0
    %901 = vmatprep.subr.mxu0 0.0
    %902 = vmatpush2.msra.mxu0 0.0
    %903 = vmatprep.subr.mxu0 0.0
    %904 = vmatpush2.msra.mxu0 0.0
    %905 = vmatprep.subr.mxu0 0.0
    %906 = vmatpush2.msra.mxu0 0.0
    %907 = vmatprep.mubr.f32.mxu0 0.0
    %908 = vmatmul.mubr.f32.gmra.mxu0 %v823
    %v909 = vpop.f32.mrf.mxu0
    %v910 = vadd.f32 0.0, %v909
    %v911 = vpop.f32.mrf.mxu0
    %912 = vmatprep.mubr.f32.mxu0 0.0
    %913 = vmatmul.mubr.f32.gmra.mxu0 %v826
    %v914 = vpop.f32.mrf.mxu0
    %v915 = vadd.f32 0.0, %v914
    %v916 = vpop.f32.mrf.mxu0
    %917 = vmatprep.mubr.f32.mxu0 0.0
    %918 = vmatmul.mubr.f32.gmra.mxu0 %v829
    %v919 = vpop.f32.mrf.mxu0
    %v920 = vadd.f32 0.0, %v919
    %v921 = vpop.f32.mrf.mxu0
    %922 = vmatprep.mubr.f32.mxu0 0.0
    %923 = vmatmul.mubr.f32.gmra.mxu0 %v832
    %v924 = vpop.f32.mrf.mxu0
    %v925 = vadd.f32 0.0, %v924
    %v926 = vpop.f32.mrf.mxu0
    %927 = vmatprep.mubr.f32.mxu0 0.0
    %928 = vmatmul.mubr.f32.gmra.mxu0 %v835
    %v929 = vpop.f32.mrf.mxu0
    %v930 = vadd.f32 0.0, %v929
    %v931 = vpop.f32.mrf.mxu0
    %932 = vmatprep.mubr.f32.mxu0 0.0
    %933 = vmatmul.mubr.f32.gmra.mxu0 %v838
    %v934 = vpop.f32.mrf.mxu0
    %v935 = vadd.f32 0.0, %v934
    %v936 = vpop.f32.mrf.mxu0
    %937 = vmatprep.mubr.f32.mxu0 0.0
    %938 = vmatmul.mubr.f32.gmra.mxu0 %v841
    %v939 = vpop.f32.mrf.mxu0
    %v940 = vadd.f32 0.0, %v939
    %v941 = vpop.f32.mrf.mxu0
    %942 = vdwg.mxu0
    %v943 = vlaneseq
    %v944 = vshrl.u32 %v943, 7
    %v945 = vsub.s32 0, %v944
    %v946 = vrot.slane %v301, %v945
    %v947 = vadd.f32 %v946, %v910
    %v948 = vadd.f32 %v946, %v915
    %v949 = vadd.f32 %v946, %v920
    %v950 = vadd.f32 %v946, %v925
    %v951 = vadd.f32 %v946, %v930
    %v952 = vadd.f32 %v946, %v935
    %v953 = vadd.f32 %v946, %v940
    %954 = vrot.lane.b32.xlu0 %v419, 120
    %v955 = vpop.permute.xlu0 %954
    %956 = vrot.lane.b32.xlu0 %v424, 120
    %v957 = vpop.permute.xlu0 %956
    %958 = vrot.lane.b32.xlu0 %v429, 120
    %v959 = vpop.permute.xlu0 %958
    %960 = vrot.lane.b32.xlu0 %v434, 120
    %v961 = vpop.permute.xlu0 %960
    %962 = vrot.lane.b32.xlu0 %v439, 120
    %v963 = vpop.permute.xlu0 %962
    %964 = vrot.lane.b32.xlu0 %v444, 120
    %v965 = vpop.permute.xlu0 %964
    %966 = vrot.lane.b32.xlu0 %v449, 120
    %v967 = vpop.permute.xlu0 %966
    %968 = vrot.lane.b32.xlu0 %v419, 88
    %v969 = vpop.permute.xlu0 %968
    %970 = vrot.lane.b32.xlu0 %v424, 88
    %v971 = vpop.permute.xlu0 %970
    %972 = vrot.lane.b32.xlu0 %v429, 88
    %v973 = vpop.permute.xlu0 %972
    %974 = vrot.lane.b32.xlu0 %v434, 88
    %v975 = vpop.permute.xlu0 %974
    %976 = vrot.lane.b32.xlu0 %v439, 88
    %v977 = vpop.permute.xlu0 %976
    %978 = vrot.lane.b32.xlu0 %v444, 88
    %v979 = vpop.permute.xlu0 %978
    %980 = vrot.lane.b32.xlu0 %v449, 88
    %v981 = vpop.permute.xlu0 %980
    %v982 = vsel %vm473, %v955, 0
    %v984 = vsel %vm473, %v957, 0
    %v986 = vsel %vm473, %v959, 0
    %v988 = vsel %vm473, %v961, 0
    %v990 = vsel %vm473, %v963, 0
    %v992 = vsel %vm473, %v965, 0
    %v994 = vsel %vm473, %v967, 0
    %v996 = vsel %vm473, %v969, 0
    %v998 = vsel %vm473, %v971, 0
    %v1000 = vsel %vm473, %v973, 0
    %v1002 = vsel %vm473, %v975, 0
    %v1004 = vsel %vm473, %v977, 0
    %v1006 = vsel %vm473, %v979, 0
    %v1008 = vsel %vm473, %v981, 0
    %1010 = vmatprep.subr.mxu0 0.0
    %1011 = vmatpush1.xpose.msra.mxu0 0.0
    %1012 = vmatprep.subr.mxu0 0.0
    %1013 = vmatpush1.xpose.msra.mxu0 0.0
    %1014 = vmatprep.subr.mxu0 0.0
    %1015 = vmatpush1.xpose.msra.mxu0 0.0
    %1016 = vmatprep.subr.mxu0 0.0
    %1017 = vmatpush1.xpose.msra.mxu0 0.0
    %1018 = vmatprep.subr.mxu0 0.0
    %1019 = vmatpush1.xpose.msra.mxu0 0.0
    %1020 = vmatprep.subr.mxu0 0.0
    %1021 = vmatpush1.xpose.msra.mxu0 0.0
    %1022 = vmatprep.subr.mxu0 0.0
    %1023 = vmatpush1.xpose.msra.mxu0 0.0
    %1024 = vmatprep.subr.mxu0 0.0
    %1025 = vmatpush1.xpose.msra.mxu0 0.0
    %1026 = vmatprep.subr.mxu0 0.0
    %1027 = vmatpush1.xpose.msra.mxu0 0.0
    %1028 = vmatprep.subr.mxu0 0.0
    %1029 = vmatpush1.xpose.msra.mxu0 %v1008
    %1030 = vmatprep.subr.mxu0 0.0
    %1031 = vmatpush1.xpose.msra.mxu0 %v1006
    %1032 = vmatprep.subr.mxu0 0.0
    %1033 = vmatpush1.xpose.msra.mxu0 %v1004
    %1034 = vmatprep.subr.mxu0 0.0
    %1035 = vmatpush1.xpose.msra.mxu0 %v1002
    %1036 = vmatprep.subr.mxu0 0.0
    %1037 = vmatpush1.xpose.msra.mxu0 %v1000
    %1038 = vmatprep.subr.mxu0 0.0
    %1039 = vmatpush1.xpose.msra.mxu0 %v998
    %1040 = vmatprep.subr.mxu0 0.0
    %1041 = vmatpush1.xpose.msra.mxu0 %v996
    %1042 = vmatprep.subr.mxu0 0.0
    %1043 = vmatpush2.xpose.msra.mxu0 0.0
    %1044 = vmatprep.subr.mxu0 0.0
    %1045 = vmatpush2.xpose.msra.mxu0 0.0
    %1046 = vmatprep.subr.mxu0 0.0
    %1047 = vmatpush2.xpose.msra.mxu0 0.0
    %1048 = vmatprep.subr.mxu0 0.0
    %1049 = vmatpush2.xpose.msra.mxu0 0.0
    %1050 = vmatprep.subr.mxu0 0.0
    %1051 = vmatpush2.xpose.msra.mxu0 0.0
    %1052 = vmatprep.subr.mxu0 0.0
    %1053 = vmatpush2.xpose.msra.mxu0 0.0
    %1054 = vmatprep.subr.mxu0 0.0
    %1055 = vmatpush2.xpose.msra.mxu0 0.0
    %1056 = vmatprep.subr.mxu0 0.0
    %1057 = vmatpush2.xpose.msra.mxu0 0.0
    %1058 = vmatprep.subr.mxu0 0.0
    %1059 = vmatpush2.xpose.msra.mxu0 0.0
    %1060 = vmatprep.subr.mxu0 0.0
    %1061 = vmatpush2.xpose.msra.mxu0 0.0
    %1062 = vmatprep.subr.mxu0 0.0
    %1063 = vmatpush2.xpose.msra.mxu0 0.0
    %1064 = vmatprep.subr.mxu0 0.0
    %1065 = vmatpush2.xpose.msra.mxu0 0.0
    %1066 = vmatprep.subr.mxu0 0.0
    %1067 = vmatpush2.xpose.msra.mxu0 0.0
    %1068 = vmatprep.subr.mxu0 0.0
    %1069 = vmatpush2.xpose.msra.mxu0 0.0
    %1070 = vmatprep.subr.mxu0 0.0
    %1071 = vmatpush2.xpose.msra.mxu0 0.0
    %1072 = vmatprep.subr.mxu0 0.0
    %1073 = vmatpush2.xpose.msra.mxu0 0.0
    %1074 = vmatprep.mubr.f32.mxu0 0.0
    %1075 = vmatmul.mubr.f32.gmra.mxu0 %v982
    %v1076 = vpop.f32.mrf.mxu0
    %v1077 = vadd.f32 %v128, %v1076
    %v1078 = vpop.f32.mrf.mxu0
    %1079 = vmatprep.mubr.f32.mxu0 0.0
    %1080 = vmatmul.mubr.f32.gmra.mxu0 %v984
    %v1081 = vpop.f32.mrf.mxu0
    %v1082 = vadd.f32 %v129, %v1081
    %v1083 = vpop.f32.mrf.mxu0
    %1084 = vmatprep.mubr.f32.mxu0 0.0
    %1085 = vmatmul.mubr.f32.gmra.mxu0 %v986
    %v1086 = vpop.f32.mrf.mxu0
    %v1087 = vadd.f32 %v130, %v1086
    %v1088 = vpop.f32.mrf.mxu0
    %1089 = vmatprep.mubr.f32.mxu0 0.0
    %1090 = vmatmul.mubr.f32.gmra.mxu0 %v988
    %v1091 = vpop.f32.mrf.mxu0
    %v1092 = vadd.f32 %v131, %v1091
    %v1093 = vpop.f32.mrf.mxu0
    %1094 = vmatprep.mubr.f32.mxu0 0.0
    %1095 = vmatmul.mubr.f32.gmra.mxu0 %v990
    %v1096 = vpop.f32.mrf.mxu0
    %v1097 = vadd.f32 %v132, %v1096
    %v1098 = vpop.f32.mrf.mxu0
    %1099 = vmatprep.mubr.f32.mxu0 0.0
    %1100 = vmatmul.mubr.f32.gmra.mxu0 %v992
    %v1101 = vpop.f32.mrf.mxu0
    %v1102 = vadd.f32 %v133, %v1101
    %v1103 = vpop.f32.mrf.mxu0
    %1104 = vmatprep.mubr.f32.mxu0 0.0
    %1105 = vmatmul.mubr.f32.gmra.mxu0 %v994
    %v1106 = vpop.f32.mrf.mxu0
    %v1107 = vadd.f32 %v134, %v1106
    %v1108 = vpop.f32.mrf.mxu0
    %1109 = vdwg.mxu0
    %v1110 = vsel %vm602, %v1077, -inf
    %1111 = vmax.xlane.f32.xlu0 %v1110
    %v1112 = vpop.xlane.xlu0 %1111
    %v1113 = vsel %vm602, %v1082, -inf
    %1114 = vmax.xlane.f32.xlu0 %v1113
    %v1115 = vpop.xlane.xlu0 %1114
    %v1116 = vsel %vm602, %v1087, -inf
    %1117 = vmax.xlane.f32.xlu0 %v1116
    %v1118 = vpop.xlane.xlu0 %1117
    %v1119 = vsel %vm602, %v1092, -inf
    %1120 = vmax.xlane.f32.xlu0 %v1119
    %v1121 = vpop.xlane.xlu0 %1120
    %v1122 = vsel %vm602, %v1097, -inf
    %1123 = vmax.xlane.f32.xlu0 %v1122
    %v1124 = vpop.xlane.xlu0 %1123
    %v1125 = vsel %vm602, %v1102, -inf
    %1126 = vmax.xlane.f32.xlu0 %v1125
    %v1127 = vpop.xlane.xlu0 %1126
    %v1128 = vsel %vm602, %v1107, -inf
    %1129 = vmax.xlane.f32.xlu0 %v1128
    %v1130 = vpop.xlane.xlu0 %1129
    %v1131 = vsub.f32 %v1077, %v1112
    %v1132 = vsub.f32 %v1082, %v1115
    %v1133 = vsub.f32 %v1087, %v1118
    %v1134 = vsub.f32 %v1092, %v1121
    %v1135 = vsub.f32 %v1097, %v1124
    %v1136 = vsub.f32 %v1102, %v1127
    %v1137 = vsub.f32 %v1107, %v1130
    %v1138 = vmul.f32 %v1131, 1.442695
    %v1139 = vpow.pop %v1138
    %v1140 = vmul.f32 %v1132, 1.442695
    %v1141 = vpow.pop %v1140
    %v1142 = vmul.f32 %v1133, 1.442695
    %v1143 = vpow.pop %v1142
    %v1144 = vmul.f32 %v1134, 1.442695
    %v1145 = vpow.pop %v1144
    %v1146 = vmul.f32 %v1135, 1.442695
    %v1147 = vpow.pop %v1146
    %v1148 = vmul.f32 %v1136, 1.442695
    %v1149 = vpow.pop %v1148
    %v1150 = vmul.f32 %v1137, 1.442695
    %v1151 = vpow.pop %v1150
    %v1152 = vsel %vm602, %v1139, 0.0
    %1153 = vadd.xlane.f32.xlu0 %v1152
    %v1154 = vpop.xlane.xlu0 %1153
    %v1155 = vsel %vm602, %v1141, 0.0
    %1156 = vadd.xlane.f32.xlu0 %v1155
    %v1157 = vpop.xlane.xlu0 %1156
    %v1158 = vsel %vm602, %v1143, 0.0
    %1159 = vadd.xlane.f32.xlu0 %v1158
    %v1160 = vpop.xlane.xlu0 %1159
    %v1161 = vsel %vm602, %v1145, 0.0
    %1162 = vadd.xlane.f32.xlu0 %v1161
    %v1163 = vpop.xlane.xlu0 %1162
    %v1164 = vsel %vm602, %v1147, 0.0
    %1165 = vadd.xlane.f32.xlu0 %v1164
    %v1166 = vpop.xlane.xlu0 %1165
    %v1167 = vsel %vm602, %v1149, 0.0
    %1168 = vadd.xlane.f32.xlu0 %v1167
    %v1169 = vpop.xlane.xlu0 %1168
    %v1170 = vsel %vm602, %v1151, 0.0
    %1171 = vadd.xlane.f32.xlu0 %v1170
    %v1172 = vpop.xlane.xlu0 %1171
    %v1173 = vrcp.pop %v1154
    %v1174 = vrcp.pop %v1157
    %v1175 = vrcp.pop %v1160
    %v1176 = vrcp.pop %v1163
    %v1177 = vrcp.pop %v1166
    %v1178 = vrcp.pop %v1169
    %v1179 = vrcp.pop %v1172
    %v1180 = vmul.f32 %v1139, %v1173
    %v1181 = vmul.f32 %v1141, %v1174
    %v1182 = vmul.f32 %v1143, %v1175
    %v1183 = vmul.f32 %v1145, %v1176
    %v1184 = vmul.f32 %v1147, %v1177
    %v1185 = vmul.f32 %v1149, %v1178
    %v1186 = vmul.f32 %v1151, %v1179
    %1187 = vrot.lane.b32.xlu0 %v419, 56
    %v1188 = vpop.permute.xlu0 %1187
    %1189 = vrot.lane.b32.xlu0 %v424, 56
    %v1190 = vpop.permute.xlu0 %1189
    %1191 = vrot.lane.b32.xlu0 %v429, 56
    %v1192 = vpop.permute.xlu0 %1191
    %1193 = vrot.lane.b32.xlu0 %v434, 56
    %v1194 = vpop.permute.xlu0 %1193
    %1195 = vrot.lane.b32.xlu0 %v439, 56
    %v1196 = vpop.permute.xlu0 %1195
    %1197 = vrot.lane.b32.xlu0 %v444, 56
    %v1198 = vpop.permute.xlu0 %1197
    %1199 = vrot.lane.b32.xlu0 %v449, 56
    %v1200 = vpop.permute.xlu0 %1199
    %v1209 = vsel %vm602, %v1180, 0
    %v1212 = vsel %vm602, %v1181, 0
    %v1215 = vsel %vm602, %v1182, 0
    %v1218 = vsel %vm602, %v1183, 0
    %v1221 = vsel %vm602, %v1184, 0
    %v1224 = vsel %vm602, %v1185, 0
    %v1227 = vsel %vm602, %v1186, 0
    %1229 = vmatprep.subr.mxu0 0.0
    %1230 = vmatpush1.msra.mxu0 0.0
    %1231 = vmatprep.subr.mxu0 0.0
    %1232 = vmatpush1.msra.mxu0 0.0
    %1233 = vmatprep.subr.mxu0 0.0
    %1234 = vmatpush1.msra.mxu0 0.0
    %1235 = vmatprep.subr.mxu0 0.0
    %1236 = vmatpush1.msra.mxu0 0.0
    %1237 = vmatprep.subr.mxu0 0.0
    %1238 = vmatpush1.msra.mxu0 0.0
    %1239 = vmatprep.subr.mxu0 0.0
    %1240 = vmatpush1.msra.mxu0 0.0
    %1241 = vmatprep.subr.mxu0 0.0
    %1242 = vmatpush1.msra.mxu0 0.0
    %1243 = vmatprep.subr.mxu0 0.0
    %1244 = vmatpush1.msra.mxu0 0.0
    %1245 = vmatprep.subr.mxu0 0.0
    %1246 = vmatpush1.msra.mxu0 0.0
    %1247 = vmatprep.subr.mxu0 0.0
    %1248 = vmatpush1.msra.mxu0 %v1200
    %1249 = vmatprep.subr.mxu0 0.0
    %1250 = vmatpush1.msra.mxu0 %v1198
    %1251 = vmatprep.subr.mxu0 0.0
    %1252 = vmatpush1.msra.mxu0 %v1196
    %1253 = vmatprep.subr.mxu0 0.0
    %1254 = vmatpush1.msra.mxu0 %v1194
    %1255 = vmatprep.subr.mxu0 0.0
    %1256 = vmatpush1.msra.mxu0 %v1192
    %1257 = vmatprep.subr.mxu0 0.0
    %1258 = vmatpush1.msra.mxu0 %v1190
    %1259 = vmatprep.subr.mxu0 0.0
    %1260 = vmatpush1.msra.mxu0 %v1188
    %1261 = vmatprep.subr.mxu0 0.0
    %1262 = vmatpush2.msra.mxu0 0.0
    %1263 = vmatprep.subr.mxu0 0.0
    %1264 = vmatpush2.msra.mxu0 0.0
    %1265 = vmatprep.subr.mxu0 0.0
    %1266 = vmatpush2.msra.mxu0 0.0
    %1267 = vmatprep.subr.mxu0 0.0
    %1268 = vmatpush2.msra.mxu0 0.0
    %1269 = vmatprep.subr.mxu0 0.0
    %1270 = vmatpush2.msra.mxu0 0.0
    %1271 = vmatprep.subr.mxu0 0.0
    %1272 = vmatpush2.msra.mxu0 0.0
    %1273 = vmatprep.subr.mxu0 0.0
    %1274 = vmatpush2.msra.mxu0 0.0
    %1275 = vmatprep.subr.mxu0 0.0
    %1276 = vmatpush2.msra.mxu0 0.0
    %1277 = vmatprep.subr.mxu0 0.0
    %1278 = vmatpush2.msra.mxu0 0.0
    %1279 = vmatprep.subr.mxu0 0.0
    %1280 = vmatpush2.msra.mxu0 0.0
    %1281 = vmatprep.subr.mxu0 0.0
    %1282 = vmatpush2.msra.mxu0 0.0
    %1283 = vmatprep.subr.mxu0 0.0
    %1284 = vmatpush2.msra.mxu0 0.0
    %1285 = vmatprep.subr.mxu0 0.0
    %1286 = vmatpush2.msra.mxu0 0.0
    %1287 = vmatprep.subr.mxu0 0.0
    %1288 = vmatpush2.msra.mxu0 0.0
    %1289 = vmatprep.subr.mxu0 0.0
    %1290 = vmatpush2.msra.mxu0 0.0
    %1291 = vmatprep.subr.mxu0 0.0
    %1292 = vmatpush2.msra.mxu0 0.0
    %1293 = vmatprep.mubr.f32.mxu0 0.0
    %1294 = vmatmul.mubr.f32.gmra.mxu0 %v1209
    %v1295 = vpop.f32.mrf.mxu0
    %v1296 = vadd.f32 0.0, %v1295
    %v1297 = vpop.f32.mrf.mxu0
    %1298 = vmatprep.mubr.f32.mxu0 0.0
    %1299 = vmatmul.mubr.f32.gmra.mxu0 %v1212
    %v1300 = vpop.f32.mrf.mxu0
    %v1301 = vadd.f32 0.0, %v1300
    %v1302 = vpop.f32.mrf.mxu0
    %1303 = vmatprep.mubr.f32.mxu0 0.0
    %1304 = vmatmul.mubr.f32.gmra.mxu0 %v1215
    %v1305 = vpop.f32.mrf.mxu0
    %v1306 = vadd.f32 0.0, %v1305
    %v1307 = vpop.f32.mrf.mxu0
    %1308 = vmatprep.mubr.f32.mxu0 0.0
    %1309 = vmatmul.mubr.f32.gmra.mxu0 %v1218
    %v1310 = vpop.f32.mrf.mxu0
    %v1311 = vadd.f32 0.0, %v1310
    %v1312 = vpop.f32.mrf.mxu0
    %1313 = vmatprep.mubr.f32.mxu0 0.0
    %1314 = vmatmul.mubr.f32.gmra.mxu0 %v1221
    %v1315 = vpop.f32.mrf.mxu0
    %v1316 = vadd.f32 0.0, %v1315
    %v1317 = vpop.f32.mrf.mxu0
    %1318 = vmatprep.mubr.f32.mxu0 0.0
    %1319 = vmatmul.mubr.f32.gmra.mxu0 %v1224
    %v1320 = vpop.f32.mrf.mxu0
    %v1321 = vadd.f32 0.0, %v1320
    %v1322 = vpop.f32.mrf.mxu0
    %1323 = vmatprep.mubr.f32.mxu0 0.0
    %1324 = vmatmul.mubr.f32.gmra.mxu0 %v1227
    %v1325 = vpop.f32.mrf.mxu0
    %v1326 = vadd.f32 0.0, %v1325
    %v1327 = vpop.f32.mrf.mxu0
    %1328 = vdwg.mxu0
    %v1330 = vsel %vm473, %v1296, 0
    %v1333 = vsel %vm473, %v1301, 0
    %v1336 = vsel %vm473, %v1306, 0
    %v1339 = vsel %vm473, %v1311, 0
    %v1342 = vsel %vm473, %v1316, 0
    %v1345 = vsel %vm473, %v1321, 0
    %v1348 = vsel %vm473, %v1326, 0
    %1350 = vmatprep.subr.mxu0 0.0
    %1351 = vmatpush1.msra.mxu0 0.0
    %1352 = vmatprep.subr.mxu0 0.0
    %1353 = vmatpush1.msra.mxu0 0.0
    %1354 = vmatprep.subr.mxu0 0.0
    %1355 = vmatpush1.msra.mxu0 0.0
    %1356 = vmatprep.subr.mxu0 0.0
    %1357 = vmatpush1.msra.mxu0 0.0
    %1358 = vmatprep.subr.mxu0 0.0
    %1359 = vmatpush1.msra.mxu0 0.0
    %1360 = vmatprep.subr.mxu0 0.0
    %1361 = vmatpush1.msra.mxu0 0.0
    %1362 = vmatprep.subr.mxu0 0.0
    %1363 = vmatpush1.msra.mxu0 0.0
    %1364 = vmatprep.subr.mxu0 0.0
    %1365 = vmatpush1.msra.mxu0 0.0
    %1366 = vmatprep.subr.mxu0 0.0
    %1367 = vmatpush1.msra.mxu0 0.0
    %1368 = vmatprep.subr.mxu0 0.0
    %1369 = vmatpush1.msra.mxu0 0.0
    %1370 = vmatprep.subr.mxu0 0.0
    %1371 = vmatpush1.msra.mxu0 0.0
    %1372 = vmatprep.subr.mxu0 0.0
    %1373 = vmatpush1.msra.mxu0 0.0
    %1374 = vmatprep.subr.mxu0 0.0
    %1375 = vmatpush1.msra.mxu0 0.0
    %1376 = vmatprep.subr.mxu0 0.0
    %1377 = vmatpush1.msra.mxu0 0.0
    %1378 = vmatprep.subr.mxu0 0.0
    %1379 = vmatpush1.msra.mxu0 0.0
    %1380 = vmatprep.subr.mxu0 0.0
    %1381 = vmatpush1.msra.mxu0 %v298
    %1382 = vmatprep.subr.mxu0 0.0
    %1383 = vmatpush2.msra.mxu0 0.0
    %1384 = vmatprep.subr.mxu0 0.0
    %1385 = vmatpush2.msra.mxu0 0.0
    %1386 = vmatprep.subr.mxu0 0.0
    %1387 = vmatpush2.msra.mxu0 0.0
    %1388 = vmatprep.subr.mxu0 0.0
    %1389 = vmatpush2.msra.mxu0 0.0
    %1390 = vmatprep.subr.mxu0 0.0
    %1391 = vmatpush2.msra.mxu0 0.0
    %1392 = vmatprep.subr.mxu0 0.0
    %1393 = vmatpush2.msra.mxu0 0.0
    %1394 = vmatprep.subr.mxu0 0.0
    %1395 = vmatpush2.msra.mxu0 0.0
    %1396 = vmatprep.subr.mxu0 0.0
    %1397 = vmatpush2.msra.mxu0 0.0
    %1398 = vmatprep.subr.mxu0 0.0
    %1399 = vmatpush2.msra.mxu0 0.0
    %1400 = vmatprep.subr.mxu0 0.0
    %1401 = vmatpush2.msra.mxu0 0.0
    %1402 = vmatprep.subr.mxu0 0.0
    %1403 = vmatpush2.msra.mxu0 0.0
    %1404 = vmatprep.subr.mxu0 0.0
    %1405 = vmatpush2.msra.mxu0 0.0
    %1406 = vmatprep.subr.mxu0 0.0
    %1407 = vmatpush2.msra.mxu0 0.0
    %1408 = vmatprep.subr.mxu0 0.0
    %1409 = vmatpush2.msra.mxu0 0.0
    %1410 = vmatprep.subr.mxu0 0.0
    %1411 = vmatpush2.msra.mxu0 0.0
    %1412 = vmatprep.subr.mxu0 0.0
    %1413 = vmatpush2.msra.mxu0 0.0
    %1414 = vmatprep.mubr.f32.mxu0 0.0
    %1415 = vmatmul.mubr.f32.gmra.mxu0 %v1330
    %v1416 = vpop.f32.mrf.mxu0
    %v1417 = vadd.f32 0.0, %v1416
    %v1418 = vpop.f32.mrf.mxu0
    %1419 = vmatprep.mubr.f32.mxu0 0.0
    %1420 = vmatmul.mubr.f32.gmra.mxu0 %v1333
    %v1421 = vpop.f32.mrf.mxu0
    %v1422 = vadd.f32 0.0, %v1421
    %v1423 = vpop.f32.mrf.mxu0
    %1424 = vmatprep.mubr.f32.mxu0 0.0
    %1425 = vmatmul.mubr.f32.gmra.mxu0 %v1336
    %v1426 = vpop.f32.mrf.mxu0
    %v1427 = vadd.f32 0.0, %v1426
    %v1428 = vpop.f32.mrf.mxu0
    %1429 = vmatprep.mubr.f32.mxu0 0.0
    %1430 = vmatmul.mubr.f32.gmra.mxu0 %v1339
    %v1431 = vpop.f32.mrf.mxu0
    %v1432 = vadd.f32 0.0, %v1431
    %v1433 = vpop.f32.mrf.mxu0
    %1434 = vmatprep.mubr.f32.mxu0 0.0
    %1435 = vmatmul.mubr.f32.gmra.mxu0 %v1342
    %v1436 = vpop.f32.mrf.mxu0
    %v1437 = vadd.f32 0.0, %v1436
    %v1438 = vpop.f32.mrf.mxu0
    %1439 = vmatprep.mubr.f32.mxu0 0.0
    %1440 = vmatmul.mubr.f32.gmra.mxu0 %v1345
    %v1441 = vpop.f32.mrf.mxu0
    %v1442 = vadd.f32 0.0, %v1441
    %v1443 = vpop.f32.mrf.mxu0
    %1444 = vmatprep.mubr.f32.mxu0 0.0
    %1445 = vmatmul.mubr.f32.gmra.mxu0 %v1348
    %v1446 = vpop.f32.mrf.mxu0
    %v1447 = vadd.f32 0.0, %v1446
    %v1448 = vpop.f32.mrf.mxu0
    %1449 = vdwg.mxu0
    %v1450 = vadd.f32 %v947, %v1417
    %v1451 = vadd.f32 %v948, %v1422
    %v1452 = vadd.f32 %v949, %v1427
    %v1453 = vadd.f32 %v950, %v1432
    %v1454 = vadd.f32 %v951, %v1437
    %v1455 = vadd.f32 %v952, %v1442
    %v1456 = vadd.f32 %v953, %v1447
    %1457 = vrot.lane.b32.xlu0 %v419, 112
    %v1458 = vpop.permute.xlu0 %1457
    %1459 = vrot.lane.b32.xlu0 %v424, 112
    %v1460 = vpop.permute.xlu0 %1459
    %1461 = vrot.lane.b32.xlu0 %v429, 112
    %v1462 = vpop.permute.xlu0 %1461
    %1463 = vrot.lane.b32.xlu0 %v434, 112
    %v1464 = vpop.permute.xlu0 %1463
    %1465 = vrot.lane.b32.xlu0 %v439, 112
    %v1466 = vpop.permute.xlu0 %1465
    %1467 = vrot.lane.b32.xlu0 %v444, 112
    %v1468 = vpop.permute.xlu0 %1467
    %1469 = vrot.lane.b32.xlu0 %v449, 112
    %v1470 = vpop.permute.xlu0 %1469
    %1471 = vrot.lane.b32.xlu0 %v419, 80
    %v1472 = vpop.permute.xlu0 %1471
    %1473 = vrot.lane.b32.xlu0 %v424, 80
    %v1474 = vpop.permute.xlu0 %1473
    %1475 = vrot.lane.b32.xlu0 %v429, 80
    %v1476 = vpop.permute.xlu0 %1475
    %1477 = vrot.lane.b32.xlu0 %v434, 80
    %v1478 = vpop.permute.xlu0 %1477
    %1479 = vrot.lane.b32.xlu0 %v439, 80
    %v1480 = vpop.permute.xlu0 %1479
    %1481 = vrot.lane.b32.xlu0 %v444, 80
    %v1482 = vpop.permute.xlu0 %1481
    %1483 = vrot.lane.b32.xlu0 %v449, 80
    %v1484 = vpop.permute.xlu0 %1483
    %v1485 = vsel %vm473, %v1458, 0
    %v1487 = vsel %vm473, %v1460, 0
    %v1489 = vsel %vm473, %v1462, 0
    %v1491 = vsel %vm473, %v1464, 0
    %v1493 = vsel %vm473, %v1466, 0
    %v1495 = vsel %vm473, %v1468, 0
    %v1497 = vsel %vm473, %v1470, 0
    %v1499 = vsel %vm473, %v1472, 0
    %v1501 = vsel %vm473, %v1474, 0
    %v1503 = vsel %vm473, %v1476, 0
    %v1505 = vsel %vm473, %v1478, 0
    %v1507 = vsel %vm473, %v1480, 0
    %v1509 = vsel %vm473, %v1482, 0
    %v1511 = vsel %vm473, %v1484, 0
    %1513 = vmatprep.subr.mxu0 0.0
    %1514 = vmatpush1.xpose.msra.mxu0 0.0
    %1515 = vmatprep.subr.mxu0 0.0
    %1516 = vmatpush1.xpose.msra.mxu0 0.0
    %1517 = vmatprep.subr.mxu0 0.0
    %1518 = vmatpush1.xpose.msra.mxu0 0.0
    %1519 = vmatprep.subr.mxu0 0.0
    %1520 = vmatpush1.xpose.msra.mxu0 0.0
    %1521 = vmatprep.subr.mxu0 0.0
    %1522 = vmatpush1.xpose.msra.mxu0 0.0
    %1523 = vmatprep.subr.mxu0 0.0
    %1524 = vmatpush1.xpose.msra.mxu0 0.0
    %1525 = vmatprep.subr.mxu0 0.0
    %1526 = vmatpush1.xpose.msra.mxu0 0.0
    %1527 = vmatprep.subr.mxu0 0.0
    %1528 = vmatpush1.xpose.msra.mxu0 0.0
    %1529 = vmatprep.subr.mxu0 0.0
    %1530 = vmatpush1.xpose.msra.mxu0 0.0
    %1531 = vmatprep.subr.mxu0 0.0
    %1532 = vmatpush1.xpose.msra.mxu0 %v1511
    %1533 = vmatprep.subr.mxu0 0.0
    %1534 = vmatpush1.xpose.msra.mxu0 %v1509
    %1535 = vmatprep.subr.mxu0 0.0
    %1536 = vmatpush1.xpose.msra.mxu0 %v1507
    %1537 = vmatprep.subr.mxu0 0.0
    %1538 = vmatpush1.xpose.msra.mxu0 %v1505
    %1539 = vmatprep.subr.mxu0 0.0
    %1540 = vmatpush1.xpose.msra.mxu0 %v1503
    %1541 = vmatprep.subr.mxu0 0.0
    %1542 = vmatpush1.xpose.msra.mxu0 %v1501
    %1543 = vmatprep.subr.mxu0 0.0
    %1544 = vmatpush1.xpose.msra.mxu0 %v1499
    %1545 = vmatprep.subr.mxu0 0.0
    %1546 = vmatpush2.xpose.msra.mxu0 0.0
    %1547 = vmatprep.subr.mxu0 0.0
    %1548 = vmatpush2.xpose.msra.mxu0 0.0
    %1549 = vmatprep.subr.mxu0 0.0
    %1550 = vmatpush2.xpose.msra.mxu0 0.0
    %1551 = vmatprep.subr.mxu0 0.0
    %1552 = vmatpush2.xpose.msra.mxu0 0.0
    %1553 = vmatprep.subr.mxu0 0.0
    %1554 = vmatpush2.xpose.msra.mxu0 0.0
    %1555 = vmatprep.subr.mxu0 0.0
    %1556 = vmatpush2.xpose.msra.mxu0 0.0
    %1557 = vmatprep.subr.mxu0 0.0
    %1558 = vmatpush2.xpose.msra.mxu0 0.0
    %1559 = vmatprep.subr.mxu0 0.0
    %1560 = vmatpush2.xpose.msra.mxu0 0.0
    %1561 = vmatprep.subr.mxu0 0.0
    %1562 = vmatpush2.xpose.msra.mxu0 0.0
    %1563 = vmatprep.subr.mxu0 0.0
    %1564 = vmatpush2.xpose.msra.mxu0 0.0
    %1565 = vmatprep.subr.mxu0 0.0
    %1566 = vmatpush2.xpose.msra.mxu0 0.0
    %1567 = vmatprep.subr.mxu0 0.0
    %1568 = vmatpush2.xpose.msra.mxu0 0.0
    %1569 = vmatprep.subr.mxu0 0.0
    %1570 = vmatpush2.xpose.msra.mxu0 0.0
    %1571 = vmatprep.subr.mxu0 0.0
    %1572 = vmatpush2.xpose.msra.mxu0 0.0
    %1573 = vmatprep.subr.mxu0 0.0
    %1574 = vmatpush2.xpose.msra.mxu0 0.0
    %1575 = vmatprep.subr.mxu0 0.0
    %1576 = vmatpush2.xpose.msra.mxu0 0.0
    %1577 = vmatprep.mubr.f32.mxu0 0.0
    %1578 = vmatmul.mubr.f32.gmra.mxu0 %v1485
    %v1579 = vpop.f32.mrf.mxu0
    %v1580 = vadd.f32 %v128, %v1579
    %v1581 = vpop.f32.mrf.mxu0
    %1582 = vmatprep.mubr.f32.mxu0 0.0
    %1583 = vmatmul.mubr.f32.gmra.mxu0 %v1487
    %v1584 = vpop.f32.mrf.mxu0
    %v1585 = vadd.f32 %v129, %v1584
    %v1586 = vpop.f32.mrf.mxu0
    %1587 = vmatprep.mubr.f32.mxu0 0.0
    %1588 = vmatmul.mubr.f32.gmra.mxu0 %v1489
    %v1589 = vpop.f32.mrf.mxu0
    %v1590 = vadd.f32 %v130, %v1589
    %v1591 = vpop.f32.mrf.mxu0
    %1592 = vmatprep.mubr.f32.mxu0 0.0
    %1593 = vmatmul.mubr.f32.gmra.mxu0 %v1491
    %v1594 = vpop.f32.mrf.mxu0
    %v1595 = vadd.f32 %v131, %v1594
    %v1596 = vpop.f32.mrf.mxu0
    %1597 = vmatprep.mubr.f32.mxu0 0.0
    %1598 = vmatmul.mubr.f32.gmra.mxu0 %v1493
    %v1599 = vpop.f32.mrf.mxu0
    %v1600 = vadd.f32 %v132, %v1599
    %v1601 = vpop.f32.mrf.mxu0
    %1602 = vmatprep.mubr.f32.mxu0 0.0
    %1603 = vmatmul.mubr.f32.gmra.mxu0 %v1495
    %v1604 = vpop.f32.mrf.mxu0
    %v1605 = vadd.f32 %v133, %v1604
    %v1606 = vpop.f32.mrf.mxu0
    %1607 = vmatprep.mubr.f32.mxu0 0.0
    %1608 = vmatmul.mubr.f32.gmra.mxu0 %v1497
    %v1609 = vpop.f32.mrf.mxu0
    %v1610 = vadd.f32 %v134, %v1609
    %v1611 = vpop.f32.mrf.mxu0
    %1612 = vdwg.mxu0
    %v1613 = vsel %vm602, %v1580, -inf
    %1614 = vmax.xlane.f32.xlu0 %v1613
    %v1615 = vpop.xlane.xlu0 %1614
    %v1616 = vsel %vm602, %v1585, -inf
    %1617 = vmax.xlane.f32.xlu0 %v1616
    %v1618 = vpop.xlane.xlu0 %1617
    %v1619 = vsel %vm602, %v1590, -inf
    %1620 = vmax.xlane.f32.xlu0 %v1619
    %v1621 = vpop.xlane.xlu0 %1620
    %v1622 = vsel %vm602, %v1595, -inf
    %1623 = vmax.xlane.f32.xlu0 %v1622
    %v1624 = vpop.xlane.xlu0 %1623
    %v1625 = vsel %vm602, %v1600, -inf
    %1626 = vmax.xlane.f32.xlu0 %v1625
    %v1627 = vpop.xlane.xlu0 %1626
    %v1628 = vsel %vm602, %v1605, -inf
    %1629 = vmax.xlane.f32.xlu0 %v1628
    %v1630 = vpop.xlane.xlu0 %1629
    %v1631 = vsel %vm602, %v1610, -inf
    %1632 = vmax.xlane.f32.xlu0 %v1631
    %v1633 = vpop.xlane.xlu0 %1632
    %v1634 = vsub.f32 %v1580, %v1615
    %v1635 = vsub.f32 %v1585, %v1618
    %v1636 = vsub.f32 %v1590, %v1621
    %v1637 = vsub.f32 %v1595, %v1624
    %v1638 = vsub.f32 %v1600, %v1627
    %v1639 = vsub.f32 %v1605, %v1630
    %v1640 = vsub.f32 %v1610, %v1633
    %v1641 = vmul.f32 %v1634, 1.442695
    %v1642 = vpow.pop %v1641
    %v1643 = vmul.f32 %v1635, 1.442695
    %v1644 = vpow.pop %v1643
    %v1645 = vmul.f32 %v1636, 1.442695
    %v1646 = vpow.pop %v1645
    %v1647 = vmul.f32 %v1637, 1.442695
    %v1648 = vpow.pop %v1647
    %v1649 = vmul.f32 %v1638, 1.442695
    %v1650 = vpow.pop %v1649
    %v1651 = vmul.f32 %v1639, 1.442695
    %v1652 = vpow.pop %v1651
    %v1653 = vmul.f32 %v1640, 1.442695
    %v1654 = vpow.pop %v1653
    %v1655 = vsel %vm602, %v1642, 0.0
    %1656 = vadd.xlane.f32.xlu0 %v1655
    %v1657 = vpop.xlane.xlu0 %1656
    %v1658 = vsel %vm602, %v1644, 0.0
    %1659 = vadd.xlane.f32.xlu0 %v1658
    %v1660 = vpop.xlane.xlu0 %1659
    %v1661 = vsel %vm602, %v1646, 0.0
    %1662 = vadd.xlane.f32.xlu0 %v1661
    %v1663 = vpop.xlane.xlu0 %1662
    %v1664 = vsel %vm602, %v1648, 0.0
    %1665 = vadd.xlane.f32.xlu0 %v1664
    %v1666 = vpop.xlane.xlu0 %1665
    %v1667 = vsel %vm602, %v1650, 0.0
    %1668 = vadd.xlane.f32.xlu0 %v1667
    %v1669 = vpop.xlane.xlu0 %1668
    %v1670 = vsel %vm602, %v1652, 0.0
    %1671 = vadd.xlane.f32.xlu0 %v1670
    %v1672 = vpop.xlane.xlu0 %1671
    %v1673 = vsel %vm602, %v1654, 0.0
    %1674 = vadd.xlane.f32.xlu0 %v1673
    %v1675 = vpop.xlane.xlu0 %1674
    %v1676 = vrcp.pop %v1657
    %v1677 = vrcp.pop %v1660
    %v1678 = vrcp.pop %v1663
    %v1679 = vrcp.pop %v1666
    %v1680 = vrcp.pop %v1669
    %v1681 = vrcp.pop %v1672
    %v1682 = vrcp.pop %v1675
    %v1683 = vmul.f32 %v1642, %v1676
    %v1684 = vmul.f32 %v1644, %v1677
    %v1685 = vmul.f32 %v1646, %v1678
    %v1686 = vmul.f32 %v1648, %v1679
    %v1687 = vmul.f32 %v1650, %v1680
    %v1688 = vmul.f32 %v1652, %v1681
    %v1689 = vmul.f32 %v1654, %v1682
    %1690 = vrot.lane.b32.xlu0 %v419, 48
    %v1691 = vpop.permute.xlu0 %1690
    %1692 = vrot.lane.b32.xlu0 %v424, 48
    %v1693 = vpop.permute.xlu0 %1692
    %1694 = vrot.lane.b32.xlu0 %v429, 48
    %v1695 = vpop.permute.xlu0 %1694
    %1696 = vrot.lane.b32.xlu0 %v434, 48
    %v1697 = vpop.permute.xlu0 %1696
    %1698 = vrot.lane.b32.xlu0 %v439, 48
    %v1699 = vpop.permute.xlu0 %1698
    %1700 = vrot.lane.b32.xlu0 %v444, 48
    %v1701 = vpop.permute.xlu0 %1700
    %1702 = vrot.lane.b32.xlu0 %v449, 48
    %v1703 = vpop.permute.xlu0 %1702
    %v1712 = vsel %vm602, %v1683, 0
    %v1715 = vsel %vm602, %v1684, 0
    %v1718 = vsel %vm602, %v1685, 0
    %v1721 = vsel %vm602, %v1686, 0
    %v1724 = vsel %vm602, %v1687, 0
    %v1727 = vsel %vm602, %v1688, 0
    %v1730 = vsel %vm602, %v1689, 0
    %1732 = vmatprep.subr.mxu0 0.0
    %1733 = vmatpush1.msra.mxu0 0.0
    %1734 = vmatprep.subr.mxu0 0.0
    %1735 = vmatpush1.msra.mxu0 0.0
    %1736 = vmatprep.subr.mxu0 0.0
    %1737 = vmatpush1.msra.mxu0 0.0
    %1738 = vmatprep.subr.mxu0 0.0
    %1739 = vmatpush1.msra.mxu0 0.0
    %1740 = vmatprep.subr.mxu0 0.0
    %1741 = vmatpush1.msra.mxu0 0.0
    %1742 = vmatprep.subr.mxu0 0.0
    %1743 = vmatpush1.msra.mxu0 0.0
    %1744 = vmatprep.subr.mxu0 0.0
    %1745 = vmatpush1.msra.mxu0 0.0
    %1746 = vmatprep.subr.mxu0 0.0
    %1747 = vmatpush1.msra.mxu0 0.0
    %1748 = vmatprep.subr.mxu0 0.0
    %1749 = vmatpush1.msra.mxu0 0.0
    %1750 = vmatprep.subr.mxu0 0.0
    %1751 = vmatpush1.msra.mxu0 %v1703
    %1752 = vmatprep.subr.mxu0 0.0
    %1753 = vmatpush1.msra.mxu0 %v1701
    %1754 = vmatprep.subr.mxu0 0.0
    %1755 = vmatpush1.msra.mxu0 %v1699
    %1756 = vmatprep.subr.mxu0 0.0
    %1757 = vmatpush1.msra.mxu0 %v1697
    %1758 = vmatprep.subr.mxu0 0.0
    %1759 = vmatpush1.msra.mxu0 %v1695
    %1760 = vmatprep.subr.mxu0 0.0
    %1761 = vmatpush1.msra.mxu0 %v1693
    %1762 = vmatprep.subr.mxu0 0.0
    %1763 = vmatpush1.msra.mxu0 %v1691
    %1764 = vmatprep.subr.mxu0 0.0
    %1765 = vmatpush2.msra.mxu0 0.0
    %1766 = vmatprep.subr.mxu0 0.0
    %1767 = vmatpush2.msra.mxu0 0.0
    %1768 = vmatprep.subr.mxu0 0.0
    %1769 = vmatpush2.msra.mxu0 0.0
    %1770 = vmatprep.subr.mxu0 0.0
    %1771 = vmatpush2.msra.mxu0 0.0
    %1772 = vmatprep.subr.mxu0 0.0
    %1773 = vmatpush2.msra.mxu0 0.0
    %1774 = vmatprep.subr.mxu0 0.0
    %1775 = vmatpush2.msra.mxu0 0.0
    %1776 = vmatprep.subr.mxu0 0.0
    %1777 = vmatpush2.msra.mxu0 0.0
    %1778 = vmatprep.subr.mxu0 0.0
    %1779 = vmatpush2.msra.mxu0 0.0
    %1780 = vmatprep.subr.mxu0 0.0
    %1781 = vmatpush2.msra.mxu0 0.0
    %1782 = vmatprep.subr.mxu0 0.0
    %1783 = vmatpush2.msra.mxu0 0.0
    %1784 = vmatprep.subr.mxu0 0.0
    %1785 = vmatpush2.msra.mxu0 0.0
    %1786 = vmatprep.subr.mxu0 0.0
    %1787 = vmatpush2.msra.mxu0 0.0
    %1788 = vmatprep.subr.mxu0 0.0
    %1789 = vmatpush2.msra.mxu0 0.0
    %1790 = vmatprep.subr.mxu0 0.0
    %1791 = vmatpush2.msra.mxu0 0.0
    %1792 = vmatprep.subr.mxu0 0.0
    %1793 = vmatpush2.msra.mxu0 0.0
    %1794 = vmatprep.subr.mxu0 0.0
    %1795 = vmatpush2.msra.mxu0 0.0
    %1796 = vmatprep.mubr.f32.mxu0 0.0
    %1797 = vmatmul.mubr.f32.gmra.mxu0 %v1712
    %v1798 = vpop.f32.mrf.mxu0
    %v1799 = vadd.f32 0.0, %v1798
    %v1800 = vpop.f32.mrf.mxu0
    %1801 = vmatprep.mubr.f32.mxu0 0.0
    %1802 = vmatmul.mubr.f32.gmra.mxu0 %v1715
    %v1803 = vpop.f32.mrf.mxu0
    %v1804 = vadd.f32 0.0, %v1803
    %v1805 = vpop.f32.mrf.mxu0
    %1806 = vmatprep.mubr.f32.mxu0 0.0
    %1807 = vmatmul.mubr.f32.gmra.mxu0 %v1718
    %v1808 = vpop.f32.mrf.mxu0
    %v1809 = vadd.f32 0.0, %v1808
    %v1810 = vpop.f32.mrf.mxu0
    %1811 = vmatprep.mubr.f32.mxu0 0.0
    %1812 = vmatmul.mubr.f32.gmra.mxu0 %v1721
    %v1813 = vpop.f32.mrf.mxu0
    %v1814 = vadd.f32 0.0, %v1813
    %v1815 = vpop.f32.mrf.mxu0
    %1816 = vmatprep.mubr.f32.mxu0 0.0
    %1817 = vmatmul.mubr.f32.gmra.mxu0 %v1724
    %v1818 = vpop.f32.mrf.mxu0
    %v1819 = vadd.f32 0.0, %v1818
    %v1820 = vpop.f32.mrf.mxu0
    %1821 = vmatprep.mubr.f32.mxu0 0.0
    %1822 = vmatmul.mubr.f32.gmra.mxu0 %v1727
    %v1823 = vpop.f32.mrf.mxu0
    %v1824 = vadd.f32 0.0, %v1823
    %v1825 = vpop.f32.mrf.mxu0
    %1826 = vmatprep.mubr.f32.mxu0 0.0
    %1827 = vmatmul.mubr.f32.gmra.mxu0 %v1730
    %v1828 = vpop.f32.mrf.mxu0
    %v1829 = vadd.f32 0.0, %v1828
    %v1830 = vpop.f32.mrf.mxu0
    %1831 = vdwg.mxu0
    %v1833 = vsel %vm473, %v1799, 0
    %v1836 = vsel %vm473, %v1804, 0
    %v1839 = vsel %vm473, %v1809, 0
    %v1842 = vsel %vm473, %v1814, 0
    %v1845 = vsel %vm473, %v1819, 0
    %v1848 = vsel %vm473, %v1824, 0
    %v1851 = vsel %vm473, %v1829, 0
    %1853 = vmatprep.subr.mxu0 0.0
    %1854 = vmatpush1.msra.mxu0 0.0
    %1855 = vmatprep.subr.mxu0 0.0
    %1856 = vmatpush1.msra.mxu0 0.0
    %1857 = vmatprep.subr.mxu0 0.0
    %1858 = vmatpush1.msra.mxu0 0.0
    %1859 = vmatprep.subr.mxu0 0.0
    %1860 = vmatpush1.msra.mxu0 0.0
    %1861 = vmatprep.subr.mxu0 0.0
    %1862 = vmatpush1.msra.mxu0 0.0
    %1863 = vmatprep.subr.mxu0 0.0
    %1864 = vmatpush1.msra.mxu0 0.0
    %1865 = vmatprep.subr.mxu0 0.0
    %1866 = vmatpush1.msra.mxu0 0.0
    %1867 = vmatprep.subr.mxu0 0.0
    %1868 = vmatpush1.msra.mxu0 0.0
    %1869 = vmatprep.subr.mxu0 0.0
    %1870 = vmatpush1.msra.mxu0 0.0
    %1871 = vmatprep.subr.mxu0 0.0
    %1872 = vmatpush1.msra.mxu0 0.0
    %1873 = vmatprep.subr.mxu0 0.0
    %1874 = vmatpush1.msra.mxu0 0.0
    %1875 = vmatprep.subr.mxu0 0.0
    %1876 = vmatpush1.msra.mxu0 0.0
    %1877 = vmatprep.subr.mxu0 0.0
    %1878 = vmatpush1.msra.mxu0 0.0
    %1879 = vmatprep.subr.mxu0 0.0
    %1880 = vmatpush1.msra.mxu0 0.0
    %1881 = vmatprep.subr.mxu0 0.0
    %1882 = vmatpush1.msra.mxu0 0.0
    %1883 = vmatprep.subr.mxu0 0.0
    %1884 = vmatpush1.msra.mxu0 %v299
    %1885 = vmatprep.subr.mxu0 0.0
    %1886 = vmatpush2.msra.mxu0 0.0
    %1887 = vmatprep.subr.mxu0 0.0
    %1888 = vmatpush2.msra.mxu0 0.0
    %1889 = vmatprep.subr.mxu0 0.0
    %1890 = vmatpush2.msra.mxu0 0.0
    %1891 = vmatprep.subr.mxu0 0.0
    %1892 = vmatpush2.msra.mxu0 0.0
    %1893 = vmatprep.subr.mxu0 0.0
    %1894 = vmatpush2.msra.mxu0 0.0
    %1895 = vmatprep.subr.mxu0 0.0
    %1896 = vmatpush2.msra.mxu0 0.0
    %1897 = vmatprep.subr.mxu0 0.0
    %1898 = vmatpush2.msra.mxu0 0.0
    %1899 = vmatprep.subr.mxu0 0.0
    %1900 = vmatpush2.msra.mxu0 0.0
    %1901 = vmatprep.subr.mxu0 0.0
    %1902 = vmatpush2.msra.mxu0 0.0
    %1903 = vmatprep.subr.mxu0 0.0
    %1904 = vmatpush2.msra.mxu0 0.0
    %1905 = vmatprep.subr.mxu0 0.0
    %1906 = vmatpush2.msra.mxu0 0.0
    %1907 = vmatprep.subr.mxu0 0.0
    %1908 = vmatpush2.msra.mxu0 0.0
    %1909 = vmatprep.subr.mxu0 0.0
    %1910 = vmatpush2.msra.mxu0 0.0
    %1911 = vmatprep.subr.mxu0 0.0
    %1912 = vmatpush2.msra.mxu0 0.0
    %1913 = vmatprep.subr.mxu0 0.0
    %1914 = vmatpush2.msra.mxu0 0.0
    %1915 = vmatprep.subr.mxu0 0.0
    %1916 = vmatpush2.msra.mxu0 0.0
    %1917 = vmatprep.mubr.f32.mxu0 0.0
    %1918 = vmatmul.mubr.f32.gmra.mxu0 %v1833
    %v1919 = vpop.f32.mrf.mxu0
    %v1920 = vadd.f32 0.0, %v1919
    %v1921 = vpop.f32.mrf.mxu0
    %1922 = vmatprep.mubr.f32.mxu0 0.0
    %1923 = vmatmul.mubr.f32.gmra.mxu0 %v1836
    %v1924 = vpop.f32.mrf.mxu0
    %v1925 = vadd.f32 0.0, %v1924
    %v1926 = vpop.f32.mrf.mxu0
    %1927 = vmatprep.mubr.f32.mxu0 0.0
    %1928 = vmatmul.mubr.f32.gmra.mxu0 %v1839
    %v1929 = vpop.f32.mrf.mxu0
    %v1930 = vadd.f32 0.0, %v1929
    %v1931 = vpop.f32.mrf.mxu0
    %1932 = vmatprep.mubr.f32.mxu0 0.0
    %1933 = vmatmul.mubr.f32.gmra.mxu0 %v1842
    %v1934 = vpop.f32.mrf.mxu0
    %v1935 = vadd.f32 0.0, %v1934
    %v1936 = vpop.f32.mrf.mxu0
    %1937 = vmatprep.mubr.f32.mxu0 0.0
    %1938 = vmatmul.mubr.f32.gmra.mxu0 %v1845
    %v1939 = vpop.f32.mrf.mxu0
    %v1940 = vadd.f32 0.0, %v1939
    %v1941 = vpop.f32.mrf.mxu0
    %1942 = vmatprep.mubr.f32.mxu0 0.0
    %1943 = vmatmul.mubr.f32.gmra.mxu0 %v1848
    %v1944 = vpop.f32.mrf.mxu0
    %v1945 = vadd.f32 0.0, %v1944
    %v1946 = vpop.f32.mrf.mxu0
    %1947 = vmatprep.mubr.f32.mxu0 0.0
    %1948 = vmatmul.mubr.f32.gmra.mxu0 %v1851
    %v1949 = vpop.f32.mrf.mxu0
    %v1950 = vadd.f32 0.0, %v1949
    %v1951 = vpop.f32.mrf.mxu0
    %1952 = vdwg.mxu0
    %v1953 = vadd.f32 %v1450, %v1920
    %v1954 = vadd.f32 %v1451, %v1925
    %v1955 = vadd.f32 %v1452, %v1930
    %v1956 = vadd.f32 %v1453, %v1935
    %v1957 = vadd.f32 %v1454, %v1940
    %v1958 = vadd.f32 %v1455, %v1945
    %v1959 = vadd.f32 %v1456, %v1950
    %1960 = vrot.lane.b32.xlu0 %v419, 104
    %v1961 = vpop.permute.xlu0 %1960
    %1962 = vrot.lane.b32.xlu0 %v424, 104
    %v1963 = vpop.permute.xlu0 %1962
    %1964 = vrot.lane.b32.xlu0 %v429, 104
    %v1965 = vpop.permute.xlu0 %1964
    %1966 = vrot.lane.b32.xlu0 %v434, 104
    %v1967 = vpop.permute.xlu0 %1966
    %1968 = vrot.lane.b32.xlu0 %v439, 104
    %v1969 = vpop.permute.xlu0 %1968
    %1970 = vrot.lane.b32.xlu0 %v444, 104
    %v1971 = vpop.permute.xlu0 %1970
    %1972 = vrot.lane.b32.xlu0 %v449, 104
    %v1973 = vpop.permute.xlu0 %1972
    %1974 = vrot.lane.b32.xlu0 %v419, 72
    %v1975 = vpop.permute.xlu0 %1974
    %1976 = vrot.lane.b32.xlu0 %v424, 72
    %v1977 = vpop.permute.xlu0 %1976
    %1978 = vrot.lane.b32.xlu0 %v429, 72
    %v1979 = vpop.permute.xlu0 %1978
    %1980 = vrot.lane.b32.xlu0 %v434, 72
    %v1981 = vpop.permute.xlu0 %1980
    %1982 = vrot.lane.b32.xlu0 %v439, 72
    %v1983 = vpop.permute.xlu0 %1982
    %1984 = vrot.lane.b32.xlu0 %v444, 72
    %v1985 = vpop.permute.xlu0 %1984
    %1986 = vrot.lane.b32.xlu0 %v449, 72
    %v1987 = vpop.permute.xlu0 %1986
    %v1988 = vsel %vm473, %v1961, 0
    %v1990 = vsel %vm473, %v1963, 0
    %v1992 = vsel %vm473, %v1965, 0
    %v1994 = vsel %vm473, %v1967, 0
    %v1996 = vsel %vm473, %v1969, 0
    %v1998 = vsel %vm473, %v1971, 0
    %v2000 = vsel %vm473, %v1973, 0
    %v2002 = vsel %vm473, %v1975, 0
    %v2004 = vsel %vm473, %v1977, 0
    %v2006 = vsel %vm473, %v1979, 0
    %v2008 = vsel %vm473, %v1981, 0
    %v2010 = vsel %vm473, %v1983, 0
    %v2012 = vsel %vm473, %v1985, 0
    %v2014 = vsel %vm473, %v1987, 0
    %2016 = vmatprep.subr.mxu0 0.0
    %2017 = vmatpush1.xpose.msra.mxu0 0.0
    %2018 = vmatprep.subr.mxu0 0.0
    %2019 = vmatpush1.xpose.msra.mxu0 0.0
    %2020 = vmatprep.subr.mxu0 0.0
    %2021 = vmatpush1.xpose.msra.mxu0 0.0
    %2022 = vmatprep.subr.mxu0 0.0
    %2023 = vmatpush1.xpose.msra.mxu0 0.0
    %2024 = vmatprep.subr.mxu0 0.0
    %2025 = vmatpush1.xpose.msra.mxu0 0.0
    %2026 = vmatprep.subr.mxu0 0.0
    %2027 = vmatpush1.xpose.msra.mxu0 0.0
    %2028 = vmatprep.subr.mxu0 0.0
    %2029 = vmatpush1.xpose.msra.mxu0 0.0
    %2030 = vmatprep.subr.mxu0 0.0
    %2031 = vmatpush1.xpose.msra.mxu0 0.0
    %2032 = vmatprep.subr.mxu0 0.0
    %2033 = vmatpush1.xpose.msra.mxu0 0.0
    %2034 = vmatprep.subr.mxu0 0.0
    %2035 = vmatpush1.xpose.msra.mxu0 %v2014
    %2036 = vmatprep.subr.mxu0 0.0
    %2037 = vmatpush1.xpose.msra.mxu0 %v2012
    %2038 = vmatprep.subr.mxu0 0.0
    %2039 = vmatpush1.xpose.msra.mxu0 %v2010
    %2040 = vmatprep.subr.mxu0 0.0
    %2041 = vmatpush1.xpose.msra.mxu0 %v2008
    %2042 = vmatprep.subr.mxu0 0.0
    %2043 = vmatpush1.xpose.msra.mxu0 %v2006
    %2044 = vmatprep.subr.mxu0 0.0
    %2045 = vmatpush1.xpose.msra.mxu0 %v2004
    %2046 = vmatprep.subr.mxu0 0.0
    %2047 = vmatpush1.xpose.msra.mxu0 %v2002
    %2048 = vmatprep.subr.mxu0 0.0
    %2049 = vmatpush2.xpose.msra.mxu0 0.0
    %2050 = vmatprep.subr.mxu0 0.0
    %2051 = vmatpush2.xpose.msra.mxu0 0.0
    %2052 = vmatprep.subr.mxu0 0.0
    %2053 = vmatpush2.xpose.msra.mxu0 0.0
    %2054 = vmatprep.subr.mxu0 0.0
    %2055 = vmatpush2.xpose.msra.mxu0 0.0
    %2056 = vmatprep.subr.mxu0 0.0
    %2057 = vmatpush2.xpose.msra.mxu0 0.0
    %2058 = vmatprep.subr.mxu0 0.0
    %2059 = vmatpush2.xpose.msra.mxu0 0.0
    %2060 = vmatprep.subr.mxu0 0.0
    %2061 = vmatpush2.xpose.msra.mxu0 0.0
    %2062 = vmatprep.subr.mxu0 0.0
    %2063 = vmatpush2.xpose.msra.mxu0 0.0
    %2064 = vmatprep.subr.mxu0 0.0
    %2065 = vmatpush2.xpose.msra.mxu0 0.0
    %2066 = vmatprep.subr.mxu0 0.0
    %2067 = vmatpush2.xpose.msra.mxu0 0.0
    %2068 = vmatprep.subr.mxu0 0.0
    %2069 = vmatpush2.xpose.msra.mxu0 0.0
    %2070 = vmatprep.subr.mxu0 0.0
    %2071 = vmatpush2.xpose.msra.mxu0 0.0
    %2072 = vmatprep.subr.mxu0 0.0
    %2073 = vmatpush2.xpose.msra.mxu0 0.0
    %2074 = vmatprep.subr.mxu0 0.0
    %2075 = vmatpush2.xpose.msra.mxu0 0.0
    %2076 = vmatprep.subr.mxu0 0.0
    %2077 = vmatpush2.xpose.msra.mxu0 0.0
    %2078 = vmatprep.subr.mxu0 0.0
    %2079 = vmatpush2.xpose.msra.mxu0 0.0
    %2080 = vmatprep.mubr.f32.mxu0 0.0
    %2081 = vmatmul.mubr.f32.gmra.mxu0 %v1988
    %v2082 = vpop.f32.mrf.mxu0
    %v2083 = vadd.f32 %v128, %v2082
    %v2084 = vpop.f32.mrf.mxu0
    %2085 = vmatprep.mubr.f32.mxu0 0.0
    %2086 = vmatmul.mubr.f32.gmra.mxu0 %v1990
    %v2087 = vpop.f32.mrf.mxu0
    %v2088 = vadd.f32 %v129, %v2087
    %v2089 = vpop.f32.mrf.mxu0
    %2090 = vmatprep.mubr.f32.mxu0 0.0
    %2091 = vmatmul.mubr.f32.gmra.mxu0 %v1992
    %v2092 = vpop.f32.mrf.mxu0
    %v2093 = vadd.f32 %v130, %v2092
    %v2094 = vpop.f32.mrf.mxu0
    %2095 = vmatprep.mubr.f32.mxu0 0.0
    %2096 = vmatmul.mubr.f32.gmra.mxu0 %v1994
    %v2097 = vpop.f32.mrf.mxu0
    %v2098 = vadd.f32 %v131, %v2097
    %v2099 = vpop.f32.mrf.mxu0
    %2100 = vmatprep.mubr.f32.mxu0 0.0
    %2101 = vmatmul.mubr.f32.gmra.mxu0 %v1996
    %v2102 = vpop.f32.mrf.mxu0
    %v2103 = vadd.f32 %v132, %v2102
    %v2104 = vpop.f32.mrf.mxu0
    %2105 = vmatprep.mubr.f32.mxu0 0.0
    %2106 = vmatmul.mubr.f32.gmra.mxu0 %v1998
    %v2107 = vpop.f32.mrf.mxu0
    %v2108 = vadd.f32 %v133, %v2107
    %v2109 = vpop.f32.mrf.mxu0
    %2110 = vmatprep.mubr.f32.mxu0 0.0
    %2111 = vmatmul.mubr.f32.gmra.mxu0 %v2000
    %v2112 = vpop.f32.mrf.mxu0
    %v2113 = vadd.f32 %v134, %v2112
    %v2114 = vpop.f32.mrf.mxu0
    %2115 = vdwg.mxu0
    %v2116 = vsel %vm602, %v2083, -inf
    %2117 = vmax.xlane.f32.xlu0 %v2116
    %v2118 = vpop.xlane.xlu0 %2117
    %v2119 = vsel %vm602, %v2088, -inf
    %2120 = vmax.xlane.f32.xlu0 %v2119
    %v2121 = vpop.xlane.xlu0 %2120
    %v2122 = vsel %vm602, %v2093, -inf
    %2123 = vmax.xlane.f32.xlu0 %v2122
    %v2124 = vpop.xlane.xlu0 %2123
    %v2125 = vsel %vm602, %v2098, -inf
    %2126 = vmax.xlane.f32.xlu0 %v2125
    %v2127 = vpop.xlane.xlu0 %2126
    %v2128 = vsel %vm602, %v2103, -inf
    %2129 = vmax.xlane.f32.xlu0 %v2128
    %v2130 = vpop.xlane.xlu0 %2129
    %v2131 = vsel %vm602, %v2108, -inf
    %2132 = vmax.xlane.f32.xlu0 %v2131
    %v2133 = vpop.xlane.xlu0 %2132
    %v2134 = vsel %vm602, %v2113, -inf
    %2135 = vmax.xlane.f32.xlu0 %v2134
    %v2136 = vpop.xlane.xlu0 %2135
    %v2137 = vsub.f32 %v2083, %v2118
    %v2138 = vsub.f32 %v2088, %v2121
    %v2139 = vsub.f32 %v2093, %v2124
    %v2140 = vsub.f32 %v2098, %v2127
    %v2141 = vsub.f32 %v2103, %v2130
    %v2142 = vsub.f32 %v2108, %v2133
    %v2143 = vsub.f32 %v2113, %v2136
    %v2144 = vmul.f32 %v2137, 1.442695
    %v2145 = vpow.pop %v2144
    %v2146 = vmul.f32 %v2138, 1.442695
    %v2147 = vpow.pop %v2146
    %v2148 = vmul.f32 %v2139, 1.442695
    %v2149 = vpow.pop %v2148
    %v2150 = vmul.f32 %v2140, 1.442695
    %v2151 = vpow.pop %v2150
    %v2152 = vmul.f32 %v2141, 1.442695
    %v2153 = vpow.pop %v2152
    %v2154 = vmul.f32 %v2142, 1.442695
    %v2155 = vpow.pop %v2154
    %v2156 = vmul.f32 %v2143, 1.442695
    %v2157 = vpow.pop %v2156
    %v2158 = vsel %vm602, %v2145, 0.0
    %2159 = vadd.xlane.f32.xlu0 %v2158
    %v2160 = vpop.xlane.xlu0 %2159
    %v2161 = vsel %vm602, %v2147, 0.0
    %2162 = vadd.xlane.f32.xlu0 %v2161
    %v2163 = vpop.xlane.xlu0 %2162
    %v2164 = vsel %vm602, %v2149, 0.0
    %2165 = vadd.xlane.f32.xlu0 %v2164
    %v2166 = vpop.xlane.xlu0 %2165
    %v2167 = vsel %vm602, %v2151, 0.0
    %2168 = vadd.xlane.f32.xlu0 %v2167
    %v2169 = vpop.xlane.xlu0 %2168
    %v2170 = vsel %vm602, %v2153, 0.0
    %2171 = vadd.xlane.f32.xlu0 %v2170
    %v2172 = vpop.xlane.xlu0 %2171
    %v2173 = vsel %vm602, %v2155, 0.0
    %2174 = vadd.xlane.f32.xlu0 %v2173
    %v2175 = vpop.xlane.xlu0 %2174
    %v2176 = vsel %vm602, %v2157, 0.0
    %2177 = vadd.xlane.f32.xlu0 %v2176
    %v2178 = vpop.xlane.xlu0 %2177
    %v2179 = vrcp.pop %v2160
    %v2180 = vrcp.pop %v2163
    %v2181 = vrcp.pop %v2166
    %v2182 = vrcp.pop %v2169
    %v2183 = vrcp.pop %v2172
    %v2184 = vrcp.pop %v2175
    %v2185 = vrcp.pop %v2178
    %v2186 = vmul.f32 %v2145, %v2179
    %v2187 = vmul.f32 %v2147, %v2180
    %v2188 = vmul.f32 %v2149, %v2181
    %v2189 = vmul.f32 %v2151, %v2182
    %v2190 = vmul.f32 %v2153, %v2183
    %v2191 = vmul.f32 %v2155, %v2184
    %v2192 = vmul.f32 %v2157, %v2185
    %2193 = vrot.lane.b32.xlu0 %v419, 40
    %v2194 = vpop.permute.xlu0 %2193
    %2195 = vrot.lane.b32.xlu0 %v424, 40
    %v2196 = vpop.permute.xlu0 %2195
    %2197 = vrot.lane.b32.xlu0 %v429, 40
    %v2198 = vpop.permute.xlu0 %2197
    %2199 = vrot.lane.b32.xlu0 %v434, 40
    %v2200 = vpop.permute.xlu0 %2199
    %2201 = vrot.lane.b32.xlu0 %v439, 40
    %v2202 = vpop.permute.xlu0 %2201
    %2203 = vrot.lane.b32.xlu0 %v444, 40
    %v2204 = vpop.permute.xlu0 %2203
    %2205 = vrot.lane.b32.xlu0 %v449, 40
    %v2206 = vpop.permute.xlu0 %2205
    %v2215 = vsel %vm602, %v2186, 0
    %v2218 = vsel %vm602, %v2187, 0
    %v2221 = vsel %vm602, %v2188, 0
    %v2224 = vsel %vm602, %v2189, 0
    %v2227 = vsel %vm602, %v2190, 0
    %v2230 = vsel %vm602, %v2191, 0
    %v2233 = vsel %vm602, %v2192, 0
    %2235 = vmatprep.subr.mxu0 0.0
    %2236 = vmatpush1.msra.mxu0 0.0
    %2237 = vmatprep.subr.mxu0 0.0
    %2238 = vmatpush1.msra.mxu0 0.0
    %2239 = vmatprep.subr.mxu0 0.0
    %2240 = vmatpush1.msra.mxu0 0.0
    %2241 = vmatprep.subr.mxu0 0.0
    %2242 = vmatpush1.msra.mxu0 0.0
    %2243 = vmatprep.subr.mxu0 0.0
    %2244 = vmatpush1.msra.mxu0 0.0
    %2245 = vmatprep.subr.mxu0 0.0
    %2246 = vmatpush1.msra.mxu0 0.0
    %2247 = vmatprep.subr.mxu0 0.0
    %2248 = vmatpush1.msra.mxu0 0.0
    %2249 = vmatprep.subr.mxu0 0.0
    %2250 = vmatpush1.msra.mxu0 0.0
    %2251 = vmatprep.subr.mxu0 0.0
    %2252 = vmatpush1.msra.mxu0 0.0
    %2253 = vmatprep.subr.mxu0 0.0
    %2254 = vmatpush1.msra.mxu0 %v2206
    %2255 = vmatprep.subr.mxu0 0.0
    %2256 = vmatpush1.msra.mxu0 %v2204
    %2257 = vmatprep.subr.mxu0 0.0
    %2258 = vmatpush1.msra.mxu0 %v2202
    %2259 = vmatprep.subr.mxu0 0.0
    %2260 = vmatpush1.msra.mxu0 %v2200
    %2261 = vmatprep.subr.mxu0 0.0
    %2262 = vmatpush1.msra.mxu0 %v2198
    %2263 = vmatprep.subr.mxu0 0.0
    %2264 = vmatpush1.msra.mxu0 %v2196
    %2265 = vmatprep.subr.mxu0 0.0
    %2266 = vmatpush1.msra.mxu0 %v2194
    %2267 = vmatprep.subr.mxu0 0.0
    %2268 = vmatpush2.msra.mxu0 0.0
    %2269 = vmatprep.subr.mxu0 0.0
    %2270 = vmatpush2.msra.mxu0 0.0
    %2271 = vmatprep.subr.mxu0 0.0
    %2272 = vmatpush2.msra.mxu0 0.0
    %2273 = vmatprep.subr.mxu0 0.0
    %2274 = vmatpush2.msra.mxu0 0.0
    %2275 = vmatprep.subr.mxu0 0.0
    %2276 = vmatpush2.msra.mxu0 0.0
    %2277 = vmatprep.subr.mxu0 0.0
    %2278 = vmatpush2.msra.mxu0 0.0
    %2279 = vmatprep.subr.mxu0 0.0
    %2280 = vmatpush2.msra.mxu0 0.0
    %2281 = vmatprep.subr.mxu0 0.0
    %2282 = vmatpush2.msra.mxu0 0.0
    %2283 = vmatprep.subr.mxu0 0.0
    %2284 = vmatpush2.msra.mxu0 0.0
    %2285 = vmatprep.subr.mxu0 0.0
    %2286 = vmatpush2.msra.mxu0 0.0
    %2287 = vmatprep.subr.mxu0 0.0
    %2288 = vmatpush2.msra.mxu0 0.0
    %2289 = vmatprep.subr.mxu0 0.0
    %2290 = vmatpush2.msra.mxu0 0.0
    %2291 = vmatprep.subr.mxu0 0.0
    %2292 = vmatpush2.msra.mxu0 0.0
    %2293 = vmatprep.subr.mxu0 0.0
    %2294 = vmatpush2.msra.mxu0 0.0
    %2295 = vmatprep.subr.mxu0 0.0
    %2296 = vmatpush2.msra.mxu0 0.0
    %2297 = vmatprep.subr.mxu0 0.0
    %2298 = vmatpush2.msra.mxu0 0.0
    %2299 = vmatprep.mubr.f32.mxu0 0.0
    %2300 = vmatmul.mubr.f32.gmra.mxu0 %v2215
    %v2301 = vpop.f32.mrf.mxu0
    %v2302 = vadd.f32 0.0, %v2301
    %v2303 = vpop.f32.mrf.mxu0
    %2304 = vmatprep.mubr.f32.mxu0 0.0
    %2305 = vmatmul.mubr.f32.gmra.mxu0 %v2218
    %v2306 = vpop.f32.mrf.mxu0
    %v2307 = vadd.f32 0.0, %v2306
    %v2308 = vpop.f32.mrf.mxu0
    %2309 = vmatprep.mubr.f32.mxu0 0.0
    %2310 = vmatmul.mubr.f32.gmra.mxu0 %v2221
    %v2311 = vpop.f32.mrf.mxu0
    %v2312 = vadd.f32 0.0, %v2311
    %v2313 = vpop.f32.mrf.mxu0
    %2314 = vmatprep.mubr.f32.mxu0 0.0
    %2315 = vmatmul.mubr.f32.gmra.mxu0 %v2224
    %v2316 = vpop.f32.mrf.mxu0
    %v2317 = vadd.f32 0.0, %v2316
    %v2318 = vpop.f32.mrf.mxu0
    %2319 = vmatprep.mubr.f32.mxu0 0.0
    %2320 = vmatmul.mubr.f32.gmra.mxu0 %v2227
    %v2321 = vpop.f32.mrf.mxu0
    %v2322 = vadd.f32 0.0, %v2321
    %v2323 = vpop.f32.mrf.mxu0
    %2324 = vmatprep.mubr.f32.mxu0 0.0
    %2325 = vmatmul.mubr.f32.gmra.mxu0 %v2230
    %v2326 = vpop.f32.mrf.mxu0
    %v2327 = vadd.f32 0.0, %v2326
    %v2328 = vpop.f32.mrf.mxu0
    %2329 = vmatprep.mubr.f32.mxu0 0.0
    %2330 = vmatmul.mubr.f32.gmra.mxu0 %v2233
    %v2331 = vpop.f32.mrf.mxu0
    %v2332 = vadd.f32 0.0, %v2331
    %v2333 = vpop.f32.mrf.mxu0
    %2334 = vdwg.mxu0
    %v2336 = vsel %vm473, %v2302, 0
    %v2339 = vsel %vm473, %v2307, 0
    %v2342 = vsel %vm473, %v2312, 0
    %v2345 = vsel %vm473, %v2317, 0
    %v2348 = vsel %vm473, %v2322, 0
    %v2351 = vsel %vm473, %v2327, 0
    %v2354 = vsel %vm473, %v2332, 0
    %2356 = vmatprep.subr.mxu0 0.0
    %2357 = vmatpush1.msra.mxu0 0.0
    %2358 = vmatprep.subr.mxu0 0.0
    %2359 = vmatpush1.msra.mxu0 0.0
    %2360 = vmatprep.subr.mxu0 0.0
    %2361 = vmatpush1.msra.mxu0 0.0
    %2362 = vmatprep.subr.mxu0 0.0
    %2363 = vmatpush1.msra.mxu0 0.0
    %2364 = vmatprep.subr.mxu0 0.0
    %2365 = vmatpush1.msra.mxu0 0.0
    %2366 = vmatprep.subr.mxu0 0.0
    %2367 = vmatpush1.msra.mxu0 0.0
    %2368 = vmatprep.subr.mxu0 0.0
    %2369 = vmatpush1.msra.mxu0 0.0
    %2370 = vmatprep.subr.mxu0 0.0
    %2371 = vmatpush1.msra.mxu0 0.0
    %2372 = vmatprep.subr.mxu0 0.0
    %2373 = vmatpush1.msra.mxu0 0.0
    %2374 = vmatprep.subr.mxu0 0.0
    %2375 = vmatpush1.msra.mxu0 0.0
    %2376 = vmatprep.subr.mxu0 0.0
    %2377 = vmatpush1.msra.mxu0 0.0
    %2378 = vmatprep.subr.mxu0 0.0
    %2379 = vmatpush1.msra.mxu0 0.0
    %2380 = vmatprep.subr.mxu0 0.0
    %2381 = vmatpush1.msra.mxu0 0.0
    %2382 = vmatprep.subr.mxu0 0.0
    %2383 = vmatpush1.msra.mxu0 0.0
    %2384 = vmatprep.subr.mxu0 0.0
    %2385 = vmatpush1.msra.mxu0 0.0
    %2386 = vmatprep.subr.mxu0 0.0
    %2387 = vmatpush1.msra.mxu0 %v300
    %2388 = vmatprep.subr.mxu0 0.0
    %2389 = vmatpush2.msra.mxu0 0.0
    %2390 = vmatprep.subr.mxu0 0.0
    %2391 = vmatpush2.msra.mxu0 0.0
    %2392 = vmatprep.subr.mxu0 0.0
    %2393 = vmatpush2.msra.mxu0 0.0
    %2394 = vmatprep.subr.mxu0 0.0
    %2395 = vmatpush2.msra.mxu0 0.0
    %2396 = vmatprep.subr.mxu0 0.0
    %2397 = vmatpush2.msra.mxu0 0.0
    %2398 = vmatprep.subr.mxu0 0.0
    %2399 = vmatpush2.msra.mxu0 0.0
    %2400 = vmatprep.subr.mxu0 0.0
    %2401 = vmatpush2.msra.mxu0 0.0
    %2402 = vmatprep.subr.mxu0 0.0
    %2403 = vmatpush2.msra.mxu0 0.0
    %2404 = vmatprep.subr.mxu0 0.0
    %2405 = vmatpush2.msra.mxu0 0.0
    %2406 = vmatprep.subr.mxu0 0.0
    %2407 = vmatpush2.msra.mxu0 0.0
    %2408 = vmatprep.subr.mxu0 0.0
    %2409 = vmatpush2.msra.mxu0 0.0
    %2410 = vmatprep.subr.mxu0 0.0
    %2411 = vmatpush2.msra.mxu0 0.0
    %2412 = vmatprep.subr.mxu0 0.0
    %2413 = vmatpush2.msra.mxu0 0.0
    %2414 = vmatprep.subr.mxu0 0.0
    %2415 = vmatpush2.msra.mxu0 0.0
    %2416 = vmatprep.subr.mxu0 0.0
    %2417 = vmatpush2.msra.mxu0 0.0
    %2418 = vmatprep.subr.mxu0 0.0
    %2419 = vmatpush2.msra.mxu0 0.0
    %2420 = vmatprep.mubr.f32.mxu0 0.0
    %2421 = vmatmul.mubr.f32.gmra.mxu0 %v2336
    %v2422 = vpop.f32.mrf.mxu0
    %v2423 = vadd.f32 0.0, %v2422
    %v2424 = vpop.f32.mrf.mxu0
    %2425 = vmatprep.mubr.f32.mxu0 0.0
    %2426 = vmatmul.mubr.f32.gmra.mxu0 %v2339
    %v2427 = vpop.f32.mrf.mxu0
    %v2428 = vadd.f32 0.0, %v2427
    %v2429 = vpop.f32.mrf.mxu0
    %2430 = vmatprep.mubr.f32.mxu0 0.0
    %2431 = vmatmul.mubr.f32.gmra.mxu0 %v2342
    %v2432 = vpop.f32.mrf.mxu0
    %v2433 = vadd.f32 0.0, %v2432
    %v2434 = vpop.f32.mrf.mxu0
    %2435 = vmatprep.mubr.f32.mxu0 0.0
    %2436 = vmatmul.mubr.f32.gmra.mxu0 %v2345
    %v2437 = vpop.f32.mrf.mxu0
    %v2438 = vadd.f32 0.0, %v2437
    %v2439 = vpop.f32.mrf.mxu0
    %2440 = vmatprep.mubr.f32.mxu0 0.0
    %2441 = vmatmul.mubr.f32.gmra.mxu0 %v2348
    %v2442 = vpop.f32.mrf.mxu0
    %v2443 = vadd.f32 0.0, %v2442
    %v2444 = vpop.f32.mrf.mxu0
    %2445 = vmatprep.mubr.f32.mxu0 0.0
    %2446 = vmatmul.mubr.f32.gmra.mxu0 %v2351
    %v2447 = vpop.f32.mrf.mxu0
    %v2448 = vadd.f32 0.0, %v2447
    %v2449 = vpop.f32.mrf.mxu0
    %2450 = vmatprep.mubr.f32.mxu0 0.0
    %2451 = vmatmul.mubr.f32.gmra.mxu0 %v2354
    %v2452 = vpop.f32.mrf.mxu0
    %v2453 = vadd.f32 0.0, %v2452
    %v2454 = vpop.f32.mrf.mxu0
    %2455 = vdwg.mxu0
    %v2456 = vadd.f32 %v1953, %v2423
    %v2457 = vadd.f32 %v1954, %v2428
    %v2458 = vadd.f32 %v1955, %v2433
    %v2459 = vadd.f32 %v1956, %v2438
    %v2460 = vadd.f32 %v1957, %v2443
    %v2461 = vadd.f32 %v1958, %v2448
    %v2462 = vadd.f32 %v1959, %v2453
    %v2463 = vadd.f32 %v53, %v2456
    %v2464 = vadd.f32 %v54, %v2457
    %v2465 = vadd.f32 %v55, %v2458
    %v2466 = vadd.f32 %v56, %v2459
    %v2467 = vadd.f32 %v57, %v2460
    %v2468 = vadd.f32 %v58, %v2461
    %v2469 = vadd.f32 %v62, %v2462
    %v2470 = vsel %vm162, %v2463, 0.0
    %2471 = vadd.xlane.f32.xlu0 %v2470
    %v2472 = vpop.xlane.xlu0 %2471
    %v2473 = vsel %vm162, %v2464, 0.0
    %2474 = vadd.xlane.f32.xlu0 %v2473
    %v2475 = vpop.xlane.xlu0 %2474
    %v2476 = vsel %vm162, %v2465, 0.0
    %2477 = vadd.xlane.f32.xlu0 %v2476
    %v2478 = vpop.xlane.xlu0 %2477
    %v2479 = vsel %vm162, %v2466, 0.0
    %2480 = vadd.xlane.f32.xlu0 %v2479
    %v2481 = vpop.xlane.xlu0 %2480
    %v2482 = vsel %vm162, %v2467, 0.0
    %2483 = vadd.xlane.f32.xlu0 %v2482
    %v2484 = vpop.xlane.xlu0 %2483
    %v2485 = vsel %vm162, %v2468, 0.0
    %2486 = vadd.xlane.f32.xlu0 %v2485
    %v2487 = vpop.xlane.xlu0 %2486
    %v2488 = vsel %vm162, %v2469, 0.0
    %2489 = vadd.xlane.f32.xlu0 %v2488
    %v2490 = vpop.xlane.xlu0 %2489
    %v2491 = vrcp.pop 32.0
    %v2492 = vmul.f32 %v2472, %v2491
    %v2493 = vmul.f32 %v2475, %v2491
    %v2494 = vmul.f32 %v2478, %v2491
    %v2495 = vmul.f32 %v2481, %v2491
    %v2496 = vmul.f32 %v2484, %v2491
    %v2497 = vmul.f32 %v2487, %v2491
    %v2498 = vmul.f32 %v2490, %v2491
    %v2499 = vmul.f32 %v2463, %v2463
    %v2500 = vmul.f32 %v2464, %v2464
    %v2501 = vmul.f32 %v2465, %v2465
    %v2502 = vmul.f32 %v2466, %v2466
    %v2503 = vmul.f32 %v2467, %v2467
    %v2504 = vmul.f32 %v2468, %v2468
    %v2505 = vmul.f32 %v2469, %v2469
    %v2506 = vsel %vm162, %v2499, 0.0
    %2507 = vadd.xlane.f32.xlu0 %v2506
    %v2508 = vpop.xlane.xlu0 %2507
    %v2509 = vsel %vm162, %v2500, 0.0
    %2510 = vadd.xlane.f32.xlu0 %v2509
    %v2511 = vpop.xlane.xlu0 %2510
    %v2512 = vsel %vm162, %v2501, 0.0
    %2513 = vadd.xlane.f32.xlu0 %v2512
    %v2514 = vpop.xlane.xlu0 %2513
    %v2515 = vsel %vm162, %v2502, 0.0
    %2516 = vadd.xlane.f32.xlu0 %v2515
    %v2517 = vpop.xlane.xlu0 %2516
    %v2518 = vsel %vm162, %v2503, 0.0
    %2519 = vadd.xlane.f32.xlu0 %v2518
    %v2520 = vpop.xlane.xlu0 %2519
    %v2521 = vsel %vm162, %v2504, 0.0
    %2522 = vadd.xlane.f32.xlu0 %v2521
    %v2523 = vpop.xlane.xlu0 %2522
    %v2524 = vsel %vm162, %v2505, 0.0
    %2525 = vadd.xlane.f32.xlu0 %v2524
    %v2526 = vpop.xlane.xlu0 %2525
    %v2527 = vmul.f32 %v2508, %v2491
    %v2528 = vmul.f32 %v2511, %v2491
    %v2529 = vmul.f32 %v2514, %v2491
    %v2530 = vmul.f32 %v2517, %v2491
    %v2531 = vmul.f32 %v2520, %v2491
    %v2532 = vmul.f32 %v2523, %v2491
    %v2533 = vmul.f32 %v2526, %v2491
    %v2534 = vmul.f32 %v2492, %v2492
    %v2535 = vmul.f32 %v2493, %v2493
    %v2536 = vmul.f32 %v2494, %v2494
    %v2537 = vmul.f32 %v2495, %v2495
    %v2538 = vmul.f32 %v2496, %v2496
    %v2539 = vmul.f32 %v2497, %v2497
    %v2540 = vmul.f32 %v2498, %v2498
    %v2541 = vsub.f32 %v2527, %v2534
    %v2542 = vsub.f32 %v2528, %v2535
    %v2543 = vsub.f32 %v2529, %v2536
    %v2544 = vsub.f32 %v2530, %v2537
    %v2545 = vsub.f32 %v2531, %v2538
    %v2546 = vsub.f32 %v2532, %v2539
    %v2547 = vsub.f32 %v2533, %v2540
    %v2548 = vsub.f32 %v2463, %v2492
    %v2549 = vsub.f32 %v2464, %v2493
    %v2550 = vsub.f32 %v2465, %v2494
    %v2551 = vsub.f32 %v2466, %v2495
    %v2552 = vsub.f32 %v2467, %v2496
    %v2553 = vsub.f32 %v2468, %v2497
    %v2554 = vsub.f32 %v2469, %v2498
    %v2555 = vadd.f32 %v2541, 1e-05
    %v2556 = vadd.f32 %v2542, 1e-05
    %v2557 = vadd.f32 %v2543, 1e-05
    %v2558 = vadd.f32 %v2544, 1e-05
    %v2559 = vadd.f32 %v2545, 1e-05
    %v2560 = vadd.f32 %v2546, 1e-05
    %v2561 = vadd.f32 %v2547, 1e-05
    %v2562 = vrsqrt.pop %v2555
    %v2563 = vrsqrt.pop %v2556
    %v2564 = vrsqrt.pop %v2557
    %v2565 = vrsqrt.pop %v2558
    %v2566 = vrsqrt.pop %v2559
    %v2567 = vrsqrt.pop %v2560
    %v2568 = vrsqrt.pop %v2561
    %v2569 = vmul.f32 %v2548, %v2562
    %v2570 = vmul.f32 %v2549, %v2563
    %v2571 = vmul.f32 %v2550, %v2564
    %v2572 = vmul.f32 %v2551, %v2565
    %v2573 = vmul.f32 %v2552, %v2566
    %v2574 = vmul.f32 %v2553, %v2567
    %v2575 = vmul.f32 %v2554, %v2568
    %v2576 = vlaneseq
    %v2577 = vshrl.u32 %v2576, 7
    %v2578 = vsub.s32 0, %v2577
    %v2579 = vrot.slane %v39, %v2578
    %v2580 = vmul.f32 %v2569, %v2579
    %v2581 = vmul.f32 %v2570, %v2579
    %v2582 = vmul.f32 %v2571, %v2579
    %v2583 = vmul.f32 %v2572, %v2579
    %v2584 = vmul.f32 %v2573, %v2579
    %v2585 = vmul.f32 %v2574, %v2579
    %v2586 = vmul.f32 %v2575, %v2579
    %v2587 = vlaneseq
    %v2588 = vshrl.u32 %v2587, 7
    %v2589 = vsub.s32 1, %v2588
    %v2590 = vrot.slane %v39, %v2589
    %v2591 = vadd.f32 %v2580, %v2590
    %v2592 = vadd.f32 %v2581, %v2590
    %v2593 = vadd.f32 %v2582, %v2590
    %v2594 = vadd.f32 %v2583, %v2590
    %v2595 = vadd.f32 %v2584, %v2590
    %v2596 = vadd.f32 %v2585, %v2590
    %v2597 = vadd.f32 %v2586, %v2590
    %v2598 = vlaneseq
    %v2599 = vshrl.u32 %v2598, 7
    %v2600 = vsub.s32 0, %v2599
    %v2601 = vrot.slane %v307, %v2600
    %v2603 = vsel %vm162, %v2591, 0
    %v2606 = vsel %vm162, %v2592, 0
    %v2609 = vsel %vm162, %v2593, 0
    %v2612 = vsel %vm162, %v2594, 0
    %v2615 = vsel %vm162, %v2595, 0
    %v2618 = vsel %vm162, %v2596, 0
    %v2621 = vsel %vm162, %v2597, 0
    %2623 = vmatprep.subr.mxu0 0.0
    %2624 = vmatpush1.msra.mxu0 0.0
    %2625 = vmatprep.subr.mxu0 0.0
    %2626 = vmatpush1.msra.mxu0 0.0
    %2627 = vmatprep.subr.mxu0 0.0
    %2628 = vmatpush1.msra.mxu0 0.0
    %2629 = vmatprep.subr.mxu0 0.0
    %2630 = vmatpush1.msra.mxu0 0.0
    %2631 = vmatprep.subr.mxu0 0.0
    %2632 = vmatpush1.msra.mxu0 0.0
    %2633 = vmatprep.subr.mxu0 0.0
    %2634 = vmatpush1.msra.mxu0 0.0
    %2635 = vmatprep.subr.mxu0 0.0
    %2636 = vmatpush1.msra.mxu0 0.0
    %2637 = vmatprep.subr.mxu0 0.0
    %2638 = vmatpush1.msra.mxu0 0.0
    %2639 = vmatprep.subr.mxu0 0.0
    %2640 = vmatpush1.msra.mxu0 0.0
    %2641 = vmatprep.subr.mxu0 0.0
    %2642 = vmatpush1.msra.mxu0 0.0
    %2643 = vmatprep.subr.mxu0 0.0
    %2644 = vmatpush1.msra.mxu0 0.0
    %2645 = vmatprep.subr.mxu0 0.0
    %2646 = vmatpush1.msra.mxu0 0.0
    %2647 = vmatprep.subr.mxu0 0.0
    %2648 = vmatpush1.msra.mxu0 %v306
    %2649 = vmatprep.subr.mxu0 0.0
    %2650 = vmatpush1.msra.mxu0 %v305
    %2651 = vmatprep.subr.mxu0 0.0
    %2652 = vmatpush1.msra.mxu0 %v304
    %2653 = vmatprep.subr.mxu0 0.0
    %2654 = vmatpush1.msra.mxu0 %v303
    %2655 = vmatprep.subr.mxu0 0.0
    %2656 = vmatpush2.msra.mxu0 0.0
    %2657 = vmatprep.subr.mxu0 0.0
    %2658 = vmatpush2.msra.mxu0 0.0
    %2659 = vmatprep.subr.mxu0 0.0
    %2660 = vmatpush2.msra.mxu0 0.0
    %2661 = vmatprep.subr.mxu0 0.0
    %2662 = vmatpush2.msra.mxu0 0.0
    %2663 = vmatprep.subr.mxu0 0.0
    %2664 = vmatpush2.msra.mxu0 0.0
    %2665 = vmatprep.subr.mxu0 0.0
    %2666 = vmatpush2.msra.mxu0 0.0
    %2667 = vmatprep.subr.mxu0 0.0
    %2668 = vmatpush2.msra.mxu0 0.0
    %2669 = vmatprep.subr.mxu0 0.0
    %2670 = vmatpush2.msra.mxu0 0.0
    %2671 = vmatprep.subr.mxu0 0.0
    %2672 = vmatpush2.msra.mxu0 0.0
    %2673 = vmatprep.subr.mxu0 0.0
    %2674 = vmatpush2.msra.mxu0 0.0
    %2675 = vmatprep.subr.mxu0 0.0
    %2676 = vmatpush2.msra.mxu0 0.0
    %2677 = vmatprep.subr.mxu0 0.0
    %2678 = vmatpush2.msra.mxu0 0.0
    %2679 = vmatprep.subr.mxu0 0.0
    %2680 = vmatpush2.msra.mxu0 0.0
    %2681 = vmatprep.subr.mxu0 0.0
    %2682 = vmatpush2.msra.mxu0 0.0
    %2683 = vmatprep.subr.mxu0 0.0
    %2684 = vmatpush2.msra.mxu0 0.0
    %2685 = vmatprep.subr.mxu0 0.0
    %2686 = vmatpush2.msra.mxu0 0.0
    %2687 = vmatprep.mubr.f32.mxu0 0.0
    %2688 = vmatmul.mubr.f32.gmra.mxu0 %v2603
    %v2689 = vpop.f32.mrf.mxu0
    %v2690 = vadd.f32 %v2601, %v2689
    %v2691 = vpop.f32.mrf.mxu0
    %2692 = vmatprep.mubr.f32.mxu0 0.0
    %2693 = vmatmul.mubr.f32.gmra.mxu0 %v2606
    %v2694 = vpop.f32.mrf.mxu0
    %v2695 = vadd.f32 %v2601, %v2694
    %v2696 = vpop.f32.mrf.mxu0
    %2697 = vmatprep.mubr.f32.mxu0 0.0
    %2698 = vmatmul.mubr.f32.gmra.mxu0 %v2609
    %v2699 = vpop.f32.mrf.mxu0
    %v2700 = vadd.f32 %v2601, %v2699
    %v2701 = vpop.f32.mrf.mxu0
    %2702 = vmatprep.mubr.f32.mxu0 0.0
    %2703 = vmatmul.mubr.f32.gmra.mxu0 %v2612
    %v2704 = vpop.f32.mrf.mxu0
    %v2705 = vadd.f32 %v2601, %v2704
    %v2706 = vpop.f32.mrf.mxu0
    %2707 = vmatprep.mubr.f32.mxu0 0.0
    %2708 = vmatmul.mubr.f32.gmra.mxu0 %v2615
    %v2709 = vpop.f32.mrf.mxu0
    %v2710 = vadd.f32 %v2601, %v2709
    %v2711 = vpop.f32.mrf.mxu0
    %2712 = vmatprep.mubr.f32.mxu0 0.0
    %2713 = vmatmul.mubr.f32.gmra.mxu0 %v2618
    %v2714 = vpop.f32.mrf.mxu0
    %v2715 = vadd.f32 %v2601, %v2714
    %v2716 = vpop.f32.mrf.mxu0
    %2717 = vmatprep.mubr.f32.mxu0 0.0
    %2718 = vmatmul.mubr.f32.gmra.mxu0 %v2621
    %v2719 = vpop.f32.mrf.mxu0
    %v2720 = vadd.f32 %v2601, %v2719
    %v2721 = vpop.f32.mrf.mxu0
    %2722 = vdwg.mxu0
    %v2724 = vsel %vm473, %v2690, 0
    %v2727 = vsel %vm473, %v2695, 0
    %v2730 = vsel %vm473, %v2700, 0
    %v2733 = vsel %vm473, %v2705, 0
    %v2736 = vsel %vm473, %v2710, 0
    %v2739 = vsel %vm473, %v2715, 0
    %v2742 = vsel %vm473, %v2720, 0
    %v2745 = vsel %vm473, %v254, 0
    %v2748 = vsel %vm473, %v259, 0
    %v2751 = vsel %vm473, %v264, 0
    %v2754 = vsel %vm473, %v269, 0
    %v2757 = vsel %vm473, %v274, 0
    %v2760 = vsel %vm473, %v279, 0
    %v2763 = vsel %vm473, %v284, 0
    %v2766 = vsel %vm473, %v289, 0
    %2768 = vmatprep.subr.mxu0 0.0
    %2769 = vmatpush1.xpose.msra.mxu0 0.0
    %2770 = vmatprep.subr.mxu0 0.0
    %2771 = vmatpush1.xpose.msra.mxu0 0.0
    %2772 = vmatprep.subr.mxu0 0.0
    %2773 = vmatpush1.xpose.msra.mxu0 0.0
    %2774 = vmatprep.subr.mxu0 0.0
    %2775 = vmatpush1.xpose.msra.mxu0 0.0
    %2776 = vmatprep.subr.mxu0 0.0
    %2777 = vmatpush1.xpose.msra.mxu0 0.0
    %2778 = vmatprep.subr.mxu0 0.0
    %2779 = vmatpush1.xpose.msra.mxu0 0.0
    %2780 = vmatprep.subr.mxu0 0.0
    %2781 = vmatpush1.xpose.msra.mxu0 0.0
    %2782 = vmatprep.subr.mxu0 0.0
    %2783 = vmatpush1.xpose.msra.mxu0 0.0
    %2784 = vmatprep.subr.mxu0 0.0
    %2785 = vmatpush1.xpose.msra.mxu0 %v2766
    %2786 = vmatprep.subr.mxu0 0.0
    %2787 = vmatpush1.xpose.msra.mxu0 %v2763
    %2788 = vmatprep.subr.mxu0 0.0
    %2789 = vmatpush1.xpose.msra.mxu0 %v2760
    %2790 = vmatprep.subr.mxu0 0.0
    %2791 = vmatpush1.xpose.msra.mxu0 %v2757
    %2792 = vmatprep.subr.mxu0 0.0
    %2793 = vmatpush1.xpose.msra.mxu0 %v2754
    %2794 = vmatprep.subr.mxu0 0.0
    %2795 = vmatpush1.xpose.msra.mxu0 %v2751
    %2796 = vmatprep.subr.mxu0 0.0
    %2797 = vmatpush1.xpose.msra.mxu0 %v2748
    %2798 = vmatprep.subr.mxu0 0.0
    %2799 = vmatpush1.xpose.msra.mxu0 %v2745
    %2800 = vmatprep.subr.mxu0 0.0
    %2801 = vmatpush2.xpose.msra.mxu0 0.0
    %2802 = vmatprep.subr.mxu0 0.0
    %2803 = vmatpush2.xpose.msra.mxu0 0.0
    %2804 = vmatprep.subr.mxu0 0.0
    %2805 = vmatpush2.xpose.msra.mxu0 0.0
    %2806 = vmatprep.subr.mxu0 0.0
    %2807 = vmatpush2.xpose.msra.mxu0 0.0
    %2808 = vmatprep.subr.mxu0 0.0
    %2809 = vmatpush2.xpose.msra.mxu0 0.0
    %2810 = vmatprep.subr.mxu0 0.0
    %2811 = vmatpush2.xpose.msra.mxu0 0.0
    %2812 = vmatprep.subr.mxu0 0.0
    %2813 = vmatpush2.xpose.msra.mxu0 0.0
    %2814 = vmatprep.subr.mxu0 0.0
    %2815 = vmatpush2.xpose.msra.mxu0 0.0
    %2816 = vmatprep.subr.mxu0 0.0
    %2817 = vmatpush2.xpose.msra.mxu0 0.0
    %2818 = vmatprep.subr.mxu0 0.0
    %2819 = vmatpush2.xpose.msra.mxu0 0.0
    %2820 = vmatprep.subr.mxu0 0.0
    %2821 = vmatpush2.xpose.msra.mxu0 0.0
    %2822 = vmatprep.subr.mxu0 0.0
    %2823 = vmatpush2.xpose.msra.mxu0 0.0
    %2824 = vmatprep.subr.mxu0 0.0
    %2825 = vmatpush2.xpose.msra.mxu0 0.0
    %2826 = vmatprep.subr.mxu0 0.0
    %2827 = vmatpush2.xpose.msra.mxu0 0.0
    %2828 = vmatprep.subr.mxu0 0.0
    %2829 = vmatpush2.xpose.msra.mxu0 0.0
    %2830 = vmatprep.subr.mxu0 0.0
    %2831 = vmatpush2.xpose.msra.mxu0 0.0
    %2832 = vmatprep.mubr.f32.mxu0 0.0
    %2833 = vmatmul.mubr.f32.gmra.mxu0 %v2724
    %v2834 = vpop.f32.mrf.mxu0
    %v2835 = vadd.f32 %v146, %v2834
    %v2836 = vpop.f32.mrf.mxu0
    %2837 = vmatprep.mubr.f32.mxu0 0.0
    %2838 = vmatmul.mubr.f32.gmra.mxu0 %v2727
    %v2839 = vpop.f32.mrf.mxu0
    %v2840 = vadd.f32 %v147, %v2839
    %v2841 = vpop.f32.mrf.mxu0
    %2842 = vmatprep.mubr.f32.mxu0 0.0
    %2843 = vmatmul.mubr.f32.gmra.mxu0 %v2730
    %v2844 = vpop.f32.mrf.mxu0
    %v2845 = vadd.f32 %v148, %v2844
    %v2846 = vpop.f32.mrf.mxu0
    %2847 = vmatprep.mubr.f32.mxu0 0.0
    %2848 = vmatmul.mubr.f32.gmra.mxu0 %v2733
    %v2849 = vpop.f32.mrf.mxu0
    %v2850 = vadd.f32 %v149, %v2849
    %v2851 = vpop.f32.mrf.mxu0
    %2852 = vmatprep.mubr.f32.mxu0 0.0
    %2853 = vmatmul.mubr.f32.gmra.mxu0 %v2736
    %v2854 = vpop.f32.mrf.mxu0
    %v2855 = vadd.f32 %v150, %v2854
    %v2856 = vpop.f32.mrf.mxu0
    %2857 = vmatprep.mubr.f32.mxu0 0.0
    %2858 = vmatmul.mubr.f32.gmra.mxu0 %v2739
    %v2859 = vpop.f32.mrf.mxu0
    %v2860 = vadd.f32 %v151, %v2859
    %v2861 = vpop.f32.mrf.mxu0
    %2862 = vmatprep.mubr.f32.mxu0 0.0
    %2863 = vmatmul.mubr.f32.gmra.mxu0 %v2742
    %v2864 = vpop.f32.mrf.mxu0
    %v2865 = vadd.f32 %v152, %v2864
    %v2866 = vpop.f32.mrf.mxu0
    %2867 = vdwg.mxu0
    %vm2868 = vcmask 523264
    %v2869 = vsel %vm2868, %v2835, -inf
    %2870 = vmax.xlane.f32.xlu0 %v2869
    %v2871 = vpop.xlane.xlu0 %2870
    %v2872 = vsel %vm2868, %v2840, -inf
    %2873 = vmax.xlane.f32.xlu0 %v2872
    %v2874 = vpop.xlane.xlu0 %2873
    %v2875 = vsel %vm2868, %v2845, -inf
    %2876 = vmax.xlane.f32.xlu0 %v2875
    %v2877 = vpop.xlane.xlu0 %2876
    %v2878 = vsel %vm2868, %v2850, -inf
    %2879 = vmax.xlane.f32.xlu0 %v2878
    %v2880 = vpop.xlane.xlu0 %2879
    %v2881 = vsel %vm2868, %v2855, -inf
    %2882 = vmax.xlane.f32.xlu0 %v2881
    %v2883 = vpop.xlane.xlu0 %2882
    %v2884 = vsel %vm2868, %v2860, -inf
    %2885 = vmax.xlane.f32.xlu0 %v2884
    %v2886 = vpop.xlane.xlu0 %2885
    %v2887 = vsel %vm2868, %v2865, -inf
    %2888 = vmax.xlane.f32.xlu0 %v2887
    %v2889 = vpop.xlane.xlu0 %2888
    %v2890 = vsub.f32 %v2835, %v2871
    %v2891 = vsub.f32 %v2840, %v2874
    %v2892 = vsub.f32 %v2845, %v2877
    %v2893 = vsub.f32 %v2850, %v2880
    %v2894 = vsub.f32 %v2855, %v2883
    %v2895 = vsub.f32 %v2860, %v2886
    %v2896 = vsub.f32 %v2865, %v2889
    %v2897 = vmul.f32 %v2890, 1.442695
    %v2898 = vpow.pop %v2897
    %v2899 = vmul.f32 %v2891, 1.442695
    %v2900 = vpow.pop %v2899
    %v2901 = vmul.f32 %v2892, 1.442695
    %v2902 = vpow.pop %v2901
    %v2903 = vmul.f32 %v2893, 1.442695
    %v2904 = vpow.pop %v2903
    %v2905 = vmul.f32 %v2894, 1.442695
    %v2906 = vpow.pop %v2905
    %v2907 = vmul.f32 %v2895, 1.442695
    %v2908 = vpow.pop %v2907
    %v2909 = vmul.f32 %v2896, 1.442695
    %v2910 = vpow.pop %v2909
    %v2911 = vsel %vm2868, %v2898, 0.0
    %2912 = vadd.xlane.f32.xlu0 %v2911
    %v2913 = vpop.xlane.xlu0 %2912
    %v2914 = vsel %vm2868, %v2900, 0.0
    %2915 = vadd.xlane.f32.xlu0 %v2914
    %v2916 = vpop.xlane.xlu0 %2915
    %v2917 = vsel %vm2868, %v2902, 0.0
    %2918 = vadd.xlane.f32.xlu0 %v2917
    %v2919 = vpop.xlane.xlu0 %2918
    %v2920 = vsel %vm2868, %v2904, 0.0
    %2921 = vadd.xlane.f32.xlu0 %v2920
    %v2922 = vpop.xlane.xlu0 %2921
    %v2923 = vsel %vm2868, %v2906, 0.0
    %2924 = vadd.xlane.f32.xlu0 %v2923
    %v2925 = vpop.xlane.xlu0 %2924
    %v2926 = vsel %vm2868, %v2908, 0.0
    %2927 = vadd.xlane.f32.xlu0 %v2926
    %v2928 = vpop.xlane.xlu0 %2927
    %v2929 = vsel %vm2868, %v2910, 0.0
    %2930 = vadd.xlane.f32.xlu0 %v2929
    %v2931 = vpop.xlane.xlu0 %2930
    %v2932 = vrcp.pop %v2913
    %v2933 = vrcp.pop %v2916
    %v2934 = vrcp.pop %v2919
    %v2935 = vrcp.pop %v2922
    %v2936 = vrcp.pop %v2925
    %v2937 = vrcp.pop %v2928
    %v2938 = vrcp.pop %v2931
    %v2939 = vmul.f32 %v2898, %v2932
    %v2940 = vmul.f32 %v2900, %v2933
    %v2941 = vmul.f32 %v2902, %v2934
    %v2942 = vmul.f32 %v2904, %v2935
    %v2943 = vmul.f32 %v2906, %v2936
    %v2944 = vmul.f32 %v2908, %v2937
    %v2945 = vmul.f32 %v2910, %v2938
    %2946 = vrot.lane.b32.xlu0 %v254, 96
    %v2947 = vpop.permute.xlu0 %2946
    %2948 = vrot.lane.b32.xlu0 %v259, 96
    %v2949 = vpop.permute.xlu0 %2948
    %2950 = vrot.lane.b32.xlu0 %v264, 96
    %v2951 = vpop.permute.xlu0 %2950
    %2952 = vrot.lane.b32.xlu0 %v269, 96
    %v2953 = vpop.permute.xlu0 %2952
    %2954 = vrot.lane.b32.xlu0 %v274, 96
    %v2955 = vpop.permute.xlu0 %2954
    %2956 = vrot.lane.b32.xlu0 %v279, 96
    %v2957 = vpop.permute.xlu0 %2956
    %2958 = vrot.lane.b32.xlu0 %v284, 96
    %v2959 = vpop.permute.xlu0 %2958
    %2960 = vrot.lane.b32.xlu0 %v289, 96
    %v2961 = vpop.permute.xlu0 %2960
    %v2971 = vsel %vm2868, %v2939, 0
    %v2974 = vsel %vm2868, %v2940, 0
    %v2977 = vsel %vm2868, %v2941, 0
    %v2980 = vsel %vm2868, %v2942, 0
    %v2983 = vsel %vm2868, %v2943, 0
    %v2986 = vsel %vm2868, %v2944, 0
    %v2989 = vsel %vm2868, %v2945, 0
    %2991 = vmatprep.subr.mxu0 0.0
    %2992 = vmatpush1.msra.mxu0 0.0
    %2993 = vmatprep.subr.mxu0 0.0
    %2994 = vmatpush1.msra.mxu0 0.0
    %2995 = vmatprep.subr.mxu0 0.0
    %2996 = vmatpush1.msra.mxu0 0.0
    %2997 = vmatprep.subr.mxu0 0.0
    %2998 = vmatpush1.msra.mxu0 0.0
    %2999 = vmatprep.subr.mxu0 0.0
    %3000 = vmatpush1.msra.mxu0 0.0
    %3001 = vmatprep.subr.mxu0 0.0
    %3002 = vmatpush1.msra.mxu0 0.0
    %3003 = vmatprep.subr.mxu0 0.0
    %3004 = vmatpush1.msra.mxu0 0.0
    %3005 = vmatprep.subr.mxu0 0.0
    %3006 = vmatpush1.msra.mxu0 0.0
    %3007 = vmatprep.subr.mxu0 0.0
    %3008 = vmatpush1.msra.mxu0 %v2961
    %3009 = vmatprep.subr.mxu0 0.0
    %3010 = vmatpush1.msra.mxu0 %v2959
    %3011 = vmatprep.subr.mxu0 0.0
    %3012 = vmatpush1.msra.mxu0 %v2957
    %3013 = vmatprep.subr.mxu0 0.0
    %3014 = vmatpush1.msra.mxu0 %v2955
    %3015 = vmatprep.subr.mxu0 0.0
    %3016 = vmatpush1.msra.mxu0 %v2953
    %3017 = vmatprep.subr.mxu0 0.0
    %3018 = vmatpush1.msra.mxu0 %v2951
    %3019 = vmatprep.subr.mxu0 0.0
    %3020 = vmatpush1.msra.mxu0 %v2949
    %3021 = vmatprep.subr.mxu0 0.0
    %3022 = vmatpush1.msra.mxu0 %v2947
    %3023 = vmatprep.subr.mxu0 0.0
    %3024 = vmatpush2.msra.mxu0 0.0
    %3025 = vmatprep.subr.mxu0 0.0
    %3026 = vmatpush2.msra.mxu0 0.0
    %3027 = vmatprep.subr.mxu0 0.0
    %3028 = vmatpush2.msra.mxu0 0.0
    %3029 = vmatprep.subr.mxu0 0.0
    %3030 = vmatpush2.msra.mxu0 0.0
    %3031 = vmatprep.subr.mxu0 0.0
    %3032 = vmatpush2.msra.mxu0 0.0
    %3033 = vmatprep.subr.mxu0 0.0
    %3034 = vmatpush2.msra.mxu0 0.0
    %3035 = vmatprep.subr.mxu0 0.0
    %3036 = vmatpush2.msra.mxu0 0.0
    %3037 = vmatprep.subr.mxu0 0.0
    %3038 = vmatpush2.msra.mxu0 0.0
    %3039 = vmatprep.subr.mxu0 0.0
    %3040 = vmatpush2.msra.mxu0 0.0
    %3041 = vmatprep.subr.mxu0 0.0
    %3042 = vmatpush2.msra.mxu0 0.0
    %3043 = vmatprep.subr.mxu0 0.0
    %3044 = vmatpush2.msra.mxu0 0.0
    %3045 = vmatprep.subr.mxu0 0.0
    %3046 = vmatpush2.msra.mxu0 0.0
    %3047 = vmatprep.subr.mxu0 0.0
    %3048 = vmatpush2.msra.mxu0 0.0
    %3049 = vmatprep.subr.mxu0 0.0
    %3050 = vmatpush2.msra.mxu0 0.0
    %3051 = vmatprep.subr.mxu0 0.0
    %3052 = vmatpush2.msra.mxu0 0.0
    %3053 = vmatprep.subr.mxu0 0.0
    %3054 = vmatpush2.msra.mxu0 0.0
    %3055 = vmatprep.mubr.f32.mxu0 0.0
    %3056 = vmatmul.mubr.f32.gmra.mxu0 %v2971
    %v3057 = vpop.f32.mrf.mxu0
    %v3058 = vadd.f32 0.0, %v3057
    %v3059 = vpop.f32.mrf.mxu0
    %3060 = vmatprep.mubr.f32.mxu0 0.0
    %3061 = vmatmul.mubr.f32.gmra.mxu0 %v2974
    %v3062 = vpop.f32.mrf.mxu0
    %v3063 = vadd.f32 0.0, %v3062
    %v3064 = vpop.f32.mrf.mxu0
    %3065 = vmatprep.mubr.f32.mxu0 0.0
    %3066 = vmatmul.mubr.f32.gmra.mxu0 %v2977
    %v3067 = vpop.f32.mrf.mxu0
    %v3068 = vadd.f32 0.0, %v3067
    %v3069 = vpop.f32.mrf.mxu0
    %3070 = vmatprep.mubr.f32.mxu0 0.0
    %3071 = vmatmul.mubr.f32.gmra.mxu0 %v2980
    %v3072 = vpop.f32.mrf.mxu0
    %v3073 = vadd.f32 0.0, %v3072
    %v3074 = vpop.f32.mrf.mxu0
    %3075 = vmatprep.mubr.f32.mxu0 0.0
    %3076 = vmatmul.mubr.f32.gmra.mxu0 %v2983
    %v3077 = vpop.f32.mrf.mxu0
    %v3078 = vadd.f32 0.0, %v3077
    %v3079 = vpop.f32.mrf.mxu0
    %3080 = vmatprep.mubr.f32.mxu0 0.0
    %3081 = vmatmul.mubr.f32.gmra.mxu0 %v2986
    %v3082 = vpop.f32.mrf.mxu0
    %v3083 = vadd.f32 0.0, %v3082
    %v3084 = vpop.f32.mrf.mxu0
    %3085 = vmatprep.mubr.f32.mxu0 0.0
    %3086 = vmatmul.mubr.f32.gmra.mxu0 %v2989
    %v3087 = vpop.f32.mrf.mxu0
    %v3088 = vadd.f32 0.0, %v3087
    %v3089 = vpop.f32.mrf.mxu0
    %3090 = vdwg.mxu0
    %v3092 = vsel %vm473, %v3058, 0
    %v3095 = vsel %vm473, %v3063, 0
    %v3098 = vsel %vm473, %v3068, 0
    %v3101 = vsel %vm473, %v3073, 0
    %v3104 = vsel %vm473, %v3078, 0
    %v3107 = vsel %vm473, %v3083, 0
    %v3110 = vsel %vm473, %v3088, 0
    %3112 = vmatprep.subr.mxu0 0.0
    %3113 = vmatpush1.msra.mxu0 0.0
    %3114 = vmatprep.subr.mxu0 0.0
    %3115 = vmatpush1.msra.mxu0 0.0
    %3116 = vmatprep.subr.mxu0 0.0
    %3117 = vmatpush1.msra.mxu0 0.0
    %3118 = vmatprep.subr.mxu0 0.0
    %3119 = vmatpush1.msra.mxu0 0.0
    %3120 = vmatprep.subr.mxu0 0.0
    %3121 = vmatpush1.msra.mxu0 0.0
    %3122 = vmatprep.subr.mxu0 0.0
    %3123 = vmatpush1.msra.mxu0 0.0
    %3124 = vmatprep.subr.mxu0 0.0
    %3125 = vmatpush1.msra.mxu0 0.0
    %3126 = vmatprep.subr.mxu0 0.0
    %3127 = vmatpush1.msra.mxu0 0.0
    %3128 = vmatprep.subr.mxu0 0.0
    %3129 = vmatpush1.msra.mxu0 0.0
    %3130 = vmatprep.subr.mxu0 0.0
    %3131 = vmatpush1.msra.mxu0 0.0
    %3132 = vmatprep.subr.mxu0 0.0
    %3133 = vmatpush1.msra.mxu0 0.0
    %3134 = vmatprep.subr.mxu0 0.0
    %3135 = vmatpush1.msra.mxu0 0.0
    %3136 = vmatprep.subr.mxu0 0.0
    %3137 = vmatpush1.msra.mxu0 0.0
    %3138 = vmatprep.subr.mxu0 0.0
    %3139 = vmatpush1.msra.mxu0 0.0
    %3140 = vmatprep.subr.mxu0 0.0
    %3141 = vmatpush1.msra.mxu0 0.0
    %3142 = vmatprep.subr.mxu0 0.0
    %3143 = vmatpush1.msra.mxu0 %v308
    %3144 = vmatprep.subr.mxu0 0.0
    %3145 = vmatpush2.msra.mxu0 0.0
    %3146 = vmatprep.subr.mxu0 0.0
    %3147 = vmatpush2.msra.mxu0 0.0
    %3148 = vmatprep.subr.mxu0 0.0
    %3149 = vmatpush2.msra.mxu0 0.0
    %3150 = vmatprep.subr.mxu0 0.0
    %3151 = vmatpush2.msra.mxu0 0.0
    %3152 = vmatprep.subr.mxu0 0.0
    %3153 = vmatpush2.msra.mxu0 0.0
    %3154 = vmatprep.subr.mxu0 0.0
    %3155 = vmatpush2.msra.mxu0 0.0
    %3156 = vmatprep.subr.mxu0 0.0
    %3157 = vmatpush2.msra.mxu0 0.0
    %3158 = vmatprep.subr.mxu0 0.0
    %3159 = vmatpush2.msra.mxu0 0.0
    %3160 = vmatprep.subr.mxu0 0.0
    %3161 = vmatpush2.msra.mxu0 0.0
    %3162 = vmatprep.subr.mxu0 0.0
    %3163 = vmatpush2.msra.mxu0 0.0
    %3164 = vmatprep.subr.mxu0 0.0
    %3165 = vmatpush2.msra.mxu0 0.0
    %3166 = vmatprep.subr.mxu0 0.0
    %3167 = vmatpush2.msra.mxu0 0.0
    %3168 = vmatprep.subr.mxu0 0.0
    %3169 = vmatpush2.msra.mxu0 0.0
    %3170 = vmatprep.subr.mxu0 0.0
    %3171 = vmatpush2.msra.mxu0 0.0
    %3172 = vmatprep.subr.mxu0 0.0
    %3173 = vmatpush2.msra.mxu0 0.0
    %3174 = vmatprep.subr.mxu0 0.0
    %3175 = vmatpush2.msra.mxu0 0.0
    %3176 = vmatprep.mubr.f32.mxu0 0.0
    %3177 = vmatmul.mubr.f32.gmra.mxu0 %v3092
    %v3178 = vpop.f32.mrf.mxu0
    %v3179 = vadd.f32 0.0, %v3178
    %v3180 = vpop.f32.mrf.mxu0
    %3181 = vmatprep.mubr.f32.mxu0 0.0
    %3182 = vmatmul.mubr.f32.gmra.mxu0 %v3095
    %v3183 = vpop.f32.mrf.mxu0
    %v3184 = vadd.f32 0.0, %v3183
    %v3185 = vpop.f32.mrf.mxu0
    %3186 = vmatprep.mubr.f32.mxu0 0.0
    %3187 = vmatmul.mubr.f32.gmra.mxu0 %v3098
    %v3188 = vpop.f32.mrf.mxu0
    %v3189 = vadd.f32 0.0, %v3188
    %v3190 = vpop.f32.mrf.mxu0
    %3191 = vmatprep.mubr.f32.mxu0 0.0
    %3192 = vmatmul.mubr.f32.gmra.mxu0 %v3101
    %v3193 = vpop.f32.mrf.mxu0
    %v3194 = vadd.f32 0.0, %v3193
    %v3195 = vpop.f32.mrf.mxu0
    %3196 = vmatprep.mubr.f32.mxu0 0.0
    %3197 = vmatmul.mubr.f32.gmra.mxu0 %v3104
    %v3198 = vpop.f32.mrf.mxu0
    %v3199 = vadd.f32 0.0, %v3198
    %v3200 = vpop.f32.mrf.mxu0
    %3201 = vmatprep.mubr.f32.mxu0 0.0
    %3202 = vmatmul.mubr.f32.gmra.mxu0 %v3107
    %v3203 = vpop.f32.mrf.mxu0
    %v3204 = vadd.f32 0.0, %v3203
    %v3205 = vpop.f32.mrf.mxu0
    %3206 = vmatprep.mubr.f32.mxu0 0.0
    %3207 = vmatmul.mubr.f32.gmra.mxu0 %v3110
    %v3208 = vpop.f32.mrf.mxu0
    %v3209 = vadd.f32 0.0, %v3208
    %v3210 = vpop.f32.mrf.mxu0
    %3211 = vdwg.mxu0
    %v3212 = vlaneseq
    %v3213 = vshrl.u32 %v3212, 7
    %v3214 = vsub.s32 0, %v3213
    %v3215 = vrot.slane %v312, %v3214
    %v3216 = vadd.f32 %v3215, %v3179
    %v3217 = vadd.f32 %v3215, %v3184
    %v3218 = vadd.f32 %v3215, %v3189
    %v3219 = vadd.f32 %v3215, %v3194
    %v3220 = vadd.f32 %v3215, %v3199
    %v3221 = vadd.f32 %v3215, %v3204
    %v3222 = vadd.f32 %v3215, %v3209
    %3223 = vrot.lane.b32.xlu0 %v2690, 120
    %v3224 = vpop.permute.xlu0 %3223
    %3225 = vrot.lane.b32.xlu0 %v2695, 120
    %v3226 = vpop.permute.xlu0 %3225
    %3227 = vrot.lane.b32.xlu0 %v2700, 120
    %v3228 = vpop.permute.xlu0 %3227
    %3229 = vrot.lane.b32.xlu0 %v2705, 120
    %v3230 = vpop.permute.xlu0 %3229
    %3231 = vrot.lane.b32.xlu0 %v2710, 120
    %v3232 = vpop.permute.xlu0 %3231
    %3233 = vrot.lane.b32.xlu0 %v2715, 120
    %v3234 = vpop.permute.xlu0 %3233
    %3235 = vrot.lane.b32.xlu0 %v2720, 120
    %v3236 = vpop.permute.xlu0 %3235
    %3237 = vrot.lane.b32.xlu0 %v254, 120
    %v3238 = vpop.permute.xlu0 %3237
    %3239 = vrot.lane.b32.xlu0 %v259, 120
    %v3240 = vpop.permute.xlu0 %3239
    %3241 = vrot.lane.b32.xlu0 %v264, 120
    %v3242 = vpop.permute.xlu0 %3241
    %3243 = vrot.lane.b32.xlu0 %v269, 120
    %v3244 = vpop.permute.xlu0 %3243
    %3245 = vrot.lane.b32.xlu0 %v274, 120
    %v3246 = vpop.permute.xlu0 %3245
    %3247 = vrot.lane.b32.xlu0 %v279, 120
    %v3248 = vpop.permute.xlu0 %3247
    %3249 = vrot.lane.b32.xlu0 %v284, 120
    %v3250 = vpop.permute.xlu0 %3249
    %3251 = vrot.lane.b32.xlu0 %v289, 120
    %v3252 = vpop.permute.xlu0 %3251
    %v3253 = vsel %vm473, %v3224, 0
    %v3255 = vsel %vm473, %v3226, 0
    %v3257 = vsel %vm473, %v3228, 0
    %v3259 = vsel %vm473, %v3230, 0
    %v3261 = vsel %vm473, %v3232, 0
    %v3263 = vsel %vm473, %v3234, 0
    %v3265 = vsel %vm473, %v3236, 0
    %v3267 = vsel %vm473, %v3238, 0
    %v3269 = vsel %vm473, %v3240, 0
    %v3271 = vsel %vm473, %v3242, 0
    %v3273 = vsel %vm473, %v3244, 0
    %v3275 = vsel %vm473, %v3246, 0
    %v3277 = vsel %vm473, %v3248, 0
    %v3279 = vsel %vm473, %v3250, 0
    %v3281 = vsel %vm473, %v3252, 0
    %3283 = vmatprep.subr.mxu0 0.0
    %3284 = vmatpush1.xpose.msra.mxu0 0.0
    %3285 = vmatprep.subr.mxu0 0.0
    %3286 = vmatpush1.xpose.msra.mxu0 0.0
    %3287 = vmatprep.subr.mxu0 0.0
    %3288 = vmatpush1.xpose.msra.mxu0 0.0
    %3289 = vmatprep.subr.mxu0 0.0
    %3290 = vmatpush1.xpose.msra.mxu0 0.0
    %3291 = vmatprep.subr.mxu0 0.0
    %3292 = vmatpush1.xpose.msra.mxu0 0.0
    %3293 = vmatprep.subr.mxu0 0.0
    %3294 = vmatpush1.xpose.msra.mxu0 0.0
    %3295 = vmatprep.subr.mxu0 0.0
    %3296 = vmatpush1.xpose.msra.mxu0 0.0
    %3297 = vmatprep.subr.mxu0 0.0
    %3298 = vmatpush1.xpose.msra.mxu0 0.0
    %3299 = vmatprep.subr.mxu0 0.0
    %3300 = vmatpush1.xpose.msra.mxu0 %v3281
    %3301 = vmatprep.subr.mxu0 0.0
    %3302 = vmatpush1.xpose.msra.mxu0 %v3279
    %3303 = vmatprep.subr.mxu0 0.0
    %3304 = vmatpush1.xpose.msra.mxu0 %v3277
    %3305 = vmatprep.subr.mxu0 0.0
    %3306 = vmatpush1.xpose.msra.mxu0 %v3275
    %3307 = vmatprep.subr.mxu0 0.0
    %3308 = vmatpush1.xpose.msra.mxu0 %v3273
    %3309 = vmatprep.subr.mxu0 0.0
    %3310 = vmatpush1.xpose.msra.mxu0 %v3271
    %3311 = vmatprep.subr.mxu0 0.0
    %3312 = vmatpush1.xpose.msra.mxu0 %v3269
    %3313 = vmatprep.subr.mxu0 0.0
    %3314 = vmatpush1.xpose.msra.mxu0 %v3267
    %3315 = vmatprep.subr.mxu0 0.0
    %3316 = vmatpush2.xpose.msra.mxu0 0.0
    %3317 = vmatprep.subr.mxu0 0.0
    %3318 = vmatpush2.xpose.msra.mxu0 0.0
    %3319 = vmatprep.subr.mxu0 0.0
    %3320 = vmatpush2.xpose.msra.mxu0 0.0
    %3321 = vmatprep.subr.mxu0 0.0
    %3322 = vmatpush2.xpose.msra.mxu0 0.0
    %3323 = vmatprep.subr.mxu0 0.0
    %3324 = vmatpush2.xpose.msra.mxu0 0.0
    %3325 = vmatprep.subr.mxu0 0.0
    %3326 = vmatpush2.xpose.msra.mxu0 0.0
    %3327 = vmatprep.subr.mxu0 0.0
    %3328 = vmatpush2.xpose.msra.mxu0 0.0
    %3329 = vmatprep.subr.mxu0 0.0
    %3330 = vmatpush2.xpose.msra.mxu0 0.0
    %3331 = vmatprep.subr.mxu0 0.0
    %3332 = vmatpush2.xpose.msra.mxu0 0.0
    %3333 = vmatprep.subr.mxu0 0.0
    %3334 = vmatpush2.xpose.msra.mxu0 0.0
    %3335 = vmatprep.subr.mxu0 0.0
    %3336 = vmatpush2.xpose.msra.mxu0 0.0
    %3337 = vmatprep.subr.mxu0 0.0
    %3338 = vmatpush2.xpose.msra.mxu0 0.0
    %3339 = vmatprep.subr.mxu0 0.0
    %3340 = vmatpush2.xpose.msra.mxu0 0.0
    %3341 = vmatprep.subr.mxu0 0.0
    %3342 = vmatpush2.xpose.msra.mxu0 0.0
    %3343 = vmatprep.subr.mxu0 0.0
    %3344 = vmatpush2.xpose.msra.mxu0 0.0
    %3345 = vmatprep.subr.mxu0 0.0
    %3346 = vmatpush2.xpose.msra.mxu0 0.0
    %3347 = vmatprep.mubr.f32.mxu0 0.0
    %3348 = vmatmul.mubr.f32.gmra.mxu0 %v3253
    %v3349 = vpop.f32.mrf.mxu0
    %v3350 = vadd.f32 %v146, %v3349
    %v3351 = vpop.f32.mrf.mxu0
    %3352 = vmatprep.mubr.f32.mxu0 0.0
    %3353 = vmatmul.mubr.f32.gmra.mxu0 %v3255
    %v3354 = vpop.f32.mrf.mxu0
    %v3355 = vadd.f32 %v147, %v3354
    %v3356 = vpop.f32.mrf.mxu0
    %3357 = vmatprep.mubr.f32.mxu0 0.0
    %3358 = vmatmul.mubr.f32.gmra.mxu0 %v3257
    %v3359 = vpop.f32.mrf.mxu0
    %v3360 = vadd.f32 %v148, %v3359
    %v3361 = vpop.f32.mrf.mxu0
    %3362 = vmatprep.mubr.f32.mxu0 0.0
    %3363 = vmatmul.mubr.f32.gmra.mxu0 %v3259
    %v3364 = vpop.f32.mrf.mxu0
    %v3365 = vadd.f32 %v149, %v3364
    %v3366 = vpop.f32.mrf.mxu0
    %3367 = vmatprep.mubr.f32.mxu0 0.0
    %3368 = vmatmul.mubr.f32.gmra.mxu0 %v3261
    %v3369 = vpop.f32.mrf.mxu0
    %v3370 = vadd.f32 %v150, %v3369
    %v3371 = vpop.f32.mrf.mxu0
    %3372 = vmatprep.mubr.f32.mxu0 0.0
    %3373 = vmatmul.mubr.f32.gmra.mxu0 %v3263
    %v3374 = vpop.f32.mrf.mxu0
    %v3375 = vadd.f32 %v151, %v3374
    %v3376 = vpop.f32.mrf.mxu0
    %3377 = vmatprep.mubr.f32.mxu0 0.0
    %3378 = vmatmul.mubr.f32.gmra.mxu0 %v3265
    %v3379 = vpop.f32.mrf.mxu0
    %v3380 = vadd.f32 %v152, %v3379
    %v3381 = vpop.f32.mrf.mxu0
    %3382 = vdwg.mxu0
    %v3383 = vsel %vm2868, %v3350, -inf
    %3384 = vmax.xlane.f32.xlu0 %v3383
    %v3385 = vpop.xlane.xlu0 %3384
    %v3386 = vsel %vm2868, %v3355, -inf
    %3387 = vmax.xlane.f32.xlu0 %v3386
    %v3388 = vpop.xlane.xlu0 %3387
    %v3389 = vsel %vm2868, %v3360, -inf
    %3390 = vmax.xlane.f32.xlu0 %v3389
    %v3391 = vpop.xlane.xlu0 %3390
    %v3392 = vsel %vm2868, %v3365, -inf
    %3393 = vmax.xlane.f32.xlu0 %v3392
    %v3394 = vpop.xlane.xlu0 %3393
    %v3395 = vsel %vm2868, %v3370, -inf
    %3396 = vmax.xlane.f32.xlu0 %v3395
    %v3397 = vpop.xlane.xlu0 %3396
    %v3398 = vsel %vm2868, %v3375, -inf
    %3399 = vmax.xlane.f32.xlu0 %v3398
    %v3400 = vpop.xlane.xlu0 %3399
    %v3401 = vsel %vm2868, %v3380, -inf
    %3402 = vmax.xlane.f32.xlu0 %v3401
    %v3403 = vpop.xlane.xlu0 %3402
    %v3404 = vsub.f32 %v3350, %v3385
    %v3405 = vsub.f32 %v3355, %v3388
    %v3406 = vsub.f32 %v3360, %v3391
    %v3407 = vsub.f32 %v3365, %v3394
    %v3408 = vsub.f32 %v3370, %v3397
    %v3409 = vsub.f32 %v3375, %v3400
    %v3410 = vsub.f32 %v3380, %v3403
    %v3411 = vmul.f32 %v3404, 1.442695
    %v3412 = vpow.pop %v3411
    %v3413 = vmul.f32 %v3405, 1.442695
    %v3414 = vpow.pop %v3413
    %v3415 = vmul.f32 %v3406, 1.442695
    %v3416 = vpow.pop %v3415
    %v3417 = vmul.f32 %v3407, 1.442695
    %v3418 = vpow.pop %v3417
    %v3419 = vmul.f32 %v3408, 1.442695
    %v3420 = vpow.pop %v3419
    %v3421 = vmul.f32 %v3409, 1.442695
    %v3422 = vpow.pop %v3421
    %v3423 = vmul.f32 %v3410, 1.442695
    %v3424 = vpow.pop %v3423
    %v3425 = vsel %vm2868, %v3412, 0.0
    %3426 = vadd.xlane.f32.xlu0 %v3425
    %v3427 = vpop.xlane.xlu0 %3426
    %v3428 = vsel %vm2868, %v3414, 0.0
    %3429 = vadd.xlane.f32.xlu0 %v3428
    %v3430 = vpop.xlane.xlu0 %3429
    %v3431 = vsel %vm2868, %v3416, 0.0
    %3432 = vadd.xlane.f32.xlu0 %v3431
    %v3433 = vpop.xlane.xlu0 %3432
    %v3434 = vsel %vm2868, %v3418, 0.0
    %3435 = vadd.xlane.f32.xlu0 %v3434
    %v3436 = vpop.xlane.xlu0 %3435
    %v3437 = vsel %vm2868, %v3420, 0.0
    %3438 = vadd.xlane.f32.xlu0 %v3437
    %v3439 = vpop.xlane.xlu0 %3438
    %v3440 = vsel %vm2868, %v3422, 0.0
    %3441 = vadd.xlane.f32.xlu0 %v3440
    %v3442 = vpop.xlane.xlu0 %3441
    %v3443 = vsel %vm2868, %v3424, 0.0
    %3444 = vadd.xlane.f32.xlu0 %v3443
    %v3445 = vpop.xlane.xlu0 %3444
    %v3446 = vrcp.pop %v3427
    %v3447 = vrcp.pop %v3430
    %v3448 = vrcp.pop %v3433
    %v3449 = vrcp.pop %v3436
    %v3450 = vrcp.pop %v3439
    %v3451 = vrcp.pop %v3442
    %v3452 = vrcp.pop %v3445
    %v3453 = vmul.f32 %v3412, %v3446
    %v3454 = vmul.f32 %v3414, %v3447
    %v3455 = vmul.f32 %v3416, %v3448
    %v3456 = vmul.f32 %v3418, %v3449
    %v3457 = vmul.f32 %v3420, %v3450
    %v3458 = vmul.f32 %v3422, %v3451
    %v3459 = vmul.f32 %v3424, %v3452
    %3460 = vrot.lane.b32.xlu0 %v254, 88
    %v3461 = vpop.permute.xlu0 %3460
    %3462 = vrot.lane.b32.xlu0 %v259, 88
    %v3463 = vpop.permute.xlu0 %3462
    %3464 = vrot.lane.b32.xlu0 %v264, 88
    %v3465 = vpop.permute.xlu0 %3464
    %3466 = vrot.lane.b32.xlu0 %v269, 88
    %v3467 = vpop.permute.xlu0 %3466
    %3468 = vrot.lane.b32.xlu0 %v274, 88
    %v3469 = vpop.permute.xlu0 %3468
    %3470 = vrot.lane.b32.xlu0 %v279, 88
    %v3471 = vpop.permute.xlu0 %3470
    %3472 = vrot.lane.b32.xlu0 %v284, 88
    %v3473 = vpop.permute.xlu0 %3472
    %3474 = vrot.lane.b32.xlu0 %v289, 88
    %v3475 = vpop.permute.xlu0 %3474
    %v3485 = vsel %vm2868, %v3453, 0
    %v3488 = vsel %vm2868, %v3454, 0
    %v3491 = vsel %vm2868, %v3455, 0
    %v3494 = vsel %vm2868, %v3456, 0
    %v3497 = vsel %vm2868, %v3457, 0
    %v3500 = vsel %vm2868, %v3458, 0
    %v3503 = vsel %vm2868, %v3459, 0
    %3505 = vmatprep.subr.mxu0 0.0
    %3506 = vmatpush1.msra.mxu0 0.0
    %3507 = vmatprep.subr.mxu0 0.0
    %3508 = vmatpush1.msra.mxu0 0.0
    %3509 = vmatprep.subr.mxu0 0.0
    %3510 = vmatpush1.msra.mxu0 0.0
    %3511 = vmatprep.subr.mxu0 0.0
    %3512 = vmatpush1.msra.mxu0 0.0
    %3513 = vmatprep.subr.mxu0 0.0
    %3514 = vmatpush1.msra.mxu0 0.0
    %3515 = vmatprep.subr.mxu0 0.0
    %3516 = vmatpush1.msra.mxu0 0.0
    %3517 = vmatprep.subr.mxu0 0.0
    %3518 = vmatpush1.msra.mxu0 0.0
    %3519 = vmatprep.subr.mxu0 0.0
    %3520 = vmatpush1.msra.mxu0 0.0
    %3521 = vmatprep.subr.mxu0 0.0
    %3522 = vmatpush1.msra.mxu0 %v3475
    %3523 = vmatprep.subr.mxu0 0.0
    %3524 = vmatpush1.msra.mxu0 %v3473
    %3525 = vmatprep.subr.mxu0 0.0
    %3526 = vmatpush1.msra.mxu0 %v3471
    %3527 = vmatprep.subr.mxu0 0.0
    %3528 = vmatpush1.msra.mxu0 %v3469
    %3529 = vmatprep.subr.mxu0 0.0
    %3530 = vmatpush1.msra.mxu0 %v3467
    %3531 = vmatprep.subr.mxu0 0.0
    %3532 = vmatpush1.msra.mxu0 %v3465
    %3533 = vmatprep.subr.mxu0 0.0
    %3534 = vmatpush1.msra.mxu0 %v3463
    %3535 = vmatprep.subr.mxu0 0.0
    %3536 = vmatpush1.msra.mxu0 %v3461
    %3537 = vmatprep.subr.mxu0 0.0
    %3538 = vmatpush2.msra.mxu0 0.0
    %3539 = vmatprep.subr.mxu0 0.0
    %3540 = vmatpush2.msra.mxu0 0.0
    %3541 = vmatprep.subr.mxu0 0.0
    %3542 = vmatpush2.msra.mxu0 0.0
    %3543 = vmatprep.subr.mxu0 0.0
    %3544 = vmatpush2.msra.mxu0 0.0
    %3545 = vmatprep.subr.mxu0 0.0
    %3546 = vmatpush2.msra.mxu0 0.0
    %3547 = vmatprep.subr.mxu0 0.0
    %3548 = vmatpush2.msra.mxu0 0.0
    %3549 = vmatprep.subr.mxu0 0.0
    %3550 = vmatpush2.msra.mxu0 0.0
    %3551 = vmatprep.subr.mxu0 0.0
    %3552 = vmatpush2.msra.mxu0 0.0
    %3553 = vmatprep.subr.mxu0 0.0
    %3554 = vmatpush2.msra.mxu0 0.0
    %3555 = vmatprep.subr.mxu0 0.0
    %3556 = vmatpush2.msra.mxu0 0.0
    %3557 = vmatprep.subr.mxu0 0.0
    %3558 = vmatpush2.msra.mxu0 0.0
    %3559 = vmatprep.subr.mxu0 0.0
    %3560 = vmatpush2.msra.mxu0 0.0
    %3561 = vmatprep.subr.mxu0 0.0
    %3562 = vmatpush2.msra.mxu0 0.0
    %3563 = vmatprep.subr.mxu0 0.0
    %3564 = vmatpush2.msra.mxu0 0.0
    %3565 = vmatprep.subr.mxu0 0.0
    %3566 = vmatpush2.msra.mxu0 0.0
    %3567 = vmatprep.subr.mxu0 0.0
    %3568 = vmatpush2.msra.mxu0 0.0
    %3569 = vmatprep.mubr.f32.mxu0 0.0
    %3570 = vmatmul.mubr.f32.gmra.mxu0 %v3485
    %v3571 = vpop.f32.mrf.mxu0
    %v3572 = vadd.f32 0.0, %v3571
    %v3573 = vpop.f32.mrf.mxu0
    %3574 = vmatprep.mubr.f32.mxu0 0.0
    %3575 = vmatmul.mubr.f32.gmra.mxu0 %v3488
    %v3576 = vpop.f32.mrf.mxu0
    %v3577 = vadd.f32 0.0, %v3576
    %v3578 = vpop.f32.mrf.mxu0
    %3579 = vmatprep.mubr.f32.mxu0 0.0
    %3580 = vmatmul.mubr.f32.gmra.mxu0 %v3491
    %v3581 = vpop.f32.mrf.mxu0
    %v3582 = vadd.f32 0.0, %v3581
    %v3583 = vpop.f32.mrf.mxu0
    %3584 = vmatprep.mubr.f32.mxu0 0.0
    %3585 = vmatmul.mubr.f32.gmra.mxu0 %v3494
    %v3586 = vpop.f32.mrf.mxu0
    %v3587 = vadd.f32 0.0, %v3586
    %v3588 = vpop.f32.mrf.mxu0
    %3589 = vmatprep.mubr.f32.mxu0 0.0
    %3590 = vmatmul.mubr.f32.gmra.mxu0 %v3497
    %v3591 = vpop.f32.mrf.mxu0
    %v3592 = vadd.f32 0.0, %v3591
    %v3593 = vpop.f32.mrf.mxu0
    %3594 = vmatprep.mubr.f32.mxu0 0.0
    %3595 = vmatmul.mubr.f32.gmra.mxu0 %v3500
    %v3596 = vpop.f32.mrf.mxu0
    %v3597 = vadd.f32 0.0, %v3596
    %v3598 = vpop.f32.mrf.mxu0
    %3599 = vmatprep.mubr.f32.mxu0 0.0
    %3600 = vmatmul.mubr.f32.gmra.mxu0 %v3503
    %v3601 = vpop.f32.mrf.mxu0
    %v3602 = vadd.f32 0.0, %v3601
    %v3603 = vpop.f32.mrf.mxu0
    %3604 = vdwg.mxu0
    %v3606 = vsel %vm473, %v3572, 0
    %v3609 = vsel %vm473, %v3577, 0
    %v3612 = vsel %vm473, %v3582, 0
    %v3615 = vsel %vm473, %v3587, 0
    %v3618 = vsel %vm473, %v3592, 0
    %v3621 = vsel %vm473, %v3597, 0
    %v3624 = vsel %vm473, %v3602, 0
    %3626 = vmatprep.subr.mxu0 0.0
    %3627 = vmatpush1.msra.mxu0 0.0
    %3628 = vmatprep.subr.mxu0 0.0
    %3629 = vmatpush1.msra.mxu0 0.0
    %3630 = vmatprep.subr.mxu0 0.0
    %3631 = vmatpush1.msra.mxu0 0.0
    %3632 = vmatprep.subr.mxu0 0.0
    %3633 = vmatpush1.msra.mxu0 0.0
    %3634 = vmatprep.subr.mxu0 0.0
    %3635 = vmatpush1.msra.mxu0 0.0
    %3636 = vmatprep.subr.mxu0 0.0
    %3637 = vmatpush1.msra.mxu0 0.0
    %3638 = vmatprep.subr.mxu0 0.0
    %3639 = vmatpush1.msra.mxu0 0.0
    %3640 = vmatprep.subr.mxu0 0.0
    %3641 = vmatpush1.msra.mxu0 0.0
    %3642 = vmatprep.subr.mxu0 0.0
    %3643 = vmatpush1.msra.mxu0 0.0
    %3644 = vmatprep.subr.mxu0 0.0
    %3645 = vmatpush1.msra.mxu0 0.0
    %3646 = vmatprep.subr.mxu0 0.0
    %3647 = vmatpush1.msra.mxu0 0.0
    %3648 = vmatprep.subr.mxu0 0.0
    %3649 = vmatpush1.msra.mxu0 0.0
    %3650 = vmatprep.subr.mxu0 0.0
    %3651 = vmatpush1.msra.mxu0 0.0
    %3652 = vmatprep.subr.mxu0 0.0
    %3653 = vmatpush1.msra.mxu0 0.0
    %3654 = vmatprep.subr.mxu0 0.0
    %3655 = vmatpush1.msra.mxu0 0.0
    %3656 = vmatprep.subr.mxu0 0.0
    %3657 = vmatpush1.msra.mxu0 %v309
    %3658 = vmatprep.subr.mxu0 0.0
    %3659 = vmatpush2.msra.mxu0 0.0
    %3660 = vmatprep.subr.mxu0 0.0
    %3661 = vmatpush2.msra.mxu0 0.0
    %3662 = vmatprep.subr.mxu0 0.0
    %3663 = vmatpush2.msra.mxu0 0.0
    %3664 = vmatprep.subr.mxu0 0.0
    %3665 = vmatpush2.msra.mxu0 0.0
    %3666 = vmatprep.subr.mxu0 0.0
    %3667 = vmatpush2.msra.mxu0 0.0
    %3668 = vmatprep.subr.mxu0 0.0
    %3669 = vmatpush2.msra.mxu0 0.0
    %3670 = vmatprep.subr.mxu0 0.0
    %3671 = vmatpush2.msra.mxu0 0.0
    %3672 = vmatprep.subr.mxu0 0.0
    %3673 = vmatpush2.msra.mxu0 0.0
    %3674 = vmatprep.subr.mxu0 0.0
    %3675 = vmatpush2.msra.mxu0 0.0
    %3676 = vmatprep.subr.mxu0 0.0
    %3677 = vmatpush2.msra.mxu0 0.0
    %3678 = vmatprep.subr.mxu0 0.0
    %3679 = vmatpush2.msra.mxu0 0.0
    %3680 = vmatprep.subr.mxu0 0.0
    %3681 = vmatpush2.msra.mxu0 0.0
    %3682 = vmatprep.subr.mxu0 0.0
    %3683 = vmatpush2.msra.mxu0 0.0
    %3684 = vmatprep.subr.mxu0 0.0
    %3685 = vmatpush2.msra.mxu0 0.0
    %3686 = vmatprep.subr.mxu0 0.0
    %3687 = vmatpush2.msra.mxu0 0.0
    %3688 = vmatprep.subr.mxu0 0.0
    %3689 = vmatpush2.msra.mxu0 0.0
    %3690 = vmatprep.mubr.f32.mxu0 0.0
    %3691 = vmatmul.mubr.f32.gmra.mxu0 %v3606
    %v3692 = vpop.f32.mrf.mxu0
    %v3693 = vadd.f32 0.0, %v3692
    %v3694 = vpop.f32.mrf.mxu0
    %3695 = vmatprep.mubr.f32.mxu0 0.0
    %3696 = vmatmul.mubr.f32.gmra.mxu0 %v3609
    %v3697 = vpop.f32.mrf.mxu0
    %v3698 = vadd.f32 0.0, %v3697
    %v3699 = vpop.f32.mrf.mxu0
    %3700 = vmatprep.mubr.f32.mxu0 0.0
    %3701 = vmatmul.mubr.f32.gmra.mxu0 %v3612
    %v3702 = vpop.f32.mrf.mxu0
    %v3703 = vadd.f32 0.0, %v3702
    %v3704 = vpop.f32.mrf.mxu0
    %3705 = vmatprep.mubr.f32.mxu0 0.0
    %3706 = vmatmul.mubr.f32.gmra.mxu0 %v3615
    %v3707 = vpop.f32.mrf.mxu0
    %v3708 = vadd.f32 0.0, %v3707
    %v3709 = vpop.f32.mrf.mxu0
    %3710 = vmatprep.mubr.f32.mxu0 0.0
    %3711 = vmatmul.mubr.f32.gmra.mxu0 %v3618
    %v3712 = vpop.f32.mrf.mxu0
    %v3713 = vadd.f32 0.0, %v3712
    %v3714 = vpop.f32.mrf.mxu0
    %3715 = vmatprep.mubr.f32.mxu0 0.0
    %3716 = vmatmul.mubr.f32.gmra.mxu0 %v3621
    %v3717 = vpop.f32.mrf.mxu0
    %v3718 = vadd.f32 0.0, %v3717
    %v3719 = vpop.f32.mrf.mxu0
    %3720 = vmatprep.mubr.f32.mxu0 0.0
    %3721 = vmatmul.mubr.f32.gmra.mxu0 %v3624
    %v3722 = vpop.f32.mrf.mxu0
    %v3723 = vadd.f32 0.0, %v3722
    %v3724 = vpop.f32.mrf.mxu0
    %3725 = vdwg.mxu0
    %v3726 = vadd.f32 %v3216, %v3693
    %v3727 = vadd.f32 %v3217, %v3698
    %v3728 = vadd.f32 %v3218, %v3703
    %v3729 = vadd.f32 %v3219, %v3708
    %v3730 = vadd.f32 %v3220, %v3713
    %v3731 = vadd.f32 %v3221, %v3718
    %v3732 = vadd.f32 %v3222, %v3723
    %3733 = vrot.lane.b32.xlu0 %v2690, 112
    %v3734 = vpop.permute.xlu0 %3733
    %3735 = vrot.lane.b32.xlu0 %v2695, 112
    %v3736 = vpop.permute.xlu0 %3735
    %3737 = vrot.lane.b32.xlu0 %v2700, 112
    %v3738 = vpop.permute.xlu0 %3737
    %3739 = vrot.lane.b32.xlu0 %v2705, 112
    %v3740 = vpop.permute.xlu0 %3739
    %3741 = vrot.lane.b32.xlu0 %v2710, 112
    %v3742 = vpop.permute.xlu0 %3741
    %3743 = vrot.lane.b32.xlu0 %v2715, 112
    %v3744 = vpop.permute.xlu0 %3743
    %3745 = vrot.lane.b32.xlu0 %v2720, 112
    %v3746 = vpop.permute.xlu0 %3745
    %3747 = vrot.lane.b32.xlu0 %v254, 112
    %v3748 = vpop.permute.xlu0 %3747
    %3749 = vrot.lane.b32.xlu0 %v259, 112
    %v3750 = vpop.permute.xlu0 %3749
    %3751 = vrot.lane.b32.xlu0 %v264, 112
    %v3752 = vpop.permute.xlu0 %3751
    %3753 = vrot.lane.b32.xlu0 %v269, 112
    %v3754 = vpop.permute.xlu0 %3753
    %3755 = vrot.lane.b32.xlu0 %v274, 112
    %v3756 = vpop.permute.xlu0 %3755
    %3757 = vrot.lane.b32.xlu0 %v279, 112
    %v3758 = vpop.permute.xlu0 %3757
    %3759 = vrot.lane.b32.xlu0 %v284, 112
    %v3760 = vpop.permute.xlu0 %3759
    %3761 = vrot.lane.b32.xlu0 %v289, 112
    %v3762 = vpop.permute.xlu0 %3761
    %v3763 = vsel %vm473, %v3734, 0
    %v3765 = vsel %vm473, %v3736, 0
    %v3767 = vsel %vm473, %v3738, 0
    %v3769 = vsel %vm473, %v3740, 0
    %v3771 = vsel %vm473, %v3742, 0
    %v3773 = vsel %vm473, %v3744, 0
    %v3775 = vsel %vm473, %v3746, 0
    %v3777 = vsel %vm473, %v3748, 0
    %v3779 = vsel %vm473, %v3750, 0
    %v3781 = vsel %vm473, %v3752, 0
    %v3783 = vsel %vm473, %v3754, 0
    %v3785 = vsel %vm473, %v3756, 0
    %v3787 = vsel %vm473, %v3758, 0
    %v3789 = vsel %vm473, %v3760, 0
    %v3791 = vsel %vm473, %v3762, 0
    %3793 = vmatprep.subr.mxu0 0.0
    %3794 = vmatpush1.xpose.msra.mxu0 0.0
    %3795 = vmatprep.subr.mxu0 0.0
    %3796 = vmatpush1.xpose.msra.mxu0 0.0
    %3797 = vmatprep.subr.mxu0 0.0
    %3798 = vmatpush1.xpose.msra.mxu0 0.0
    %3799 = vmatprep.subr.mxu0 0.0
    %3800 = vmatpush1.xpose.msra.mxu0 0.0
    %3801 = vmatprep.subr.mxu0 0.0
    %3802 = vmatpush1.xpose.msra.mxu0 0.0
    %3803 = vmatprep.subr.mxu0 0.0
    %3804 = vmatpush1.xpose.msra.mxu0 0.0
    %3805 = vmatprep.subr.mxu0 0.0
    %3806 = vmatpush1.xpose.msra.mxu0 0.0
    %3807 = vmatprep.subr.mxu0 0.0
    %3808 = vmatpush1.xpose.msra.mxu0 0.0
    %3809 = vmatprep.subr.mxu0 0.0
    %3810 = vmatpush1.xpose.msra.mxu0 %v3791
    %3811 = vmatprep.subr.mxu0 0.0
    %3812 = vmatpush1.xpose.msra.mxu0 %v3789
    %3813 = vmatprep.subr.mxu0 0.0
    %3814 = vmatpush1.xpose.msra.mxu0 %v3787
    %3815 = vmatprep.subr.mxu0 0.0
    %3816 = vmatpush1.xpose.msra.mxu0 %v3785
    %3817 = vmatprep.subr.mxu0 0.0
    %3818 = vmatpush1.xpose.msra.mxu0 %v3783
    %3819 = vmatprep.subr.mxu0 0.0
    %3820 = vmatpush1.xpose.msra.mxu0 %v3781
    %3821 = vmatprep.subr.mxu0 0.0
    %3822 = vmatpush1.xpose.msra.mxu0 %v3779
    %3823 = vmatprep.subr.mxu0 0.0
    %3824 = vmatpush1.xpose.msra.mxu0 %v3777
    %3825 = vmatprep.subr.mxu0 0.0
    %3826 = vmatpush2.xpose.msra.mxu0 0.0
    %3827 = vmatprep.subr.mxu0 0.0
    %3828 = vmatpush2.xpose.msra.mxu0 0.0
    %3829 = vmatprep.subr.mxu0 0.0
    %3830 = vmatpush2.xpose.msra.mxu0 0.0
    %3831 = vmatprep.subr.mxu0 0.0
    %3832 = vmatpush2.xpose.msra.mxu0 0.0
    %3833 = vmatprep.subr.mxu0 0.0
    %3834 = vmatpush2.xpose.msra.mxu0 0.0
    %3835 = vmatprep.subr.mxu0 0.0
    %3836 = vmatpush2.xpose.msra.mxu0 0.0
    %3837 = vmatprep.subr.mxu0 0.0
    %3838 = vmatpush2.xpose.msra.mxu0 0.0
    %3839 = vmatprep.subr.mxu0 0.0
    %3840 = vmatpush2.xpose.msra.mxu0 0.0
    %3841 = vmatprep.subr.mxu0 0.0
    %3842 = vmatpush2.xpose.msra.mxu0 0.0
    %3843 = vmatprep.subr.mxu0 0.0
    %3844 = vmatpush2.xpose.msra.mxu0 0.0
    %3845 = vmatprep.subr.mxu0 0.0
    %3846 = vmatpush2.xpose.msra.mxu0 0.0
    %3847 = vmatprep.subr.mxu0 0.0
    %3848 = vmatpush2.xpose.msra.mxu0 0.0
    %3849 = vmatprep.subr.mxu0 0.0
    %3850 = vmatpush2.xpose.msra.mxu0 0.0
    %3851 = vmatprep.subr.mxu0 0.0
    %3852 = vmatpush2.xpose.msra.mxu0 0.0
    %3853 = vmatprep.subr.mxu0 0.0
    %3854 = vmatpush2.xpose.msra.mxu0 0.0
    %3855 = vmatprep.subr.mxu0 0.0
    %3856 = vmatpush2.xpose.msra.mxu0 0.0
    %3857 = vmatprep.mubr.f32.mxu0 0.0
    %3858 = vmatmul.mubr.f32.gmra.mxu0 %v3763
    %v3859 = vpop.f32.mrf.mxu0
    %v3860 = vadd.f32 %v146, %v3859
    %v3861 = vpop.f32.mrf.mxu0
    %3862 = vmatprep.mubr.f32.mxu0 0.0
    %3863 = vmatmul.mubr.f32.gmra.mxu0 %v3765
    %v3864 = vpop.f32.mrf.mxu0
    %v3865 = vadd.f32 %v147, %v3864
    %v3866 = vpop.f32.mrf.mxu0
    %3867 = vmatprep.mubr.f32.mxu0 0.0
    %3868 = vmatmul.mubr.f32.gmra.mxu0 %v3767
    %v3869 = vpop.f32.mrf.mxu0
    %v3870 = vadd.f32 %v148, %v3869
    %v3871 = vpop.f32.mrf.mxu0
    %3872 = vmatprep.mubr.f32.mxu0 0.0
    %3873 = vmatmul.mubr.f32.gmra.mxu0 %v3769
    %v3874 = vpop.f32.mrf.mxu0
    %v3875 = vadd.f32 %v149, %v3874
    %v3876 = vpop.f32.mrf.mxu0
    %3877 = vmatprep.mubr.f32.mxu0 0.0
    %3878 = vmatmul.mubr.f32.gmra.mxu0 %v3771
    %v3879 = vpop.f32.mrf.mxu0
    %v3880 = vadd.f32 %v150, %v3879
    %v3881 = vpop.f32.mrf.mxu0
    %3882 = vmatprep.mubr.f32.mxu0 0.0
    %3883 = vmatmul.mubr.f32.gmra.mxu0 %v3773
    %v3884 = vpop.f32.mrf.mxu0
    %v3885 = vadd.f32 %v151, %v3884
    %v3886 = vpop.f32.mrf.mxu0
    %3887 = vmatprep.mubr.f32.mxu0 0.0
    %3888 = vmatmul.mubr.f32.gmra.mxu0 %v3775
    %v3889 = vpop.f32.mrf.mxu0
    %v3890 = vadd.f32 %v152, %v3889
    %v3891 = vpop.f32.mrf.mxu0
    %3892 = vdwg.mxu0
    %v3893 = vsel %vm2868, %v3860, -inf
    %3894 = vmax.xlane.f32.xlu0 %v3893
    %v3895 = vpop.xlane.xlu0 %3894
    %v3896 = vsel %vm2868, %v3865, -inf
    %3897 = vmax.xlane.f32.xlu0 %v3896
    %v3898 = vpop.xlane.xlu0 %3897
    %v3899 = vsel %vm2868, %v3870, -inf
    %3900 = vmax.xlane.f32.xlu0 %v3899
    %v3901 = vpop.xlane.xlu0 %3900
    %v3902 = vsel %vm2868, %v3875, -inf
    %3903 = vmax.xlane.f32.xlu0 %v3902
    %v3904 = vpop.xlane.xlu0 %3903
    %v3905 = vsel %vm2868, %v3880, -inf
    %3906 = vmax.xlane.f32.xlu0 %v3905
    %v3907 = vpop.xlane.xlu0 %3906
    %v3908 = vsel %vm2868, %v3885, -inf
    %3909 = vmax.xlane.f32.xlu0 %v3908
    %v3910 = vpop.xlane.xlu0 %3909
    %v3911 = vsel %vm2868, %v3890, -inf
    %3912 = vmax.xlane.f32.xlu0 %v3911
    %v3913 = vpop.xlane.xlu0 %3912
    %v3914 = vsub.f32 %v3860, %v3895
    %v3915 = vsub.f32 %v3865, %v3898
    %v3916 = vsub.f32 %v3870, %v3901
    %v3917 = vsub.f32 %v3875, %v3904
    %v3918 = vsub.f32 %v3880, %v3907
    %v3919 = vsub.f32 %v3885, %v3910
    %v3920 = vsub.f32 %v3890, %v3913
    %v3921 = vmul.f32 %v3914, 1.442695
    %v3922 = vpow.pop %v3921
    %v3923 = vmul.f32 %v3915, 1.442695
    %v3924 = vpow.pop %v3923
    %v3925 = vmul.f32 %v3916, 1.442695
    %v3926 = vpow.pop %v3925
    %v3927 = vmul.f32 %v3917, 1.442695
    %v3928 = vpow.pop %v3927
    %v3929 = vmul.f32 %v3918, 1.442695
    %v3930 = vpow.pop %v3929
    %v3931 = vmul.f32 %v3919, 1.442695
    %v3932 = vpow.pop %v3931
    %v3933 = vmul.f32 %v3920, 1.442695
    %v3934 = vpow.pop %v3933
    %v3935 = vsel %vm2868, %v3922, 0.0
    %3936 = vadd.xlane.f32.xlu0 %v3935
    %v3937 = vpop.xlane.xlu0 %3936
    %v3938 = vsel %vm2868, %v3924, 0.0
    %3939 = vadd.xlane.f32.xlu0 %v3938
    %v3940 = vpop.xlane.xlu0 %3939
    %v3941 = vsel %vm2868, %v3926, 0.0
    %3942 = vadd.xlane.f32.xlu0 %v3941
    %v3943 = vpop.xlane.xlu0 %3942
    %v3944 = vsel %vm2868, %v3928, 0.0
    %3945 = vadd.xlane.f32.xlu0 %v3944
    %v3946 = vpop.xlane.xlu0 %3945
    %v3947 = vsel %vm2868, %v3930, 0.0
    %3948 = vadd.xlane.f32.xlu0 %v3947
    %v3949 = vpop.xlane.xlu0 %3948
    %v3950 = vsel %vm2868, %v3932, 0.0
    %3951 = vadd.xlane.f32.xlu0 %v3950
    %v3952 = vpop.xlane.xlu0 %3951
    %v3953 = vsel %vm2868, %v3934, 0.0
    %3954 = vadd.xlane.f32.xlu0 %v3953
    %v3955 = vpop.xlane.xlu0 %3954
    %v3956 = vrcp.pop %v3937
    %v3957 = vrcp.pop %v3940
    %v3958 = vrcp.pop %v3943
    %v3959 = vrcp.pop %v3946
    %v3960 = vrcp.pop %v3949
    %v3961 = vrcp.pop %v3952
    %v3962 = vrcp.pop %v3955
    %v3963 = vmul.f32 %v3922, %v3956
    %v3964 = vmul.f32 %v3924, %v3957
    %v3965 = vmul.f32 %v3926, %v3958
    %v3966 = vmul.f32 %v3928, %v3959
    %v3967 = vmul.f32 %v3930, %v3960
    %v3968 = vmul.f32 %v3932, %v3961
    %v3969 = vmul.f32 %v3934, %v3962
    %3970 = vrot.lane.b32.xlu0 %v254, 80
    %v3971 = vpop.permute.xlu0 %3970
    %3972 = vrot.lane.b32.xlu0 %v259, 80
    %v3973 = vpop.permute.xlu0 %3972
    %3974 = vrot.lane.b32.xlu0 %v264, 80
    %v3975 = vpop.permute.xlu0 %3974
    %3976 = vrot.lane.b32.xlu0 %v269, 80
    %v3977 = vpop.permute.xlu0 %3976
    %3978 = vrot.lane.b32.xlu0 %v274, 80
    %v3979 = vpop.permute.xlu0 %3978
    %3980 = vrot.lane.b32.xlu0 %v279, 80
    %v3981 = vpop.permute.xlu0 %3980
    %3982 = vrot.lane.b32.xlu0 %v284, 80
    %v3983 = vpop.permute.xlu0 %3982
    %3984 = vrot.lane.b32.xlu0 %v289, 80
    %v3985 = vpop.permute.xlu0 %3984
    %v3995 = vsel %vm2868, %v3963, 0
    %v3998 = vsel %vm2868, %v3964, 0
    %v4001 = vsel %vm2868, %v3965, 0
    %v4004 = vsel %vm2868, %v3966, 0
    %v4007 = vsel %vm2868, %v3967, 0
    %v4010 = vsel %vm2868, %v3968, 0
    %v4013 = vsel %vm2868, %v3969, 0
    %4015 = vmatprep.subr.mxu0 0.0
    %4016 = vmatpush1.msra.mxu0 0.0
    %4017 = vmatprep.subr.mxu0 0.0
    %4018 = vmatpush1.msra.mxu0 0.0
    %4019 = vmatprep.subr.mxu0 0.0
    %4020 = vmatpush1.msra.mxu0 0.0
    %4021 = vmatprep.subr.mxu0 0.0
    %4022 = vmatpush1.msra.mxu0 0.0
    %4023 = vmatprep.subr.mxu0 0.0
    %4024 = vmatpush1.msra.mxu0 0.0
    %4025 = vmatprep.subr.mxu0 0.0
    %4026 = vmatpush1.msra.mxu0 0.0
    %4027 = vmatprep.subr.mxu0 0.0
    %4028 = vmatpush1.msra.mxu0 0.0
    %4029 = vmatprep.subr.mxu0 0.0
    %4030 = vmatpush1.msra.mxu0 0.0
    %4031 = vmatprep.subr.mxu0 0.0
    %4032 = vmatpush1.msra.mxu0 %v3985
    %4033 = vmatprep.subr.mxu0 0.0
    %4034 = vmatpush1.msra.mxu0 %v3983
    %4035 = vmatprep.subr.mxu0 0.0
    %4036 = vmatpush1.msra.mxu0 %v3981
    %4037 = vmatprep.subr.mxu0 0.0
    %4038 = vmatpush1.msra.mxu0 %v3979
    %4039 = vmatprep.subr.mxu0 0.0
    %4040 = vmatpush1.msra.mxu0 %v3977
    %4041 = vmatprep.subr.mxu0 0.0
    %4042 = vmatpush1.msra.mxu0 %v3975
    %4043 = vmatprep.subr.mxu0 0.0
    %4044 = vmatpush1.msra.mxu0 %v3973
    %4045 = vmatprep.subr.mxu0 0.0
    %4046 = vmatpush1.msra.mxu0 %v3971
    %4047 = vmatprep.subr.mxu0 0.0
    %4048 = vmatpush2.msra.mxu0 0.0
    %4049 = vmatprep.subr.mxu0 0.0
    %4050 = vmatpush2.msra.mxu0 0.0
    %4051 = vmatprep.subr.mxu0 0.0
    %4052 = vmatpush2.msra.mxu0 0.0
    %4053 = vmatprep.subr.mxu0 0.0
    %4054 = vmatpush2.msra.mxu0 0.0
    %4055 = vmatprep.subr.mxu0 0.0
    %4056 = vmatpush2.msra.mxu0 0.0
    %4057 = vmatprep.subr.mxu0 0.0
    %4058 = vmatpush2.msra.mxu0 0.0
    %4059 = vmatprep.subr.mxu0 0.0
    %4060 = vmatpush2.msra.mxu0 0.0
    %4061 = vmatprep.subr.mxu0 0.0
    %4062 = vmatpush2.msra.mxu0 0.0
    %4063 = vmatprep.subr.mxu0 0.0
    %4064 = vmatpush2.msra.mxu0 0.0
    %4065 = vmatprep.subr.mxu0 0.0
    %4066 = vmatpush2.msra.mxu0 0.0
    %4067 = vmatprep.subr.mxu0 0.0
    %4068 = vmatpush2.msra.mxu0 0.0
    %4069 = vmatprep.subr.mxu0 0.0
    %4070 = vmatpush2.msra.mxu0 0.0
    %4071 = vmatprep.subr.mxu0 0.0
    %4072 = vmatpush2.msra.mxu0 0.0
    %4073 = vmatprep.subr.mxu0 0.0
    %4074 = vmatpush2.msra.mxu0 0.0
    %4075 = vmatprep.subr.mxu0 0.0
    %4076 = vmatpush2.msra.mxu0 0.0
    %4077 = vmatprep.subr.mxu0 0.0
    %4078 = vmatpush2.msra.mxu0 0.0
    %4079 = vmatprep.mubr.f32.mxu0 0.0
    %4080 = vmatmul.mubr.f32.gmra.mxu0 %v3995
    %v4081 = vpop.f32.mrf.mxu0
    %v4082 = vadd.f32 0.0, %v4081
    %v4083 = vpop.f32.mrf.mxu0
    %4084 = vmatprep.mubr.f32.mxu0 0.0
    %4085 = vmatmul.mubr.f32.gmra.mxu0 %v3998
    %v4086 = vpop.f32.mrf.mxu0
    %v4087 = vadd.f32 0.0, %v4086
    %v4088 = vpop.f32.mrf.mxu0
    %4089 = vmatprep.mubr.f32.mxu0 0.0
    %4090 = vmatmul.mubr.f32.gmra.mxu0 %v4001
    %v4091 = vpop.f32.mrf.mxu0
    %v4092 = vadd.f32 0.0, %v4091
    %v4093 = vpop.f32.mrf.mxu0
    %4094 = vmatprep.mubr.f32.mxu0 0.0
    %4095 = vmatmul.mubr.f32.gmra.mxu0 %v4004
    %v4096 = vpop.f32.mrf.mxu0
    %v4097 = vadd.f32 0.0, %v4096
    %v4098 = vpop.f32.mrf.mxu0
    %4099 = vmatprep.mubr.f32.mxu0 0.0
    %4100 = vmatmul.mubr.f32.gmra.mxu0 %v4007
    %v4101 = vpop.f32.mrf.mxu0
    %v4102 = vadd.f32 0.0, %v4101
    %v4103 = vpop.f32.mrf.mxu0
    %4104 = vmatprep.mubr.f32.mxu0 0.0
    %4105 = vmatmul.mubr.f32.gmra.mxu0 %v4010
    %v4106 = vpop.f32.mrf.mxu0
    %v4107 = vadd.f32 0.0, %v4106
    %v4108 = vpop.f32.mrf.mxu0
    %4109 = vmatprep.mubr.f32.mxu0 0.0
    %4110 = vmatmul.mubr.f32.gmra.mxu0 %v4013
    %v4111 = vpop.f32.mrf.mxu0
    %v4112 = vadd.f32 0.0, %v4111
    %v4113 = vpop.f32.mrf.mxu0
    %4114 = vdwg.mxu0
    %v4116 = vsel %vm473, %v4082, 0
    %v4119 = vsel %vm473, %v4087, 0
    %v4122 = vsel %vm473, %v4092, 0
    %v4125 = vsel %vm473, %v4097, 0
    %v4128 = vsel %vm473, %v4102, 0
    %v4131 = vsel %vm473, %v4107, 0
    %v4134 = vsel %vm473, %v4112, 0
    %4136 = vmatprep.subr.mxu0 0.0
    %4137 = vmatpush1.msra.mxu0 0.0
    %4138 = vmatprep.subr.mxu0 0.0
    %4139 = vmatpush1.msra.mxu0 0.0
    %4140 = vmatprep.subr.mxu0 0.0
    %4141 = vmatpush1.msra.mxu0 0.0
    %4142 = vmatprep.subr.mxu0 0.0
    %4143 = vmatpush1.msra.mxu0 0.0
    %4144 = vmatprep.subr.mxu0 0.0
    %4145 = vmatpush1.msra.mxu0 0.0
    %4146 = vmatprep.subr.mxu0 0.0
    %4147 = vmatpush1.msra.mxu0 0.0
    %4148 = vmatprep.subr.mxu0 0.0
    %4149 = vmatpush1.msra.mxu0 0.0
    %4150 = vmatprep.subr.mxu0 0.0
    %4151 = vmatpush1.msra.mxu0 0.0
    %4152 = vmatprep.subr.mxu0 0.0
    %4153 = vmatpush1.msra.mxu0 0.0
    %4154 = vmatprep.subr.mxu0 0.0
    %4155 = vmatpush1.msra.mxu0 0.0
    %4156 = vmatprep.subr.mxu0 0.0
    %4157 = vmatpush1.msra.mxu0 0.0
    %4158 = vmatprep.subr.mxu0 0.0
    %4159 = vmatpush1.msra.mxu0 0.0
    %4160 = vmatprep.subr.mxu0 0.0
    %4161 = vmatpush1.msra.mxu0 0.0
    %4162 = vmatprep.subr.mxu0 0.0
    %4163 = vmatpush1.msra.mxu0 0.0
    %4164 = vmatprep.subr.mxu0 0.0
    %4165 = vmatpush1.msra.mxu0 0.0
    %4166 = vmatprep.subr.mxu0 0.0
    %4167 = vmatpush1.msra.mxu0 %v310
    %4168 = vmatprep.subr.mxu0 0.0
    %4169 = vmatpush2.msra.mxu0 0.0
    %4170 = vmatprep.subr.mxu0 0.0
    %4171 = vmatpush2.msra.mxu0 0.0
    %4172 = vmatprep.subr.mxu0 0.0
    %4173 = vmatpush2.msra.mxu0 0.0
    %4174 = vmatprep.subr.mxu0 0.0
    %4175 = vmatpush2.msra.mxu0 0.0
    %4176 = vmatprep.subr.mxu0 0.0
    %4177 = vmatpush2.msra.mxu0 0.0
    %4178 = vmatprep.subr.mxu0 0.0
    %4179 = vmatpush2.msra.mxu0 0.0
    %4180 = vmatprep.subr.mxu0 0.0
    %4181 = vmatpush2.msra.mxu0 0.0
    %4182 = vmatprep.subr.mxu0 0.0
    %4183 = vmatpush2.msra.mxu0 0.0
    %4184 = vmatprep.subr.mxu0 0.0
    %4185 = vmatpush2.msra.mxu0 0.0
    %4186 = vmatprep.subr.mxu0 0.0
    %4187 = vmatpush2.msra.mxu0 0.0
    %4188 = vmatprep.subr.mxu0 0.0
    %4189 = vmatpush2.msra.mxu0 0.0
    %4190 = vmatprep.subr.mxu0 0.0
    %4191 = vmatpush2.msra.mxu0 0.0
    %4192 = vmatprep.subr.mxu0 0.0
    %4193 = vmatpush2.msra.mxu0 0.0
    %4194 = vmatprep.subr.mxu0 0.0
    %4195 = vmatpush2.msra.mxu0 0.0
    %4196 = vmatprep.subr.mxu0 0.0
    %4197 = vmatpush2.msra.mxu0 0.0
    %4198 = vmatprep.subr.mxu0 0.0
    %4199 = vmatpush2.msra.mxu0 0.0
    %4200 = vmatprep.mubr.f32.mxu0 0.0
    %4201 = vmatmul.mubr.f32.gmra.mxu0 %v4116
    %v4202 = vpop.f32.mrf.mxu0
    %v4203 = vadd.f32 0.0, %v4202
    %v4204 = vpop.f32.mrf.mxu0
    %4205 = vmatprep.mubr.f32.mxu0 0.0
    %4206 = vmatmul.mubr.f32.gmra.mxu0 %v4119
    %v4207 = vpop.f32.mrf.mxu0
    %v4208 = vadd.f32 0.0, %v4207
    %v4209 = vpop.f32.mrf.mxu0
    %4210 = vmatprep.mubr.f32.mxu0 0.0
    %4211 = vmatmul.mubr.f32.gmra.mxu0 %v4122
    %v4212 = vpop.f32.mrf.mxu0
    %v4213 = vadd.f32 0.0, %v4212
    %v4214 = vpop.f32.mrf.mxu0
    %4215 = vmatprep.mubr.f32.mxu0 0.0
    %4216 = vmatmul.mubr.f32.gmra.mxu0 %v4125
    %v4217 = vpop.f32.mrf.mxu0
    %v4218 = vadd.f32 0.0, %v4217
    %v4219 = vpop.f32.mrf.mxu0
    %4220 = vmatprep.mubr.f32.mxu0 0.0
    %4221 = vmatmul.mubr.f32.gmra.mxu0 %v4128
    %v4222 = vpop.f32.mrf.mxu0
    %v4223 = vadd.f32 0.0, %v4222
    %v4224 = vpop.f32.mrf.mxu0
    %4225 = vmatprep.mubr.f32.mxu0 0.0
    %4226 = vmatmul.mubr.f32.gmra.mxu0 %v4131
    %v4227 = vpop.f32.mrf.mxu0
    %v4228 = vadd.f32 0.0, %v4227
    %v4229 = vpop.f32.mrf.mxu0
    %4230 = vmatprep.mubr.f32.mxu0 0.0
    %4231 = vmatmul.mubr.f32.gmra.mxu0 %v4134
    %v4232 = vpop.f32.mrf.mxu0
    %v4233 = vadd.f32 0.0, %v4232
    %v4234 = vpop.f32.mrf.mxu0
    %4235 = vdwg.mxu0
    %v4236 = vadd.f32 %v3726, %v4203
    %v4237 = vadd.f32 %v3727, %v4208
    %v4238 = vadd.f32 %v3728, %v4213
    %v4239 = vadd.f32 %v3729, %v4218
    %v4240 = vadd.f32 %v3730, %v4223
    %v4241 = vadd.f32 %v3731, %v4228
    %v4242 = vadd.f32 %v3732, %v4233
    %4243 = vrot.lane.b32.xlu0 %v2690, 104
    %v4244 = vpop.permute.xlu0 %4243
    %4245 = vrot.lane.b32.xlu0 %v2695, 104
    %v4246 = vpop.permute.xlu0 %4245
    %4247 = vrot.lane.b32.xlu0 %v2700, 104
    %v4248 = vpop.permute.xlu0 %4247
    %4249 = vrot.lane.b32.xlu0 %v2705, 104
    %v4250 = vpop.permute.xlu0 %4249
    %4251 = vrot.lane.b32.xlu0 %v2710, 104
    %v4252 = vpop.permute.xlu0 %4251
    %4253 = vrot.lane.b32.xlu0 %v2715, 104
    %v4254 = vpop.permute.xlu0 %4253
    %4255 = vrot.lane.b32.xlu0 %v2720, 104
    %v4256 = vpop.permute.xlu0 %4255
    %4257 = vrot.lane.b32.xlu0 %v254, 104
    %v4258 = vpop.permute.xlu0 %4257
    %4259 = vrot.lane.b32.xlu0 %v259, 104
    %v4260 = vpop.permute.xlu0 %4259
    %4261 = vrot.lane.b32.xlu0 %v264, 104
    %v4262 = vpop.permute.xlu0 %4261
    %4263 = vrot.lane.b32.xlu0 %v269, 104
    %v4264 = vpop.permute.xlu0 %4263
    %4265 = vrot.lane.b32.xlu0 %v274, 104
    %v4266 = vpop.permute.xlu0 %4265
    %4267 = vrot.lane.b32.xlu0 %v279, 104
    %v4268 = vpop.permute.xlu0 %4267
    %4269 = vrot.lane.b32.xlu0 %v284, 104
    %v4270 = vpop.permute.xlu0 %4269
    %4271 = vrot.lane.b32.xlu0 %v289, 104
    %v4272 = vpop.permute.xlu0 %4271
    %v4273 = vsel %vm473, %v4244, 0
    %v4275 = vsel %vm473, %v4246, 0
    %v4277 = vsel %vm473, %v4248, 0
    %v4279 = vsel %vm473, %v4250, 0
    %v4281 = vsel %vm473, %v4252, 0
    %v4283 = vsel %vm473, %v4254, 0
    %v4285 = vsel %vm473, %v4256, 0
    %v4287 = vsel %vm473, %v4258, 0
    %v4289 = vsel %vm473, %v4260, 0
    %v4291 = vsel %vm473, %v4262, 0
    %v4293 = vsel %vm473, %v4264, 0
    %v4295 = vsel %vm473, %v4266, 0
    %v4297 = vsel %vm473, %v4268, 0
    %v4299 = vsel %vm473, %v4270, 0
    %v4301 = vsel %vm473, %v4272, 0
    %4303 = vmatprep.subr.mxu0 0.0
    %4304 = vmatpush1.xpose.msra.mxu0 0.0
    %4305 = vmatprep.subr.mxu0 0.0
    %4306 = vmatpush1.xpose.msra.mxu0 0.0
    %4307 = vmatprep.subr.mxu0 0.0
    %4308 = vmatpush1.xpose.msra.mxu0 0.0
    %4309 = vmatprep.subr.mxu0 0.0
    %4310 = vmatpush1.xpose.msra.mxu0 0.0
    %4311 = vmatprep.subr.mxu0 0.0
    %4312 = vmatpush1.xpose.msra.mxu0 0.0
    %4313 = vmatprep.subr.mxu0 0.0
    %4314 = vmatpush1.xpose.msra.mxu0 0.0
    %4315 = vmatprep.subr.mxu0 0.0
    %4316 = vmatpush1.xpose.msra.mxu0 0.0
    %4317 = vmatprep.subr.mxu0 0.0
    %4318 = vmatpush1.xpose.msra.mxu0 0.0
    %4319 = vmatprep.subr.mxu0 0.0
    %4320 = vmatpush1.xpose.msra.mxu0 %v4301
    %4321 = vmatprep.subr.mxu0 0.0
    %4322 = vmatpush1.xpose.msra.mxu0 %v4299
    %4323 = vmatprep.subr.mxu0 0.0
    %4324 = vmatpush1.xpose.msra.mxu0 %v4297
    %4325 = vmatprep.subr.mxu0 0.0
    %4326 = vmatpush1.xpose.msra.mxu0 %v4295
    %4327 = vmatprep.subr.mxu0 0.0
    %4328 = vmatpush1.xpose.msra.mxu0 %v4293
    %4329 = vmatprep.subr.mxu0 0.0
    %4330 = vmatpush1.xpose.msra.mxu0 %v4291
    %4331 = vmatprep.subr.mxu0 0.0
    %4332 = vmatpush1.xpose.msra.mxu0 %v4289
    %4333 = vmatprep.subr.mxu0 0.0
    %4334 = vmatpush1.xpose.msra.mxu0 %v4287
    %4335 = vmatprep.subr.mxu0 0.0
    %4336 = vmatpush2.xpose.msra.mxu0 0.0
    %4337 = vmatprep.subr.mxu0 0.0
    %4338 = vmatpush2.xpose.msra.mxu0 0.0
    %4339 = vmatprep.subr.mxu0 0.0
    %4340 = vmatpush2.xpose.msra.mxu0 0.0
    %4341 = vmatprep.subr.mxu0 0.0
    %4342 = vmatpush2.xpose.msra.mxu0 0.0
    %4343 = vmatprep.subr.mxu0 0.0
    %4344 = vmatpush2.xpose.msra.mxu0 0.0
    %4345 = vmatprep.subr.mxu0 0.0
    %4346 = vmatpush2.xpose.msra.mxu0 0.0
    %4347 = vmatprep.subr.mxu0 0.0
    %4348 = vmatpush2.xpose.msra.mxu0 0.0
    %4349 = vmatprep.subr.mxu0 0.0
    %4350 = vmatpush2.xpose.msra.mxu0 0.0
    %4351 = vmatprep.subr.mxu0 0.0
    %4352 = vmatpush2.xpose.msra.mxu0 0.0
    %4353 = vmatprep.subr.mxu0 0.0
    %4354 = vmatpush2.xpose.msra.mxu0 0.0
    %4355 = vmatprep.subr.mxu0 0.0
    %4356 = vmatpush2.xpose.msra.mxu0 0.0
    %4357 = vmatprep.subr.mxu0 0.0
    %4358 = vmatpush2.xpose.msra.mxu0 0.0
    %4359 = vmatprep.subr.mxu0 0.0
    %4360 = vmatpush2.xpose.msra.mxu0 0.0
    %4361 = vmatprep.subr.mxu0 0.0
    %4362 = vmatpush2.xpose.msra.mxu0 0.0
    %4363 = vmatprep.subr.mxu0 0.0
    %4364 = vmatpush2.xpose.msra.mxu0 0.0
    %4365 = vmatprep.subr.mxu0 0.0
    %4366 = vmatpush2.xpose.msra.mxu0 0.0
    %4367 = vmatprep.mubr.f32.mxu0 0.0
    %4368 = vmatmul.mubr.f32.gmra.mxu0 %v4273
    %v4369 = vpop.f32.mrf.mxu0
    %v4370 = vadd.f32 %v146, %v4369
    %v4371 = vpop.f32.mrf.mxu0
    %4372 = vmatprep.mubr.f32.mxu0 0.0
    %4373 = vmatmul.mubr.f32.gmra.mxu0 %v4275
    %v4374 = vpop.f32.mrf.mxu0
    %v4375 = vadd.f32 %v147, %v4374
    %v4376 = vpop.f32.mrf.mxu0
    %4377 = vmatprep.mubr.f32.mxu0 0.0
    %4378 = vmatmul.mubr.f32.gmra.mxu0 %v4277
    %v4379 = vpop.f32.mrf.mxu0
    %v4380 = vadd.f32 %v148, %v4379
    %v4381 = vpop.f32.mrf.mxu0
    %4382 = vmatprep.mubr.f32.mxu0 0.0
    %4383 = vmatmul.mubr.f32.gmra.mxu0 %v4279
    %v4384 = vpop.f32.mrf.mxu0
    %v4385 = vadd.f32 %v149, %v4384
    %v4386 = vpop.f32.mrf.mxu0
    %4387 = vmatprep.mubr.f32.mxu0 0.0
    %4388 = vmatmul.mubr.f32.gmra.mxu0 %v4281
    %v4389 = vpop.f32.mrf.mxu0
    %v4390 = vadd.f32 %v150, %v4389
    %v4391 = vpop.f32.mrf.mxu0
    %4392 = vmatprep.mubr.f32.mxu0 0.0
    %4393 = vmatmul.mubr.f32.gmra.mxu0 %v4283
    %v4394 = vpop.f32.mrf.mxu0
    %v4395 = vadd.f32 %v151, %v4394
    %v4396 = vpop.f32.mrf.mxu0
    %4397 = vmatprep.mubr.f32.mxu0 0.0
    %4398 = vmatmul.mubr.f32.gmra.mxu0 %v4285
    %v4399 = vpop.f32.mrf.mxu0
    %v4400 = vadd.f32 %v152, %v4399
    %v4401 = vpop.f32.mrf.mxu0
    %4402 = vdwg.mxu0
    %v4403 = vsel %vm2868, %v4370, -inf
    %4404 = vmax.xlane.f32.xlu0 %v4403
    %v4405 = vpop.xlane.xlu0 %4404
    %v4406 = vsel %vm2868, %v4375, -inf
    %4407 = vmax.xlane.f32.xlu0 %v4406
    %v4408 = vpop.xlane.xlu0 %4407
    %v4409 = vsel %vm2868, %v4380, -inf
    %4410 = vmax.xlane.f32.xlu0 %v4409
    %v4411 = vpop.xlane.xlu0 %4410
    %v4412 = vsel %vm2868, %v4385, -inf
    %4413 = vmax.xlane.f32.xlu0 %v4412
    %v4414 = vpop.xlane.xlu0 %4413
    %v4415 = vsel %vm2868, %v4390, -inf
    %4416 = vmax.xlane.f32.xlu0 %v4415
    %v4417 = vpop.xlane.xlu0 %4416
    %v4418 = vsel %vm2868, %v4395, -inf
    %4419 = vmax.xlane.f32.xlu0 %v4418
    %v4420 = vpop.xlane.xlu0 %4419
    %v4421 = vsel %vm2868, %v4400, -inf
    %4422 = vmax.xlane.f32.xlu0 %v4421
    %v4423 = vpop.xlane.xlu0 %4422
    %v4424 = vsub.f32 %v4370, %v4405
    %v4425 = vsub.f32 %v4375, %v4408
    %v4426 = vsub.f32 %v4380, %v4411
    %v4427 = vsub.f32 %v4385, %v4414
    %v4428 = vsub.f32 %v4390, %v4417
    %v4429 = vsub.f32 %v4395, %v4420
    %v4430 = vsub.f32 %v4400, %v4423
    %v4431 = vmul.f32 %v4424, 1.442695
    %v4432 = vpow.pop %v4431
    %v4433 = vmul.f32 %v4425, 1.442695
    %v4434 = vpow.pop %v4433
    %v4435 = vmul.f32 %v4426, 1.442695
    %v4436 = vpow.pop %v4435
    %v4437 = vmul.f32 %v4427, 1.442695
    %v4438 = vpow.pop %v4437
    %v4439 = vmul.f32 %v4428, 1.442695
    %v4440 = vpow.pop %v4439
    %v4441 = vmul.f32 %v4429, 1.442695
    %v4442 = vpow.pop %v4441
    %v4443 = vmul.f32 %v4430, 1.442695
    %v4444 = vpow.pop %v4443
    %v4445 = vsel %vm2868, %v4432, 0.0
    %4446 = vadd.xlane.f32.xlu0 %v4445
    %v4447 = vpop.xlane.xlu0 %4446
    %v4448 = vsel %vm2868, %v4434, 0.0
    %4449 = vadd.xlane.f32.xlu0 %v4448
    %v4450 = vpop.xlane.xlu0 %4449
    %v4451 = vsel %vm2868, %v4436, 0.0
    %4452 = vadd.xlane.f32.xlu0 %v4451
    %v4453 = vpop.xlane.xlu0 %4452
    %v4454 = vsel %vm2868, %v4438, 0.0
    %4455 = vadd.xlane.f32.xlu0 %v4454
    %v4456 = vpop.xlane.xlu0 %4455
    %v4457 = vsel %vm2868, %v4440, 0.0
    %4458 = vadd.xlane.f32.xlu0 %v4457
    %v4459 = vpop.xlane.xlu0 %4458
    %v4460 = vsel %vm2868, %v4442, 0.0
    %4461 = vadd.xlane.f32.xlu0 %v4460
    %v4462 = vpop.xlane.xlu0 %4461
    %v4463 = vsel %vm2868, %v4444, 0.0
    %4464 = vadd.xlane.f32.xlu0 %v4463
    %v4465 = vpop.xlane.xlu0 %4464
    %v4466 = vrcp.pop %v4447
    %v4467 = vrcp.pop %v4450
    %v4468 = vrcp.pop %v4453
    %v4469 = vrcp.pop %v4456
    %v4470 = vrcp.pop %v4459
    %v4471 = vrcp.pop %v4462
    %v4472 = vrcp.pop %v4465
    %v4473 = vmul.f32 %v4432, %v4466
    %v4474 = vmul.f32 %v4434, %v4467
    %v4475 = vmul.f32 %v4436, %v4468
    %v4476 = vmul.f32 %v4438, %v4469
    %v4477 = vmul.f32 %v4440, %v4470
    %v4478 = vmul.f32 %v4442, %v4471
    %v4479 = vmul.f32 %v4444, %v4472
    %4480 = vrot.lane.b32.xlu0 %v254, 72
    %v4481 = vpop.permute.xlu0 %4480
    %4482 = vrot.lane.b32.xlu0 %v259, 72
    %v4483 = vpop.permute.xlu0 %4482
    %4484 = vrot.lane.b32.xlu0 %v264, 72
    %v4485 = vpop.permute.xlu0 %4484
    %4486 = vrot.lane.b32.xlu0 %v269, 72
    %v4487 = vpop.permute.xlu0 %4486
    %4488 = vrot.lane.b32.xlu0 %v274, 72
    %v4489 = vpop.permute.xlu0 %4488
    %4490 = vrot.lane.b32.xlu0 %v279, 72
    %v4491 = vpop.permute.xlu0 %4490
    %4492 = vrot.lane.b32.xlu0 %v284, 72
    %v4493 = vpop.permute.xlu0 %4492
    %4494 = vrot.lane.b32.xlu0 %v289, 72
    %v4495 = vpop.permute.xlu0 %4494
    %v4505 = vsel %vm2868, %v4473, 0
    %v4508 = vsel %vm2868, %v4474, 0
    %v4511 = vsel %vm2868, %v4475, 0
    %v4514 = vsel %vm2868, %v4476, 0
    %v4517 = vsel %vm2868, %v4477, 0
    %v4520 = vsel %vm2868, %v4478, 0
    %v4523 = vsel %vm2868, %v4479, 0
    %4525 = vmatprep.subr.mxu0 0.0
    %4526 = vmatpush1.msra.mxu0 0.0
    %4527 = vmatprep.subr.mxu0 0.0
    %4528 = vmatpush1.msra.mxu0 0.0
    %4529 = vmatprep.subr.mxu0 0.0
    %4530 = vmatpush1.msra.mxu0 0.0
    %4531 = vmatprep.subr.mxu0 0.0
    %4532 = vmatpush1.msra.mxu0 0.0
    %4533 = vmatprep.subr.mxu0 0.0
    %4534 = vmatpush1.msra.mxu0 0.0
    %4535 = vmatprep.subr.mxu0 0.0
    %4536 = vmatpush1.msra.mxu0 0.0
    %4537 = vmatprep.subr.mxu0 0.0
    %4538 = vmatpush1.msra.mxu0 0.0
    %4539 = vmatprep.subr.mxu0 0.0
    %4540 = vmatpush1.msra.mxu0 0.0
    %4541 = vmatprep.subr.mxu0 0.0
    %4542 = vmatpush1.msra.mxu0 %v4495
    %4543 = vmatprep.subr.mxu0 0.0
    %4544 = vmatpush1.msra.mxu0 %v4493
    %4545 = vmatprep.subr.mxu0 0.0
    %4546 = vmatpush1.msra.mxu0 %v4491
    %4547 = vmatprep.subr.mxu0 0.0
    %4548 = vmatpush1.msra.mxu0 %v4489
    %4549 = vmatprep.subr.mxu0 0.0
    %4550 = vmatpush1.msra.mxu0 %v4487
    %4551 = vmatprep.subr.mxu0 0.0
    %4552 = vmatpush1.msra.mxu0 %v4485
    %4553 = vmatprep.subr.mxu0 0.0
    %4554 = vmatpush1.msra.mxu0 %v4483
    %4555 = vmatprep.subr.mxu0 0.0
    %4556 = vmatpush1.msra.mxu0 %v4481
    %4557 = vmatprep.subr.mxu0 0.0
    %4558 = vmatpush2.msra.mxu0 0.0
    %4559 = vmatprep.subr.mxu0 0.0
    %4560 = vmatpush2.msra.mxu0 0.0
    %4561 = vmatprep.subr.mxu0 0.0
    %4562 = vmatpush2.msra.mxu0 0.0
    %4563 = vmatprep.subr.mxu0 0.0
    %4564 = vmatpush2.msra.mxu0 0.0
    %4565 = vmatprep.subr.mxu0 0.0
    %4566 = vmatpush2.msra.mxu0 0.0
    %4567 = vmatprep.subr.mxu0 0.0
    %4568 = vmatpush2.msra.mxu0 0.0
    %4569 = vmatprep.subr.mxu0 0.0
    %4570 = vmatpush2.msra.mxu0 0.0
    %4571 = vmatprep.subr.mxu0 0.0
    %4572 = vmatpush2.msra.mxu0 0.0
    %4573 = vmatprep.subr.mxu0 0.0
    %4574 = vmatpush2.msra.mxu0 0.0
    %4575 = vmatprep.subr.mxu0 0.0
    %4576 = vmatpush2.msra.mxu0 0.0
    %4577 = vmatprep.subr.mxu0 0.0
    %4578 = vmatpush2.msra.mxu0 0.0
    %4579 = vmatprep.subr.mxu0 0.0
    %4580 = vmatpush2.msra.mxu0 0.0
    %4581 = vmatprep.subr.mxu0 0.0
    %4582 = vmatpush2.msra.mxu0 0.0
    %4583 = vmatprep.subr.mxu0 0.0
    %4584 = vmatpush2.msra.mxu0 0.0
    %4585 = vmatprep.subr.mxu0 0.0
    %4586 = vmatpush2.msra.mxu0 0.0
    %4587 = vmatprep.subr.mxu0 0.0
    %4588 = vmatpush2.msra.mxu0 0.0
    %4589 = vmatprep.mubr.f32.mxu0 0.0
    %4590 = vmatmul.mubr.f32.gmra.mxu0 %v4505
    %v4591 = vpop.f32.mrf.mxu0
    %v4592 = vadd.f32 0.0, %v4591
    %v4593 = vpop.f32.mrf.mxu0
    %4594 = vmatprep.mubr.f32.mxu0 0.0
    %4595 = vmatmul.mubr.f32.gmra.mxu0 %v4508
    %v4596 = vpop.f32.mrf.mxu0
    %v4597 = vadd.f32 0.0, %v4596
    %v4598 = vpop.f32.mrf.mxu0
    %4599 = vmatprep.mubr.f32.mxu0 0.0
    %4600 = vmatmul.mubr.f32.gmra.mxu0 %v4511
    %v4601 = vpop.f32.mrf.mxu0
    %v4602 = vadd.f32 0.0, %v4601
    %v4603 = vpop.f32.mrf.mxu0
    %4604 = vmatprep.mubr.f32.mxu0 0.0
    %4605 = vmatmul.mubr.f32.gmra.mxu0 %v4514
    %v4606 = vpop.f32.mrf.mxu0
    %v4607 = vadd.f32 0.0, %v4606
    %v4608 = vpop.f32.mrf.mxu0
    %4609 = vmatprep.mubr.f32.mxu0 0.0
    %4610 = vmatmul.mubr.f32.gmra.mxu0 %v4517
    %v4611 = vpop.f32.mrf.mxu0
    %v4612 = vadd.f32 0.0, %v4611
    %v4613 = vpop.f32.mrf.mxu0
    %4614 = vmatprep.mubr.f32.mxu0 0.0
    %4615 = vmatmul.mubr.f32.gmra.mxu0 %v4520
    %v4616 = vpop.f32.mrf.mxu0
    %v4617 = vadd.f32 0.0, %v4616
    %v4618 = vpop.f32.mrf.mxu0
    %4619 = vmatprep.mubr.f32.mxu0 0.0
    %4620 = vmatmul.mubr.f32.gmra.mxu0 %v4523
    %v4621 = vpop.f32.mrf.mxu0
    %v4622 = vadd.f32 0.0, %v4621
    %v4623 = vpop.f32.mrf.mxu0
    %4624 = vdwg.mxu0
    %v4626 = vsel %vm473, %v4592, 0
    %v4629 = vsel %vm473, %v4597, 0
    %v4632 = vsel %vm473, %v4602, 0
    %v4635 = vsel %vm473, %v4607, 0
    %v4638 = vsel %vm473, %v4612, 0
    %v4641 = vsel %vm473, %v4617, 0
    %v4644 = vsel %vm473, %v4622, 0
    %4646 = vmatprep.subr.mxu0 0.0
    %4647 = vmatpush1.msra.mxu0 0.0
    %4648 = vmatprep.subr.mxu0 0.0
    %4649 = vmatpush1.msra.mxu0 0.0
    %4650 = vmatprep.subr.mxu0 0.0
    %4651 = vmatpush1.msra.mxu0 0.0
    %4652 = vmatprep.subr.mxu0 0.0
    %4653 = vmatpush1.msra.mxu0 0.0
    %4654 = vmatprep.subr.mxu0 0.0
    %4655 = vmatpush1.msra.mxu0 0.0
    %4656 = vmatprep.subr.mxu0 0.0
    %4657 = vmatpush1.msra.mxu0 0.0
    %4658 = vmatprep.subr.mxu0 0.0
    %4659 = vmatpush1.msra.mxu0 0.0
    %4660 = vmatprep.subr.mxu0 0.0
    %4661 = vmatpush1.msra.mxu0 0.0
    %4662 = vmatprep.subr.mxu0 0.0
    %4663 = vmatpush1.msra.mxu0 0.0
    %4664 = vmatprep.subr.mxu0 0.0
    %4665 = vmatpush1.msra.mxu0 0.0
    %4666 = vmatprep.subr.mxu0 0.0
    %4667 = vmatpush1.msra.mxu0 0.0
    %4668 = vmatprep.subr.mxu0 0.0
    %4669 = vmatpush1.msra.mxu0 0.0
    %4670 = vmatprep.subr.mxu0 0.0
    %4671 = vmatpush1.msra.mxu0 0.0
    %4672 = vmatprep.subr.mxu0 0.0
    %4673 = vmatpush1.msra.mxu0 0.0
    %4674 = vmatprep.subr.mxu0 0.0
    %4675 = vmatpush1.msra.mxu0 0.0
    %4676 = vmatprep.subr.mxu0 0.0
    %4677 = vmatpush1.msra.mxu0 %v311
    %4678 = vmatprep.subr.mxu0 0.0
    %4679 = vmatpush2.msra.mxu0 0.0
    %4680 = vmatprep.subr.mxu0 0.0
    %4681 = vmatpush2.msra.mxu0 0.0
    %4682 = vmatprep.subr.mxu0 0.0
    %4683 = vmatpush2.msra.mxu0 0.0
    %4684 = vmatprep.subr.mxu0 0.0
    %4685 = vmatpush2.msra.mxu0 0.0
    %4686 = vmatprep.subr.mxu0 0.0
    %4687 = vmatpush2.msra.mxu0 0.0
    %4688 = vmatprep.subr.mxu0 0.0
    %4689 = vmatpush2.msra.mxu0 0.0
    %4690 = vmatprep.subr.mxu0 0.0
    %4691 = vmatpush2.msra.mxu0 0.0
    %4692 = vmatprep.subr.mxu0 0.0
    %4693 = vmatpush2.msra.mxu0 0.0
    %4694 = vmatprep.subr.mxu0 0.0
    %4695 = vmatpush2.msra.mxu0 0.0
    %4696 = vmatprep.subr.mxu0 0.0
    %4697 = vmatpush2.msra.mxu0 0.0
    %4698 = vmatprep.subr.mxu0 0.0
    %4699 = vmatpush2.msra.mxu0 0.0
    %4700 = vmatprep.subr.mxu0 0.0
    %4701 = vmatpush2.msra.mxu0 0.0
    %4702 = vmatprep.subr.mxu0 0.0
    %4703 = vmatpush2.msra.mxu0 0.0
    %4704 = vmatprep.subr.mxu0 0.0
    %4705 = vmatpush2.msra.mxu0 0.0
    %4706 = vmatprep.subr.mxu0 0.0
    %4707 = vmatpush2.msra.mxu0 0.0
    %4708 = vmatprep.subr.mxu0 0.0
    %4709 = vmatpush2.msra.mxu0 0.0
    %4710 = vmatprep.mubr.f32.mxu0 0.0
    %4711 = vmatmul.mubr.f32.gmra.mxu0 %v4626
    %v4712 = vpop.f32.mrf.mxu0
    %v4713 = vadd.f32 0.0, %v4712
    %v4714 = vpop.f32.mrf.mxu0
    %4715 = vmatprep.mubr.f32.mxu0 0.0
    %4716 = vmatmul.mubr.f32.gmra.mxu0 %v4629
    %v4717 = vpop.f32.mrf.mxu0
    %v4718 = vadd.f32 0.0, %v4717
    %v4719 = vpop.f32.mrf.mxu0
    %4720 = vmatprep.mubr.f32.mxu0 0.0
    %4721 = vmatmul.mubr.f32.gmra.mxu0 %v4632
    %v4722 = vpop.f32.mrf.mxu0
    %v4723 = vadd.f32 0.0, %v4722
    %v4724 = vpop.f32.mrf.mxu0
    %4725 = vmatprep.mubr.f32.mxu0 0.0
    %4726 = vmatmul.mubr.f32.gmra.mxu0 %v4635
    %v4727 = vpop.f32.mrf.mxu0
    %v4728 = vadd.f32 0.0, %v4727
    %v4729 = vpop.f32.mrf.mxu0
    %4730 = vmatprep.mubr.f32.mxu0 0.0
    %4731 = vmatmul.mubr.f32.gmra.mxu0 %v4638
    %v4732 = vpop.f32.mrf.mxu0
    %v4733 = vadd.f32 0.0, %v4732
    %v4734 = vpop.f32.mrf.mxu0
    %4735 = vmatprep.mubr.f32.mxu0 0.0
    %4736 = vmatmul.mubr.f32.gmra.mxu0 %v4641
    %v4737 = vpop.f32.mrf.mxu0
    %v4738 = vadd.f32 0.0, %v4737
    %v4739 = vpop.f32.mrf.mxu0
    %4740 = vmatprep.mubr.f32.mxu0 0.0
    %4741 = vmatmul.mubr.f32.gmra.mxu0 %v4644
    %v4742 = vpop.f32.mrf.mxu0
    %v4743 = vadd.f32 0.0, %v4742
    %v4744 = vpop.f32.mrf.mxu0
    %4745 = vdwg.mxu0
    %v4746 = vadd.f32 %v4236, %v4713
    %v4747 = vadd.f32 %v4237, %v4718
    %v4748 = vadd.f32 %v4238, %v4723
    %v4749 = vadd.f32 %v4239, %v4728
    %v4750 = vadd.f32 %v4240, %v4733
    %v4751 = vadd.f32 %v4241, %v4738
    %v4752 = vadd.f32 %v4242, %v4743
    %v4753 = vadd.f32 %v2591, %v4746
    %v4754 = vadd.f32 %v2592, %v4747
    %v4755 = vadd.f32 %v2593, %v4748
    %v4756 = vadd.f32 %v2594, %v4749
    %v4757 = vadd.f32 %v2595, %v4750
    %v4758 = vadd.f32 %v2596, %v4751
    %v4759 = vadd.f32 %v2597, %v4752
    %v4760 = vsel %vm162, %v4753, 0.0
    %4761 = vadd.xlane.f32.xlu0 %v4760
    %v4762 = vpop.xlane.xlu0 %4761
    %v4763 = vsel %vm162, %v4754, 0.0
    %4764 = vadd.xlane.f32.xlu0 %v4763
    %v4765 = vpop.xlane.xlu0 %4764
    %v4766 = vsel %vm162, %v4755, 0.0
    %4767 = vadd.xlane.f32.xlu0 %v4766
    %v4768 = vpop.xlane.xlu0 %4767
    %v4769 = vsel %vm162, %v4756, 0.0
    %4770 = vadd.xlane.f32.xlu0 %v4769
    %v4771 = vpop.xlane.xlu0 %4770
    %v4772 = vsel %vm162, %v4757, 0.0
    %4773 = vadd.xlane.f32.xlu0 %v4772
    %v4774 = vpop.xlane.xlu0 %4773
    %v4775 = vsel %vm162, %v4758, 0.0
    %4776 = vadd.xlane.f32.xlu0 %v4775
    %v4777 = vpop.xlane.xlu0 %4776
    %v4778 = vsel %vm162, %v4759, 0.0
    %4779 = vadd.xlane.f32.xlu0 %v4778
    %v4780 = vpop.xlane.xlu0 %4779
    %v4781 = vmul.f32 %v4762, %v2491
    %v4782 = vmul.f32 %v4765, %v2491
    %v4783 = vmul.f32 %v4768, %v2491
    %v4784 = vmul.f32 %v4771, %v2491
    %v4785 = vmul.f32 %v4774, %v2491
    %v4786 = vmul.f32 %v4777, %v2491
    %v4787 = vmul.f32 %v4780, %v2491
    %v4788 = vmul.f32 %v4753, %v4753
    %v4789 = vmul.f32 %v4754, %v4754
    %v4790 = vmul.f32 %v4755, %v4755
    %v4791 = vmul.f32 %v4756, %v4756
    %v4792 = vmul.f32 %v4757, %v4757
    %v4793 = vmul.f32 %v4758, %v4758
    %v4794 = vmul.f32 %v4759, %v4759
    %v4795 = vsel %vm162, %v4788, 0.0
    %4796 = vadd.xlane.f32.xlu0 %v4795
    %v4797 = vpop.xlane.xlu0 %4796
    %v4798 = vsel %vm162, %v4789, 0.0
    %4799 = vadd.xlane.f32.xlu0 %v4798
    %v4800 = vpop.xlane.xlu0 %4799
    %v4801 = vsel %vm162, %v4790, 0.0
    %4802 = vadd.xlane.f32.xlu0 %v4801
    %v4803 = vpop.xlane.xlu0 %4802
    %v4804 = vsel %vm162, %v4791, 0.0
    %4805 = vadd.xlane.f32.xlu0 %v4804
    %v4806 = vpop.xlane.xlu0 %4805
    %v4807 = vsel %vm162, %v4792, 0.0
    %4808 = vadd.xlane.f32.xlu0 %v4807
    %v4809 = vpop.xlane.xlu0 %4808
    %v4810 = vsel %vm162, %v4793, 0.0
    %4811 = vadd.xlane.f32.xlu0 %v4810
    %v4812 = vpop.xlane.xlu0 %4811
    %v4813 = vsel %vm162, %v4794, 0.0
    %4814 = vadd.xlane.f32.xlu0 %v4813
    %v4815 = vpop.xlane.xlu0 %4814
    %v4816 = vmul.f32 %v4797, %v2491
    %v4817 = vmul.f32 %v4800, %v2491
    %v4818 = vmul.f32 %v4803, %v2491
    %v4819 = vmul.f32 %v4806, %v2491
    %v4820 = vmul.f32 %v4809, %v2491
    %v4821 = vmul.f32 %v4812, %v2491
    %v4822 = vmul.f32 %v4815, %v2491
    %v4823 = vmul.f32 %v4781, %v4781
    %v4824 = vmul.f32 %v4782, %v4782
    %v4825 = vmul.f32 %v4783, %v4783
    %v4826 = vmul.f32 %v4784, %v4784
    %v4827 = vmul.f32 %v4785, %v4785
    %v4828 = vmul.f32 %v4786, %v4786
    %v4829 = vmul.f32 %v4787, %v4787
    %v4830 = vsub.f32 %v4816, %v4823
    %v4831 = vsub.f32 %v4817, %v4824
    %v4832 = vsub.f32 %v4818, %v4825
    %v4833 = vsub.f32 %v4819, %v4826
    %v4834 = vsub.f32 %v4820, %v4827
    %v4835 = vsub.f32 %v4821, %v4828
    %v4836 = vsub.f32 %v4822, %v4829
    %v4837 = vsub.f32 %v4753, %v4781
    %v4838 = vsub.f32 %v4754, %v4782
    %v4839 = vsub.f32 %v4755, %v4783
    %v4840 = vsub.f32 %v4756, %v4784
    %v4841 = vsub.f32 %v4757, %v4785
    %v4842 = vsub.f32 %v4758, %v4786
    %v4843 = vsub.f32 %v4759, %v4787
    %v4844 = vadd.f32 %v4830, 1e-05
    %v4845 = vadd.f32 %v4831, 1e-05
    %v4846 = vadd.f32 %v4832, 1e-05
    %v4847 = vadd.f32 %v4833, 1e-05
    %v4848 = vadd.f32 %v4834, 1e-05
    %v4849 = vadd.f32 %v4835, 1e-05
    %v4850 = vadd.f32 %v4836, 1e-05
    %v4851 = vrsqrt.pop %v4844
    %v4852 = vrsqrt.pop %v4845
    %v4853 = vrsqrt.pop %v4846
    %v4854 = vrsqrt.pop %v4847
    %v4855 = vrsqrt.pop %v4848
    %v4856 = vrsqrt.pop %v4849
    %v4857 = vrsqrt.pop %v4850
    %v4858 = vmul.f32 %v4837, %v4851
    %v4859 = vmul.f32 %v4838, %v4852
    %v4860 = vmul.f32 %v4839, %v4853
    %v4861 = vmul.f32 %v4840, %v4854
    %v4862 = vmul.f32 %v4841, %v4855
    %v4863 = vmul.f32 %v4842, %v4856
    %v4864 = vmul.f32 %v4843, %v4857
    %v4865 = vlaneseq
    %v4866 = vshrl.u32 %v4865, 7
    %v4867 = vsub.s32 2, %v4866
    %v4868 = vrot.slane %v39, %v4867
    %v4869 = vmul.f32 %v4858, %v4868
    %v4870 = vmul.f32 %v4859, %v4868
    %v4871 = vmul.f32 %v4860, %v4868
    %v4872 = vmul.f32 %v4861, %v4868
    %v4873 = vmul.f32 %v4862, %v4868
    %v4874 = vmul.f32 %v4863, %v4868
    %v4875 = vmul.f32 %v4864, %v4868
    %v4876 = vlaneseq
    %v4877 = vshrl.u32 %v4876, 7
    %v4878 = vsub.s32 3, %v4877
    %v4879 = vrot.slane %v39, %v4878
    %v4880 = vadd.f32 %v4869, %v4879
    %v4881 = vadd.f32 %v4870, %v4879
    %v4882 = vadd.f32 %v4871, %v4879
    %v4883 = vadd.f32 %v4872, %v4879
    %v4884 = vadd.f32 %v4873, %v4879
    %v4885 = vadd.f32 %v4874, %v4879
    %v4886 = vadd.f32 %v4875, %v4879
    %v4887 = vlaneseq
    %v4888 = vshrl.u32 %v4887, 7
    %v4889 = vsub.s32 0, %v4888
    %v4890 = vrot.slane %v317, %v4889
    %v4892 = vsel %vm162, %v4880, 0
    %v4895 = vsel %vm162, %v4881, 0
    %v4898 = vsel %vm162, %v4882, 0
    %v4901 = vsel %vm162, %v4883, 0
    %v4904 = vsel %vm162, %v4884, 0
    %v4907 = vsel %vm162, %v4885, 0
    %v4910 = vsel %vm162, %v4886, 0
    %4912 = vmatprep.subr.mxu0 0.0
    %4913 = vmatpush1.msra.mxu0 0.0
    %4914 = vmatprep.subr.mxu0 0.0
    %4915 = vmatpush1.msra.mxu0 0.0
    %4916 = vmatprep.subr.mxu0 0.0
    %4917 = vmatpush1.msra.mxu0 0.0
    %4918 = vmatprep.subr.mxu0 0.0
    %4919 = vmatpush1.msra.mxu0 0.0
    %4920 = vmatprep.subr.mxu0 0.0
    %4921 = vmatpush1.msra.mxu0 0.0
    %4922 = vmatprep.subr.mxu0 0.0
    %4923 = vmatpush1.msra.mxu0 0.0
    %4924 = vmatprep.subr.mxu0 0.0
    %4925 = vmatpush1.msra.mxu0 0.0
    %4926 = vmatprep.subr.mxu0 0.0
    %4927 = vmatpush1.msra.mxu0 0.0
    %4928 = vmatprep.subr.mxu0 0.0
    %4929 = vmatpush1.msra.mxu0 0.0
    %4930 = vmatprep.subr.mxu0 0.0
    %4931 = vmatpush1.msra.mxu0 0.0
    %4932 = vmatprep.subr.mxu0 0.0
    %4933 = vmatpush1.msra.mxu0 0.0
    %4934 = vmatprep.subr.mxu0 0.0
    %4935 = vmatpush1.msra.mxu0 0.0
    %4936 = vmatprep.subr.mxu0 0.0
    %4937 = vmatpush1.msra.mxu0 %v316
    %4938 = vmatprep.subr.mxu0 0.0
    %4939 = vmatpush1.msra.mxu0 %v315
    %4940 = vmatprep.subr.mxu0 0.0
    %4941 = vmatpush1.msra.mxu0 %v314
    %4942 = vmatprep.subr.mxu0 0.0
    %4943 = vmatpush1.msra.mxu0 %v313
    %4944 = vmatprep.subr.mxu0 0.0
    %4945 = vmatpush2.msra.mxu0 0.0
    %4946 = vmatprep.subr.mxu0 0.0
    %4947 = vmatpush2.msra.mxu0 0.0
    %4948 = vmatprep.subr.mxu0 0.0
    %4949 = vmatpush2.msra.mxu0 0.0
    %4950 = vmatprep.subr.mxu0 0.0
    %4951 = vmatpush2.msra.mxu0 0.0
    %4952 = vmatprep.subr.mxu0 0.0
    %4953 = vmatpush2.msra.mxu0 0.0
    %4954 = vmatprep.subr.mxu0 0.0
    %4955 = vmatpush2.msra.mxu0 0.0
    %4956 = vmatprep.subr.mxu0 0.0
    %4957 = vmatpush2.msra.mxu0 0.0
    %4958 = vmatprep.subr.mxu0 0.0
    %4959 = vmatpush2.msra.mxu0 0.0
    %4960 = vmatprep.subr.mxu0 0.0
    %4961 = vmatpush2.msra.mxu0 0.0
    %4962 = vmatprep.subr.mxu0 0.0
    %4963 = vmatpush2.msra.mxu0 0.0
    %4964 = vmatprep.subr.mxu0 0.0
    %4965 = vmatpush2.msra.mxu0 0.0
    %4966 = vmatprep.subr.mxu0 0.0
    %4967 = vmatpush2.msra.mxu0 0.0
    %4968 = vmatprep.subr.mxu0 0.0
    %4969 = vmatpush2.msra.mxu0 0.0
    %4970 = vmatprep.subr.mxu0 0.0
    %4971 = vmatpush2.msra.mxu0 0.0
    %4972 = vmatprep.subr.mxu0 0.0
    %4973 = vmatpush2.msra.mxu0 0.0
    %4974 = vmatprep.subr.mxu0 0.0
    %4975 = vmatpush2.msra.mxu0 0.0
    %4976 = vmatprep.mubr.f32.mxu0 0.0
    %4977 = vmatmul.mubr.f32.gmra.mxu0 %v4892
    %v4978 = vpop.f32.mrf.mxu0
    %v4979 = vadd.f32 %v4890, %v4978
    %v4980 = vpop.f32.mrf.mxu0
    %4981 = vmatprep.mubr.f32.mxu0 0.0
    %4982 = vmatmul.mubr.f32.gmra.mxu0 %v4895
    %v4983 = vpop.f32.mrf.mxu0
    %v4984 = vadd.f32 %v4890, %v4983
    %v4985 = vpop.f32.mrf.mxu0
    %4986 = vmatprep.mubr.f32.mxu0 0.0
    %4987 = vmatmul.mubr.f32.gmra.mxu0 %v4898
    %v4988 = vpop.f32.mrf.mxu0
    %v4989 = vadd.f32 %v4890, %v4988
    %v4990 = vpop.f32.mrf.mxu0
    %4991 = vmatprep.mubr.f32.mxu0 0.0
    %4992 = vmatmul.mubr.f32.gmra.mxu0 %v4901
    %v4993 = vpop.f32.mrf.mxu0
    %v4994 = vadd.f32 %v4890, %v4993
    %v4995 = vpop.f32.mrf.mxu0
    %4996 = vmatprep.mubr.f32.mxu0 0.0
    %4997 = vmatmul.mubr.f32.gmra.mxu0 %v4904
    %v4998 = vpop.f32.mrf.mxu0
    %v4999 = vadd.f32 %v4890, %v4998
    %v5000 = vpop.f32.mrf.mxu0
    %5001 = vmatprep.mubr.f32.mxu0 0.0
    %5002 = vmatmul.mubr.f32.gmra.mxu0 %v4907
    %v5003 = vpop.f32.mrf.mxu0
    %v5004 = vadd.f32 %v4890, %v5003
    %v5005 = vpop.f32.mrf.mxu0
    %5006 = vmatprep.mubr.f32.mxu0 0.0
    %5007 = vmatmul.mubr.f32.gmra.mxu0 %v4910
    %v5008 = vpop.f32.mrf.mxu0
    %v5009 = vadd.f32 %v4890, %v5008
    %v5010 = vpop.f32.mrf.mxu0
    %5011 = vdwg.mxu0
    %v5012 = vmax.f32 %v4979, 0.0
    %v5013 = vmax.f32 %v4984, 0.0
    %v5014 = vmax.f32 %v4989, 0.0
    %v5015 = vmax.f32 %v4994, 0.0
    %v5016 = vmax.f32 %v4999, 0.0
    %v5017 = vmax.f32 %v5004, 0.0
    %v5018 = vmax.f32 %v5009, 0.0
    %v5019 = vlaneseq
    %v5020 = vshrl.u32 %v5019, 7
    %v5021 = vsub.s32 0, %v5020
    %v5022 = vrot.slane %v326, %v5021
    %v5024 = vsel %vm2868, %v5012, 0
    %v5027 = vsel %vm2868, %v5013, 0
    %v5030 = vsel %vm2868, %v5014, 0
    %v5033 = vsel %vm2868, %v5015, 0
    %v5036 = vsel %vm2868, %v5016, 0
    %v5039 = vsel %vm2868, %v5017, 0
    %v5042 = vsel %vm2868, %v5018, 0
    %5044 = vmatprep.subr.mxu0 0.0
    %5045 = vmatpush1.msra.mxu0 0.0
    %5046 = vmatprep.subr.mxu0 0.0
    %5047 = vmatpush1.msra.mxu0 0.0
    %5048 = vmatprep.subr.mxu0 0.0
    %5049 = vmatpush1.msra.mxu0 0.0
    %5050 = vmatprep.subr.mxu0 0.0
    %5051 = vmatpush1.msra.mxu0 0.0
    %5052 = vmatprep.subr.mxu0 0.0
    %5053 = vmatpush1.msra.mxu0 0.0
    %5054 = vmatprep.subr.mxu0 0.0
    %5055 = vmatpush1.msra.mxu0 0.0
    %5056 = vmatprep.subr.mxu0 0.0
    %5057 = vmatpush1.msra.mxu0 0.0
    %5058 = vmatprep.subr.mxu0 0.0
    %5059 = vmatpush1.msra.mxu0 0.0
    %5060 = vmatprep.subr.mxu0 0.0
    %5061 = vmatpush1.msra.mxu0 %v325
    %5062 = vmatprep.subr.mxu0 0.0
    %5063 = vmatpush1.msra.mxu0 %v324
    %5064 = vmatprep.subr.mxu0 0.0
    %5065 = vmatpush1.msra.mxu0 %v323
    %5066 = vmatprep.subr.mxu0 0.0
    %5067 = vmatpush1.msra.mxu0 %v322
    %5068 = vmatprep.subr.mxu0 0.0
    %5069 = vmatpush1.msra.mxu0 %v321
    %5070 = vmatprep.subr.mxu0 0.0
    %5071 = vmatpush1.msra.mxu0 %v320
    %5072 = vmatprep.subr.mxu0 0.0
    %5073 = vmatpush1.msra.mxu0 %v319
    %5074 = vmatprep.subr.mxu0 0.0
    %5075 = vmatpush1.msra.mxu0 %v318
    %5076 = vmatprep.subr.mxu0 0.0
    %5077 = vmatpush2.msra.mxu0 0.0
    %5078 = vmatprep.subr.mxu0 0.0
    %5079 = vmatpush2.msra.mxu0 0.0
    %5080 = vmatprep.subr.mxu0 0.0
    %5081 = vmatpush2.msra.mxu0 0.0
    %5082 = vmatprep.subr.mxu0 0.0
    %5083 = vmatpush2.msra.mxu0 0.0
    %5084 = vmatprep.subr.mxu0 0.0
    %5085 = vmatpush2.msra.mxu0 0.0
    %5086 = vmatprep.subr.mxu0 0.0
    %5087 = vmatpush2.msra.mxu0 0.0
    %5088 = vmatprep.subr.mxu0 0.0
    %5089 = vmatpush2.msra.mxu0 0.0
    %5090 = vmatprep.subr.mxu0 0.0
    %5091 = vmatpush2.msra.mxu0 0.0
    %5092 = vmatprep.subr.mxu0 0.0
    %5093 = vmatpush2.msra.mxu0 0.0
    %5094 = vmatprep.subr.mxu0 0.0
    %5095 = vmatpush2.msra.mxu0 0.0
    %5096 = vmatprep.subr.mxu0 0.0
    %5097 = vmatpush2.msra.mxu0 0.0
    %5098 = vmatprep.subr.mxu0 0.0
    %5099 = vmatpush2.msra.mxu0 0.0
    %5100 = vmatprep.subr.mxu0 0.0
    %5101 = vmatpush2.msra.mxu0 0.0
    %5102 = vmatprep.subr.mxu0 0.0
    %5103 = vmatpush2.msra.mxu0 0.0
    %5104 = vmatprep.subr.mxu0 0.0
    %5105 = vmatpush2.msra.mxu0 0.0
    %5106 = vmatprep.subr.mxu0 0.0
    %5107 = vmatpush2.msra.mxu0 0.0
    %5108 = vmatprep.mubr.f32.mxu0 0.0
    %5109 = vmatmul.mubr.f32.gmra.mxu0 %v5024
    %v5110 = vpop.f32.mrf.mxu0
    %v5111 = vadd.f32 %v5022, %v5110
    %v5112 = vpop.f32.mrf.mxu0
    %5113 = vmatprep.mubr.f32.mxu0 0.0
    %5114 = vmatmul.mubr.f32.gmra.mxu0 %v5027
    %v5115 = vpop.f32.mrf.mxu0
    %v5116 = vadd.f32 %v5022, %v5115
    %v5117 = vpop.f32.mrf.mxu0
    %5118 = vmatprep.mubr.f32.mxu0 0.0
    %5119 = vmatmul.mubr.f32.gmra.mxu0 %v5030
    %v5120 = vpop.f32.mrf.mxu0
    %v5121 = vadd.f32 %v5022, %v5120
    %v5122 = vpop.f32.mrf.mxu0
    %5123 = vmatprep.mubr.f32.mxu0 0.0
    %5124 = vmatmul.mubr.f32.gmra.mxu0 %v5033
    %v5125 = vpop.f32.mrf.mxu0
    %v5126 = vadd.f32 %v5022, %v5125
    %v5127 = vpop.f32.mrf.mxu0
    %5128 = vmatprep.mubr.f32.mxu0 0.0
    %5129 = vmatmul.mubr.f32.gmra.mxu0 %v5036
    %v5130 = vpop.f32.mrf.mxu0
    %v5131 = vadd.f32 %v5022, %v5130
    %v5132 = vpop.f32.mrf.mxu0
    %5133 = vmatprep.mubr.f32.mxu0 0.0
    %5134 = vmatmul.mubr.f32.gmra.mxu0 %v5039
    %v5135 = vpop.f32.mrf.mxu0
    %v5136 = vadd.f32 %v5022, %v5135
    %v5137 = vpop.f32.mrf.mxu0
    %5138 = vmatprep.mubr.f32.mxu0 0.0
    %5139 = vmatmul.mubr.f32.gmra.mxu0 %v5042
    %v5140 = vpop.f32.mrf.mxu0
    %v5141 = vadd.f32 %v5022, %v5140
    %v5142 = vpop.f32.mrf.mxu0
    %5143 = vdwg.mxu0
    %v5144 = vadd.f32 %v4880, %v5111
    %v5145 = vadd.f32 %v4881, %v5116
    %v5146 = vadd.f32 %v4882, %v5121
    %v5147 = vadd.f32 %v4883, %v5126
    %v5148 = vadd.f32 %v4884, %v5131
    %v5149 = vadd.f32 %v4885, %v5136
    %v5150 = vadd.f32 %v4886, %v5141
    %v5151 = vsel %vm162, %v5144, 0.0
    %5152 = vadd.xlane.f32.xlu0 %v5151
    %v5153 = vpop.xlane.xlu0 %5152
    %v5154 = vsel %vm162, %v5145, 0.0
    %5155 = vadd.xlane.f32.xlu0 %v5154
    %v5156 = vpop.xlane.xlu0 %5155
    %v5157 = vsel %vm162, %v5146, 0.0
    %5158 = vadd.xlane.f32.xlu0 %v5157
    %v5159 = vpop.xlane.xlu0 %5158
    %v5160 = vsel %vm162, %v5147, 0.0
    %5161 = vadd.xlane.f32.xlu0 %v5160
    %v5162 = vpop.xlane.xlu0 %5161
    %v5163 = vsel %vm162, %v5148, 0.0
    %5164 = vadd.xlane.f32.xlu0 %v5163
    %v5165 = vpop.xlane.xlu0 %5164
    %v5166 = vsel %vm162, %v5149, 0.0
    %5167 = vadd.xlane.f32.xlu0 %v5166
    %v5168 = vpop.xlane.xlu0 %5167
    %v5169 = vsel %vm162, %v5150, 0.0
    %5170 = vadd.xlane.f32.xlu0 %v5169
    %v5171 = vpop.xlane.xlu0 %5170
    %v5172 = vmul.f32 %v5153, %v2491
    %v5173 = vmul.f32 %v5156, %v2491
    %v5174 = vmul.f32 %v5159, %v2491
    %v5175 = vmul.f32 %v5162, %v2491
    %v5176 = vmul.f32 %v5165, %v2491
    %v5177 = vmul.f32 %v5168, %v2491
    %v5178 = vmul.f32 %v5171, %v2491
    %v5179 = vmul.f32 %v5144, %v5144
    %v5180 = vmul.f32 %v5145, %v5145
    %v5181 = vmul.f32 %v5146, %v5146
    %v5182 = vmul.f32 %v5147, %v5147
    %v5183 = vmul.f32 %v5148, %v5148
    %v5184 = vmul.f32 %v5149, %v5149
    %v5185 = vmul.f32 %v5150, %v5150
    %v5186 = vsel %vm162, %v5179, 0.0
    %5187 = vadd.xlane.f32.xlu0 %v5186
    %v5188 = vpop.xlane.xlu0 %5187
    %v5189 = vsel %vm162, %v5180, 0.0
    %5190 = vadd.xlane.f32.xlu0 %v5189
    %v5191 = vpop.xlane.xlu0 %5190
    %v5192 = vsel %vm162, %v5181, 0.0
    %5193 = vadd.xlane.f32.xlu0 %v5192
    %v5194 = vpop.xlane.xlu0 %5193
    %v5195 = vsel %vm162, %v5182, 0.0
    %5196 = vadd.xlane.f32.xlu0 %v5195
    %v5197 = vpop.xlane.xlu0 %5196
    %v5198 = vsel %vm162, %v5183, 0.0
    %5199 = vadd.xlane.f32.xlu0 %v5198
    %v5200 = vpop.xlane.xlu0 %5199
    %v5201 = vsel %vm162, %v5184, 0.0
    %5202 = vadd.xlane.f32.xlu0 %v5201
    %v5203 = vpop.xlane.xlu0 %5202
    %v5204 = vsel %vm162, %v5185, 0.0
    %5205 = vadd.xlane.f32.xlu0 %v5204
    %v5206 = vpop.xlane.xlu0 %5205
    %v5207 = vmul.f32 %v5188, %v2491
    %v5208 = vmul.f32 %v5191, %v2491
    %v5209 = vmul.f32 %v5194, %v2491
    %v5210 = vmul.f32 %v5197, %v2491
    %v5211 = vmul.f32 %v5200, %v2491
    %v5212 = vmul.f32 %v5203, %v2491
    %v5213 = vmul.f32 %v5206, %v2491
    %v5214 = vmul.f32 %v5172, %v5172
    %v5215 = vmul.f32 %v5173, %v5173
    %v5216 = vmul.f32 %v5174, %v5174
    %v5217 = vmul.f32 %v5175, %v5175
    %v5218 = vmul.f32 %v5176, %v5176
    %v5219 = vmul.f32 %v5177, %v5177
    %v5220 = vmul.f32 %v5178, %v5178
    %v5221 = vsub.f32 %v5207, %v5214
    %v5222 = vsub.f32 %v5208, %v5215
    %v5223 = vsub.f32 %v5209, %v5216
    %v5224 = vsub.f32 %v5210, %v5217
    %v5225 = vsub.f32 %v5211, %v5218
    %v5226 = vsub.f32 %v5212, %v5219
    %v5227 = vsub.f32 %v5213, %v5220
    %v5228 = vsub.f32 %v5144, %v5172
    %v5229 = vsub.f32 %v5145, %v5173
    %v5230 = vsub.f32 %v5146, %v5174
    %v5231 = vsub.f32 %v5147, %v5175
    %v5232 = vsub.f32 %v5148, %v5176
    %v5233 = vsub.f32 %v5149, %v5177
    %v5234 = vsub.f32 %v5150, %v5178
    %v5235 = vadd.f32 %v5221, 1e-05
    %v5236 = vadd.f32 %v5222, 1e-05
    %v5237 = vadd.f32 %v5223, 1e-05
    %v5238 = vadd.f32 %v5224, 1e-05
    %v5239 = vadd.f32 %v5225, 1e-05
    %v5240 = vadd.f32 %v5226, 1e-05
    %v5241 = vadd.f32 %v5227, 1e-05
    %v5242 = vrsqrt.pop %v5235
    %v5243 = vrsqrt.pop %v5236
    %v5244 = vrsqrt.pop %v5237
    %v5245 = vrsqrt.pop %v5238
    %v5246 = vrsqrt.pop %v5239
    %v5247 = vrsqrt.pop %v5240
    %v5248 = vrsqrt.pop %v5241
    %v5249 = vmul.f32 %v5228, %v5242
    %v5250 = vmul.f32 %v5229, %v5243
    %v5251 = vmul.f32 %v5230, %v5244
    %v5252 = vmul.f32 %v5231, %v5245
    %v5253 = vmul.f32 %v5232, %v5246
    %v5254 = vmul.f32 %v5233, %v5247
    %v5255 = vmul.f32 %v5234, %v5248
    %v5256 = vlaneseq
    %v5257 = vshrl.u32 %v5256, 7
    %v5258 = vsub.s32 4, %v5257
    %v5259 = vrot.slane %v39, %v5258
    %v5260 = vmul.f32 %v5249, %v5259
    %v5261 = vmul.f32 %v5250, %v5259
    %v5262 = vmul.f32 %v5251, %v5259
    %v5263 = vmul.f32 %v5252, %v5259
    %v5264 = vmul.f32 %v5253, %v5259
    %v5265 = vmul.f32 %v5254, %v5259
    %v5266 = vmul.f32 %v5255, %v5259
    %v5267 = vlaneseq
    %v5268 = vshrl.u32 %v5267, 7
    %v5269 = vsub.s32 5, %v5268
    %v5270 = vrot.slane %v39, %v5269
    %v5271 = vadd.f32 %v5260, %v5270
    %v5272 = vadd.f32 %v5261, %v5270
    %v5273 = vadd.f32 %v5262, %v5270
    %v5274 = vadd.f32 %v5263, %v5270
    %v5275 = vadd.f32 %v5264, %v5270
    %v5276 = vadd.f32 %v5265, %v5270
    %v5277 = vadd.f32 %v5266, %v5270
    %s5278 = scalar_lea.vmem %s7, 160
    %v5279 = vld [vmem:[%s5278] sm:$0xff]
    %v5280 = vld [vmem:[%s5278 + $0x8] sm:$0xff]
    %v5281 = vld [vmem:[%s5278 + $0x10] sm:$0xff]
    %v5282 = vld [vmem:[%s5278 + $0x18] sm:$0xff]
    %v5283 = vld [vmem:[%s5278 + $0x20] sm:$0xff]
    %v5284 = vld [vmem:[%s5278 + $0x28] sm:$0xff]
    %v5285 = vld [vmem:[%s5278 + $0x30] sm:$0xff]
    %v5286 = vld [vmem:[%s5278 + $0x38] sm:$0xff]
    %v5287 = vld [vmem:[%s5278 + $0x40] sm:$0xff]
    %v5288 = vld [vmem:[%s5278 + $0x48] sm:$0xff]
    %s5289 = scalar_lea.vmem %s7, 240
    %v5290 = vld [vmem:[%s5289] sm:$0xff]
    %v5291 = vld [vmem:[%s5289 + $0x8] sm:$0xff]
    %v5292 = vld [vmem:[%s5289 + $0x10] sm:$0xff]
    %v5293 = vld [vmem:[%s5289 + $0x18] sm:$0xff]
    %v5294 = vld [vmem:[%s5289 + $0x20] sm:$0xff]
    %v5295 = vld [vmem:[%s5289 + $0x28] sm:$0xff]
    %v5296 = vld [vmem:[%s5289 + $0x30] sm:$0xff]
    %v5297 = vld [vmem:[%s5289 + $0x38] sm:$0xff]
    %v5298 = vld [vmem:[%s5289 + $0x40] sm:$0xff]
    %v5299 = vld [vmem:[%s5289 + $0x48] sm:$0xff]
    %s5300 = scalar_lea.vmem %s9, 112
    %v5301 = vld [vmem:[%s5300] sm:$0xff]
    %v5302 = vld [vmem:[%s5300 + $0x8] sm:$0xff]
    %v5303 = vld [vmem:[%s5300 + $0x10] sm:$0xff]
    %v5304 = vld [vmem:[%s5300 + $0x18] sm:$0xff]
    %v5305 = vld [vmem:[%s5300 + $0x20] sm:$0xff]
    %v5306 = vld [vmem:[%s5300 + $0x28] sm:$0xff]
    %v5307 = vld [vmem:[%s5300 + $0x30] sm:$0xff]
    %v5308 = vld [vmem:[%s5300 + $0x38] sm:$0xff]
    %v5309 = vld [vmem:[%s5300 + $0x40] sm:$0xff]
    %v5310 = vld [vmem:[%s5300 + $0x48] sm:$0xff]
    %v5311 = vld [vmem:[%s5300 + $0x50] sm:$0xff]
    %v5312 = vld [vmem:[%s5300 + $0x58] sm:$0xff]
    %v5313 = vld [vmem:[%s5300 + $0x60] sm:$0xff]
    %v5314 = vld [vmem:[%s5300 + $0x68] sm:$0xff]
    %v5315 = vlaneseq
    %v5316 = vshrl.u32 %v5315, 7
    %vm5317 = vcmp.eq.s32.totalorder %v5316, %v120
    %v5318 = vsel %vm5317, 0.0, -1e+09
    %vm5319 = vcmp.eq.s32.totalorder %v5316, %v138
    %v5320 = vsel %vm5319, 0.0, -1e+09
    %v5321 = vlaneseq
    %v5322 = vshrl.u32 %v5321, 7
    %v5323 = vsub.s32 0, %v5322
    %v5324 = vrot.slane %v5283, %v5323
    %v5326 = vsel %vm162, %v5277, 0
    %5328 = vmatprep.subr.mxu0 0.0
    %5329 = vmatpush1.msra.mxu0 0.0
    %5330 = vmatprep.subr.mxu0 0.0
    %5331 = vmatpush1.msra.mxu0 0.0
    %5332 = vmatprep.subr.mxu0 0.0
    %5333 = vmatpush1.msra.mxu0 0.0
    %5334 = vmatprep.subr.mxu0 0.0
    %5335 = vmatpush1.msra.mxu0 0.0
    %5336 = vmatprep.subr.mxu0 0.0
    %5337 = vmatpush1.msra.mxu0 0.0
    %5338 = vmatprep.subr.mxu0 0.0
    %5339 = vmatpush1.msra.mxu0 0.0
    %5340 = vmatprep.subr.mxu0 0.0
    %5341 = vmatpush1.msra.mxu0 0.0
    %5342 = vmatprep.subr.mxu0 0.0
    %5343 = vmatpush1.msra.mxu0 0.0
    %5344 = vmatprep.subr.mxu0 0.0
    %5345 = vmatpush1.msra.mxu0 0.0
    %5346 = vmatprep.subr.mxu0 0.0
    %5347 = vmatpush1.msra.mxu0 0.0
    %5348 = vmatprep.subr.mxu0 0.0
    %5349 = vmatpush1.msra.mxu0 0.0
    %5350 = vmatprep.subr.mxu0 0.0
    %5351 = vmatpush1.msra.mxu0 0.0
    %5352 = vmatprep.subr.mxu0 0.0
    %5353 = vmatpush1.msra.mxu0 %v5282
    %5354 = vmatprep.subr.mxu0 0.0
    %5355 = vmatpush1.msra.mxu0 %v5281
    %5356 = vmatprep.subr.mxu0 0.0
    %5357 = vmatpush1.msra.mxu0 %v5280
    %5358 = vmatprep.subr.mxu0 0.0
    %5359 = vmatpush1.msra.mxu0 %v5279
    %5360 = vmatprep.subr.mxu0 0.0
    %5361 = vmatpush2.msra.mxu0 0.0
    %5362 = vmatprep.subr.mxu0 0.0
    %5363 = vmatpush2.msra.mxu0 0.0
    %5364 = vmatprep.subr.mxu0 0.0
    %5365 = vmatpush2.msra.mxu0 0.0
    %5366 = vmatprep.subr.mxu0 0.0
    %5367 = vmatpush2.msra.mxu0 0.0
    %5368 = vmatprep.subr.mxu0 0.0
    %5369 = vmatpush2.msra.mxu0 0.0
    %5370 = vmatprep.subr.mxu0 0.0
    %5371 = vmatpush2.msra.mxu0 0.0
    %5372 = vmatprep.subr.mxu0 0.0
    %5373 = vmatpush2.msra.mxu0 0.0
    %5374 = vmatprep.subr.mxu0 0.0
    %5375 = vmatpush2.msra.mxu0 0.0
    %5376 = vmatprep.subr.mxu0 0.0
    %5377 = vmatpush2.msra.mxu0 0.0
    %5378 = vmatprep.subr.mxu0 0.0
    %5379 = vmatpush2.msra.mxu0 0.0
    %5380 = vmatprep.subr.mxu0 0.0
    %5381 = vmatpush2.msra.mxu0 0.0
    %5382 = vmatprep.subr.mxu0 0.0
    %5383 = vmatpush2.msra.mxu0 0.0
    %5384 = vmatprep.subr.mxu0 0.0
    %5385 = vmatpush2.msra.mxu0 0.0
    %5386 = vmatprep.subr.mxu0 0.0
    %5387 = vmatpush2.msra.mxu0 0.0
    %5388 = vmatprep.subr.mxu0 0.0
    %5389 = vmatpush2.msra.mxu0 0.0
    %5390 = vmatprep.subr.mxu0 0.0
    %5391 = vmatpush2.msra.mxu0 0.0
    %5392 = vmatprep.mubr.f32.mxu0 0.0
    %5393 = vmatmul.mubr.f32.gmra.mxu0 %v5326
    %v5394 = vpop.f32.mrf.mxu0
    %v5395 = vadd.f32 %v5324, %v5394
    %v5396 = vpop.f32.mrf.mxu0
    %5397 = vdwg.mxu0
    %5402 = vrot.lane.b32.xlu0 %v5279, 96
    %v5403 = vpop.permute.xlu0 %5402
    %5404 = vrot.lane.b32.xlu0 %v5280, 96
    %v5405 = vpop.permute.xlu0 %5404
    %5406 = vrot.lane.b32.xlu0 %v5281, 96
    %v5407 = vpop.permute.xlu0 %5406
    %5408 = vrot.lane.b32.xlu0 %v5282, 96
    %v5409 = vpop.permute.xlu0 %5408
    %5415 = vrot.lane.b32.xlu0 %v5324, 96
    %v5416 = vpop.permute.xlu0 %5415
    %v5419 = vsel %vm162, %v5271, 0
    %v5422 = vsel %vm162, %v5272, 0
    %v5425 = vsel %vm162, %v5273, 0
    %v5428 = vsel %vm162, %v5274, 0
    %v5431 = vsel %vm162, %v5275, 0
    %v5434 = vsel %vm162, %v5276, 0
    %5436 = vmatprep.subr.mxu0 0.0
    %5437 = vmatpush1.msra.mxu0 0.0
    %5438 = vmatprep.subr.mxu0 0.0
    %5439 = vmatpush1.msra.mxu0 0.0
    %5440 = vmatprep.subr.mxu0 0.0
    %5441 = vmatpush1.msra.mxu0 0.0
    %5442 = vmatprep.subr.mxu0 0.0
    %5443 = vmatpush1.msra.mxu0 0.0
    %5444 = vmatprep.subr.mxu0 0.0
    %5445 = vmatpush1.msra.mxu0 0.0
    %5446 = vmatprep.subr.mxu0 0.0
    %5447 = vmatpush1.msra.mxu0 0.0
    %5448 = vmatprep.subr.mxu0 0.0
    %5449 = vmatpush1.msra.mxu0 0.0
    %5450 = vmatprep.subr.mxu0 0.0
    %5451 = vmatpush1.msra.mxu0 0.0
    %5452 = vmatprep.subr.mxu0 0.0
    %5453 = vmatpush1.msra.mxu0 0.0
    %5454 = vmatprep.subr.mxu0 0.0
    %5455 = vmatpush1.msra.mxu0 0.0
    %5456 = vmatprep.subr.mxu0 0.0
    %5457 = vmatpush1.msra.mxu0 0.0
    %5458 = vmatprep.subr.mxu0 0.0
    %5459 = vmatpush1.msra.mxu0 0.0
    %5460 = vmatprep.subr.mxu0 0.0
    %5461 = vmatpush1.msra.mxu0 %v5409
    %5462 = vmatprep.subr.mxu0 0.0
    %5463 = vmatpush1.msra.mxu0 %v5407
    %5464 = vmatprep.subr.mxu0 0.0
    %5465 = vmatpush1.msra.mxu0 %v5405
    %5466 = vmatprep.subr.mxu0 0.0
    %5467 = vmatpush1.msra.mxu0 %v5403
    %5468 = vmatprep.subr.mxu0 0.0
    %5469 = vmatpush2.msra.mxu0 0.0
    %5470 = vmatprep.subr.mxu0 0.0
    %5471 = vmatpush2.msra.mxu0 0.0
    %5472 = vmatprep.subr.mxu0 0.0
    %5473 = vmatpush2.msra.mxu0 0.0
    %5474 = vmatprep.subr.mxu0 0.0
    %5475 = vmatpush2.msra.mxu0 0.0
    %5476 = vmatprep.subr.mxu0 0.0
    %5477 = vmatpush2.msra.mxu0 0.0
    %5478 = vmatprep.subr.mxu0 0.0
    %5479 = vmatpush2.msra.mxu0 0.0
    %5480 = vmatprep.subr.mxu0 0.0
    %5481 = vmatpush2.msra.mxu0 0.0
    %5482 = vmatprep.subr.mxu0 0.0
    %5483 = vmatpush2.msra.mxu0 0.0
    %5484 = vmatprep.subr.mxu0 0.0
    %5485 = vmatpush2.msra.mxu0 0.0
    %5486 = vmatprep.subr.mxu0 0.0
    %5487 = vmatpush2.msra.mxu0 0.0
    %5488 = vmatprep.subr.mxu0 0.0
    %5489 = vmatpush2.msra.mxu0 0.0
    %5490 = vmatprep.subr.mxu0 0.0
    %5491 = vmatpush2.msra.mxu0 0.0
    %5492 = vmatprep.subr.mxu0 0.0
    %5493 = vmatpush2.msra.mxu0 0.0
    %5494 = vmatprep.subr.mxu0 0.0
    %5495 = vmatpush2.msra.mxu0 0.0
    %5496 = vmatprep.subr.mxu0 0.0
    %5497 = vmatpush2.msra.mxu0 0.0
    %5498 = vmatprep.subr.mxu0 0.0
    %5499 = vmatpush2.msra.mxu0 0.0
    %5500 = vmatprep.mubr.f32.mxu0 0.0
    %5501 = vmatmul.mubr.f32.gmra.mxu0 %v5419
    %v5502 = vpop.f32.mrf.mxu0
    %v5503 = vadd.f32 %v5416, %v5502
    %v5504 = vpop.f32.mrf.mxu0
    %5505 = vmatprep.mubr.f32.mxu0 0.0
    %5506 = vmatmul.mubr.f32.gmra.mxu0 %v5422
    %v5507 = vpop.f32.mrf.mxu0
    %v5508 = vadd.f32 %v5416, %v5507
    %v5509 = vpop.f32.mrf.mxu0
    %5510 = vmatprep.mubr.f32.mxu0 0.0
    %5511 = vmatmul.mubr.f32.gmra.mxu0 %v5425
    %v5512 = vpop.f32.mrf.mxu0
    %v5513 = vadd.f32 %v5416, %v5512
    %v5514 = vpop.f32.mrf.mxu0
    %5515 = vmatprep.mubr.f32.mxu0 0.0
    %5516 = vmatmul.mubr.f32.gmra.mxu0 %v5428
    %v5517 = vpop.f32.mrf.mxu0
    %v5518 = vadd.f32 %v5416, %v5517
    %v5519 = vpop.f32.mrf.mxu0
    %5520 = vmatprep.mubr.f32.mxu0 0.0
    %5521 = vmatmul.mubr.f32.gmra.mxu0 %v5431
    %v5522 = vpop.f32.mrf.mxu0
    %v5523 = vadd.f32 %v5416, %v5522
    %v5524 = vpop.f32.mrf.mxu0
    %5525 = vmatprep.mubr.f32.mxu0 0.0
    %5526 = vmatmul.mubr.f32.gmra.mxu0 %v5434
    %v5527 = vpop.f32.mrf.mxu0
    %v5528 = vadd.f32 %v5416, %v5527
    %v5529 = vpop.f32.mrf.mxu0
    %5530 = vmatprep.mubr.f32.mxu0 0.0
    %5531 = vmatmul.mubr.f32.gmra.mxu0 %v5326
    %v5532 = vpop.f32.mrf.mxu0
    %v5533 = vadd.f32 %v5416, %v5532
    %v5534 = vpop.f32.mrf.mxu0
    %5535 = vdwg.mxu0
    %v5537 = vsel %vm473, %v5395, 0
    %v5540 = vsel %vm473, %v5503, 0
    %v5543 = vsel %vm473, %v5508, 0
    %v5546 = vsel %vm473, %v5513, 0
    %v5549 = vsel %vm473, %v5518, 0
    %v5552 = vsel %vm473, %v5523, 0
    %v5555 = vsel %vm473, %v5528, 0
    %v5558 = vsel %vm473, %v5533, 0
    %5560 = vmatprep.subr.mxu0 0.0
    %5561 = vmatpush1.xpose.msra.mxu0 0.0
    %5562 = vmatprep.subr.mxu0 0.0
    %5563 = vmatpush1.xpose.msra.mxu0 0.0
    %5564 = vmatprep.subr.mxu0 0.0
    %5565 = vmatpush1.xpose.msra.mxu0 0.0
    %5566 = vmatprep.subr.mxu0 0.0
    %5567 = vmatpush1.xpose.msra.mxu0 0.0
    %5568 = vmatprep.subr.mxu0 0.0
    %5569 = vmatpush1.xpose.msra.mxu0 0.0
    %5570 = vmatprep.subr.mxu0 0.0
    %5571 = vmatpush1.xpose.msra.mxu0 0.0
    %5572 = vmatprep.subr.mxu0 0.0
    %5573 = vmatpush1.xpose.msra.mxu0 0.0
    %5574 = vmatprep.subr.mxu0 0.0
    %5575 = vmatpush1.xpose.msra.mxu0 0.0
    %5576 = vmatprep.subr.mxu0 0.0
    %5577 = vmatpush1.xpose.msra.mxu0 0.0
    %5578 = vmatprep.subr.mxu0 0.0
    %5579 = vmatpush1.xpose.msra.mxu0 %v5558
    %5580 = vmatprep.subr.mxu0 0.0
    %5581 = vmatpush1.xpose.msra.mxu0 %v5555
    %5582 = vmatprep.subr.mxu0 0.0
    %5583 = vmatpush1.xpose.msra.mxu0 %v5552
    %5584 = vmatprep.subr.mxu0 0.0
    %5585 = vmatpush1.xpose.msra.mxu0 %v5549
    %5586 = vmatprep.subr.mxu0 0.0
    %5587 = vmatpush1.xpose.msra.mxu0 %v5546
    %5588 = vmatprep.subr.mxu0 0.0
    %5589 = vmatpush1.xpose.msra.mxu0 %v5543
    %5590 = vmatprep.subr.mxu0 0.0
    %5591 = vmatpush1.xpose.msra.mxu0 %v5540
    %5592 = vmatprep.subr.mxu0 0.0
    %5593 = vmatpush2.xpose.msra.mxu0 0.0
    %5594 = vmatprep.subr.mxu0 0.0
    %5595 = vmatpush2.xpose.msra.mxu0 0.0
    %5596 = vmatprep.subr.mxu0 0.0
    %5597 = vmatpush2.xpose.msra.mxu0 0.0
    %5598 = vmatprep.subr.mxu0 0.0
    %5599 = vmatpush2.xpose.msra.mxu0 0.0
    %5600 = vmatprep.subr.mxu0 0.0
    %5601 = vmatpush2.xpose.msra.mxu0 0.0
    %5602 = vmatprep.subr.mxu0 0.0
    %5603 = vmatpush2.xpose.msra.mxu0 0.0
    %5604 = vmatprep.subr.mxu0 0.0
    %5605 = vmatpush2.xpose.msra.mxu0 0.0
    %5606 = vmatprep.subr.mxu0 0.0
    %5607 = vmatpush2.xpose.msra.mxu0 0.0
    %5608 = vmatprep.subr.mxu0 0.0
    %5609 = vmatpush2.xpose.msra.mxu0 0.0
    %5610 = vmatprep.subr.mxu0 0.0
    %5611 = vmatpush2.xpose.msra.mxu0 0.0
    %5612 = vmatprep.subr.mxu0 0.0
    %5613 = vmatpush2.xpose.msra.mxu0 0.0
    %5614 = vmatprep.subr.mxu0 0.0
    %5615 = vmatpush2.xpose.msra.mxu0 0.0
    %5616 = vmatprep.subr.mxu0 0.0
    %5617 = vmatpush2.xpose.msra.mxu0 0.0
    %5618 = vmatprep.subr.mxu0 0.0
    %5619 = vmatpush2.xpose.msra.mxu0 0.0
    %5620 = vmatprep.subr.mxu0 0.0
    %5621 = vmatpush2.xpose.msra.mxu0 0.0
    %5622 = vmatprep.subr.mxu0 0.0
    %5623 = vmatpush2.xpose.msra.mxu0 0.0
    %5624 = vmatprep.mubr.f32.mxu0 0.0
    %5625 = vmatmul.mubr.f32.gmra.mxu0 %v5537
    %v5626 = vpop.f32.mrf.mxu0
    %v5627 = vadd.f32 %v5318, %v5626
    %v5628 = vpop.f32.mrf.mxu0
    %5629 = vdwg.mxu0
    %v5630 = vsel %vm602, %v5627, -inf
    %5631 = vmax.xlane.f32.xlu0 %v5630
    %v5632 = vpop.xlane.xlu0 %5631
    %v5633 = vsub.f32 %v5627, %v5632
    %v5634 = vmul.f32 %v5633, 1.442695
    %v5635 = vpow.pop %v5634
    %v5636 = vsel %vm602, %v5635, 0.0
    %5637 = vadd.xlane.f32.xlu0 %v5636
    %v5638 = vpop.xlane.xlu0 %5637
    %v5639 = vrcp.pop %v5638
    %v5640 = vmul.f32 %v5635, %v5639
    %5641 = vrot.lane.b32.xlu0 %v5503, 96
    %v5642 = vpop.permute.xlu0 %5641
    %5643 = vrot.lane.b32.xlu0 %v5508, 96
    %v5644 = vpop.permute.xlu0 %5643
    %5645 = vrot.lane.b32.xlu0 %v5513, 96
    %v5646 = vpop.permute.xlu0 %5645
    %5647 = vrot.lane.b32.xlu0 %v5518, 96
    %v5648 = vpop.permute.xlu0 %5647
    %5649 = vrot.lane.b32.xlu0 %v5523, 96
    %v5650 = vpop.permute.xlu0 %5649
    %5651 = vrot.lane.b32.xlu0 %v5528, 96
    %v5652 = vpop.permute.xlu0 %5651
    %5653 = vrot.lane.b32.xlu0 %v5533, 96
    %v5654 = vpop.permute.xlu0 %5653
    %v5663 = vsel %vm602, %v5640, 0
    %5665 = vmatprep.subr.mxu0 0.0
    %5666 = vmatpush1.msra.mxu0 0.0
    %5667 = vmatprep.subr.mxu0 0.0
    %5668 = vmatpush1.msra.mxu0 0.0
    %5669 = vmatprep.subr.mxu0 0.0
    %5670 = vmatpush1.msra.mxu0 0.0
    %5671 = vmatprep.subr.mxu0 0.0
    %5672 = vmatpush1.msra.mxu0 0.0
    %5673 = vmatprep.subr.mxu0 0.0
    %5674 = vmatpush1.msra.mxu0 0.0
    %5675 = vmatprep.subr.mxu0 0.0
    %5676 = vmatpush1.msra.mxu0 0.0
    %5677 = vmatprep.subr.mxu0 0.0
    %5678 = vmatpush1.msra.mxu0 0.0
    %5679 = vmatprep.subr.mxu0 0.0
    %5680 = vmatpush1.msra.mxu0 0.0
    %5681 = vmatprep.subr.mxu0 0.0
    %5682 = vmatpush1.msra.mxu0 0.0
    %5683 = vmatprep.subr.mxu0 0.0
    %5684 = vmatpush1.msra.mxu0 %v5654
    %5685 = vmatprep.subr.mxu0 0.0
    %5686 = vmatpush1.msra.mxu0 %v5652
    %5687 = vmatprep.subr.mxu0 0.0
    %5688 = vmatpush1.msra.mxu0 %v5650
    %5689 = vmatprep.subr.mxu0 0.0
    %5690 = vmatpush1.msra.mxu0 %v5648
    %5691 = vmatprep.subr.mxu0 0.0
    %5692 = vmatpush1.msra.mxu0 %v5646
    %5693 = vmatprep.subr.mxu0 0.0
    %5694 = vmatpush1.msra.mxu0 %v5644
    %5695 = vmatprep.subr.mxu0 0.0
    %5696 = vmatpush1.msra.mxu0 %v5642
    %5697 = vmatprep.subr.mxu0 0.0
    %5698 = vmatpush2.msra.mxu0 0.0
    %5699 = vmatprep.subr.mxu0 0.0
    %5700 = vmatpush2.msra.mxu0 0.0
    %5701 = vmatprep.subr.mxu0 0.0
    %5702 = vmatpush2.msra.mxu0 0.0
    %5703 = vmatprep.subr.mxu0 0.0
    %5704 = vmatpush2.msra.mxu0 0.0
    %5705 = vmatprep.subr.mxu0 0.0
    %5706 = vmatpush2.msra.mxu0 0.0
    %5707 = vmatprep.subr.mxu0 0.0
    %5708 = vmatpush2.msra.mxu0 0.0
    %5709 = vmatprep.subr.mxu0 0.0
    %5710 = vmatpush2.msra.mxu0 0.0
    %5711 = vmatprep.subr.mxu0 0.0
    %5712 = vmatpush2.msra.mxu0 0.0
    %5713 = vmatprep.subr.mxu0 0.0
    %5714 = vmatpush2.msra.mxu0 0.0
    %5715 = vmatprep.subr.mxu0 0.0
    %5716 = vmatpush2.msra.mxu0 0.0
    %5717 = vmatprep.subr.mxu0 0.0
    %5718 = vmatpush2.msra.mxu0 0.0
    %5719 = vmatprep.subr.mxu0 0.0
    %5720 = vmatpush2.msra.mxu0 0.0
    %5721 = vmatprep.subr.mxu0 0.0
    %5722 = vmatpush2.msra.mxu0 0.0
    %5723 = vmatprep.subr.mxu0 0.0
    %5724 = vmatpush2.msra.mxu0 0.0
    %5725 = vmatprep.subr.mxu0 0.0
    %5726 = vmatpush2.msra.mxu0 0.0
    %5727 = vmatprep.subr.mxu0 0.0
    %5728 = vmatpush2.msra.mxu0 0.0
    %5729 = vmatprep.mubr.f32.mxu0 0.0
    %5730 = vmatmul.mubr.f32.gmra.mxu0 %v5663
    %v5731 = vpop.f32.mrf.mxu0
    %v5732 = vadd.f32 0.0, %v5731
    %v5733 = vpop.f32.mrf.mxu0
    %5734 = vdwg.mxu0
    %v5736 = vsel %vm473, %v5732, 0
    %5738 = vmatprep.subr.mxu0 0.0
    %5739 = vmatpush1.msra.mxu0 0.0
    %5740 = vmatprep.subr.mxu0 0.0
    %5741 = vmatpush1.msra.mxu0 0.0
    %5742 = vmatprep.subr.mxu0 0.0
    %5743 = vmatpush1.msra.mxu0 0.0
    %5744 = vmatprep.subr.mxu0 0.0
    %5745 = vmatpush1.msra.mxu0 0.0
    %5746 = vmatprep.subr.mxu0 0.0
    %5747 = vmatpush1.msra.mxu0 0.0
    %5748 = vmatprep.subr.mxu0 0.0
    %5749 = vmatpush1.msra.mxu0 0.0
    %5750 = vmatprep.subr.mxu0 0.0
    %5751 = vmatpush1.msra.mxu0 0.0
    %5752 = vmatprep.subr.mxu0 0.0
    %5753 = vmatpush1.msra.mxu0 0.0
    %5754 = vmatprep.subr.mxu0 0.0
    %5755 = vmatpush1.msra.mxu0 0.0
    %5756 = vmatprep.subr.mxu0 0.0
    %5757 = vmatpush1.msra.mxu0 0.0
    %5758 = vmatprep.subr.mxu0 0.0
    %5759 = vmatpush1.msra.mxu0 0.0
    %5760 = vmatprep.subr.mxu0 0.0
    %5761 = vmatpush1.msra.mxu0 0.0
    %5762 = vmatprep.subr.mxu0 0.0
    %5763 = vmatpush1.msra.mxu0 0.0
    %5764 = vmatprep.subr.mxu0 0.0
    %5765 = vmatpush1.msra.mxu0 0.0
    %5766 = vmatprep.subr.mxu0 0.0
    %5767 = vmatpush1.msra.mxu0 0.0
    %5768 = vmatprep.subr.mxu0 0.0
    %5769 = vmatpush1.msra.mxu0 %v5284
    %5770 = vmatprep.subr.mxu0 0.0
    %5771 = vmatpush2.msra.mxu0 0.0
    %5772 = vmatprep.subr.mxu0 0.0
    %5773 = vmatpush2.msra.mxu0 0.0
    %5774 = vmatprep.subr.mxu0 0.0
    %5775 = vmatpush2.msra.mxu0 0.0
    %5776 = vmatprep.subr.mxu0 0.0
    %5777 = vmatpush2.msra.mxu0 0.0
    %5778 = vmatprep.subr.mxu0 0.0
    %5779 = vmatpush2.msra.mxu0 0.0
    %5780 = vmatprep.subr.mxu0 0.0
    %5781 = vmatpush2.msra.mxu0 0.0
    %5782 = vmatprep.subr.mxu0 0.0
    %5783 = vmatpush2.msra.mxu0 0.0
    %5784 = vmatprep.subr.mxu0 0.0
    %5785 = vmatpush2.msra.mxu0 0.0
    %5786 = vmatprep.subr.mxu0 0.0
    %5787 = vmatpush2.msra.mxu0 0.0
    %5788 = vmatprep.subr.mxu0 0.0
    %5789 = vmatpush2.msra.mxu0 0.0
    %5790 = vmatprep.subr.mxu0 0.0
    %5791 = vmatpush2.msra.mxu0 0.0
    %5792 = vmatprep.subr.mxu0 0.0
    %5793 = vmatpush2.msra.mxu0 0.0
    %5794 = vmatprep.subr.mxu0 0.0
    %5795 = vmatpush2.msra.mxu0 0.0
    %5796 = vmatprep.subr.mxu0 0.0
    %5797 = vmatpush2.msra.mxu0 0.0
    %5798 = vmatprep.subr.mxu0 0.0
    %5799 = vmatpush2.msra.mxu0 0.0
    %5800 = vmatprep.subr.mxu0 0.0
    %5801 = vmatpush2.msra.mxu0 0.0
    %5802 = vmatprep.mubr.f32.mxu0 0.0
    %5803 = vmatmul.mubr.f32.gmra.mxu0 %v5736
    %v5804 = vpop.f32.mrf.mxu0
    %v5805 = vadd.f32 0.0, %v5804
    %v5806 = vpop.f32.mrf.mxu0
    %5807 = vdwg.mxu0
    %v5808 = vlaneseq
    %v5809 = vshrl.u32 %v5808, 7
    %v5810 = vsub.s32 0, %v5809
    %v5811 = vrot.slane %v5288, %v5810
    %v5812 = vadd.f32 %v5811, %v5805
    %5813 = vrot.lane.b32.xlu0 %v5395, 120
    %v5814 = vpop.permute.xlu0 %5813
    %5815 = vrot.lane.b32.xlu0 %v5503, 120
    %v5816 = vpop.permute.xlu0 %5815
    %5817 = vrot.lane.b32.xlu0 %v5508, 120
    %v5818 = vpop.permute.xlu0 %5817
    %5819 = vrot.lane.b32.xlu0 %v5513, 120
    %v5820 = vpop.permute.xlu0 %5819
    %5821 = vrot.lane.b32.xlu0 %v5518, 120
    %v5822 = vpop.permute.xlu0 %5821
    %5823 = vrot.lane.b32.xlu0 %v5523, 120
    %v5824 = vpop.permute.xlu0 %5823
    %5825 = vrot.lane.b32.xlu0 %v5528, 120
    %v5826 = vpop.permute.xlu0 %5825
    %5827 = vrot.lane.b32.xlu0 %v5533, 120
    %v5828 = vpop.permute.xlu0 %5827
    %v5829 = vsel %vm473, %v5814, 0
    %v5831 = vsel %vm473, %v5816, 0
    %v5833 = vsel %vm473, %v5818, 0
    %v5835 = vsel %vm473, %v5820, 0
    %v5837 = vsel %vm473, %v5822, 0
    %v5839 = vsel %vm473, %v5824, 0
    %v5841 = vsel %vm473, %v5826, 0
    %v5843 = vsel %vm473, %v5828, 0
    %5845 = vmatprep.subr.mxu0 0.0
    %5846 = vmatpush1.xpose.msra.mxu0 0.0
    %5847 = vmatprep.subr.mxu0 0.0
    %5848 = vmatpush1.xpose.msra.mxu0 0.0
    %5849 = vmatprep.subr.mxu0 0.0
    %5850 = vmatpush1.xpose.msra.mxu0 0.0
    %5851 = vmatprep.subr.mxu0 0.0
    %5852 = vmatpush1.xpose.msra.mxu0 0.0
    %5853 = vmatprep.subr.mxu0 0.0
    %5854 = vmatpush1.xpose.msra.mxu0 0.0
    %5855 = vmatprep.subr.mxu0 0.0
    %5856 = vmatpush1.xpose.msra.mxu0 0.0
    %5857 = vmatprep.subr.mxu0 0.0
    %5858 = vmatpush1.xpose.msra.mxu0 0.0
    %5859 = vmatprep.subr.mxu0 0.0
    %5860 = vmatpush1.xpose.msra.mxu0 0.0
    %5861 = vmatprep.subr.mxu0 0.0
    %5862 = vmatpush1.xpose.msra.mxu0 0.0
    %5863 = vmatprep.subr.mxu0 0.0
    %5864 = vmatpush1.xpose.msra.mxu0 %v5843
    %5865 = vmatprep.subr.mxu0 0.0
    %5866 = vmatpush1.xpose.msra.mxu0 %v5841
    %5867 = vmatprep.subr.mxu0 0.0
    %5868 = vmatpush1.xpose.msra.mxu0 %v5839
    %5869 = vmatprep.subr.mxu0 0.0
    %5870 = vmatpush1.xpose.msra.mxu0 %v5837
    %5871 = vmatprep.subr.mxu0 0.0
    %5872 = vmatpush1.xpose.msra.mxu0 %v5835
    %5873 = vmatprep.subr.mxu0 0.0
    %5874 = vmatpush1.xpose.msra.mxu0 %v5833
    %5875 = vmatprep.subr.mxu0 0.0
    %5876 = vmatpush1.xpose.msra.mxu0 %v5831
    %5877 = vmatprep.subr.mxu0 0.0
    %5878 = vmatpush2.xpose.msra.mxu0 0.0
    %5879 = vmatprep.subr.mxu0 0.0
    %5880 = vmatpush2.xpose.msra.mxu0 0.0
    %5881 = vmatprep.subr.mxu0 0.0
    %5882 = vmatpush2.xpose.msra.mxu0 0.0
    %5883 = vmatprep.subr.mxu0 0.0
    %5884 = vmatpush2.xpose.msra.mxu0 0.0
    %5885 = vmatprep.subr.mxu0 0.0
    %5886 = vmatpush2.xpose.msra.mxu0 0.0
    %5887 = vmatprep.subr.mxu0 0.0
    %5888 = vmatpush2.xpose.msra.mxu0 0.0
    %5889 = vmatprep.subr.mxu0 0.0
    %5890 = vmatpush2.xpose.msra.mxu0 0.0
    %5891 = vmatprep.subr.mxu0 0.0
    %5892 = vmatpush2.xpose.msra.mxu0 0.0
    %5893 = vmatprep.subr.mxu0 0.0
    %5894 = vmatpush2.xpose.msra.mxu0 0.0
    %5895 = vmatprep.subr.mxu0 0.0
    %5896 = vmatpush2.xpose.msra.mxu0 0.0
    %5897 = vmatprep.subr.mxu0 0.0
    %5898 = vmatpush2.xpose.msra.mxu0 0.0
    %5899 = vmatprep.subr.mxu0 0.0
    %5900 = vmatpush2.xpose.msra.mxu0 0.0
    %5901 = vmatprep.subr.mxu0 0.0
    %5902 = vmatpush2.xpose.msra.mxu0 0.0
    %5903 = vmatprep.subr.mxu0 0.0
    %5904 = vmatpush2.xpose.msra.mxu0 0.0
    %5905 = vmatprep.subr.mxu0 0.0
    %5906 = vmatpush2.xpose.msra.mxu0 0.0
    %5907 = vmatprep.subr.mxu0 0.0
    %5908 = vmatpush2.xpose.msra.mxu0 0.0
    %5909 = vmatprep.mubr.f32.mxu0 0.0
    %5910 = vmatmul.mubr.f32.gmra.mxu0 %v5829
    %v5911 = vpop.f32.mrf.mxu0
    %v5912 = vadd.f32 %v5318, %v5911
    %v5913 = vpop.f32.mrf.mxu0
    %5914 = vdwg.mxu0
    %v5915 = vsel %vm602, %v5912, -inf
    %5916 = vmax.xlane.f32.xlu0 %v5915
    %v5917 = vpop.xlane.xlu0 %5916
    %v5918 = vsub.f32 %v5912, %v5917
    %v5919 = vmul.f32 %v5918, 1.442695
    %v5920 = vpow.pop %v5919
    %v5921 = vsel %vm602, %v5920, 0.0
    %5922 = vadd.xlane.f32.xlu0 %v5921
    %v5923 = vpop.xlane.xlu0 %5922
    %v5924 = vrcp.pop %v5923
    %v5925 = vmul.f32 %v5920, %v5924
    %5926 = vrot.lane.b32.xlu0 %v5503, 88
    %v5927 = vpop.permute.xlu0 %5926
    %5928 = vrot.lane.b32.xlu0 %v5508, 88
    %v5929 = vpop.permute.xlu0 %5928
    %5930 = vrot.lane.b32.xlu0 %v5513, 88
    %v5931 = vpop.permute.xlu0 %5930
    %5932 = vrot.lane.b32.xlu0 %v5518, 88
    %v5933 = vpop.permute.xlu0 %5932
    %5934 = vrot.lane.b32.xlu0 %v5523, 88
    %v5935 = vpop.permute.xlu0 %5934
    %5936 = vrot.lane.b32.xlu0 %v5528, 88
    %v5937 = vpop.permute.xlu0 %5936
    %5938 = vrot.lane.b32.xlu0 %v5533, 88
    %v5939 = vpop.permute.xlu0 %5938
    %v5948 = vsel %vm602, %v5925, 0
    %5950 = vmatprep.subr.mxu0 0.0
    %5951 = vmatpush1.msra.mxu0 0.0
    %5952 = vmatprep.subr.mxu0 0.0
    %5953 = vmatpush1.msra.mxu0 0.0
    %5954 = vmatprep.subr.mxu0 0.0
    %5955 = vmatpush1.msra.mxu0 0.0
    %5956 = vmatprep.subr.mxu0 0.0
    %5957 = vmatpush1.msra.mxu0 0.0
    %5958 = vmatprep.subr.mxu0 0.0
    %5959 = vmatpush1.msra.mxu0 0.0
    %5960 = vmatprep.subr.mxu0 0.0
    %5961 = vmatpush1.msra.mxu0 0.0
    %5962 = vmatprep.subr.mxu0 0.0
    %5963 = vmatpush1.msra.mxu0 0.0
    %5964 = vmatprep.subr.mxu0 0.0
    %5965 = vmatpush1.msra.mxu0 0.0
    %5966 = vmatprep.subr.mxu0 0.0
    %5967 = vmatpush1.msra.mxu0 0.0
    %5968 = vmatprep.subr.mxu0 0.0
    %5969 = vmatpush1.msra.mxu0 %v5939
    %5970 = vmatprep.subr.mxu0 0.0
    %5971 = vmatpush1.msra.mxu0 %v5937
    %5972 = vmatprep.subr.mxu0 0.0
    %5973 = vmatpush1.msra.mxu0 %v5935
    %5974 = vmatprep.subr.mxu0 0.0
    %5975 = vmatpush1.msra.mxu0 %v5933
    %5976 = vmatprep.subr.mxu0 0.0
    %5977 = vmatpush1.msra.mxu0 %v5931
    %5978 = vmatprep.subr.mxu0 0.0
    %5979 = vmatpush1.msra.mxu0 %v5929
    %5980 = vmatprep.subr.mxu0 0.0
    %5981 = vmatpush1.msra.mxu0 %v5927
    %5982 = vmatprep.subr.mxu0 0.0
    %5983 = vmatpush2.msra.mxu0 0.0
    %5984 = vmatprep.subr.mxu0 0.0
    %5985 = vmatpush2.msra.mxu0 0.0
    %5986 = vmatprep.subr.mxu0 0.0
    %5987 = vmatpush2.msra.mxu0 0.0
    %5988 = vmatprep.subr.mxu0 0.0
    %5989 = vmatpush2.msra.mxu0 0.0
    %5990 = vmatprep.subr.mxu0 0.0
    %5991 = vmatpush2.msra.mxu0 0.0
    %5992 = vmatprep.subr.mxu0 0.0
    %5993 = vmatpush2.msra.mxu0 0.0
    %5994 = vmatprep.subr.mxu0 0.0
    %5995 = vmatpush2.msra.mxu0 0.0
    %5996 = vmatprep.subr.mxu0 0.0
    %5997 = vmatpush2.msra.mxu0 0.0
    %5998 = vmatprep.subr.mxu0 0.0
    %5999 = vmatpush2.msra.mxu0 0.0
    %6000 = vmatprep.subr.mxu0 0.0
    %6001 = vmatpush2.msra.mxu0 0.0
    %6002 = vmatprep.subr.mxu0 0.0
    %6003 = vmatpush2.msra.mxu0 0.0
    %6004 = vmatprep.subr.mxu0 0.0
    %6005 = vmatpush2.msra.mxu0 0.0
    %6006 = vmatprep.subr.mxu0 0.0
    %6007 = vmatpush2.msra.mxu0 0.0
    %6008 = vmatprep.subr.mxu0 0.0
    %6009 = vmatpush2.msra.mxu0 0.0
    %6010 = vmatprep.subr.mxu0 0.0
    %6011 = vmatpush2.msra.mxu0 0.0
    %6012 = vmatprep.subr.mxu0 0.0
    %6013 = vmatpush2.msra.mxu0 0.0
    %6014 = vmatprep.mubr.f32.mxu0 0.0
    %6015 = vmatmul.mubr.f32.gmra.mxu0 %v5948
    %v6016 = vpop.f32.mrf.mxu0
    %v6017 = vadd.f32 0.0, %v6016
    %v6018 = vpop.f32.mrf.mxu0
    %6019 = vdwg.mxu0
    %v6021 = vsel %vm473, %v6017, 0
    %6023 = vmatprep.subr.mxu0 0.0
    %6024 = vmatpush1.msra.mxu0 0.0
    %6025 = vmatprep.subr.mxu0 0.0
    %6026 = vmatpush1.msra.mxu0 0.0
    %6027 = vmatprep.subr.mxu0 0.0
    %6028 = vmatpush1.msra.mxu0 0.0
    %6029 = vmatprep.subr.mxu0 0.0
    %6030 = vmatpush1.msra.mxu0 0.0
    %6031 = vmatprep.subr.mxu0 0.0
    %6032 = vmatpush1.msra.mxu0 0.0
    %6033 = vmatprep.subr.mxu0 0.0
    %6034 = vmatpush1.msra.mxu0 0.0
    %6035 = vmatprep.subr.mxu0 0.0
    %6036 = vmatpush1.msra.mxu0 0.0
    %6037 = vmatprep.subr.mxu0 0.0
    %6038 = vmatpush1.msra.mxu0 0.0
    %6039 = vmatprep.subr.mxu0 0.0
    %6040 = vmatpush1.msra.mxu0 0.0
    %6041 = vmatprep.subr.mxu0 0.0
    %6042 = vmatpush1.msra.mxu0 0.0
    %6043 = vmatprep.subr.mxu0 0.0
    %6044 = vmatpush1.msra.mxu0 0.0
    %6045 = vmatprep.subr.mxu0 0.0
    %6046 = vmatpush1.msra.mxu0 0.0
    %6047 = vmatprep.subr.mxu0 0.0
    %6048 = vmatpush1.msra.mxu0 0.0
    %6049 = vmatprep.subr.mxu0 0.0
    %6050 = vmatpush1.msra.mxu0 0.0
    %6051 = vmatprep.subr.mxu0 0.0
    %6052 = vmatpush1.msra.mxu0 0.0
    %6053 = vmatprep.subr.mxu0 0.0
    %6054 = vmatpush1.msra.mxu0 %v5285
    %6055 = vmatprep.subr.mxu0 0.0
    %6056 = vmatpush2.msra.mxu0 0.0
    %6057 = vmatprep.subr.mxu0 0.0
    %6058 = vmatpush2.msra.mxu0 0.0
    %6059 = vmatprep.subr.mxu0 0.0
    %6060 = vmatpush2.msra.mxu0 0.0
    %6061 = vmatprep.subr.mxu0 0.0
    %6062 = vmatpush2.msra.mxu0 0.0
    %6063 = vmatprep.subr.mxu0 0.0
    %6064 = vmatpush2.msra.mxu0 0.0
    %6065 = vmatprep.subr.mxu0 0.0
    %6066 = vmatpush2.msra.mxu0 0.0
    %6067 = vmatprep.subr.mxu0 0.0
    %6068 = vmatpush2.msra.mxu0 0.0
    %6069 = vmatprep.subr.mxu0 0.0
    %6070 = vmatpush2.msra.mxu0 0.0
    %6071 = vmatprep.subr.mxu0 0.0
    %6072 = vmatpush2.msra.mxu0 0.0
    %6073 = vmatprep.subr.mxu0 0.0
    %6074 = vmatpush2.msra.mxu0 0.0
    %6075 = vmatprep.subr.mxu0 0.0
    %6076 = vmatpush2.msra.mxu0 0.0
    %6077 = vmatprep.subr.mxu0 0.0
    %6078 = vmatpush2.msra.mxu0 0.0
    %6079 = vmatprep.subr.mxu0 0.0
    %6080 = vmatpush2.msra.mxu0 0.0
    %6081 = vmatprep.subr.mxu0 0.0
    %6082 = vmatpush2.msra.mxu0 0.0
    %6083 = vmatprep.subr.mxu0 0.0
    %6084 = vmatpush2.msra.mxu0 0.0
    %6085 = vmatprep.subr.mxu0 0.0
    %6086 = vmatpush2.msra.mxu0 0.0
    %6087 = vmatprep.mubr.f32.mxu0 0.0
    %6088 = vmatmul.mubr.f32.gmra.mxu0 %v6021
    %v6089 = vpop.f32.mrf.mxu0
    %v6090 = vadd.f32 0.0, %v6089
    %v6091 = vpop.f32.mrf.mxu0
    %6092 = vdwg.mxu0
    %v6093 = vadd.f32 %v5812, %v6090
    %6094 = vrot.lane.b32.xlu0 %v5395, 112
    %v6095 = vpop.permute.xlu0 %6094
    %6096 = vrot.lane.b32.xlu0 %v5503, 112
    %v6097 = vpop.permute.xlu0 %6096
    %6098 = vrot.lane.b32.xlu0 %v5508, 112
    %v6099 = vpop.permute.xlu0 %6098
    %6100 = vrot.lane.b32.xlu0 %v5513, 112
    %v6101 = vpop.permute.xlu0 %6100
    %6102 = vrot.lane.b32.xlu0 %v5518, 112
    %v6103 = vpop.permute.xlu0 %6102
    %6104 = vrot.lane.b32.xlu0 %v5523, 112
    %v6105 = vpop.permute.xlu0 %6104
    %6106 = vrot.lane.b32.xlu0 %v5528, 112
    %v6107 = vpop.permute.xlu0 %6106
    %6108 = vrot.lane.b32.xlu0 %v5533, 112
    %v6109 = vpop.permute.xlu0 %6108
    %v6110 = vsel %vm473, %v6095, 0
    %v6112 = vsel %vm473, %v6097, 0
    %v6114 = vsel %vm473, %v6099, 0
    %v6116 = vsel %vm473, %v6101, 0
    %v6118 = vsel %vm473, %v6103, 0
    %v6120 = vsel %vm473, %v6105, 0
    %v6122 = vsel %vm473, %v6107, 0
    %v6124 = vsel %vm473, %v6109, 0
    %6126 = vmatprep.subr.mxu0 0.0
    %6127 = vmatpush1.xpose.msra.mxu0 0.0
    %6128 = vmatprep.subr.mxu0 0.0
    %6129 = vmatpush1.xpose.msra.mxu0 0.0
    %6130 = vmatprep.subr.mxu0 0.0
    %6131 = vmatpush1.xpose.msra.mxu0 0.0
    %6132 = vmatprep.subr.mxu0 0.0
    %6133 = vmatpush1.xpose.msra.mxu0 0.0
    %6134 = vmatprep.subr.mxu0 0.0
    %6135 = vmatpush1.xpose.msra.mxu0 0.0
    %6136 = vmatprep.subr.mxu0 0.0
    %6137 = vmatpush1.xpose.msra.mxu0 0.0
    %6138 = vmatprep.subr.mxu0 0.0
    %6139 = vmatpush1.xpose.msra.mxu0 0.0
    %6140 = vmatprep.subr.mxu0 0.0
    %6141 = vmatpush1.xpose.msra.mxu0 0.0
    %6142 = vmatprep.subr.mxu0 0.0
    %6143 = vmatpush1.xpose.msra.mxu0 0.0
    %6144 = vmatprep.subr.mxu0 0.0
    %6145 = vmatpush1.xpose.msra.mxu0 %v6124
    %6146 = vmatprep.subr.mxu0 0.0
    %6147 = vmatpush1.xpose.msra.mxu0 %v6122
    %6148 = vmatprep.subr.mxu0 0.0
    %6149 = vmatpush1.xpose.msra.mxu0 %v6120
    %6150 = vmatprep.subr.mxu0 0.0
    %6151 = vmatpush1.xpose.msra.mxu0 %v6118
    %6152 = vmatprep.subr.mxu0 0.0
    %6153 = vmatpush1.xpose.msra.mxu0 %v6116
    %6154 = vmatprep.subr.mxu0 0.0
    %6155 = vmatpush1.xpose.msra.mxu0 %v6114
    %6156 = vmatprep.subr.mxu0 0.0
    %6157 = vmatpush1.xpose.msra.mxu0 %v6112
    %6158 = vmatprep.subr.mxu0 0.0
    %6159 = vmatpush2.xpose.msra.mxu0 0.0
    %6160 = vmatprep.subr.mxu0 0.0
    %6161 = vmatpush2.xpose.msra.mxu0 0.0
    %6162 = vmatprep.subr.mxu0 0.0
    %6163 = vmatpush2.xpose.msra.mxu0 0.0
    %6164 = vmatprep.subr.mxu0 0.0
    %6165 = vmatpush2.xpose.msra.mxu0 0.0
    %6166 = vmatprep.subr.mxu0 0.0
    %6167 = vmatpush2.xpose.msra.mxu0 0.0
    %6168 = vmatprep.subr.mxu0 0.0
    %6169 = vmatpush2.xpose.msra.mxu0 0.0
    %6170 = vmatprep.subr.mxu0 0.0
    %6171 = vmatpush2.xpose.msra.mxu0 0.0
    %6172 = vmatprep.subr.mxu0 0.0
    %6173 = vmatpush2.xpose.msra.mxu0 0.0
    %6174 = vmatprep.subr.mxu0 0.0
    %6175 = vmatpush2.xpose.msra.mxu0 0.0
    %6176 = vmatprep.subr.mxu0 0.0
    %6177 = vmatpush2.xpose.msra.mxu0 0.0
    %6178 = vmatprep.subr.mxu0 0.0
    %6179 = vmatpush2.xpose.msra.mxu0 0.0
    %6180 = vmatprep.subr.mxu0 0.0
    %6181 = vmatpush2.xpose.msra.mxu0 0.0
    %6182 = vmatprep.subr.mxu0 0.0
    %6183 = vmatpush2.xpose.msra.mxu0 0.0
    %6184 = vmatprep.subr.mxu0 0.0
    %6185 = vmatpush2.xpose.msra.mxu0 0.0
    %6186 = vmatprep.subr.mxu0 0.0
    %6187 = vmatpush2.xpose.msra.mxu0 0.0
    %6188 = vmatprep.subr.mxu0 0.0
    %6189 = vmatpush2.xpose.msra.mxu0 0.0
    %6190 = vmatprep.mubr.f32.mxu0 0.0
    %6191 = vmatmul.mubr.f32.gmra.mxu0 %v6110
    %v6192 = vpop.f32.mrf.mxu0
    %v6193 = vadd.f32 %v5318, %v6192
    %v6194 = vpop.f32.mrf.mxu0
    %6195 = vdwg.mxu0
    %v6196 = vsel %vm602, %v6193, -inf
    %6197 = vmax.xlane.f32.xlu0 %v6196
    %v6198 = vpop.xlane.xlu0 %6197
    %v6199 = vsub.f32 %v6193, %v6198
    %v6200 = vmul.f32 %v6199, 1.442695
    %v6201 = vpow.pop %v6200
    %v6202 = vsel %vm602, %v6201, 0.0
    %6203 = vadd.xlane.f32.xlu0 %v6202
    %v6204 = vpop.xlane.xlu0 %6203
    %v6205 = vrcp.pop %v6204
    %v6206 = vmul.f32 %v6201, %v6205
    %6207 = vrot.lane.b32.xlu0 %v5503, 80
    %v6208 = vpop.permute.xlu0 %6207
    %6209 = vrot.lane.b32.xlu0 %v5508, 80
    %v6210 = vpop.permute.xlu0 %6209
    %6211 = vrot.lane.b32.xlu0 %v5513, 80
    %v6212 = vpop.permute.xlu0 %6211
    %6213 = vrot.lane.b32.xlu0 %v5518, 80
    %v6214 = vpop.permute.xlu0 %6213
    %6215 = vrot.lane.b32.xlu0 %v5523, 80
    %v6216 = vpop.permute.xlu0 %6215
    %6217 = vrot.lane.b32.xlu0 %v5528, 80
    %v6218 = vpop.permute.xlu0 %6217
    %6219 = vrot.lane.b32.xlu0 %v5533, 80
    %v6220 = vpop.permute.xlu0 %6219
    %v6229 = vsel %vm602, %v6206, 0
    %6231 = vmatprep.subr.mxu0 0.0
    %6232 = vmatpush1.msra.mxu0 0.0
    %6233 = vmatprep.subr.mxu0 0.0
    %6234 = vmatpush1.msra.mxu0 0.0
    %6235 = vmatprep.subr.mxu0 0.0
    %6236 = vmatpush1.msra.mxu0 0.0
    %6237 = vmatprep.subr.mxu0 0.0
    %6238 = vmatpush1.msra.mxu0 0.0
    %6239 = vmatprep.subr.mxu0 0.0
    %6240 = vmatpush1.msra.mxu0 0.0
    %6241 = vmatprep.subr.mxu0 0.0
    %6242 = vmatpush1.msra.mxu0 0.0
    %6243 = vmatprep.subr.mxu0 0.0
    %6244 = vmatpush1.msra.mxu0 0.0
    %6245 = vmatprep.subr.mxu0 0.0
    %6246 = vmatpush1.msra.mxu0 0.0
    %6247 = vmatprep.subr.mxu0 0.0
    %6248 = vmatpush1.msra.mxu0 0.0
    %6249 = vmatprep.subr.mxu0 0.0
    %6250 = vmatpush1.msra.mxu0 %v6220
    %6251 = vmatprep.subr.mxu0 0.0
    %6252 = vmatpush1.msra.mxu0 %v6218
    %6253 = vmatprep.subr.mxu0 0.0
    %6254 = vmatpush1.msra.mxu0 %v6216
    %6255 = vmatprep.subr.mxu0 0.0
    %6256 = vmatpush1.msra.mxu0 %v6214
    %6257 = vmatprep.subr.mxu0 0.0
    %6258 = vmatpush1.msra.mxu0 %v6212
    %6259 = vmatprep.subr.mxu0 0.0
    %6260 = vmatpush1.msra.mxu0 %v6210
    %6261 = vmatprep.subr.mxu0 0.0
    %6262 = vmatpush1.msra.mxu0 %v6208
    %6263 = vmatprep.subr.mxu0 0.0
    %6264 = vmatpush2.msra.mxu0 0.0
    %6265 = vmatprep.subr.mxu0 0.0
    %6266 = vmatpush2.msra.mxu0 0.0
    %6267 = vmatprep.subr.mxu0 0.0
    %6268 = vmatpush2.msra.mxu0 0.0
    %6269 = vmatprep.subr.mxu0 0.0
    %6270 = vmatpush2.msra.mxu0 0.0
    %6271 = vmatprep.subr.mxu0 0.0
    %6272 = vmatpush2.msra.mxu0 0.0
    %6273 = vmatprep.subr.mxu0 0.0
    %6274 = vmatpush2.msra.mxu0 0.0
    %6275 = vmatprep.subr.mxu0 0.0
    %6276 = vmatpush2.msra.mxu0 0.0
    %6277 = vmatprep.subr.mxu0 0.0
    %6278 = vmatpush2.msra.mxu0 0.0
    %6279 = vmatprep.subr.mxu0 0.0
    %6280 = vmatpush2.msra.mxu0 0.0
    %6281 = vmatprep.subr.mxu0 0.0
    %6282 = vmatpush2.msra.mxu0 0.0
    %6283 = vmatprep.subr.mxu0 0.0
    %6284 = vmatpush2.msra.mxu0 0.0
    %6285 = vmatprep.subr.mxu0 0.0
    %6286 = vmatpush2.msra.mxu0 0.0
    %6287 = vmatprep.subr.mxu0 0.0
    %6288 = vmatpush2.msra.mxu0 0.0
    %6289 = vmatprep.subr.mxu0 0.0
    %6290 = vmatpush2.msra.mxu0 0.0
    %6291 = vmatprep.subr.mxu0 0.0
    %6292 = vmatpush2.msra.mxu0 0.0
    %6293 = vmatprep.subr.mxu0 0.0
    %6294 = vmatpush2.msra.mxu0 0.0
    %6295 = vmatprep.mubr.f32.mxu0 0.0
    %6296 = vmatmul.mubr.f32.gmra.mxu0 %v6229
    %v6297 = vpop.f32.mrf.mxu0
    %v6298 = vadd.f32 0.0, %v6297
    %v6299 = vpop.f32.mrf.mxu0
    %6300 = vdwg.mxu0
    %v6302 = vsel %vm473, %v6298, 0
    %6304 = vmatprep.subr.mxu0 0.0
    %6305 = vmatpush1.msra.mxu0 0.0
    %6306 = vmatprep.subr.mxu0 0.0
    %6307 = vmatpush1.msra.mxu0 0.0
    %6308 = vmatprep.subr.mxu0 0.0
    %6309 = vmatpush1.msra.mxu0 0.0
    %6310 = vmatprep.subr.mxu0 0.0
    %6311 = vmatpush1.msra.mxu0 0.0
    %6312 = vmatprep.subr.mxu0 0.0
    %6313 = vmatpush1.msra.mxu0 0.0
    %6314 = vmatprep.subr.mxu0 0.0
    %6315 = vmatpush1.msra.mxu0 0.0
    %6316 = vmatprep.subr.mxu0 0.0
    %6317 = vmatpush1.msra.mxu0 0.0
    %6318 = vmatprep.subr.mxu0 0.0
    %6319 = vmatpush1.msra.mxu0 0.0
    %6320 = vmatprep.subr.mxu0 0.0
    %6321 = vmatpush1.msra.mxu0 0.0
    %6322 = vmatprep.subr.mxu0 0.0
    %6323 = vmatpush1.msra.mxu0 0.0
    %6324 = vmatprep.subr.mxu0 0.0
    %6325 = vmatpush1.msra.mxu0 0.0
    %6326 = vmatprep.subr.mxu0 0.0
    %6327 = vmatpush1.msra.mxu0 0.0
    %6328 = vmatprep.subr.mxu0 0.0
    %6329 = vmatpush1.msra.mxu0 0.0
    %6330 = vmatprep.subr.mxu0 0.0
    %6331 = vmatpush1.msra.mxu0 0.0
    %6332 = vmatprep.subr.mxu0 0.0
    %6333 = vmatpush1.msra.mxu0 0.0
    %6334 = vmatprep.subr.mxu0 0.0
    %6335 = vmatpush1.msra.mxu0 %v5286
    %6336 = vmatprep.subr.mxu0 0.0
    %6337 = vmatpush2.msra.mxu0 0.0
    %6338 = vmatprep.subr.mxu0 0.0
    %6339 = vmatpush2.msra.mxu0 0.0
    %6340 = vmatprep.subr.mxu0 0.0
    %6341 = vmatpush2.msra.mxu0 0.0
    %6342 = vmatprep.subr.mxu0 0.0
    %6343 = vmatpush2.msra.mxu0 0.0
    %6344 = vmatprep.subr.mxu0 0.0
    %6345 = vmatpush2.msra.mxu0 0.0
    %6346 = vmatprep.subr.mxu0 0.0
    %6347 = vmatpush2.msra.mxu0 0.0
    %6348 = vmatprep.subr.mxu0 0.0
    %6349 = vmatpush2.msra.mxu0 0.0
    %6350 = vmatprep.subr.mxu0 0.0
    %6351 = vmatpush2.msra.mxu0 0.0
    %6352 = vmatprep.subr.mxu0 0.0
    %6353 = vmatpush2.msra.mxu0 0.0
    %6354 = vmatprep.subr.mxu0 0.0
    %6355 = vmatpush2.msra.mxu0 0.0
    %6356 = vmatprep.subr.mxu0 0.0
    %6357 = vmatpush2.msra.mxu0 0.0
    %6358 = vmatprep.subr.mxu0 0.0
    %6359 = vmatpush2.msra.mxu0 0.0
    %6360 = vmatprep.subr.mxu0 0.0
    %6361 = vmatpush2.msra.mxu0 0.0
    %6362 = vmatprep.subr.mxu0 0.0
    %6363 = vmatpush2.msra.mxu0 0.0
    %6364 = vmatprep.subr.mxu0 0.0
    %6365 = vmatpush2.msra.mxu0 0.0
    %6366 = vmatprep.subr.mxu0 0.0
    %6367 = vmatpush2.msra.mxu0 0.0
    %6368 = vmatprep.mubr.f32.mxu0 0.0
    %6369 = vmatmul.mubr.f32.gmra.mxu0 %v6302
    %v6370 = vpop.f32.mrf.mxu0
    %v6371 = vadd.f32 0.0, %v6370
    %v6372 = vpop.f32.mrf.mxu0
    %6373 = vdwg.mxu0
    %v6374 = vadd.f32 %v6093, %v6371
    %6375 = vrot.lane.b32.xlu0 %v5395, 104
    %v6376 = vpop.permute.xlu0 %6375
    %6377 = vrot.lane.b32.xlu0 %v5503, 104
    %v6378 = vpop.permute.xlu0 %6377
    %6379 = vrot.lane.b32.xlu0 %v5508, 104
    %v6380 = vpop.permute.xlu0 %6379
    %6381 = vrot.lane.b32.xlu0 %v5513, 104
    %v6382 = vpop.permute.xlu0 %6381
    %6383 = vrot.lane.b32.xlu0 %v5518, 104
    %v6384 = vpop.permute.xlu0 %6383
    %6385 = vrot.lane.b32.xlu0 %v5523, 104
    %v6386 = vpop.permute.xlu0 %6385
    %6387 = vrot.lane.b32.xlu0 %v5528, 104
    %v6388 = vpop.permute.xlu0 %6387
    %6389 = vrot.lane.b32.xlu0 %v5533, 104
    %v6390 = vpop.permute.xlu0 %6389
    %v6391 = vsel %vm473, %v6376, 0
    %v6393 = vsel %vm473, %v6378, 0
    %v6395 = vsel %vm473, %v6380, 0
    %v6397 = vsel %vm473, %v6382, 0
    %v6399 = vsel %vm473, %v6384, 0
    %v6401 = vsel %vm473, %v6386, 0
    %v6403 = vsel %vm473, %v6388, 0
    %v6405 = vsel %vm473, %v6390, 0
    %6407 = vmatprep.subr.mxu0 0.0
    %6408 = vmatpush1.xpose.msra.mxu0 0.0
    %6409 = vmatprep.subr.mxu0 0.0
    %6410 = vmatpush1.xpose.msra.mxu0 0.0
    %6411 = vmatprep.subr.mxu0 0.0
    %6412 = vmatpush1.xpose.msra.mxu0 0.0
    %6413 = vmatprep.subr.mxu0 0.0
    %6414 = vmatpush1.xpose.msra.mxu0 0.0
    %6415 = vmatprep.subr.mxu0 0.0
    %6416 = vmatpush1.xpose.msra.mxu0 0.0
    %6417 = vmatprep.subr.mxu0 0.0
    %6418 = vmatpush1.xpose.msra.mxu0 0.0
    %6419 = vmatprep.subr.mxu0 0.0
    %6420 = vmatpush1.xpose.msra.mxu0 0.0
    %6421 = vmatprep.subr.mxu0 0.0
    %6422 = vmatpush1.xpose.msra.mxu0 0.0
    %6423 = vmatprep.subr.mxu0 0.0
    %6424 = vmatpush1.xpose.msra.mxu0 0.0
    %6425 = vmatprep.subr.mxu0 0.0
    %6426 = vmatpush1.xpose.msra.mxu0 %v6405
    %6427 = vmatprep.subr.mxu0 0.0
    %6428 = vmatpush1.xpose.msra.mxu0 %v6403
    %6429 = vmatprep.subr.mxu0 0.0
    %6430 = vmatpush1.xpose.msra.mxu0 %v6401
    %6431 = vmatprep.subr.mxu0 0.0
    %6432 = vmatpush1.xpose.msra.mxu0 %v6399
    %6433 = vmatprep.subr.mxu0 0.0
    %6434 = vmatpush1.xpose.msra.mxu0 %v6397
    %6435 = vmatprep.subr.mxu0 0.0
    %6436 = vmatpush1.xpose.msra.mxu0 %v6395
    %6437 = vmatprep.subr.mxu0 0.0
    %6438 = vmatpush1.xpose.msra.mxu0 %v6393
    %6439 = vmatprep.subr.mxu0 0.0
    %6440 = vmatpush2.xpose.msra.mxu0 0.0
    %6441 = vmatprep.subr.mxu0 0.0
    %6442 = vmatpush2.xpose.msra.mxu0 0.0
    %6443 = vmatprep.subr.mxu0 0.0
    %6444 = vmatpush2.xpose.msra.mxu0 0.0
    %6445 = vmatprep.subr.mxu0 0.0
    %6446 = vmatpush2.xpose.msra.mxu0 0.0
    %6447 = vmatprep.subr.mxu0 0.0
    %6448 = vmatpush2.xpose.msra.mxu0 0.0
    %6449 = vmatprep.subr.mxu0 0.0
    %6450 = vmatpush2.xpose.msra.mxu0 0.0
    %6451 = vmatprep.subr.mxu0 0.0
    %6452 = vmatpush2.xpose.msra.mxu0 0.0
    %6453 = vmatprep.subr.mxu0 0.0
    %6454 = vmatpush2.xpose.msra.mxu0 0.0
    %6455 = vmatprep.subr.mxu0 0.0
    %6456 = vmatpush2.xpose.msra.mxu0 0.0
    %6457 = vmatprep.subr.mxu0 0.0
    %6458 = vmatpush2.xpose.msra.mxu0 0.0
    %6459 = vmatprep.subr.mxu0 0.0
    %6460 = vmatpush2.xpose.msra.mxu0 0.0
    %6461 = vmatprep.subr.mxu0 0.0
    %6462 = vmatpush2.xpose.msra.mxu0 0.0
    %6463 = vmatprep.subr.mxu0 0.0
    %6464 = vmatpush2.xpose.msra.mxu0 0.0
    %6465 = vmatprep.subr.mxu0 0.0
    %6466 = vmatpush2.xpose.msra.mxu0 0.0
    %6467 = vmatprep.subr.mxu0 0.0
    %6468 = vmatpush2.xpose.msra.mxu0 0.0
    %6469 = vmatprep.subr.mxu0 0.0
    %6470 = vmatpush2.xpose.msra.mxu0 0.0
    %6471 = vmatprep.mubr.f32.mxu0 0.0
    %6472 = vmatmul.mubr.f32.gmra.mxu0 %v6391
    %v6473 = vpop.f32.mrf.mxu0
    %v6474 = vadd.f32 %v5318, %v6473
    %v6475 = vpop.f32.mrf.mxu0
    %6476 = vdwg.mxu0
    %v6477 = vsel %vm602, %v6474, -inf
    %6478 = vmax.xlane.f32.xlu0 %v6477
    %v6479 = vpop.xlane.xlu0 %6478
    %v6480 = vsub.f32 %v6474, %v6479
    %v6481 = vmul.f32 %v6480, 1.442695
    %v6482 = vpow.pop %v6481
    %v6483 = vsel %vm602, %v6482, 0.0
    %6484 = vadd.xlane.f32.xlu0 %v6483
    %v6485 = vpop.xlane.xlu0 %6484
    %v6486 = vrcp.pop %v6485
    %v6487 = vmul.f32 %v6482, %v6486
    %6488 = vrot.lane.b32.xlu0 %v5503, 72
    %v6489 = vpop.permute.xlu0 %6488
    %6490 = vrot.lane.b32.xlu0 %v5508, 72
    %v6491 = vpop.permute.xlu0 %6490
    %6492 = vrot.lane.b32.xlu0 %v5513, 72
    %v6493 = vpop.permute.xlu0 %6492
    %6494 = vrot.lane.b32.xlu0 %v5518, 72
    %v6495 = vpop.permute.xlu0 %6494
    %6496 = vrot.lane.b32.xlu0 %v5523, 72
    %v6497 = vpop.permute.xlu0 %6496
    %6498 = vrot.lane.b32.xlu0 %v5528, 72
    %v6499 = vpop.permute.xlu0 %6498
    %6500 = vrot.lane.b32.xlu0 %v5533, 72
    %v6501 = vpop.permute.xlu0 %6500
    %v6510 = vsel %vm602, %v6487, 0
    %6512 = vmatprep.subr.mxu0 0.0
    %6513 = vmatpush1.msra.mxu0 0.0
    %6514 = vmatprep.subr.mxu0 0.0
    %6515 = vmatpush1.msra.mxu0 0.0
    %6516 = vmatprep.subr.mxu0 0.0
    %6517 = vmatpush1.msra.mxu0 0.0
    %6518 = vmatprep.subr.mxu0 0.0
    %6519 = vmatpush1.msra.mxu0 0.0
    %6520 = vmatprep.subr.mxu0 0.0
    %6521 = vmatpush1.msra.mxu0 0.0
    %6522 = vmatprep.subr.mxu0 0.0
    %6523 = vmatpush1.msra.mxu0 0.0
    %6524 = vmatprep.subr.mxu0 0.0
    %6525 = vmatpush1.msra.mxu0 0.0
    %6526 = vmatprep.subr.mxu0 0.0
    %6527 = vmatpush1.msra.mxu0 0.0
    %6528 = vmatprep.subr.mxu0 0.0
    %6529 = vmatpush1.msra.mxu0 0.0
    %6530 = vmatprep.subr.mxu0 0.0
    %6531 = vmatpush1.msra.mxu0 %v6501
    %6532 = vmatprep.subr.mxu0 0.0
    %6533 = vmatpush1.msra.mxu0 %v6499
    %6534 = vmatprep.subr.mxu0 0.0
    %6535 = vmatpush1.msra.mxu0 %v6497
    %6536 = vmatprep.subr.mxu0 0.0
    %6537 = vmatpush1.msra.mxu0 %v6495
    %6538 = vmatprep.subr.mxu0 0.0
    %6539 = vmatpush1.msra.mxu0 %v6493
    %6540 = vmatprep.subr.mxu0 0.0
    %6541 = vmatpush1.msra.mxu0 %v6491
    %6542 = vmatprep.subr.mxu0 0.0
    %6543 = vmatpush1.msra.mxu0 %v6489
    %6544 = vmatprep.subr.mxu0 0.0
    %6545 = vmatpush2.msra.mxu0 0.0
    %6546 = vmatprep.subr.mxu0 0.0
    %6547 = vmatpush2.msra.mxu0 0.0
    %6548 = vmatprep.subr.mxu0 0.0
    %6549 = vmatpush2.msra.mxu0 0.0
    %6550 = vmatprep.subr.mxu0 0.0
    %6551 = vmatpush2.msra.mxu0 0.0
    %6552 = vmatprep.subr.mxu0 0.0
    %6553 = vmatpush2.msra.mxu0 0.0
    %6554 = vmatprep.subr.mxu0 0.0
    %6555 = vmatpush2.msra.mxu0 0.0
    %6556 = vmatprep.subr.mxu0 0.0
    %6557 = vmatpush2.msra.mxu0 0.0
    %6558 = vmatprep.subr.mxu0 0.0
    %6559 = vmatpush2.msra.mxu0 0.0
    %6560 = vmatprep.subr.mxu0 0.0
    %6561 = vmatpush2.msra.mxu0 0.0
    %6562 = vmatprep.subr.mxu0 0.0
    %6563 = vmatpush2.msra.mxu0 0.0
    %6564 = vmatprep.subr.mxu0 0.0
    %6565 = vmatpush2.msra.mxu0 0.0
    %6566 = vmatprep.subr.mxu0 0.0
    %6567 = vmatpush2.msra.mxu0 0.0
    %6568 = vmatprep.subr.mxu0 0.0
    %6569 = vmatpush2.msra.mxu0 0.0
    %6570 = vmatprep.subr.mxu0 0.0
    %6571 = vmatpush2.msra.mxu0 0.0
    %6572 = vmatprep.subr.mxu0 0.0
    %6573 = vmatpush2.msra.mxu0 0.0
    %6574 = vmatprep.subr.mxu0 0.0
    %6575 = vmatpush2.msra.mxu0 0.0
    %6576 = vmatprep.mubr.f32.mxu0 0.0
    %6577 = vmatmul.mubr.f32.gmra.mxu0 %v6510
    %v6578 = vpop.f32.mrf.mxu0
    %v6579 = vadd.f32 0.0, %v6578
    %v6580 = vpop.f32.mrf.mxu0
    %6581 = vdwg.mxu0
    %v6583 = vsel %vm473, %v6579, 0
    %6585 = vmatprep.subr.mxu0 0.0
    %6586 = vmatpush1.msra.mxu0 0.0
    %6587 = vmatprep.subr.mxu0 0.0
    %6588 = vmatpush1.msra.mxu0 0.0
    %6589 = vmatprep.subr.mxu0 0.0
    %6590 = vmatpush1.msra.mxu0 0.0
    %6591 = vmatprep.subr.mxu0 0.0
    %6592 = vmatpush1.msra.mxu0 0.0
    %6593 = vmatprep.subr.mxu0 0.0
    %6594 = vmatpush1.msra.mxu0 0.0
    %6595 = vmatprep.subr.mxu0 0.0
    %6596 = vmatpush1.msra.mxu0 0.0
    %6597 = vmatprep.subr.mxu0 0.0
    %6598 = vmatpush1.msra.mxu0 0.0
    %6599 = vmatprep.subr.mxu0 0.0
    %6600 = vmatpush1.msra.mxu0 0.0
    %6601 = vmatprep.subr.mxu0 0.0
    %6602 = vmatpush1.msra.mxu0 0.0
    %6603 = vmatprep.subr.mxu0 0.0
    %6604 = vmatpush1.msra.mxu0 0.0
    %6605 = vmatprep.subr.mxu0 0.0
    %6606 = vmatpush1.msra.mxu0 0.0
    %6607 = vmatprep.subr.mxu0 0.0
    %6608 = vmatpush1.msra.mxu0 0.0
    %6609 = vmatprep.subr.mxu0 0.0
    %6610 = vmatpush1.msra.mxu0 0.0
    %6611 = vmatprep.subr.mxu0 0.0
    %6612 = vmatpush1.msra.mxu0 0.0
    %6613 = vmatprep.subr.mxu0 0.0
    %6614 = vmatpush1.msra.mxu0 0.0
    %6615 = vmatprep.subr.mxu0 0.0
    %6616 = vmatpush1.msra.mxu0 %v5287
    %6617 = vmatprep.subr.mxu0 0.0
    %6618 = vmatpush2.msra.mxu0 0.0
    %6619 = vmatprep.subr.mxu0 0.0
    %6620 = vmatpush2.msra.mxu0 0.0
    %6621 = vmatprep.subr.mxu0 0.0
    %6622 = vmatpush2.msra.mxu0 0.0
    %6623 = vmatprep.subr.mxu0 0.0
    %6624 = vmatpush2.msra.mxu0 0.0
    %6625 = vmatprep.subr.mxu0 0.0
    %6626 = vmatpush2.msra.mxu0 0.0
    %6627 = vmatprep.subr.mxu0 0.0
    %6628 = vmatpush2.msra.mxu0 0.0
    %6629 = vmatprep.subr.mxu0 0.0
    %6630 = vmatpush2.msra.mxu0 0.0
    %6631 = vmatprep.subr.mxu0 0.0
    %6632 = vmatpush2.msra.mxu0 0.0
    %6633 = vmatprep.subr.mxu0 0.0
    %6634 = vmatpush2.msra.mxu0 0.0
    %6635 = vmatprep.subr.mxu0 0.0
    %6636 = vmatpush2.msra.mxu0 0.0
    %6637 = vmatprep.subr.mxu0 0.0
    %6638 = vmatpush2.msra.mxu0 0.0
    %6639 = vmatprep.subr.mxu0 0.0
    %6640 = vmatpush2.msra.mxu0 0.0
    %6641 = vmatprep.subr.mxu0 0.0
    %6642 = vmatpush2.msra.mxu0 0.0
    %6643 = vmatprep.subr.mxu0 0.0
    %6644 = vmatpush2.msra.mxu0 0.0
    %6645 = vmatprep.subr.mxu0 0.0
    %6646 = vmatpush2.msra.mxu0 0.0
    %6647 = vmatprep.subr.mxu0 0.0
    %6648 = vmatpush2.msra.mxu0 0.0
    %6649 = vmatprep.mubr.f32.mxu0 0.0
    %6650 = vmatmul.mubr.f32.gmra.mxu0 %v6583
    %v6651 = vpop.f32.mrf.mxu0
    %v6652 = vadd.f32 0.0, %v6651
    %v6653 = vpop.f32.mrf.mxu0
    %6654 = vdwg.mxu0
    %v6655 = vadd.f32 %v6374, %v6652
    %v6656 = vadd.f32 %v5277, %v6655
    %v6657 = vsel %vm162, %v6656, 0.0
    %6658 = vadd.xlane.f32.xlu0 %v6657
    %v6659 = vpop.xlane.xlu0 %6658
    %v6660 = vmul.f32 %v6659, %v2491
    %v6661 = vmul.f32 %v6656, %v6656
    %v6662 = vsel %vm162, %v6661, 0.0
    %6663 = vadd.xlane.f32.xlu0 %v6662
    %v6664 = vpop.xlane.xlu0 %6663
    %v6665 = vmul.f32 %v6664, %v2491
    %v6666 = vmul.f32 %v6660, %v6660
    %v6667 = vsub.f32 %v6665, %v6666
    %v6668 = vsub.f32 %v6656, %v6660
    %v6669 = vadd.f32 %v6667, 1e-05
    %v6670 = vrsqrt.pop %v6669
    %v6671 = vmul.f32 %v6668, %v6670
    %v6672 = vlaneseq
    %v6673 = vshrl.u32 %v6672, 7
    %v6674 = vsub.s32 6, %v6673
    %v6675 = vrot.slane %v39, %v6674
    %v6676 = vmul.f32 %v6671, %v6675
    %v6677 = vlaneseq
    %v6678 = vshrl.u32 %v6677, 7
    %v6679 = vsub.s32 7, %v6678
    %v6680 = vrot.slane %v39, %v6679
    %v6681 = vadd.f32 %v6676, %v6680
    %v6682 = vlaneseq
    %v6683 = vshrl.u32 %v6682, 7
    %v6684 = vsub.s32 0, %v6683
    %v6685 = vrot.slane %v5294, %v6684
    %v6687 = vsel %vm162, %v6681, 0
    %6689 = vmatprep.subr.mxu0 0.0
    %6690 = vmatpush1.msra.mxu0 0.0
    %6691 = vmatprep.subr.mxu0 0.0
    %6692 = vmatpush1.msra.mxu0 0.0
    %6693 = vmatprep.subr.mxu0 0.0
    %6694 = vmatpush1.msra.mxu0 0.0
    %6695 = vmatprep.subr.mxu0 0.0
    %6696 = vmatpush1.msra.mxu0 0.0
    %6697 = vmatprep.subr.mxu0 0.0
    %6698 = vmatpush1.msra.mxu0 0.0
    %6699 = vmatprep.subr.mxu0 0.0
    %6700 = vmatpush1.msra.mxu0 0.0
    %6701 = vmatprep.subr.mxu0 0.0
    %6702 = vmatpush1.msra.mxu0 0.0
    %6703 = vmatprep.subr.mxu0 0.0
    %6704 = vmatpush1.msra.mxu0 0.0
    %6705 = vmatprep.subr.mxu0 0.0
    %6706 = vmatpush1.msra.mxu0 0.0
    %6707 = vmatprep.subr.mxu0 0.0
    %6708 = vmatpush1.msra.mxu0 0.0
    %6709 = vmatprep.subr.mxu0 0.0
    %6710 = vmatpush1.msra.mxu0 0.0
    %6711 = vmatprep.subr.mxu0 0.0
    %6712 = vmatpush1.msra.mxu0 0.0
    %6713 = vmatprep.subr.mxu0 0.0
    %6714 = vmatpush1.msra.mxu0 %v5293
    %6715 = vmatprep.subr.mxu0 0.0
    %6716 = vmatpush1.msra.mxu0 %v5292
    %6717 = vmatprep.subr.mxu0 0.0
    %6718 = vmatpush1.msra.mxu0 %v5291
    %6719 = vmatprep.subr.mxu0 0.0
    %6720 = vmatpush1.msra.mxu0 %v5290
    %6721 = vmatprep.subr.mxu0 0.0
    %6722 = vmatpush2.msra.mxu0 0.0
    %6723 = vmatprep.subr.mxu0 0.0
    %6724 = vmatpush2.msra.mxu0 0.0
    %6725 = vmatprep.subr.mxu0 0.0
    %6726 = vmatpush2.msra.mxu0 0.0
    %6727 = vmatprep.subr.mxu0 0.0
    %6728 = vmatpush2.msra.mxu0 0.0
    %6729 = vmatprep.subr.mxu0 0.0
    %6730 = vmatpush2.msra.mxu0 0.0
    %6731 = vmatprep.subr.mxu0 0.0
    %6732 = vmatpush2.msra.mxu0 0.0
    %6733 = vmatprep.subr.mxu0 0.0
    %6734 = vmatpush2.msra.mxu0 0.0
    %6735 = vmatprep.subr.mxu0 0.0
    %6736 = vmatpush2.msra.mxu0 0.0
    %6737 = vmatprep.subr.mxu0 0.0
    %6738 = vmatpush2.msra.mxu0 0.0
    %6739 = vmatprep.subr.mxu0 0.0
    %6740 = vmatpush2.msra.mxu0 0.0
    %6741 = vmatprep.subr.mxu0 0.0
    %6742 = vmatpush2.msra.mxu0 0.0
    %6743 = vmatprep.subr.mxu0 0.0
    %6744 = vmatpush2.msra.mxu0 0.0
    %6745 = vmatprep.subr.mxu0 0.0
    %6746 = vmatpush2.msra.mxu0 0.0
    %6747 = vmatprep.subr.mxu0 0.0
    %6748 = vmatpush2.msra.mxu0 0.0
    %6749 = vmatprep.subr.mxu0 0.0
    %6750 = vmatpush2.msra.mxu0 0.0
    %6751 = vmatprep.subr.mxu0 0.0
    %6752 = vmatpush2.msra.mxu0 0.0
    %6753 = vmatprep.mubr.f32.mxu0 0.0
    %6754 = vmatmul.mubr.f32.gmra.mxu0 %v6687
    %v6755 = vpop.f32.mrf.mxu0
    %v6756 = vadd.f32 %v6685, %v6755
    %v6757 = vpop.f32.mrf.mxu0
    %6758 = vdwg.mxu0
    %6759 = vrot.lane.b32.xlu0 %v254, 64
    %v6760 = vpop.permute.xlu0 %6759
    %6761 = vrot.lane.b32.xlu0 %v259, 64
    %v6762 = vpop.permute.xlu0 %6761
    %6763 = vrot.lane.b32.xlu0 %v264, 64
    %v6764 = vpop.permute.xlu0 %6763
    %6765 = vrot.lane.b32.xlu0 %v269, 64
    %v6766 = vpop.permute.xlu0 %6765
    %6767 = vrot.lane.b32.xlu0 %v274, 64
    %v6768 = vpop.permute.xlu0 %6767
    %6769 = vrot.lane.b32.xlu0 %v279, 64
    %v6770 = vpop.permute.xlu0 %6769
    %6771 = vrot.lane.b32.xlu0 %v284, 64
    %v6772 = vpop.permute.xlu0 %6771
    %6773 = vrot.lane.b32.xlu0 %v289, 64
    %v6774 = vpop.permute.xlu0 %6773
    %v6776 = vsel %vm473, %v6756, 0
    %v6778 = vsel %vm473, %v6760, 0
    %v6780 = vsel %vm473, %v6762, 0
    %v6782 = vsel %vm473, %v6764, 0
    %v6784 = vsel %vm473, %v6766, 0
    %v6786 = vsel %vm473, %v6768, 0
    %v6788 = vsel %vm473, %v6770, 0
    %v6790 = vsel %vm473, %v6772, 0
    %v6792 = vsel %vm473, %v6774, 0
    %6794 = vmatprep.subr.mxu0 0.0
    %6795 = vmatpush1.xpose.msra.mxu0 0.0
    %6796 = vmatprep.subr.mxu0 0.0
    %6797 = vmatpush1.xpose.msra.mxu0 0.0
    %6798 = vmatprep.subr.mxu0 0.0
    %6799 = vmatpush1.xpose.msra.mxu0 0.0
    %6800 = vmatprep.subr.mxu0 0.0
    %6801 = vmatpush1.xpose.msra.mxu0 0.0
    %6802 = vmatprep.subr.mxu0 0.0
    %6803 = vmatpush1.xpose.msra.mxu0 0.0
    %6804 = vmatprep.subr.mxu0 0.0
    %6805 = vmatpush1.xpose.msra.mxu0 0.0
    %6806 = vmatprep.subr.mxu0 0.0
    %6807 = vmatpush1.xpose.msra.mxu0 0.0
    %6808 = vmatprep.subr.mxu0 0.0
    %6809 = vmatpush1.xpose.msra.mxu0 0.0
    %6810 = vmatprep.subr.mxu0 0.0
    %6811 = vmatpush1.xpose.msra.mxu0 %v6792
    %6812 = vmatprep.subr.mxu0 0.0
    %6813 = vmatpush1.xpose.msra.mxu0 %v6790
    %6814 = vmatprep.subr.mxu0 0.0
    %6815 = vmatpush1.xpose.msra.mxu0 %v6788
    %6816 = vmatprep.subr.mxu0 0.0
    %6817 = vmatpush1.xpose.msra.mxu0 %v6786
    %6818 = vmatprep.subr.mxu0 0.0
    %6819 = vmatpush1.xpose.msra.mxu0 %v6784
    %6820 = vmatprep.subr.mxu0 0.0
    %6821 = vmatpush1.xpose.msra.mxu0 %v6782
    %6822 = vmatprep.subr.mxu0 0.0
    %6823 = vmatpush1.xpose.msra.mxu0 %v6780
    %6824 = vmatprep.subr.mxu0 0.0
    %6825 = vmatpush1.xpose.msra.mxu0 %v6778
    %6826 = vmatprep.subr.mxu0 0.0
    %6827 = vmatpush2.xpose.msra.mxu0 0.0
    %6828 = vmatprep.subr.mxu0 0.0
    %6829 = vmatpush2.xpose.msra.mxu0 0.0
    %6830 = vmatprep.subr.mxu0 0.0
    %6831 = vmatpush2.xpose.msra.mxu0 0.0
    %6832 = vmatprep.subr.mxu0 0.0
    %6833 = vmatpush2.xpose.msra.mxu0 0.0
    %6834 = vmatprep.subr.mxu0 0.0
    %6835 = vmatpush2.xpose.msra.mxu0 0.0
    %6836 = vmatprep.subr.mxu0 0.0
    %6837 = vmatpush2.xpose.msra.mxu0 0.0
    %6838 = vmatprep.subr.mxu0 0.0
    %6839 = vmatpush2.xpose.msra.mxu0 0.0
    %6840 = vmatprep.subr.mxu0 0.0
    %6841 = vmatpush2.xpose.msra.mxu0 0.0
    %6842 = vmatprep.subr.mxu0 0.0
    %6843 = vmatpush2.xpose.msra.mxu0 0.0
    %6844 = vmatprep.subr.mxu0 0.0
    %6845 = vmatpush2.xpose.msra.mxu0 0.0
    %6846 = vmatprep.subr.mxu0 0.0
    %6847 = vmatpush2.xpose.msra.mxu0 0.0
    %6848 = vmatprep.subr.mxu0 0.0
    %6849 = vmatpush2.xpose.msra.mxu0 0.0
    %6850 = vmatprep.subr.mxu0 0.0
    %6851 = vmatpush2.xpose.msra.mxu0 0.0
    %6852 = vmatprep.subr.mxu0 0.0
    %6853 = vmatpush2.xpose.msra.mxu0 0.0
    %6854 = vmatprep.subr.mxu0 0.0
    %6855 = vmatpush2.xpose.msra.mxu0 0.0
    %6856 = vmatprep.subr.mxu0 0.0
    %6857 = vmatpush2.xpose.msra.mxu0 0.0
    %6858 = vmatprep.mubr.f32.mxu0 0.0
    %6859 = vmatmul.mubr.f32.gmra.mxu0 %v6776
    %v6860 = vpop.f32.mrf.mxu0
    %v6861 = vadd.f32 %v5320, %v6860
    %v6862 = vpop.f32.mrf.mxu0
    %6863 = vdwg.mxu0
    %v6864 = vsel %vm2868, %v6861, -inf
    %6865 = vmax.xlane.f32.xlu0 %v6864
    %v6866 = vpop.xlane.xlu0 %6865
    %v6867 = vsub.f32 %v6861, %v6866
    %v6868 = vmul.f32 %v6867, 1.442695
    %v6869 = vpow.pop %v6868
    %v6870 = vsel %vm2868, %v6869, 0.0
    %6871 = vadd.xlane.f32.xlu0 %v6870
    %v6872 = vpop.xlane.xlu0 %6871
    %v6873 = vrcp.pop %v6872
    %v6874 = vmul.f32 %v6869, %v6873
    %6875 = vrot.lane.b32.xlu0 %v254, 32
    %v6876 = vpop.permute.xlu0 %6875
    %6877 = vrot.lane.b32.xlu0 %v259, 32
    %v6878 = vpop.permute.xlu0 %6877
    %6879 = vrot.lane.b32.xlu0 %v264, 32
    %v6880 = vpop.permute.xlu0 %6879
    %6881 = vrot.lane.b32.xlu0 %v269, 32
    %v6882 = vpop.permute.xlu0 %6881
    %6883 = vrot.lane.b32.xlu0 %v274, 32
    %v6884 = vpop.permute.xlu0 %6883
    %6885 = vrot.lane.b32.xlu0 %v279, 32
    %v6886 = vpop.permute.xlu0 %6885
    %6887 = vrot.lane.b32.xlu0 %v284, 32
    %v6888 = vpop.permute.xlu0 %6887
    %6889 = vrot.lane.b32.xlu0 %v289, 32
    %v6890 = vpop.permute.xlu0 %6889
    %v6900 = vsel %vm2868, %v6874, 0
    %6902 = vmatprep.subr.mxu0 0.0
    %6903 = vmatpush1.msra.mxu0 0.0
    %6904 = vmatprep.subr.mxu0 0.0
    %6905 = vmatpush1.msra.mxu0 0.0
    %6906 = vmatprep.subr.mxu0 0.0
    %6907 = vmatpush1.msra.mxu0 0.0
    %6908 = vmatprep.subr.mxu0 0.0
    %6909 = vmatpush1.msra.mxu0 0.0
    %6910 = vmatprep.subr.mxu0 0.0
    %6911 = vmatpush1.msra.mxu0 0.0
    %6912 = vmatprep.subr.mxu0 0.0
    %6913 = vmatpush1.msra.mxu0 0.0
    %6914 = vmatprep.subr.mxu0 0.0
    %6915 = vmatpush1.msra.mxu0 0.0
    %6916 = vmatprep.subr.mxu0 0.0
    %6917 = vmatpush1.msra.mxu0 0.0
    %6918 = vmatprep.subr.mxu0 0.0
    %6919 = vmatpush1.msra.mxu0 %v6890
    %6920 = vmatprep.subr.mxu0 0.0
    %6921 = vmatpush1.msra.mxu0 %v6888
    %6922 = vmatprep.subr.mxu0 0.0
    %6923 = vmatpush1.msra.mxu0 %v6886
    %6924 = vmatprep.subr.mxu0 0.0
    %6925 = vmatpush1.msra.mxu0 %v6884
    %6926 = vmatprep.subr.mxu0 0.0
    %6927 = vmatpush1.msra.mxu0 %v6882
    %6928 = vmatprep.subr.mxu0 0.0
    %6929 = vmatpush1.msra.mxu0 %v6880
    %6930 = vmatprep.subr.mxu0 0.0
    %6931 = vmatpush1.msra.mxu0 %v6878
    %6932 = vmatprep.subr.mxu0 0.0
    %6933 = vmatpush1.msra.mxu0 %v6876
    %6934 = vmatprep.subr.mxu0 0.0
    %6935 = vmatpush2.msra.mxu0 0.0
    %6936 = vmatprep.subr.mxu0 0.0
    %6937 = vmatpush2.msra.mxu0 0.0
    %6938 = vmatprep.subr.mxu0 0.0
    %6939 = vmatpush2.msra.mxu0 0.0
    %6940 = vmatprep.subr.mxu0 0.0
    %6941 = vmatpush2.msra.mxu0 0.0
    %6942 = vmatprep.subr.mxu0 0.0
    %6943 = vmatpush2.msra.mxu0 0.0
    %6944 = vmatprep.subr.mxu0 0.0
    %6945 = vmatpush2.msra.mxu0 0.0
    %6946 = vmatprep.subr.mxu0 0.0
    %6947 = vmatpush2.msra.mxu0 0.0
    %6948 = vmatprep.subr.mxu0 0.0
    %6949 = vmatpush2.msra.mxu0 0.0
    %6950 = vmatprep.subr.mxu0 0.0
    %6951 = vmatpush2.msra.mxu0 0.0
    %6952 = vmatprep.subr.mxu0 0.0
    %6953 = vmatpush2.msra.mxu0 0.0
    %6954 = vmatprep.subr.mxu0 0.0
    %6955 = vmatpush2.msra.mxu0 0.0
    %6956 = vmatprep.subr.mxu0 0.0
    %6957 = vmatpush2.msra.mxu0 0.0
    %6958 = vmatprep.subr.mxu0 0.0
    %6959 = vmatpush2.msra.mxu0 0.0
    %6960 = vmatprep.subr.mxu0 0.0
    %6961 = vmatpush2.msra.mxu0 0.0
    %6962 = vmatprep.subr.mxu0 0.0
    %6963 = vmatpush2.msra.mxu0 0.0
    %6964 = vmatprep.subr.mxu0 0.0
    %6965 = vmatpush2.msra.mxu0 0.0
    %6966 = vmatprep.mubr.f32.mxu0 0.0
    %6967 = vmatmul.mubr.f32.gmra.mxu0 %v6900
    %v6968 = vpop.f32.mrf.mxu0
    %v6969 = vadd.f32 0.0, %v6968
    %v6970 = vpop.f32.mrf.mxu0
    %6971 = vdwg.mxu0
    %v6973 = vsel %vm473, %v6969, 0
    %6975 = vmatprep.subr.mxu0 0.0
    %6976 = vmatpush1.msra.mxu0 0.0
    %6977 = vmatprep.subr.mxu0 0.0
    %6978 = vmatpush1.msra.mxu0 0.0
    %6979 = vmatprep.subr.mxu0 0.0
    %6980 = vmatpush1.msra.mxu0 0.0
    %6981 = vmatprep.subr.mxu0 0.0
    %6982 = vmatpush1.msra.mxu0 0.0
    %6983 = vmatprep.subr.mxu0 0.0
    %6984 = vmatpush1.msra.mxu0 0.0
    %6985 = vmatprep.subr.mxu0 0.0
    %6986 = vmatpush1.msra.mxu0 0.0
    %6987 = vmatprep.subr.mxu0 0.0
    %6988 = vmatpush1.msra.mxu0 0.0
    %6989 = vmatprep.subr.mxu0 0.0
    %6990 = vmatpush1.msra.mxu0 0.0
    %6991 = vmatprep.subr.mxu0 0.0
    %6992 = vmatpush1.msra.mxu0 0.0
    %6993 = vmatprep.subr.mxu0 0.0
    %6994 = vmatpush1.msra.mxu0 0.0
    %6995 = vmatprep.subr.mxu0 0.0
    %6996 = vmatpush1.msra.mxu0 0.0
    %6997 = vmatprep.subr.mxu0 0.0
    %6998 = vmatpush1.msra.mxu0 0.0
    %6999 = vmatprep.subr.mxu0 0.0
    %7000 = vmatpush1.msra.mxu0 0.0
    %7001 = vmatprep.subr.mxu0 0.0
    %7002 = vmatpush1.msra.mxu0 0.0
    %7003 = vmatprep.subr.mxu0 0.0
    %7004 = vmatpush1.msra.mxu0 0.0
    %7005 = vmatprep.subr.mxu0 0.0
    %7006 = vmatpush1.msra.mxu0 %v5295
    %7007 = vmatprep.subr.mxu0 0.0
    %7008 = vmatpush2.msra.mxu0 0.0
    %7009 = vmatprep.subr.mxu0 0.0
    %7010 = vmatpush2.msra.mxu0 0.0
    %7011 = vmatprep.subr.mxu0 0.0
    %7012 = vmatpush2.msra.mxu0 0.0
    %7013 = vmatprep.subr.mxu0 0.0
    %7014 = vmatpush2.msra.mxu0 0.0
    %7015 = vmatprep.subr.mxu0 0.0
    %7016 = vmatpush2.msra.mxu0 0.0
    %7017 = vmatprep.subr.mxu0 0.0
    %7018 = vmatpush2.msra.mxu0 0.0
    %7019 = vmatprep.subr.mxu0 0.0
    %7020 = vmatpush2.msra.mxu0 0.0
    %7021 = vmatprep.subr.mxu0 0.0
    %7022 = vmatpush2.msra.mxu0 0.0
    %7023 = vmatprep.subr.mxu0 0.0
    %7024 = vmatpush2.msra.mxu0 0.0
    %7025 = vmatprep.subr.mxu0 0.0
    %7026 = vmatpush2.msra.mxu0 0.0
    %7027 = vmatprep.subr.mxu0 0.0
    %7028 = vmatpush2.msra.mxu0 0.0
    %7029 = vmatprep.subr.mxu0 0.0
    %7030 = vmatpush2.msra.mxu0 0.0
    %7031 = vmatprep.subr.mxu0 0.0
    %7032 = vmatpush2.msra.mxu0 0.0
    %7033 = vmatprep.subr.mxu0 0.0
    %7034 = vmatpush2.msra.mxu0 0.0
    %7035 = vmatprep.subr.mxu0 0.0
    %7036 = vmatpush2.msra.mxu0 0.0
    %7037 = vmatprep.subr.mxu0 0.0
    %7038 = vmatpush2.msra.mxu0 0.0
    %7039 = vmatprep.mubr.f32.mxu0 0.0
    %7040 = vmatmul.mubr.f32.gmra.mxu0 %v6973
    %v7041 = vpop.f32.mrf.mxu0
    %v7042 = vadd.f32 0.0, %v7041
    %v7043 = vpop.f32.mrf.mxu0
    %7044 = vdwg.mxu0
    %v7045 = vlaneseq
    %v7046 = vshrl.u32 %v7045, 7
    %v7047 = vsub.s32 0, %v7046
    %v7048 = vrot.slane %v5299, %v7047
    %v7049 = vadd.f32 %v7048, %v7042
    %7050 = vrot.lane.b32.xlu0 %v6756, 120
    %v7051 = vpop.permute.xlu0 %7050
    %7052 = vrot.lane.b32.xlu0 %v254, 56
    %v7053 = vpop.permute.xlu0 %7052
    %7054 = vrot.lane.b32.xlu0 %v259, 56
    %v7055 = vpop.permute.xlu0 %7054
    %7056 = vrot.lane.b32.xlu0 %v264, 56
    %v7057 = vpop.permute.xlu0 %7056
    %7058 = vrot.lane.b32.xlu0 %v269, 56
    %v7059 = vpop.permute.xlu0 %7058
    %7060 = vrot.lane.b32.xlu0 %v274, 56
    %v7061 = vpop.permute.xlu0 %7060
    %7062 = vrot.lane.b32.xlu0 %v279, 56
    %v7063 = vpop.permute.xlu0 %7062
    %7064 = vrot.lane.b32.xlu0 %v284, 56
    %v7065 = vpop.permute.xlu0 %7064
    %7066 = vrot.lane.b32.xlu0 %v289, 56
    %v7067 = vpop.permute.xlu0 %7066
    %v7068 = vsel %vm473, %v7051, 0
    %v7070 = vsel %vm473, %v7053, 0
    %v7072 = vsel %vm473, %v7055, 0
    %v7074 = vsel %vm473, %v7057, 0
    %v7076 = vsel %vm473, %v7059, 0
    %v7078 = vsel %vm473, %v7061, 0
    %v7080 = vsel %vm473, %v7063, 0
    %v7082 = vsel %vm473, %v7065, 0
    %v7084 = vsel %vm473, %v7067, 0
    %7086 = vmatprep.subr.mxu0 0.0
    %7087 = vmatpush1.xpose.msra.mxu0 0.0
    %7088 = vmatprep.subr.mxu0 0.0
    %7089 = vmatpush1.xpose.msra.mxu0 0.0
    %7090 = vmatprep.subr.mxu0 0.0
    %7091 = vmatpush1.xpose.msra.mxu0 0.0
    %7092 = vmatprep.subr.mxu0 0.0
    %7093 = vmatpush1.xpose.msra.mxu0 0.0
    %7094 = vmatprep.subr.mxu0 0.0
    %7095 = vmatpush1.xpose.msra.mxu0 0.0
    %7096 = vmatprep.subr.mxu0 0.0
    %7097 = vmatpush1.xpose.msra.mxu0 0.0
    %7098 = vmatprep.subr.mxu0 0.0
    %7099 = vmatpush1.xpose.msra.mxu0 0.0
    %7100 = vmatprep.subr.mxu0 0.0
    %7101 = vmatpush1.xpose.msra.mxu0 0.0
    %7102 = vmatprep.subr.mxu0 0.0
    %7103 = vmatpush1.xpose.msra.mxu0 %v7084
    %7104 = vmatprep.subr.mxu0 0.0
    %7105 = vmatpush1.xpose.msra.mxu0 %v7082
    %7106 = vmatprep.subr.mxu0 0.0
    %7107 = vmatpush1.xpose.msra.mxu0 %v7080
    %7108 = vmatprep.subr.mxu0 0.0
    %7109 = vmatpush1.xpose.msra.mxu0 %v7078
    %7110 = vmatprep.subr.mxu0 0.0
    %7111 = vmatpush1.xpose.msra.mxu0 %v7076
    %7112 = vmatprep.subr.mxu0 0.0
    %7113 = vmatpush1.xpose.msra.mxu0 %v7074
    %7114 = vmatprep.subr.mxu0 0.0
    %7115 = vmatpush1.xpose.msra.mxu0 %v7072
    %7116 = vmatprep.subr.mxu0 0.0
    %7117 = vmatpush1.xpose.msra.mxu0 %v7070
    %7118 = vmatprep.subr.mxu0 0.0
    %7119 = vmatpush2.xpose.msra.mxu0 0.0
    %7120 = vmatprep.subr.mxu0 0.0
    %7121 = vmatpush2.xpose.msra.mxu0 0.0
    %7122 = vmatprep.subr.mxu0 0.0
    %7123 = vmatpush2.xpose.msra.mxu0 0.0
    %7124 = vmatprep.subr.mxu0 0.0
    %7125 = vmatpush2.xpose.msra.mxu0 0.0
    %7126 = vmatprep.subr.mxu0 0.0
    %7127 = vmatpush2.xpose.msra.mxu0 0.0
    %7128 = vmatprep.subr.mxu0 0.0
    %7129 = vmatpush2.xpose.msra.mxu0 0.0
    %7130 = vmatprep.subr.mxu0 0.0
    %7131 = vmatpush2.xpose.msra.mxu0 0.0
    %7132 = vmatprep.subr.mxu0 0.0
    %7133 = vmatpush2.xpose.msra.mxu0 0.0
    %7134 = vmatprep.subr.mxu0 0.0
    %7135 = vmatpush2.xpose.msra.mxu0 0.0
    %7136 = vmatprep.subr.mxu0 0.0
    %7137 = vmatpush2.xpose.msra.mxu0 0.0
    %7138 = vmatprep.subr.mxu0 0.0
    %7139 = vmatpush2.xpose.msra.mxu0 0.0
    %7140 = vmatprep.subr.mxu0 0.0
    %7141 = vmatpush2.xpose.msra.mxu0 0.0
    %7142 = vmatprep.subr.mxu0 0.0
    %7143 = vmatpush2.xpose.msra.mxu0 0.0
    %7144 = vmatprep.subr.mxu0 0.0
    %7145 = vmatpush2.xpose.msra.mxu0 0.0
    %7146 = vmatprep.subr.mxu0 0.0
    %7147 = vmatpush2.xpose.msra.mxu0 0.0
    %7148 = vmatprep.subr.mxu0 0.0
    %7149 = vmatpush2.xpose.msra.mxu0 0.0
    %7150 = vmatprep.mubr.f32.mxu0 0.0
    %7151 = vmatmul.mubr.f32.gmra.mxu0 %v7068
    %v7152 = vpop.f32.mrf.mxu0
    %v7153 = vadd.f32 %v5320, %v7152
    %v7154 = vpop.f32.mrf.mxu0
    %7155 = vdwg.mxu0
    %v7156 = vsel %vm2868, %v7153, -inf
    %7157 = vmax.xlane.f32.xlu0 %v7156
    %v7158 = vpop.xlane.xlu0 %7157
    %v7159 = vsub.f32 %v7153, %v7158
    %v7160 = vmul.f32 %v7159, 1.442695
    %v7161 = vpow.pop %v7160
    %v7162 = vsel %vm2868, %v7161, 0.0
    %7163 = vadd.xlane.f32.xlu0 %v7162
    %v7164 = vpop.xlane.xlu0 %7163
    %v7165 = vrcp.pop %v7164
    %v7166 = vmul.f32 %v7161, %v7165
    %7167 = vrot.lane.b32.xlu0 %v254, 24
    %v7168 = vpop.permute.xlu0 %7167
    %7169 = vrot.lane.b32.xlu0 %v259, 24
    %v7170 = vpop.permute.xlu0 %7169
    %7171 = vrot.lane.b32.xlu0 %v264, 24
    %v7172 = vpop.permute.xlu0 %7171
    %7173 = vrot.lane.b32.xlu0 %v269, 24
    %v7174 = vpop.permute.xlu0 %7173
    %7175 = vrot.lane.b32.xlu0 %v274, 24
    %v7176 = vpop.permute.xlu0 %7175
    %7177 = vrot.lane.b32.xlu0 %v279, 24
    %v7178 = vpop.permute.xlu0 %7177
    %7179 = vrot.lane.b32.xlu0 %v284, 24
    %v7180 = vpop.permute.xlu0 %7179
    %7181 = vrot.lane.b32.xlu0 %v289, 24
    %v7182 = vpop.permute.xlu0 %7181
    %v7192 = vsel %vm2868, %v7166, 0
    %7194 = vmatprep.subr.mxu0 0.0
    %7195 = vmatpush1.msra.mxu0 0.0
    %7196 = vmatprep.subr.mxu0 0.0
    %7197 = vmatpush1.msra.mxu0 0.0
    %7198 = vmatprep.subr.mxu0 0.0
    %7199 = vmatpush1.msra.mxu0 0.0
    %7200 = vmatprep.subr.mxu0 0.0
    %7201 = vmatpush1.msra.mxu0 0.0
    %7202 = vmatprep.subr.mxu0 0.0
    %7203 = vmatpush1.msra.mxu0 0.0
    %7204 = vmatprep.subr.mxu0 0.0
    %7205 = vmatpush1.msra.mxu0 0.0
    %7206 = vmatprep.subr.mxu0 0.0
    %7207 = vmatpush1.msra.mxu0 0.0
    %7208 = vmatprep.subr.mxu0 0.0
    %7209 = vmatpush1.msra.mxu0 0.0
    %7210 = vmatprep.subr.mxu0 0.0
    %7211 = vmatpush1.msra.mxu0 %v7182
    %7212 = vmatprep.subr.mxu0 0.0
    %7213 = vmatpush1.msra.mxu0 %v7180
    %7214 = vmatprep.subr.mxu0 0.0
    %7215 = vmatpush1.msra.mxu0 %v7178
    %7216 = vmatprep.subr.mxu0 0.0
    %7217 = vmatpush1.msra.mxu0 %v7176
    %7218 = vmatprep.subr.mxu0 0.0
    %7219 = vmatpush1.msra.mxu0 %v7174
    %7220 = vmatprep.subr.mxu0 0.0
    %7221 = vmatpush1.msra.mxu0 %v7172
    %7222 = vmatprep.subr.mxu0 0.0
    %7223 = vmatpush1.msra.mxu0 %v7170
    %7224 = vmatprep.subr.mxu0 0.0
    %7225 = vmatpush1.msra.mxu0 %v7168
    %7226 = vmatprep.subr.mxu0 0.0
    %7227 = vmatpush2.msra.mxu0 0.0
    %7228 = vmatprep.subr.mxu0 0.0
    %7229 = vmatpush2.msra.mxu0 0.0
    %7230 = vmatprep.subr.mxu0 0.0
    %7231 = vmatpush2.msra.mxu0 0.0
    %7232 = vmatprep.subr.mxu0 0.0
    %7233 = vmatpush2.msra.mxu0 0.0
    %7234 = vmatprep.subr.mxu0 0.0
    %7235 = vmatpush2.msra.mxu0 0.0
    %7236 = vmatprep.subr.mxu0 0.0
    %7237 = vmatpush2.msra.mxu0 0.0
    %7238 = vmatprep.subr.mxu0 0.0
    %7239 = vmatpush2.msra.mxu0 0.0
    %7240 = vmatprep.subr.mxu0 0.0
    %7241 = vmatpush2.msra.mxu0 0.0
    %7242 = vmatprep.subr.mxu0 0.0
    %7243 = vmatpush2.msra.mxu0 0.0
    %7244 = vmatprep.subr.mxu0 0.0
    %7245 = vmatpush2.msra.mxu0 0.0
    %7246 = vmatprep.subr.mxu0 0.0
    %7247 = vmatpush2.msra.mxu0 0.0
    %7248 = vmatprep.subr.mxu0 0.0
    %7249 = vmatpush2.msra.mxu0 0.0
    %7250 = vmatprep.subr.mxu0 0.0
    %7251 = vmatpush2.msra.mxu0 0.0
    %7252 = vmatprep.subr.mxu0 0.0
    %7253 = vmatpush2.msra.mxu0 0.0
    %7254 = vmatprep.subr.mxu0 0.0
    %7255 = vmatpush2.msra.mxu0 0.0
    %7256 = vmatprep.subr.mxu0 0.0
    %7257 = vmatpush2.msra.mxu0 0.0
    %7258 = vmatprep.mubr.f32.mxu0 0.0
    %7259 = vmatmul.mubr.f32.gmra.mxu0 %v7192
    %v7260 = vpop.f32.mrf.mxu0
    %v7261 = vadd.f32 0.0, %v7260
    %v7262 = vpop.f32.mrf.mxu0
    %7263 = vdwg.mxu0
    %v7265 = vsel %vm473, %v7261, 0
    %7267 = vmatprep.subr.mxu0 0.0
    %7268 = vmatpush1.msra.mxu0 0.0
    %7269 = vmatprep.subr.mxu0 0.0
    %7270 = vmatpush1.msra.mxu0 0.0
    %7271 = vmatprep.subr.mxu0 0.0
    %7272 = vmatpush1.msra.mxu0 0.0
    %7273 = vmatprep.subr.mxu0 0.0
    %7274 = vmatpush1.msra.mxu0 0.0
    %7275 = vmatprep.subr.mxu0 0.0
    %7276 = vmatpush1.msra.mxu0 0.0
    %7277 = vmatprep.subr.mxu0 0.0
    %7278 = vmatpush1.msra.mxu0 0.0
    %7279 = vmatprep.subr.mxu0 0.0
    %7280 = vmatpush1.msra.mxu0 0.0
    %7281 = vmatprep.subr.mxu0 0.0
    %7282 = vmatpush1.msra.mxu0 0.0
    %7283 = vmatprep.subr.mxu0 0.0
    %7284 = vmatpush1.msra.mxu0 0.0
    %7285 = vmatprep.subr.mxu0 0.0
    %7286 = vmatpush1.msra.mxu0 0.0
    %7287 = vmatprep.subr.mxu0 0.0
    %7288 = vmatpush1.msra.mxu0 0.0
    %7289 = vmatprep.subr.mxu0 0.0
    %7290 = vmatpush1.msra.mxu0 0.0
    %7291 = vmatprep.subr.mxu0 0.0
    %7292 = vmatpush1.msra.mxu0 0.0
    %7293 = vmatprep.subr.mxu0 0.0
    %7294 = vmatpush1.msra.mxu0 0.0
    %7295 = vmatprep.subr.mxu0 0.0
    %7296 = vmatpush1.msra.mxu0 0.0
    %7297 = vmatprep.subr.mxu0 0.0
    %7298 = vmatpush1.msra.mxu0 %v5296
    %7299 = vmatprep.subr.mxu0 0.0
    %7300 = vmatpush2.msra.mxu0 0.0
    %7301 = vmatprep.subr.mxu0 0.0
    %7302 = vmatpush2.msra.mxu0 0.0
    %7303 = vmatprep.subr.mxu0 0.0
    %7304 = vmatpush2.msra.mxu0 0.0
    %7305 = vmatprep.subr.mxu0 0.0
    %7306 = vmatpush2.msra.mxu0 0.0
    %7307 = vmatprep.subr.mxu0 0.0
    %7308 = vmatpush2.msra.mxu0 0.0
    %7309 = vmatprep.subr.mxu0 0.0
    %7310 = vmatpush2.msra.mxu0 0.0
    %7311 = vmatprep.subr.mxu0 0.0
    %7312 = vmatpush2.msra.mxu0 0.0
    %7313 = vmatprep.subr.mxu0 0.0
    %7314 = vmatpush2.msra.mxu0 0.0
    %7315 = vmatprep.subr.mxu0 0.0
    %7316 = vmatpush2.msra.mxu0 0.0
    %7317 = vmatprep.subr.mxu0 0.0
    %7318 = vmatpush2.msra.mxu0 0.0
    %7319 = vmatprep.subr.mxu0 0.0
    %7320 = vmatpush2.msra.mxu0 0.0
    %7321 = vmatprep.subr.mxu0 0.0
    %7322 = vmatpush2.msra.mxu0 0.0
    %7323 = vmatprep.subr.mxu0 0.0
    %7324 = vmatpush2.msra.mxu0 0.0
    %7325 = vmatprep.subr.mxu0 0.0
    %7326 = vmatpush2.msra.mxu0 0.0
    %7327 = vmatprep.subr.mxu0 0.0
    %7328 = vmatpush2.msra.mxu0 0.0
    %7329 = vmatprep.subr.mxu0 0.0
    %7330 = vmatpush2.msra.mxu0 0.0
    %7331 = vmatprep.mubr.f32.mxu0 0.0
    %7332 = vmatmul.mubr.f32.gmra.mxu0 %v7265
    %v7333 = vpop.f32.mrf.mxu0
    %v7334 = vadd.f32 0.0, %v7333
    %v7335 = vpop.f32.mrf.mxu0
    %7336 = vdwg.mxu0
    %v7337 = vadd.f32 %v7049, %v7334
    %7338 = vrot.lane.b32.xlu0 %v6756, 112
    %v7339 = vpop.permute.xlu0 %7338
    %7340 = vrot.lane.b32.xlu0 %v254, 48
    %v7341 = vpop.permute.xlu0 %7340
    %7342 = vrot.lane.b32.xlu0 %v259, 48
    %v7343 = vpop.permute.xlu0 %7342
    %7344 = vrot.lane.b32.xlu0 %v264, 48
    %v7345 = vpop.permute.xlu0 %7344
    %7346 = vrot.lane.b32.xlu0 %v269, 48
    %v7347 = vpop.permute.xlu0 %7346
    %7348 = vrot.lane.b32.xlu0 %v274, 48
    %v7349 = vpop.permute.xlu0 %7348
    %7350 = vrot.lane.b32.xlu0 %v279, 48
    %v7351 = vpop.permute.xlu0 %7350
    %7352 = vrot.lane.b32.xlu0 %v284, 48
    %v7353 = vpop.permute.xlu0 %7352
    %7354 = vrot.lane.b32.xlu0 %v289, 48
    %v7355 = vpop.permute.xlu0 %7354
    %v7356 = vsel %vm473, %v7339, 0
    %v7358 = vsel %vm473, %v7341, 0
    %v7360 = vsel %vm473, %v7343, 0
    %v7362 = vsel %vm473, %v7345, 0
    %v7364 = vsel %vm473, %v7347, 0
    %v7366 = vsel %vm473, %v7349, 0
    %v7368 = vsel %vm473, %v7351, 0
    %v7370 = vsel %vm473, %v7353, 0
    %v7372 = vsel %vm473, %v7355, 0
    %7374 = vmatprep.subr.mxu0 0.0
    %7375 = vmatpush1.xpose.msra.mxu0 0.0
    %7376 = vmatprep.subr.mxu0 0.0
    %7377 = vmatpush1.xpose.msra.mxu0 0.0
    %7378 = vmatprep.subr.mxu0 0.0
    %7379 = vmatpush1.xpose.msra.mxu0 0.0
    %7380 = vmatprep.subr.mxu0 0.0
    %7381 = vmatpush1.xpose.msra.mxu0 0.0
    %7382 = vmatprep.subr.mxu0 0.0
    %7383 = vmatpush1.xpose.msra.mxu0 0.0
    %7384 = vmatprep.subr.mxu0 0.0
    %7385 = vmatpush1.xpose.msra.mxu0 0.0
    %7386 = vmatprep.subr.mxu0 0.0
    %7387 = vmatpush1.xpose.msra.mxu0 0.0
    %7388 = vmatprep.subr.mxu0 0.0
    %7389 = vmatpush1.xpose.msra.mxu0 0.0
    %7390 = vmatprep.subr.mxu0 0.0
    %7391 = vmatpush1.xpose.msra.mxu0 %v7372
    %7392 = vmatprep.subr.mxu0 0.0
    %7393 = vmatpush1.xpose.msra.mxu0 %v7370
    %7394 = vmatprep.subr.mxu0 0.0
    %7395 = vmatpush1.xpose.msra.mxu0 %v7368
    %7396 = vmatprep.subr.mxu0 0.0
    %7397 = vmatpush1.xpose.msra.mxu0 %v7366
    %7398 = vmatprep.subr.mxu0 0.0
    %7399 = vmatpush1.xpose.msra.mxu0 %v7364
    %7400 = vmatprep.subr.mxu0 0.0
    %7401 = vmatpush1.xpose.msra.mxu0 %v7362
    %7402 = vmatprep.subr.mxu0 0.0
    %7403 = vmatpush1.xpose.msra.mxu0 %v7360
    %7404 = vmatprep.subr.mxu0 0.0
    %7405 = vmatpush1.xpose.msra.mxu0 %v7358
    %7406 = vmatprep.subr.mxu0 0.0
    %7407 = vmatpush2.xpose.msra.mxu0 0.0
    %7408 = vmatprep.subr.mxu0 0.0
    %7409 = vmatpush2.xpose.msra.mxu0 0.0
    %7410 = vmatprep.subr.mxu0 0.0
    %7411 = vmatpush2.xpose.msra.mxu0 0.0
    %7412 = vmatprep.subr.mxu0 0.0
    %7413 = vmatpush2.xpose.msra.mxu0 0.0
    %7414 = vmatprep.subr.mxu0 0.0
    %7415 = vmatpush2.xpose.msra.mxu0 0.0
    %7416 = vmatprep.subr.mxu0 0.0
    %7417 = vmatpush2.xpose.msra.mxu0 0.0
    %7418 = vmatprep.subr.mxu0 0.0
    %7419 = vmatpush2.xpose.msra.mxu0 0.0
    %7420 = vmatprep.subr.mxu0 0.0
    %7421 = vmatpush2.xpose.msra.mxu0 0.0
    %7422 = vmatprep.subr.mxu0 0.0
    %7423 = vmatpush2.xpose.msra.mxu0 0.0
    %7424 = vmatprep.subr.mxu0 0.0
    %7425 = vmatpush2.xpose.msra.mxu0 0.0
    %7426 = vmatprep.subr.mxu0 0.0
    %7427 = vmatpush2.xpose.msra.mxu0 0.0
    %7428 = vmatprep.subr.mxu0 0.0
    %7429 = vmatpush2.xpose.msra.mxu0 0.0
    %7430 = vmatprep.subr.mxu0 0.0
    %7431 = vmatpush2.xpose.msra.mxu0 0.0
    %7432 = vmatprep.subr.mxu0 0.0
    %7433 = vmatpush2.xpose.msra.mxu0 0.0
    %7434 = vmatprep.subr.mxu0 0.0
    %7435 = vmatpush2.xpose.msra.mxu0 0.0
    %7436 = vmatprep.subr.mxu0 0.0
    %7437 = vmatpush2.xpose.msra.mxu0 0.0
    %7438 = vmatprep.mubr.f32.mxu0 0.0
    %7439 = vmatmul.mubr.f32.gmra.mxu0 %v7356
    %v7440 = vpop.f32.mrf.mxu0
    %v7441 = vadd.f32 %v5320, %v7440
    %v7442 = vpop.f32.mrf.mxu0
    %7443 = vdwg.mxu0
    %v7444 = vsel %vm2868, %v7441, -inf
    %7445 = vmax.xlane.f32.xlu0 %v7444
    %v7446 = vpop.xlane.xlu0 %7445
    %v7447 = vsub.f32 %v7441, %v7446
    %v7448 = vmul.f32 %v7447, 1.442695
    %v7449 = vpow.pop %v7448
    %v7450 = vsel %vm2868, %v7449, 0.0
    %7451 = vadd.xlane.f32.xlu0 %v7450
    %v7452 = vpop.xlane.xlu0 %7451
    %v7453 = vrcp.pop %v7452
    %v7454 = vmul.f32 %v7449, %v7453
    %7455 = vrot.lane.b32.xlu0 %v254, 16
    %v7456 = vpop.permute.xlu0 %7455
    %7457 = vrot.lane.b32.xlu0 %v259, 16
    %v7458 = vpop.permute.xlu0 %7457
    %7459 = vrot.lane.b32.xlu0 %v264, 16
    %v7460 = vpop.permute.xlu0 %7459
    %7461 = vrot.lane.b32.xlu0 %v269, 16
    %v7462 = vpop.permute.xlu0 %7461
    %7463 = vrot.lane.b32.xlu0 %v274, 16
    %v7464 = vpop.permute.xlu0 %7463
    %7465 = vrot.lane.b32.xlu0 %v279, 16
    %v7466 = vpop.permute.xlu0 %7465
    %7467 = vrot.lane.b32.xlu0 %v284, 16
    %v7468 = vpop.permute.xlu0 %7467
    %7469 = vrot.lane.b32.xlu0 %v289, 16
    %v7470 = vpop.permute.xlu0 %7469
    %v7480 = vsel %vm2868, %v7454, 0
    %7482 = vmatprep.subr.mxu0 0.0
    %7483 = vmatpush1.msra.mxu0 0.0
    %7484 = vmatprep.subr.mxu0 0.0
    %7485 = vmatpush1.msra.mxu0 0.0
    %7486 = vmatprep.subr.mxu0 0.0
    %7487 = vmatpush1.msra.mxu0 0.0
    %7488 = vmatprep.subr.mxu0 0.0
    %7489 = vmatpush1.msra.mxu0 0.0
    %7490 = vmatprep.subr.mxu0 0.0
    %7491 = vmatpush1.msra.mxu0 0.0
    %7492 = vmatprep.subr.mxu0 0.0
    %7493 = vmatpush1.msra.mxu0 0.0
    %7494 = vmatprep.subr.mxu0 0.0
    %7495 = vmatpush1.msra.mxu0 0.0
    %7496 = vmatprep.subr.mxu0 0.0
    %7497 = vmatpush1.msra.mxu0 0.0
    %7498 = vmatprep.subr.mxu0 0.0
    %7499 = vmatpush1.msra.mxu0 %v7470
    %7500 = vmatprep.subr.mxu0 0.0
    %7501 = vmatpush1.msra.mxu0 %v7468
    %7502 = vmatprep.subr.mxu0 0.0
    %7503 = vmatpush1.msra.mxu0 %v7466
    %7504 = vmatprep.subr.mxu0 0.0
    %7505 = vmatpush1.msra.mxu0 %v7464
    %7506 = vmatprep.subr.mxu0 0.0
    %7507 = vmatpush1.msra.mxu0 %v7462
    %7508 = vmatprep.subr.mxu0 0.0
    %7509 = vmatpush1.msra.mxu0 %v7460
    %7510 = vmatprep.subr.mxu0 0.0
    %7511 = vmatpush1.msra.mxu0 %v7458
    %7512 = vmatprep.subr.mxu0 0.0
    %7513 = vmatpush1.msra.mxu0 %v7456
    %7514 = vmatprep.subr.mxu0 0.0
    %7515 = vmatpush2.msra.mxu0 0.0
    %7516 = vmatprep.subr.mxu0 0.0
    %7517 = vmatpush2.msra.mxu0 0.0
    %7518 = vmatprep.subr.mxu0 0.0
    %7519 = vmatpush2.msra.mxu0 0.0
    %7520 = vmatprep.subr.mxu0 0.0
    %7521 = vmatpush2.msra.mxu0 0.0
    %7522 = vmatprep.subr.mxu0 0.0
    %7523 = vmatpush2.msra.mxu0 0.0
    %7524 = vmatprep.subr.mxu0 0.0
    %7525 = vmatpush2.msra.mxu0 0.0
    %7526 = vmatprep.subr.mxu0 0.0
    %7527 = vmatpush2.msra.mxu0 0.0
    %7528 = vmatprep.subr.mxu0 0.0
    %7529 = vmatpush2.msra.mxu0 0.0
    %7530 = vmatprep.subr.mxu0 0.0
    %7531 = vmatpush2.msra.mxu0 0.0
    %7532 = vmatprep.subr.mxu0 0.0
    %7533 = vmatpush2.msra.mxu0 0.0
    %7534 = vmatprep.subr.mxu0 0.0
    %7535 = vmatpush2.msra.mxu0 0.0
    %7536 = vmatprep.subr.mxu0 0.0
    %7537 = vmatpush2.msra.mxu0 0.0
    %7538 = vmatprep.subr.mxu0 0.0
    %7539 = vmatpush2.msra.mxu0 0.0
    %7540 = vmatprep.subr.mxu0 0.0
    %7541 = vmatpush2.msra.mxu0 0.0
    %7542 = vmatprep.subr.mxu0 0.0
    %7543 = vmatpush2.msra.mxu0 0.0
    %7544 = vmatprep.subr.mxu0 0.0
    %7545 = vmatpush2.msra.mxu0 0.0
    %7546 = vmatprep.mubr.f32.mxu0 0.0
    %7547 = vmatmul.mubr.f32.gmra.mxu0 %v7480
    %v7548 = vpop.f32.mrf.mxu0
    %v7549 = vadd.f32 0.0, %v7548
    %v7550 = vpop.f32.mrf.mxu0
    %7551 = vdwg.mxu0
    %v7553 = vsel %vm473, %v7549, 0
    %7555 = vmatprep.subr.mxu0 0.0
    %7556 = vmatpush1.msra.mxu0 0.0
    %7557 = vmatprep.subr.mxu0 0.0
    %7558 = vmatpush1.msra.mxu0 0.0
    %7559 = vmatprep.subr.mxu0 0.0
    %7560 = vmatpush1.msra.mxu0 0.0
    %7561 = vmatprep.subr.mxu0 0.0
    %7562 = vmatpush1.msra.mxu0 0.0
    %7563 = vmatprep.subr.mxu0 0.0
    %7564 = vmatpush1.msra.mxu0 0.0
    %7565 = vmatprep.subr.mxu0 0.0
    %7566 = vmatpush1.msra.mxu0 0.0
    %7567 = vmatprep.subr.mxu0 0.0
    %7568 = vmatpush1.msra.mxu0 0.0
    %7569 = vmatprep.subr.mxu0 0.0
    %7570 = vmatpush1.msra.mxu0 0.0
    %7571 = vmatprep.subr.mxu0 0.0
    %7572 = vmatpush1.msra.mxu0 0.0
    %7573 = vmatprep.subr.mxu0 0.0
    %7574 = vmatpush1.msra.mxu0 0.0
    %7575 = vmatprep.subr.mxu0 0.0
    %7576 = vmatpush1.msra.mxu0 0.0
    %7577 = vmatprep.subr.mxu0 0.0
    %7578 = vmatpush1.msra.mxu0 0.0
    %7579 = vmatprep.subr.mxu0 0.0
    %7580 = vmatpush1.msra.mxu0 0.0
    %7581 = vmatprep.subr.mxu0 0.0
    %7582 = vmatpush1.msra.mxu0 0.0
    %7583 = vmatprep.subr.mxu0 0.0
    %7584 = vmatpush1.msra.mxu0 0.0
    %7585 = vmatprep.subr.mxu0 0.0
    %7586 = vmatpush1.msra.mxu0 %v5297
    %7587 = vmatprep.subr.mxu0 0.0
    %7588 = vmatpush2.msra.mxu0 0.0
    %7589 = vmatprep.subr.mxu0 0.0
    %7590 = vmatpush2.msra.mxu0 0.0
    %7591 = vmatprep.subr.mxu0 0.0
    %7592 = vmatpush2.msra.mxu0 0.0
    %7593 = vmatprep.subr.mxu0 0.0
    %7594 = vmatpush2.msra.mxu0 0.0
    %7595 = vmatprep.subr.mxu0 0.0
    %7596 = vmatpush2.msra.mxu0 0.0
    %7597 = vmatprep.subr.mxu0 0.0
    %7598 = vmatpush2.msra.mxu0 0.0
    %7599 = vmatprep.subr.mxu0 0.0
    %7600 = vmatpush2.msra.mxu0 0.0
    %7601 = vmatprep.subr.mxu0 0.0
    %7602 = vmatpush2.msra.mxu0 0.0
    %7603 = vmatprep.subr.mxu0 0.0
    %7604 = vmatpush2.msra.mxu0 0.0
    %7605 = vmatprep.subr.mxu0 0.0
    %7606 = vmatpush2.msra.mxu0 0.0
    %7607 = vmatprep.subr.mxu0 0.0
    %7608 = vmatpush2.msra.mxu0 0.0
    %7609 = vmatprep.subr.mxu0 0.0
    %7610 = vmatpush2.msra.mxu0 0.0
    %7611 = vmatprep.subr.mxu0 0.0
    %7612 = vmatpush2.msra.mxu0 0.0
    %7613 = vmatprep.subr.mxu0 0.0
    %7614 = vmatpush2.msra.mxu0 0.0
    %7615 = vmatprep.subr.mxu0 0.0
    %7616 = vmatpush2.msra.mxu0 0.0
    %7617 = vmatprep.subr.mxu0 0.0
    %7618 = vmatpush2.msra.mxu0 0.0
    %7619 = vmatprep.mubr.f32.mxu0 0.0
    %7620 = vmatmul.mubr.f32.gmra.mxu0 %v7553
    %v7621 = vpop.f32.mrf.mxu0
    %v7622 = vadd.f32 0.0, %v7621
    %v7623 = vpop.f32.mrf.mxu0
    %7624 = vdwg.mxu0
    %v7625 = vadd.f32 %v7337, %v7622
    %7626 = vrot.lane.b32.xlu0 %v6756, 104
    %v7627 = vpop.permute.xlu0 %7626
    %7628 = vrot.lane.b32.xlu0 %v254, 40
    %v7629 = vpop.permute.xlu0 %7628
    %7630 = vrot.lane.b32.xlu0 %v259, 40
    %v7631 = vpop.permute.xlu0 %7630
    %7632 = vrot.lane.b32.xlu0 %v264, 40
    %v7633 = vpop.permute.xlu0 %7632
    %7634 = vrot.lane.b32.xlu0 %v269, 40
    %v7635 = vpop.permute.xlu0 %7634
    %7636 = vrot.lane.b32.xlu0 %v274, 40
    %v7637 = vpop.permute.xlu0 %7636
    %7638 = vrot.lane.b32.xlu0 %v279, 40
    %v7639 = vpop.permute.xlu0 %7638
    %7640 = vrot.lane.b32.xlu0 %v284, 40
    %v7641 = vpop.permute.xlu0 %7640
    %7642 = vrot.lane.b32.xlu0 %v289, 40
    %v7643 = vpop.permute.xlu0 %7642
    %v7644 = vsel %vm473, %v7627, 0
    %v7646 = vsel %vm473, %v7629, 0
    %v7648 = vsel %vm473, %v7631, 0
    %v7650 = vsel %vm473, %v7633, 0
    %v7652 = vsel %vm473, %v7635, 0
    %v7654 = vsel %vm473, %v7637, 0
    %v7656 = vsel %vm473, %v7639, 0
    %v7658 = vsel %vm473, %v7641, 0
    %v7660 = vsel %vm473, %v7643, 0
    %7662 = vmatprep.subr.mxu0 0.0
    %7663 = vmatpush1.xpose.msra.mxu0 0.0
    %7664 = vmatprep.subr.mxu0 0.0
    %7665 = vmatpush1.xpose.msra.mxu0 0.0
    %7666 = vmatprep.subr.mxu0 0.0
    %7667 = vmatpush1.xpose.msra.mxu0 0.0
    %7668 = vmatprep.subr.mxu0 0.0
    %7669 = vmatpush1.xpose.msra.mxu0 0.0
    %7670 = vmatprep.subr.mxu0 0.0
    %7671 = vmatpush1.xpose.msra.mxu0 0.0
    %7672 = vmatprep.subr.mxu0 0.0
    %7673 = vmatpush1.xpose.msra.mxu0 0.0
    %7674 = vmatprep.subr.mxu0 0.0
    %7675 = vmatpush1.xpose.msra.mxu0 0.0
    %7676 = vmatprep.subr.mxu0 0.0
    %7677 = vmatpush1.xpose.msra.mxu0 0.0
    %7678 = vmatprep.subr.mxu0 0.0
    %7679 = vmatpush1.xpose.msra.mxu0 %v7660
    %7680 = vmatprep.subr.mxu0 0.0
    %7681 = vmatpush1.xpose.msra.mxu0 %v7658
    %7682 = vmatprep.subr.mxu0 0.0
    %7683 = vmatpush1.xpose.msra.mxu0 %v7656
    %7684 = vmatprep.subr.mxu0 0.0
    %7685 = vmatpush1.xpose.msra.mxu0 %v7654
    %7686 = vmatprep.subr.mxu0 0.0
    %7687 = vmatpush1.xpose.msra.mxu0 %v7652
    %7688 = vmatprep.subr.mxu0 0.0
    %7689 = vmatpush1.xpose.msra.mxu0 %v7650
    %7690 = vmatprep.subr.mxu0 0.0
    %7691 = vmatpush1.xpose.msra.mxu0 %v7648
    %7692 = vmatprep.subr.mxu0 0.0
    %7693 = vmatpush1.xpose.msra.mxu0 %v7646
    %7694 = vmatprep.subr.mxu0 0.0
    %7695 = vmatpush2.xpose.msra.mxu0 0.0
    %7696 = vmatprep.subr.mxu0 0.0
    %7697 = vmatpush2.xpose.msra.mxu0 0.0
    %7698 = vmatprep.subr.mxu0 0.0
    %7699 = vmatpush2.xpose.msra.mxu0 0.0
    %7700 = vmatprep.subr.mxu0 0.0
    %7701 = vmatpush2.xpose.msra.mxu0 0.0
    %7702 = vmatprep.subr.mxu0 0.0
    %7703 = vmatpush2.xpose.msra.mxu0 0.0
    %7704 = vmatprep.subr.mxu0 0.0
    %7705 = vmatpush2.xpose.msra.mxu0 0.0
    %7706 = vmatprep.subr.mxu0 0.0
    %7707 = vmatpush2.xpose.msra.mxu0 0.0
    %7708 = vmatprep.subr.mxu0 0.0
    %7709 = vmatpush2.xpose.msra.mxu0 0.0
    %7710 = vmatprep.subr.mxu0 0.0
    %7711 = vmatpush2.xpose.msra.mxu0 0.0
    %7712 = vmatprep.subr.mxu0 0.0
    %7713 = vmatpush2.xpose.msra.mxu0 0.0
    %7714 = vmatprep.subr.mxu0 0.0
    %7715 = vmatpush2.xpose.msra.mxu0 0.0
    %7716 = vmatprep.subr.mxu0 0.0
    %7717 = vmatpush2.xpose.msra.mxu0 0.0
    %7718 = vmatprep.subr.mxu0 0.0
    %7719 = vmatpush2.xpose.msra.mxu0 0.0
    %7720 = vmatprep.subr.mxu0 0.0
    %7721 = vmatpush2.xpose.msra.mxu0 0.0
    %7722 = vmatprep.subr.mxu0 0.0
    %7723 = vmatpush2.xpose.msra.mxu0 0.0
    %7724 = vmatprep.subr.mxu0 0.0
    %7725 = vmatpush2.xpose.msra.mxu0 0.0
    %7726 = vmatprep.mubr.f32.mxu0 0.0
    %7727 = vmatmul.mubr.f32.gmra.mxu0 %v7644
    %v7728 = vpop.f32.mrf.mxu0
    %v7729 = vadd.f32 %v5320, %v7728
    %v7730 = vpop.f32.mrf.mxu0
    %7731 = vdwg.mxu0
    %v7732 = vsel %vm2868, %v7729, -inf
    %7733 = vmax.xlane.f32.xlu0 %v7732
    %v7734 = vpop.xlane.xlu0 %7733
    %v7735 = vsub.f32 %v7729, %v7734
    %v7736 = vmul.f32 %v7735, 1.442695
    %v7737 = vpow.pop %v7736
    %v7738 = vsel %vm2868, %v7737, 0.0
    %7739 = vadd.xlane.f32.xlu0 %v7738
    %v7740 = vpop.xlane.xlu0 %7739
    %v7741 = vrcp.pop %v7740
    %v7742 = vmul.f32 %v7737, %v7741
    %7743 = vrot.lane.b32.xlu0 %v254, 8
    %v7744 = vpop.permute.xlu0 %7743
    %7745 = vrot.lane.b32.xlu0 %v259, 8
    %v7746 = vpop.permute.xlu0 %7745
    %7747 = vrot.lane.b32.xlu0 %v264, 8
    %v7748 = vpop.permute.xlu0 %7747
    %7749 = vrot.lane.b32.xlu0 %v269, 8
    %v7750 = vpop.permute.xlu0 %7749
    %7751 = vrot.lane.b32.xlu0 %v274, 8
    %v7752 = vpop.permute.xlu0 %7751
    %7753 = vrot.lane.b32.xlu0 %v279, 8
    %v7754 = vpop.permute.xlu0 %7753
    %7755 = vrot.lane.b32.xlu0 %v284, 8
    %v7756 = vpop.permute.xlu0 %7755
    %7757 = vrot.lane.b32.xlu0 %v289, 8
    %v7758 = vpop.permute.xlu0 %7757
    %v7768 = vsel %vm2868, %v7742, 0
    %7770 = vmatprep.subr.mxu0 0.0
    %7771 = vmatpush1.msra.mxu0 0.0
    %7772 = vmatprep.subr.mxu0 0.0
    %7773 = vmatpush1.msra.mxu0 0.0
    %7774 = vmatprep.subr.mxu0 0.0
    %7775 = vmatpush1.msra.mxu0 0.0
    %7776 = vmatprep.subr.mxu0 0.0
    %7777 = vmatpush1.msra.mxu0 0.0
    %7778 = vmatprep.subr.mxu0 0.0
    %7779 = vmatpush1.msra.mxu0 0.0
    %7780 = vmatprep.subr.mxu0 0.0
    %7781 = vmatpush1.msra.mxu0 0.0
    %7782 = vmatprep.subr.mxu0 0.0
    %7783 = vmatpush1.msra.mxu0 0.0
    %7784 = vmatprep.subr.mxu0 0.0
    %7785 = vmatpush1.msra.mxu0 0.0
    %7786 = vmatprep.subr.mxu0 0.0
    %7787 = vmatpush1.msra.mxu0 %v7758
    %7788 = vmatprep.subr.mxu0 0.0
    %7789 = vmatpush1.msra.mxu0 %v7756
    %7790 = vmatprep.subr.mxu0 0.0
    %7791 = vmatpush1.msra.mxu0 %v7754
    %7792 = vmatprep.subr.mxu0 0.0
    %7793 = vmatpush1.msra.mxu0 %v7752
    %7794 = vmatprep.subr.mxu0 0.0
    %7795 = vmatpush1.msra.mxu0 %v7750
    %7796 = vmatprep.subr.mxu0 0.0
    %7797 = vmatpush1.msra.mxu0 %v7748
    %7798 = vmatprep.subr.mxu0 0.0
    %7799 = vmatpush1.msra.mxu0 %v7746
    %7800 = vmatprep.subr.mxu0 0.0
    %7801 = vmatpush1.msra.mxu0 %v7744
    %7802 = vmatprep.subr.mxu0 0.0
    %7803 = vmatpush2.msra.mxu0 0.0
    %7804 = vmatprep.subr.mxu0 0.0
    %7805 = vmatpush2.msra.mxu0 0.0
    %7806 = vmatprep.subr.mxu0 0.0
    %7807 = vmatpush2.msra.mxu0 0.0
    %7808 = vmatprep.subr.mxu0 0.0
    %7809 = vmatpush2.msra.mxu0 0.0
    %7810 = vmatprep.subr.mxu0 0.0
    %7811 = vmatpush2.msra.mxu0 0.0
    %7812 = vmatprep.subr.mxu0 0.0
    %7813 = vmatpush2.msra.mxu0 0.0
    %7814 = vmatprep.subr.mxu0 0.0
    %7815 = vmatpush2.msra.mxu0 0.0
    %7816 = vmatprep.subr.mxu0 0.0
    %7817 = vmatpush2.msra.mxu0 0.0
    %7818 = vmatprep.subr.mxu0 0.0
    %7819 = vmatpush2.msra.mxu0 0.0
    %7820 = vmatprep.subr.mxu0 0.0
    %7821 = vmatpush2.msra.mxu0 0.0
    %7822 = vmatprep.subr.mxu0 0.0
    %7823 = vmatpush2.msra.mxu0 0.0
    %7824 = vmatprep.subr.mxu0 0.0
    %7825 = vmatpush2.msra.mxu0 0.0
    %7826 = vmatprep.subr.mxu0 0.0
    %7827 = vmatpush2.msra.mxu0 0.0
    %7828 = vmatprep.subr.mxu0 0.0
    %7829 = vmatpush2.msra.mxu0 0.0
    %7830 = vmatprep.subr.mxu0 0.0
    %7831 = vmatpush2.msra.mxu0 0.0
    %7832 = vmatprep.subr.mxu0 0.0
    %7833 = vmatpush2.msra.mxu0 0.0
    %7834 = vmatprep.mubr.f32.mxu0 0.0
    %7835 = vmatmul.mubr.f32.gmra.mxu0 %v7768
    %v7836 = vpop.f32.mrf.mxu0
    %v7837 = vadd.f32 0.0, %v7836
    %v7838 = vpop.f32.mrf.mxu0
    %7839 = vdwg.mxu0
    %v7841 = vsel %vm473, %v7837, 0
    %7843 = vmatprep.subr.mxu0 0.0
    %7844 = vmatpush1.msra.mxu0 0.0
    %7845 = vmatprep.subr.mxu0 0.0
    %7846 = vmatpush1.msra.mxu0 0.0
    %7847 = vmatprep.subr.mxu0 0.0
    %7848 = vmatpush1.msra.mxu0 0.0
    %7849 = vmatprep.subr.mxu0 0.0
    %7850 = vmatpush1.msra.mxu0 0.0
    %7851 = vmatprep.subr.mxu0 0.0
    %7852 = vmatpush1.msra.mxu0 0.0
    %7853 = vmatprep.subr.mxu0 0.0
    %7854 = vmatpush1.msra.mxu0 0.0
    %7855 = vmatprep.subr.mxu0 0.0
    %7856 = vmatpush1.msra.mxu0 0.0
    %7857 = vmatprep.subr.mxu0 0.0
    %7858 = vmatpush1.msra.mxu0 0.0
    %7859 = vmatprep.subr.mxu0 0.0
    %7860 = vmatpush1.msra.mxu0 0.0
    %7861 = vmatprep.subr.mxu0 0.0
    %7862 = vmatpush1.msra.mxu0 0.0
    %7863 = vmatprep.subr.mxu0 0.0
    %7864 = vmatpush1.msra.mxu0 0.0
    %7865 = vmatprep.subr.mxu0 0.0
    %7866 = vmatpush1.msra.mxu0 0.0
    %7867 = vmatprep.subr.mxu0 0.0
    %7868 = vmatpush1.msra.mxu0 0.0
    %7869 = vmatprep.subr.mxu0 0.0
    %7870 = vmatpush1.msra.mxu0 0.0
    %7871 = vmatprep.subr.mxu0 0.0
    %7872 = vmatpush1.msra.mxu0 0.0
    %7873 = vmatprep.subr.mxu0 0.0
    %7874 = vmatpush1.msra.mxu0 %v5298
    %7875 = vmatprep.subr.mxu0 0.0
    %7876 = vmatpush2.msra.mxu0 0.0
    %7877 = vmatprep.subr.mxu0 0.0
    %7878 = vmatpush2.msra.mxu0 0.0
    %7879 = vmatprep.subr.mxu0 0.0
    %7880 = vmatpush2.msra.mxu0 0.0
    %7881 = vmatprep.subr.mxu0 0.0
    %7882 = vmatpush2.msra.mxu0 0.0
    %7883 = vmatprep.subr.mxu0 0.0
    %7884 = vmatpush2.msra.mxu0 0.0
    %7885 = vmatprep.subr.mxu0 0.0
    %7886 = vmatpush2.msra.mxu0 0.0
    %7887 = vmatprep.subr.mxu0 0.0
    %7888 = vmatpush2.msra.mxu0 0.0
    %7889 = vmatprep.subr.mxu0 0.0
    %7890 = vmatpush2.msra.mxu0 0.0
    %7891 = vmatprep.subr.mxu0 0.0
    %7892 = vmatpush2.msra.mxu0 0.0
    %7893 = vmatprep.subr.mxu0 0.0
    %7894 = vmatpush2.msra.mxu0 0.0
    %7895 = vmatprep.subr.mxu0 0.0
    %7896 = vmatpush2.msra.mxu0 0.0
    %7897 = vmatprep.subr.mxu0 0.0
    %7898 = vmatpush2.msra.mxu0 0.0
    %7899 = vmatprep.subr.mxu0 0.0
    %7900 = vmatpush2.msra.mxu0 0.0
    %7901 = vmatprep.subr.mxu0 0.0
    %7902 = vmatpush2.msra.mxu0 0.0
    %7903 = vmatprep.subr.mxu0 0.0
    %7904 = vmatpush2.msra.mxu0 0.0
    %7905 = vmatprep.subr.mxu0 0.0
    %7906 = vmatpush2.msra.mxu0 0.0
    %7907 = vmatprep.mubr.f32.mxu0 0.0
    %7908 = vmatmul.mubr.f32.gmra.mxu0 %v7841
    %v7909 = vpop.f32.mrf.mxu0
    %v7910 = vadd.f32 0.0, %v7909
    %v7911 = vpop.f32.mrf.mxu0
    %7912 = vdwg.mxu0
    %v7913 = vadd.f32 %v7625, %v7910
    %v7914 = vadd.f32 %v6681, %v7913
    %v7915 = vsel %vm162, %v7914, 0.0
    %7916 = vadd.xlane.f32.xlu0 %v7915
    %v7917 = vpop.xlane.xlu0 %7916
    %v7918 = vmul.f32 %v7917, %v2491
    %v7919 = vmul.f32 %v7914, %v7914
    %v7920 = vsel %vm162, %v7919, 0.0
    %7921 = vadd.xlane.f32.xlu0 %v7920
    %v7922 = vpop.xlane.xlu0 %7921
    %v7923 = vmul.f32 %v7922, %v2491
    %v7924 = vmul.f32 %v7918, %v7918
    %v7925 = vsub.f32 %v7923, %v7924
    %v7926 = vsub.f32 %v7914, %v7918
    %v7927 = vadd.f32 %v7925, 1e-05
    %v7928 = vrsqrt.pop %v7927
    %v7929 = vmul.f32 %v7926, %v7928
    %v7930 = vlaneseq
    %v7931 = vshrl.u32 %v7930, 7
    %v7932 = vsub.s32 0, %v7931
    %v7933 = vrot.slane %v40, %v7932
    %v7934 = vmul.f32 %v7929, %v7933
    %v7935 = vlaneseq
    %v7936 = vshrl.u32 %v7935, 7
    %v7937 = vsub.s32 1, %v7936
    %v7938 = vrot.slane %v40, %v7937
    %v7939 = vadd.f32 %v7934, %v7938
    %v7940 = vlaneseq
    %v7941 = vshrl.u32 %v7940, 7
    %v7942 = vsub.s32 0, %v7941
    %v7943 = vrot.slane %v5305, %v7942
    %v7945 = vsel %vm162, %v7939, 0
    %7947 = vmatprep.subr.mxu0 0.0
    %7948 = vmatpush1.msra.mxu0 0.0
    %7949 = vmatprep.subr.mxu0 0.0
    %7950 = vmatpush1.msra.mxu0 0.0
    %7951 = vmatprep.subr.mxu0 0.0
    %7952 = vmatpush1.msra.mxu0 0.0
    %7953 = vmatprep.subr.mxu0 0.0
    %7954 = vmatpush1.msra.mxu0 0.0
    %7955 = vmatprep.subr.mxu0 0.0
    %7956 = vmatpush1.msra.mxu0 0.0
    %7957 = vmatprep.subr.mxu0 0.0
    %7958 = vmatpush1.msra.mxu0 0.0
    %7959 = vmatprep.subr.mxu0 0.0
    %7960 = vmatpush1.msra.mxu0 0.0
    %7961 = vmatprep.subr.mxu0 0.0
    %7962 = vmatpush1.msra.mxu0 0.0
    %7963 = vmatprep.subr.mxu0 0.0
    %7964 = vmatpush1.msra.mxu0 0.0
    %7965 = vmatprep.subr.mxu0 0.0
    %7966 = vmatpush1.msra.mxu0 0.0
    %7967 = vmatprep.subr.mxu0 0.0
    %7968 = vmatpush1.msra.mxu0 0.0
    %7969 = vmatprep.subr.mxu0 0.0
    %7970 = vmatpush1.msra.mxu0 0.0
    %7971 = vmatprep.subr.mxu0 0.0
    %7972 = vmatpush1.msra.mxu0 %v5304
    %7973 = vmatprep.subr.mxu0 0.0
    %7974 = vmatpush1.msra.mxu0 %v5303
    %7975 = vmatprep.subr.mxu0 0.0
    %7976 = vmatpush1.msra.mxu0 %v5302
    %7977 = vmatprep.subr.mxu0 0.0
    %7978 = vmatpush1.msra.mxu0 %v5301
    %7979 = vmatprep.subr.mxu0 0.0
    %7980 = vmatpush2.msra.mxu0 0.0
    %7981 = vmatprep.subr.mxu0 0.0
    %7982 = vmatpush2.msra.mxu0 0.0
    %7983 = vmatprep.subr.mxu0 0.0
    %7984 = vmatpush2.msra.mxu0 0.0
    %7985 = vmatprep.subr.mxu0 0.0
    %7986 = vmatpush2.msra.mxu0 0.0
    %7987 = vmatprep.subr.mxu0 0.0
    %7988 = vmatpush2.msra.mxu0 0.0
    %7989 = vmatprep.subr.mxu0 0.0
    %7990 = vmatpush2.msra.mxu0 0.0
    %7991 = vmatprep.subr.mxu0 0.0
    %7992 = vmatpush2.msra.mxu0 0.0
    %7993 = vmatprep.subr.mxu0 0.0
    %7994 = vmatpush2.msra.mxu0 0.0
    %7995 = vmatprep.subr.mxu0 0.0
    %7996 = vmatpush2.msra.mxu0 0.0
    %7997 = vmatprep.subr.mxu0 0.0
    %7998 = vmatpush2.msra.mxu0 0.0
    %7999 = vmatprep.subr.mxu0 0.0
    %8000 = vmatpush2.msra.mxu0 0.0
    %8001 = vmatprep.subr.mxu0 0.0
    %8002 = vmatpush2.msra.mxu0 0.0
    %8003 = vmatprep.subr.mxu0 0.0
    %8004 = vmatpush2.msra.mxu0 0.0
    %8005 = vmatprep.subr.mxu0 0.0
    %8006 = vmatpush2.msra.mxu0 0.0
    %8007 = vmatprep.subr.mxu0 0.0
    %8008 = vmatpush2.msra.mxu0 0.0
    %8009 = vmatprep.subr.mxu0 0.0
    %8010 = vmatpush2.msra.mxu0 0.0
    %8011 = vmatprep.mubr.f32.mxu0 0.0
    %8012 = vmatmul.mubr.f32.gmra.mxu0 %v7945
    %v8013 = vpop.f32.mrf.mxu0
    %v8014 = vadd.f32 %v7943, %v8013
    %v8015 = vpop.f32.mrf.mxu0
    %8016 = vdwg.mxu0
    %v8017 = vmax.f32 %v8014, 0.0
    %v8018 = vlaneseq
    %v8019 = vshrl.u32 %v8018, 7
    %v8020 = vsub.s32 0, %v8019
    %v8021 = vrot.slane %v5314, %v8020
    %v8023 = vsel %vm2868, %v8017, 0
    %8025 = vmatprep.subr.mxu0 0.0
    %8026 = vmatpush1.msra.mxu0 0.0
    %8027 = vmatprep.subr.mxu0 0.0
    %8028 = vmatpush1.msra.mxu0 0.0
    %8029 = vmatprep.subr.mxu0 0.0
    %8030 = vmatpush1.msra.mxu0 0.0
    %8031 = vmatprep.subr.mxu0 0.0
    %8032 = vmatpush1.msra.mxu0 0.0
    %8033 = vmatprep.subr.mxu0 0.0
    %8034 = vmatpush1.msra.mxu0 0.0
    %8035 = vmatprep.subr.mxu0 0.0
    %8036 = vmatpush1.msra.mxu0 0.0
    %8037 = vmatprep.subr.mxu0 0.0
    %8038 = vmatpush1.msra.mxu0 0.0
    %8039 = vmatprep.subr.mxu0 0.0
    %8040 = vmatpush1.msra.mxu0 0.0
    %8041 = vmatprep.subr.mxu0 0.0
    %8042 = vmatpush1.msra.mxu0 %v5313
    %8043 = vmatprep.subr.mxu0 0.0
    %8044 = vmatpush1.msra.mxu0 %v5312
    %8045 = vmatprep.subr.mxu0 0.0
    %8046 = vmatpush1.msra.mxu0 %v5311
    %8047 = vmatprep.subr.mxu0 0.0
    %8048 = vmatpush1.msra.mxu0 %v5310
    %8049 = vmatprep.subr.mxu0 0.0
    %8050 = vmatpush1.msra.mxu0 %v5309
    %8051 = vmatprep.subr.mxu0 0.0
    %8052 = vmatpush1.msra.mxu0 %v5308
    %8053 = vmatprep.subr.mxu0 0.0
    %8054 = vmatpush1.msra.mxu0 %v5307
    %8055 = vmatprep.subr.mxu0 0.0
    %8056 = vmatpush1.msra.mxu0 %v5306
    %8057 = vmatprep.subr.mxu0 0.0
    %8058 = vmatpush2.msra.mxu0 0.0
    %8059 = vmatprep.subr.mxu0 0.0
    %8060 = vmatpush2.msra.mxu0 0.0
    %8061 = vmatprep.subr.mxu0 0.0
    %8062 = vmatpush2.msra.mxu0 0.0
    %8063 = vmatprep.subr.mxu0 0.0
    %8064 = vmatpush2.msra.mxu0 0.0
    %8065 = vmatprep.subr.mxu0 0.0
    %8066 = vmatpush2.msra.mxu0 0.0
    %8067 = vmatprep.subr.mxu0 0.0
    %8068 = vmatpush2.msra.mxu0 0.0
    %8069 = vmatprep.subr.mxu0 0.0
    %8070 = vmatpush2.msra.mxu0 0.0
    %8071 = vmatprep.subr.mxu0 0.0
    %8072 = vmatpush2.msra.mxu0 0.0
    %8073 = vmatprep.subr.mxu0 0.0
    %8074 = vmatpush2.msra.mxu0 0.0
    %8075 = vmatprep.subr.mxu0 0.0
    %8076 = vmatpush2.msra.mxu0 0.0
    %8077 = vmatprep.subr.mxu0 0.0
    %8078 = vmatpush2.msra.mxu0 0.0
    %8079 = vmatprep.subr.mxu0 0.0
    %8080 = vmatpush2.msra.mxu0 0.0
    %8081 = vmatprep.subr.mxu0 0.0
    %8082 = vmatpush2.msra.mxu0 0.0
    %8083 = vmatprep.subr.mxu0 0.0
    %8084 = vmatpush2.msra.mxu0 0.0
    %8085 = vmatprep.subr.mxu0 0.0
    %8086 = vmatpush2.msra.mxu0 0.0
    %8087 = vmatprep.subr.mxu0 0.0
    %8088 = vmatpush2.msra.mxu0 0.0
    %8089 = vmatprep.mubr.f32.mxu0 0.0
    %8090 = vmatmul.mubr.f32.gmra.mxu0 %v8023
    %v8091 = vpop.f32.mrf.mxu0
    %v8092 = vadd.f32 %v8021, %v8091
    %v8093 = vpop.f32.mrf.mxu0
    %8094 = vdwg.mxu0
    %v8095 = vadd.f32 %v7939, %v8092
    %v8096 = vsel %vm162, %v8095, 0.0
    %8097 = vadd.xlane.f32.xlu0 %v8096
    %v8098 = vpop.xlane.xlu0 %8097
    %v8099 = vmul.f32 %v8098, %v2491
    %v8100 = vmul.f32 %v8095, %v8095
    %v8101 = vsel %vm162, %v8100, 0.0
    %8102 = vadd.xlane.f32.xlu0 %v8101
    %v8103 = vpop.xlane.xlu0 %8102
    %v8104 = vmul.f32 %v8103, %v2491
    %v8105 = vmul.f32 %v8099, %v8099
    %v8106 = vsub.f32 %v8104, %v8105
    %v8107 = vsub.f32 %v8095, %v8099
    %v8108 = vadd.f32 %v8106, 1e-05
    %v8109 = vrsqrt.pop %v8108
    %v8110 = vmul.f32 %v8107, %v8109
    %v8111 = vlaneseq
    %v8112 = vshrl.u32 %v8111, 7
    %v8113 = vsub.s32 2, %v8112
    %v8114 = vrot.slane %v40, %v8113
    %v8115 = vmul.f32 %v8110, %v8114
    %v8116 = vlaneseq
    %v8117 = vshrl.u32 %v8116, 7
    %v8118 = vsub.s32 3, %v8117
    %v8119 = vrot.slane %v40, %v8118
    %v8120 = vadd.f32 %v8115, %v8119
    %v8121 = vsel %vm162, %v8120, 0.0
    %8122 = vadd.xlane.f32.xlu0 %v8121
    %v8123 = vpop.xlane.xlu0 %8122
    %v8124 = vmul.f32 %v8123, %v2491
    %v8125 = vmul.f32 %v8120, %v8120
    %v8126 = vsel %vm162, %v8125, 0.0
    %8127 = vadd.xlane.f32.xlu0 %v8126
    %v8128 = vpop.xlane.xlu0 %8127
    %v8129 = vmul.f32 %v8128, %v2491
    %v8130 = vmul.f32 %v8124, %v8124
    %v8131 = vsub.f32 %v8129, %v8130
    %v8132 = vsub.f32 %v8120, %v8124
    %v8133 = vadd.f32 %v8131, 1e-05
    %v8134 = vrsqrt.pop %v8133
    %v8135 = vmul.f32 %v8132, %v8134
    %v8136 = vlaneseq
    %v8137 = vshrl.u32 %v8136, 7
    %v8138 = vsub.s32 4, %v8137
    %v8139 = vrot.slane %v40, %v8138
    %v8140 = vmul.f32 %v8135, %v8139
    %v8141 = vlaneseq
    %v8142 = vshrl.u32 %v8141, 7
    %v8143 = vsub.s32 5, %v8142
    %v8144 = vrot.slane %v40, %v8143
    %v8145 = vadd.f32 %v8140, %v8144
    %8146 = vst.msk [vmem:[#allocation2] sm:$0xff] %vm162, %v8145
    // Predicated region
    $region46: #{tpu_custom_call.1} parent=1 // pred_check
      _
    $region47: #{tpu_custom_call.1} parent=1 // pred_check_branch
      %8148 = sbr.rel (0) target = $region49
    $region48: #{tpu_custom_call.1} parent=1 // pred_region
      %s8150 = ssub.s32 128, 128
      %8151 = vsyncadd [#allocation3], %s8150
      %s8153 = sshll.u32 [#allocation2], 4
      %s8154 = int_to_ptr.vmem [resolvable:$true] %s8153
      %8156 = dma.vmem_to_hbm [thread:$0]  %s8154, 128, %s11, [#allocation3]
    $region49: #{tpu_custom_call.1} parent=1 // pred_fallthru
      _
    // Predicated region
    $region50: #{tpu_custom_call.1} parent=1 // pred_check
      _
    $region51: #{tpu_custom_call.1} parent=1 // pred_check_branch
      %8158 = sbr.rel (0) target = $region53
    $region52: #{tpu_custom_call.1} parent=1 // pred_region
      %8159 = dma.done [#allocation3], 128
    $region53: #{tpu_custom_call.1} parent=1 // pred_fallthru
      _
    %8160 = vsyncpa [#allocation3], 1

</llo_original>
